<compile_context>
chip_gen: v7x
topology: tpu7x:2x2x1
jax: 0.10.0
libtpu: 0.0.40
codegen_flags: <defaults>
</compile_context>

<pallas_src>
import math

import jax
import jax.numpy as jnp
from jax.experimental import pallas as pl
from jax.experimental.pallas import tpu as pltpu

INPUT_SIZE = 50      # GRU input_size (fixed in the PyTorch module)
HIDDEN = 20          # GRU hidden_size == encoder.last_hidden_dim
NUM_LAYERS = 3       # GRU num_layers
N_EXPONENT = 7       # n_exponent
MEAN_HIDDEN = 64     # hidden width of mlp_mean
SEQ = 8              # example seq_len
BATCH = 2            # example batch


def _sigmoid(x):
    return 1.0 / (1.0 + jnp.exp(-x))


def backbone_kernel(x_ref,
                    wi0, wh0, b0,
                    wi1, wh1, b1,
                    wi2, wh2, b2,
                    w_exp, b_exp, w_m1, b_m1, w_m2, b_m2,
                    out_ref,
                    buf0, buf1, enc):
    H = HIDDEN
    S = SEQ
    B = BATCH

    def gru_layer(x_block, wi_ref, wh_ref, b_ref, write_fn):
        # Batched input->hidden projection for ALL timesteps: one matmul per
        # gate per layer (hoisted out of the serial recurrence).
        gi_r = jnp.dot(x_block, wi_ref[0],
                       preferred_element_type=jnp.float32) + b_ref[0:1, :]
        gi_z = jnp.dot(x_block, wi_ref[1],
                       preferred_element_type=jnp.float32) + b_ref[1:2, :]
        gi_n = jnp.dot(x_block, wi_ref[2],
                       preferred_element_type=jnp.float32) + b_ref[2:3, :]
        wh_r = wh_ref[0]
        wh_z = wh_ref[1]
        wh_n = wh_ref[2]
        bh_n = b_ref[3:4, :]

        h = jnp.zeros((B, H), jnp.float32)
        for t in range(S):
            lo = t * B
            hi = lo + B
            # PyTorch GRU gate order: r, z, n  (b_ih+b_hh folded for r, z).
            r = _sigmoid(gi_r[lo:hi, :] +
                         jnp.dot(h, wh_r, preferred_element_type=jnp.float32))
            z = _sigmoid(gi_z[lo:hi, :] +
                         jnp.dot(h, wh_z, preferred_element_type=jnp.float32))
            n = jnp.tanh(gi_n[lo:hi, :] + r *
                         (jnp.dot(h, wh_n,
                                  preferred_element_type=jnp.float32) + bh_n))
            h = (1.0 - z) * n + z * h
            write_fn(t, h)

    def write_buf0(t, h):
        buf0[t * B:(t + 1) * B, :] = h

    def write_buf1(t, h):
        buf1[t * B:(t + 1) * B, :] = h

    def write_enc(t, h):
        # encoded = gru_output[:, -1, :]  -> batch index B-1 at every t.
        enc[t:t + 1, :] = h[B - 1:B, :]

    gru_layer(x_ref[...], wi0, wh0, b0, write_buf0)
    gru_layer(buf0[...], wi1, wh1, b1, write_buf1)
    gru_layer(buf1[...], wi2, wh2, b2, write_enc)

    encoded = enc[...]                     # (S, H)

    # --- exponent head ---
    exp_pred = jnp.dot(encoded, w_exp[...],
                       preferred_element_type=jnp.float32) + b_exp[...]
    m = jnp.max(exp_pred, axis=1, keepdims=True)
    shifted = exp_pred - m
    logprobs = shifted - jnp.log(jnp.sum(jnp.exp(shifted), axis=1,
                                         keepdims=True))

    # --- mean head: Linear -> Sigmoid -> Linear -> Sigmoid -> ScaleLayer ---
    h1 = _sigmoid(jnp.dot(encoded, w_m1[...],
                          preferred_element_type=jnp.float32) + b_m1[...])
    mean = _sigmoid(jnp.dot(h1, w_m2[...],
                            preferred_element_type=jnp.float32) + b_m2[...])
    mean = mean * 0.9 + 0.1

    # Single fused, lane-contiguous output: [mean | exp_pred | logprobs].
    out_ref[...] = jnp.concatenate([mean, exp_pred, logprobs], axis=1)


def init_params(key):
    """PyTorch-layout parameters (as nn.GRU / nn.Linear store them)."""
    def uniform(k, shape, bound):
        return jax.random.uniform(k, shape, jnp.float32, -bound, bound)

    keys = iter(jax.random.split(key, 32))
    params = {}
    k_gru = 1.0 / math.sqrt(HIDDEN)
    gru = []
    in_dim = INPUT_SIZE
    for _ in range(NUM_LAYERS):
        gru.append(uniform(next(keys), (3 * HIDDEN, in_dim), k_gru))   # w_ih
        gru.append(uniform(next(keys), (3 * HIDDEN, HIDDEN), k_gru))   # w_hh
        gru.append(uniform(next(keys), (1, 3 * HIDDEN), k_gru))        # b_ih
        gru.append(uniform(next(keys), (1, 3 * HIDDEN), k_gru))        # b_hh
        in_dim = HIDDEN
    params['gru'] = gru

    k1 = 1.0 / math.sqrt(HIDDEN)
    params['w_exp'] = uniform(next(keys), (N_EXPONENT, HIDDEN), k1)
    params['b_exp'] = uniform(next(keys), (1, N_EXPONENT), k1)
    params['w_m1'] = uniform(next(keys), (MEAN_HIDDEN, HIDDEN), k1)
    params['b_m1'] = uniform(next(keys), (1, MEAN_HIDDEN), k1)
    k2 = 1.0 / math.sqrt(MEAN_HIDDEN)
    params['w_m2'] = uniform(next(keys), (N_EXPONENT, MEAN_HIDDEN), k2)
    params['b_m2'] = uniform(next(keys), (1, N_EXPONENT), k2)
    return params


def _prepare_kernel_params(params):
    """Wrapper-side layout plumbing: transpose / gate-split / fold biases."""
    H = HIDDEN
    out = []
    for l in range(NUM_LAYERS):
        w_ih, w_hh, b_ih, b_hh = params['gru'][4 * l:4 * l + 4]
        # (3H, in) PyTorch layout -> per-gate (in, H), stacked on leading axis.
        wi = jnp.stack([w_ih[0:H].T, w_ih[H:2 * H].T, w_ih[2 * H:3 * H].T], 0)
        wh = jnp.stack([w_hh[0:H].T, w_hh[H:2 * H].T, w_hh[2 * H:3 * H].T], 0)
        bi = b_ih.reshape(3, H)
        bh = b_hh.reshape(3, H)
        b = jnp.stack([bi[0] + bh[0],      # r: b_ir + b_hr folded
                       bi[1] + bh[1],      # z: b_iz + b_hz folded
                       bi[2],              # n: input-side bias
                       bh[2]], axis=0)     # n: hidden-side bias (inside r*())
        out += [wi, wh, b]
    out += [params['w_exp'].T, params['b_exp'],
            params['w_m1'].T, params['b_m1'],
            params['w_m2'].T, params['b_m2']]
    return out


def backbone_forward(x, params):
    S, B, _ = x.shape
    assert (S, B) == (SEQ, BATCH)
    x_flat = x.reshape(S * B, INPUT_SIZE)           # row t*B + b == x[t, b]
    inputs = [x_flat] + _prepare_kernel_params(params)

    def full_spec(a):
        # Whole array as one block (trivial grid), resident in VMEM.
        return pl.BlockSpec(a.shape, lambda i, n=a.ndim: (0,) * n)

    fused = pl.pallas_call(
        backbone_kernel,
        out_shape=jax.ShapeDtypeStruct((S, 3 * N_EXPONENT), jnp.float32),
        grid=(1,),
        in_specs=[full_spec(a) for a in inputs],
        out_specs=pl.BlockSpec((S, 3 * N_EXPONENT), lambda i: (0, 0)),
        scratch_shapes=[
            pltpu.VMEM((S * B, HIDDEN), jnp.float32),   # layer-0 outputs
            pltpu.VMEM((S * B, HIDDEN), jnp.float32),   # layer-1 outputs
            pltpu.VMEM((S, HIDDEN), jnp.float32),       # encoded rows
        ],
        compiler_params=pltpu.CompilerParams(
            dimension_semantics=("arbitrary",)),
    )(*inputs)

    mean = fused[:, 0:N_EXPONENT]
    exp_pred = fused[:, N_EXPONENT:2 * N_EXPONENT]
    logprobs = fused[:, 2 * N_EXPONENT:3 * N_EXPONENT]
    # do_logvar == False path: constant, produced outside the kernel.
    logvar = jnp.full((S, N_EXPONENT), -3.0, jnp.float32)
    return mean, logvar, exp_pred, logprobs


def backbone_ref(x, params):
    """Pure-JAX reference mirroring the PyTorch forward (for validation)."""
    def gru_layer(inp, wi, wh, bi, bh):
        S, B, _ = inp.shape
        h = jnp.zeros((B, HIDDEN), jnp.float32)
        outs = []
        for t in range(S):
            gi = inp[t] @ wi.T + bi
            gh = h @ wh.T + bh
            r = jax.nn.sigmoid(gi[:, :HIDDEN] + gh[:, :HIDDEN])
            z = jax.nn.sigmoid(gi[:, HIDDEN:2 * HIDDEN] + gh[:, HIDDEN:2 * HIDDEN])
            n = jnp.tanh(gi[:, 2 * HIDDEN:] + r * gh[:, 2 * HIDDEN:])
            h = (1.0 - z) * n + z * h
            outs.append(h)
        return jnp.stack(outs, 0)

    y = x
    g = params['gru']
    for l in range(NUM_LAYERS):
        y = gru_layer(y, *g[4 * l:4 * l + 4])
    encoded = y[:, -1, :]
    exp_pred = encoded @ params['w_exp'].T + params['b_exp']
    logprobs = jax.nn.log_softmax(exp_pred, axis=1)
    h1 = jax.nn.sigmoid(encoded @ params['w_m1'].T + params['b_m1'])
    mean = jax.nn.sigmoid(h1 @ params['w_m2'].T + params['b_m2']) * 0.9 + 0.1
    logvar = jnp.full_like(exp_pred, -3.0)
    return mean, logvar, exp_pred, logprobs


if __name__ == "__main__":
    key = jax.random.PRNGKey(0)
    kx, kp = jax.random.split(key)
    x = jax.random.normal(kx, (SEQ, BATCH, INPUT_SIZE), dtype=jnp.float32)
    params = init_params(kp)

    outs = backbone_forward(x, params)
    outs = jax.block_until_ready(outs)

    refs = backbone_ref(x, params)
    for o, r in zip(outs, refs):
        assert o.shape == r.shape and o.dtype == r.dtype
        assert jnp.max(jnp.abs(o - r)) < 1e-4

    print("KERNEL_OK")
</pallas_src>

<mosaic_0001>
module attributes {stable_mosaic.version = 11 : i64} {
  func.func @backbone_kernel(%arg0: i32, %arg1: memref<16x50xf32, #tpu.memory_space<vmem>>, %arg2: memref<3x50x20xf32, #tpu.memory_space<vmem>>, %arg3: memref<3x20x20xf32, #tpu.memory_space<vmem>>, %arg4: memref<4x20xf32, #tpu.memory_space<vmem>>, %arg5: memref<3x20x20xf32, #tpu.memory_space<vmem>>, %arg6: memref<3x20x20xf32, #tpu.memory_space<vmem>>, %arg7: memref<4x20xf32, #tpu.memory_space<vmem>>, %arg8: memref<3x20x20xf32, #tpu.memory_space<vmem>>, %arg9: memref<3x20x20xf32, #tpu.memory_space<vmem>>, %arg10: memref<4x20xf32, #tpu.memory_space<vmem>>, %arg11: memref<20x7xf32, #tpu.memory_space<vmem>>, %arg12: memref<1x7xf32, #tpu.memory_space<vmem>>, %arg13: memref<20x64xf32, #tpu.memory_space<vmem>>, %arg14: memref<1x64xf32, #tpu.memory_space<vmem>>, %arg15: memref<64x7xf32, #tpu.memory_space<vmem>>, %arg16: memref<1x7xf32, #tpu.memory_space<vmem>>, %arg17: memref<8x21xf32, #tpu.memory_space<vmem>>, %arg18: memref<16x20xf32, #tpu.memory_space<vmem>>, %arg19: memref<16x20xf32, #tpu.memory_space<vmem>>, %arg20: memref<8x20xf32, #tpu.memory_space<vmem>>) attributes {dimension_semantics = [#tpu.dimension_semantics<arbitrary>], iteration_bounds = array<i64: 1>, scalar_prefetch = 0 : i64, scratch_operands = 3 : i64, tpu.core_type = #tpu.core_type<tc>, window_params = [{pipeline_mode = #tpu.pipeline_mode<synchronous>, transform_indices = @transform_0, window_bounds = array<i64: 16, 50>}, {pipeline_mode = #tpu.pipeline_mode<synchronous>, transform_indices = @transform_1, window_bounds = array<i64: 3, 50, 20>}, {pipeline_mode = #tpu.pipeline_mode<synchronous>, transform_indices = @transform_2, window_bounds = array<i64: 3, 20, 20>}, {pipeline_mode = #tpu.pipeline_mode<synchronous>, transform_indices = @transform_3, window_bounds = array<i64: 4, 20>}, {pipeline_mode = #tpu.pipeline_mode<synchronous>, transform_indices = @transform_4, window_bounds = array<i64: 3, 20, 20>}, {pipeline_mode = #tpu.pipeline_mode<synchronous>, transform_indices = @transform_5, window_bounds = array<i64: 3, 20, 20>}, {pipeline_mode = #tpu.pipeline_mode<synchronous>, transform_indices = @transform_6, window_bounds = array<i64: 4, 20>}, {pipeline_mode = #tpu.pipeline_mode<synchronous>, transform_indices = @transform_7, window_bounds = array<i64: 3, 20, 20>}, {pipeline_mode = #tpu.pipeline_mode<synchronous>, transform_indices = @transform_8, window_bounds = array<i64: 3, 20, 20>}, {pipeline_mode = #tpu.pipeline_mode<synchronous>, transform_indices = @transform_9, window_bounds = array<i64: 4, 20>}, {pipeline_mode = #tpu.pipeline_mode<synchronous>, transform_indices = @transform_10, window_bounds = array<i64: 20, 7>}, {pipeline_mode = #tpu.pipeline_mode<synchronous>, transform_indices = @transform_11, window_bounds = array<i64: 1, 7>}, {pipeline_mode = #tpu.pipeline_mode<synchronous>, transform_indices = @transform_12, window_bounds = array<i64: 20, 64>}, {pipeline_mode = #tpu.pipeline_mode<synchronous>, transform_indices = @transform_13, window_bounds = array<i64: 1, 64>}, {pipeline_mode = #tpu.pipeline_mode<synchronous>, transform_indices = @transform_14, window_bounds = array<i64: 64, 7>}, {pipeline_mode = #tpu.pipeline_mode<synchronous>, transform_indices = @transform_15, window_bounds = array<i64: 1, 7>}, {pipeline_mode = #tpu.pipeline_mode<synchronous>, transform_indices = @transform_16, window_bounds = array<i64: 8, 21>}]} {
    %c0 = arith.constant 0 : index
    %c0_0 = arith.constant 0 : index
    %0 = vector.load %arg1[%c0, %c0_0] : memref<16x50xf32, #tpu.memory_space<vmem>>, vector<16x50xf32>
    %c0_1 = arith.constant 0 : index
    %c0_2 = arith.constant 0 : index
    %c0_3 = arith.constant 0 : index
    %1 = vector.load %arg2[%c0_1, %c0_2, %c0_3] : memref<3x50x20xf32, #tpu.memory_space<vmem>>, vector<1x50x20xf32>
    %2 = vector.shape_cast %1 : vector<1x50x20xf32> to vector<50x20xf32>
    %cst = arith.constant dense<0.000000e+00> : vector<16x20xf32>
    %3 = tpu.matmul %0, %2, %cst {dimension_numbers = #tpu.dot_dimension_numbers<[1], [0], [0], [1], [0, 0, 1, 1], [], []>} : vector<16x50xf32>, vector<50x20xf32>, vector<16x20xf32> -> vector<16x20xf32>
    %c0_4 = arith.constant 0 : index
    %c0_5 = arith.constant 0 : index
    %4 = vector.load %arg4[%c0_4, %c0_5] : memref<4x20xf32, #tpu.memory_space<vmem>>, vector<1x20xf32>
    %5 = vector.broadcast %4 : vector<1x20xf32> to vector<16x20xf32>
    %6 = arith.addf %3, %5 : vector<16x20xf32>
    %c1 = arith.constant 1 : index
    %c0_6 = arith.constant 0 : index
    %c0_7 = arith.constant 0 : index
    %7 = vector.load %arg2[%c1, %c0_6, %c0_7] : memref<3x50x20xf32, #tpu.memory_space<vmem>>, vector<1x50x20xf32>
    %8 = vector.shape_cast %7 : vector<1x50x20xf32> to vector<50x20xf32>
    %cst_8 = arith.constant dense<0.000000e+00> : vector<16x20xf32>
    %9 = tpu.matmul %0, %8, %cst_8 {dimension_numbers = #tpu.dot_dimension_numbers<[1], [0], [0], [1], [0, 0, 1, 1], [], []>} : vector<16x50xf32>, vector<50x20xf32>, vector<16x20xf32> -> vector<16x20xf32>
    %c1_9 = arith.constant 1 : index
    %c0_10 = arith.constant 0 : index
    %10 = vector.load %arg4[%c1_9, %c0_10] : memref<4x20xf32, #tpu.memory_space<vmem>>, vector<1x20xf32>
    %11 = vector.broadcast %10 : vector<1x20xf32> to vector<16x20xf32>
    %12 = arith.addf %9, %11 : vector<16x20xf32>
    %c2 = arith.constant 2 : index
    %c0_11 = arith.constant 0 : index
    %c0_12 = arith.constant 0 : index
    %13 = vector.load %arg2[%c2, %c0_11, %c0_12] : memref<3x50x20xf32, #tpu.memory_space<vmem>>, vector<1x50x20xf32>
    %14 = vector.shape_cast %13 : vector<1x50x20xf32> to vector<50x20xf32>
    %cst_13 = arith.constant dense<0.000000e+00> : vector<16x20xf32>
    %15 = tpu.matmul %0, %14, %cst_13 {dimension_numbers = #tpu.dot_dimension_numbers<[1], [0], [0], [1], [0, 0, 1, 1], [], []>} : vector<16x50xf32>, vector<50x20xf32>, vector<16x20xf32> -> vector<16x20xf32>
    %c2_14 = arith.constant 2 : index
    %c0_15 = arith.constant 0 : index
    %16 = vector.load %arg4[%c2_14, %c0_15] : memref<4x20xf32, #tpu.memory_space<vmem>>, vector<1x20xf32>
    %17 = vector.broadcast %16 : vector<1x20xf32> to vector<16x20xf32>
    %18 = arith.addf %15, %17 : vector<16x20xf32>
    %c0_16 = arith.constant 0 : index
    %c0_17 = arith.constant 0 : index
    %c0_18 = arith.constant 0 : index
    %19 = vector.load %arg3[%c0_16, %c0_17, %c0_18] : memref<3x20x20xf32, #tpu.memory_space<vmem>>, vector<1x20x20xf32>
    %20 = vector.shape_cast %19 : vector<1x20x20xf32> to vector<20x20xf32>
    %c1_19 = arith.constant 1 : index
    %c0_20 = arith.constant 0 : index
    %c0_21 = arith.constant 0 : index
    %21 = vector.load %arg3[%c1_19, %c0_20, %c0_21] : memref<3x20x20xf32, #tpu.memory_space<vmem>>, vector<1x20x20xf32>
    %22 = vector.shape_cast %21 : vector<1x20x20xf32> to vector<20x20xf32>
    %c2_22 = arith.constant 2 : index
    %c0_23 = arith.constant 0 : index
    %c0_24 = arith.constant 0 : index
    %23 = vector.load %arg3[%c2_22, %c0_23, %c0_24] : memref<3x20x20xf32, #tpu.memory_space<vmem>>, vector<1x20x20xf32>
    %24 = vector.shape_cast %23 : vector<1x20x20xf32> to vector<20x20xf32>
    %c3 = arith.constant 3 : index
    %c0_25 = arith.constant 0 : index
    %25 = vector.load %arg4[%c3, %c0_25] : memref<4x20xf32, #tpu.memory_space<vmem>>, vector<1x20xf32>
    %cst_26 = arith.constant 0.000000e+00 : f32
    %26 = vector.broadcast %cst_26 : f32 to vector<2x20xf32>
    %27 = vector.extract_strided_slice %6 {offsets = [0, 0], sizes = [2, 20], strides = [1, 1]} : vector<16x20xf32> to vector<2x20xf32>
    %cst_27 = arith.constant dense<0.000000e+00> : vector<2x20xf32>
    %28 = tpu.matmul %26, %20, %cst_27 {dimension_numbers = #tpu.dot_dimension_numbers<[1], [0], [0], [1], [0, 0, 1, 1], [], []>} : vector<2x20xf32>, vector<20x20xf32>, vector<2x20xf32> -> vector<2x20xf32>
    %29 = arith.addf %27, %28 : vector<2x20xf32>
    %cst_28 = arith.constant 0.000000e+00 : f32
    %30 = vector.broadcast %cst_28 : f32 to vector<2x20xf32>
    %31 = arith.subf %30, %29 : vector<2x20xf32>
    %32 = math.exp %31 : vector<2x20xf32>
    %cst_29 = arith.constant 1.000000e+00 : f32
    %33 = vector.broadcast %cst_29 : f32 to vector<2x20xf32>
    %34 = arith.addf %33, %32 : vector<2x20xf32>
    %cst_30 = arith.constant 1.000000e+00 : f32
    %35 = vector.broadcast %cst_30 : f32 to vector<2x20xf32>
    %36 = arith.divf %35, %34 : vector<2x20xf32>
    %37 = vector.extract_strided_slice %12 {offsets = [0, 0], sizes = [2, 20], strides = [1, 1]} : vector<16x20xf32> to vector<2x20xf32>
    %cst_31 = arith.constant dense<0.000000e+00> : vector<2x20xf32>
    %38 = tpu.matmul %26, %22, %cst_31 {dimension_numbers = #tpu.dot_dimension_numbers<[1], [0], [0], [1], [0, 0, 1, 1], [], []>} : vector<2x20xf32>, vector<20x20xf32>, vector<2x20xf32> -> vector<2x20xf32>
    %39 = arith.addf %37, %38 : vector<2x20xf32>
    %cst_32 = arith.constant 0.000000e+00 : f32
    %40 = vector.broadcast %cst_32 : f32 to vector<2x20xf32>
    %41 = arith.subf %40, %39 : vector<2x20xf32>
    %42 = math.exp %41 : vector<2x20xf32>
    %cst_33 = arith.constant 1.000000e+00 : f32
    %43 = vector.broadcast %cst_33 : f32 to vector<2x20xf32>
    %44 = arith.addf %43, %42 : vector<2x20xf32>
    %cst_34 = arith.constant 1.000000e+00 : f32
    %45 = vector.broadcast %cst_34 : f32 to vector<2x20xf32>
    %46 = arith.divf %45, %44 : vector<2x20xf32>
    %47 = vector.extract_strided_slice %18 {offsets = [0, 0], sizes = [2, 20], strides = [1, 1]} : vector<16x20xf32> to vector<2x20xf32>
    %cst_35 = arith.constant dense<0.000000e+00> : vector<2x20xf32>
    %48 = tpu.matmul %26, %24, %cst_35 {dimension_numbers = #tpu.dot_dimension_numbers<[1], [0], [0], [1], [0, 0, 1, 1], [], []>} : vector<2x20xf32>, vector<20x20xf32>, vector<2x20xf32> -> vector<2x20xf32>
    %49 = vector.broadcast %25 : vector<1x20xf32> to vector<2x20xf32>
    %50 = arith.addf %48, %49 : vector<2x20xf32>
    %51 = arith.mulf %36, %50 : vector<2x20xf32>
    %52 = arith.addf %47, %51 : vector<2x20xf32>
    %53 = math.tanh %52 : vector<2x20xf32>
    %cst_36 = arith.constant 1.000000e+00 : f32
    %54 = vector.broadcast %cst_36 : f32 to vector<2x20xf32>
    %55 = arith.subf %54, %46 : vector<2x20xf32>
    %56 = arith.mulf %55, %53 : vector<2x20xf32>
    %57 = arith.mulf %46, %26 : vector<2x20xf32>
    %58 = arith.addf %56, %57 : vector<2x20xf32>
    %c0_37 = arith.constant 0 : index
    %c0_38 = arith.constant 0 : index
    %59 = vector.load %arg18[%c0_37, %c0_38] : memref<16x20xf32, #tpu.memory_space<vmem>>, vector<2x20xf32>
    tpu.vector_store %arg18[%c0_37, %c0_38], %58 {strides = array<i32>} : memref<16x20xf32, #tpu.memory_space<vmem>>, vector<2x20xf32>,
    %60 = vector.extract_strided_slice %6 {offsets = [2, 0], sizes = [2, 20], strides = [1, 1]} : vector<16x20xf32> to vector<2x20xf32>
    %cst_39 = arith.constant dense<0.000000e+00> : vector<2x20xf32>
    %61 = tpu.matmul %58, %20, %cst_39 {dimension_numbers = #tpu.dot_dimension_numbers<[1], [0], [0], [1], [0, 0, 1, 1], [], []>} : vector<2x20xf32>, vector<20x20xf32>, vector<2x20xf32> -> vector<2x20xf32>
    %62 = arith.addf %60, %61 : vector<2x20xf32>
    %cst_40 = arith.constant 0.000000e+00 : f32
    %63 = vector.broadcast %cst_40 : f32 to vector<2x20xf32>
    %64 = arith.subf %63, %62 : vector<2x20xf32>
    %65 = math.exp %64 : vector<2x20xf32>
    %cst_41 = arith.constant 1.000000e+00 : f32
    %66 = vector.broadcast %cst_41 : f32 to vector<2x20xf32>
    %67 = arith.addf %66, %65 : vector<2x20xf32>
    %cst_42 = arith.constant 1.000000e+00 : f32
    %68 = vector.broadcast %cst_42 : f32 to vector<2x20xf32>
    %69 = arith.divf %68, %67 : vector<2x20xf32>
    %70 = vector.extract_strided_slice %12 {offsets = [2, 0], sizes = [2, 20], strides = [1, 1]} : vector<16x20xf32> to vector<2x20xf32>
    %cst_43 = arith.constant dense<0.000000e+00> : vector<2x20xf32>
    %71 = tpu.matmul %58, %22, %cst_43 {dimension_numbers = #tpu.dot_dimension_numbers<[1], [0], [0], [1], [0, 0, 1, 1], [], []>} : vector<2x20xf32>, vector<20x20xf32>, vector<2x20xf32> -> vector<2x20xf32>
    %72 = arith.addf %70, %71 : vector<2x20xf32>
    %cst_44 = arith.constant 0.000000e+00 : f32
    %73 = vector.broadcast %cst_44 : f32 to vector<2x20xf32>
    %74 = arith.subf %73, %72 : vector<2x20xf32>
    %75 = math.exp %74 : vector<2x20xf32>
    %cst_45 = arith.constant 1.000000e+00 : f32
    %76 = vector.broadcast %cst_45 : f32 to vector<2x20xf32>
    %77 = arith.addf %76, %75 : vector<2x20xf32>
    %cst_46 = arith.constant 1.000000e+00 : f32
    %78 = vector.broadcast %cst_46 : f32 to vector<2x20xf32>
    %79 = arith.divf %78, %77 : vector<2x20xf32>
    %80 = vector.extract_strided_slice %18 {offsets = [2, 0], sizes = [2, 20], strides = [1, 1]} : vector<16x20xf32> to vector<2x20xf32>
    %cst_47 = arith.constant dense<0.000000e+00> : vector<2x20xf32>
    %81 = tpu.matmul %58, %24, %cst_47 {dimension_numbers = #tpu.dot_dimension_numbers<[1], [0], [0], [1], [0, 0, 1, 1], [], []>} : vector<2x20xf32>, vector<20x20xf32>, vector<2x20xf32> -> vector<2x20xf32>
    %82 = vector.broadcast %25 : vector<1x20xf32> to vector<2x20xf32>
    %83 = arith.addf %81, %82 : vector<2x20xf32>
    %84 = arith.mulf %69, %83 : vector<2x20xf32>
    %85 = arith.addf %80, %84 : vector<2x20xf32>
    %86 = math.tanh %85 : vector<2x20xf32>
    %cst_48 = arith.constant 1.000000e+00 : f32
    %87 = vector.broadcast %cst_48 : f32 to vector<2x20xf32>
    %88 = arith.subf %87, %79 : vector<2x20xf32>
    %89 = arith.mulf %88, %86 : vector<2x20xf32>
    %90 = arith.mulf %79, %58 : vector<2x20xf32>
    %91 = arith.addf %89, %90 : vector<2x20xf32>
    %c2_49 = arith.constant 2 : index
    %c0_50 = arith.constant 0 : index
    %92 = vector.load %arg18[%c2_49, %c0_50] : memref<16x20xf32, #tpu.memory_space<vmem>>, vector<2x20xf32>
    tpu.vector_store %arg18[%c2_49, %c0_50], %91 {strides = array<i32>} : memref<16x20xf32, #tpu.memory_space<vmem>>, vector<2x20xf32>,
    %93 = vector.extract_strided_slice %6 {offsets = [4, 0], sizes = [2, 20], strides = [1, 1]} : vector<16x20xf32> to vector<2x20xf32>
    %cst_51 = arith.constant dense<0.000000e+00> : vector<2x20xf32>
    %94 = tpu.matmul %91, %20, %cst_51 {dimension_numbers = #tpu.dot_dimension_numbers<[1], [0], [0], [1], [0, 0, 1, 1], [], []>} : vector<2x20xf32>, vector<20x20xf32>, vector<2x20xf32> -> vector<2x20xf32>
    %95 = arith.addf %93, %94 : vector<2x20xf32>
    %cst_52 = arith.constant 0.000000e+00 : f32
    %96 = vector.broadcast %cst_52 : f32 to vector<2x20xf32>
    %97 = arith.subf %96, %95 : vector<2x20xf32>
    %98 = math.exp %97 : vector<2x20xf32>
    %cst_53 = arith.constant 1.000000e+00 : f32
    %99 = vector.broadcast %cst_53 : f32 to vector<2x20xf32>
    %100 = arith.addf %99, %98 : vector<2x20xf32>
    %cst_54 = arith.constant 1.000000e+00 : f32
    %101 = vector.broadcast %cst_54 : f32 to vector<2x20xf32>
    %102 = arith.divf %101, %100 : vector<2x20xf32>
    %103 = vector.extract_strided_slice %12 {offsets = [4, 0], sizes = [2, 20], strides = [1, 1]} : vector<16x20xf32> to vector<2x20xf32>
    %cst_55 = arith.constant dense<0.000000e+00> : vector<2x20xf32>
    %104 = tpu.matmul %91, %22, %cst_55 {dimension_numbers = #tpu.dot_dimension_numbers<[1], [0], [0], [1], [0, 0, 1, 1], [], []>} : vector<2x20xf32>, vector<20x20xf32>, vector<2x20xf32> -> vector<2x20xf32>
    %105 = arith.addf %103, %104 : vector<2x20xf32>
    %cst_56 = arith.constant 0.000000e+00 : f32
    %106 = vector.broadcast %cst_56 : f32 to vector<2x20xf32>
    %107 = arith.subf %106, %105 : vector<2x20xf32>
    %108 = math.exp %107 : vector<2x20xf32>
    %cst_57 = arith.constant 1.000000e+00 : f32
    %109 = vector.broadcast %cst_57 : f32 to vector<2x20xf32>
    %110 = arith.addf %109, %108 : vector<2x20xf32>
    %cst_58 = arith.constant 1.000000e+00 : f32
    %111 = vector.broadcast %cst_58 : f32 to vector<2x20xf32>
    %112 = arith.divf %111, %110 : vector<2x20xf32>
    %113 = vector.extract_strided_slice %18 {offsets = [4, 0], sizes = [2, 20], strides = [1, 1]} : vector<16x20xf32> to vector<2x20xf32>
    %cst_59 = arith.constant dense<0.000000e+00> : vector<2x20xf32>
    %114 = tpu.matmul %91, %24, %cst_59 {dimension_numbers = #tpu.dot_dimension_numbers<[1], [0], [0], [1], [0, 0, 1, 1], [], []>} : vector<2x20xf32>, vector<20x20xf32>, vector<2x20xf32> -> vector<2x20xf32>
    %115 = vector.broadcast %25 : vector<1x20xf32> to vector<2x20xf32>
    %116 = arith.addf %114, %115 : vector<2x20xf32>
    %117 = arith.mulf %102, %116 : vector<2x20xf32>
    %118 = arith.addf %113, %117 : vector<2x20xf32>
    %119 = math.tanh %118 : vector<2x20xf32>
    %cst_60 = arith.constant 1.000000e+00 : f32
    %120 = vector.broadcast %cst_60 : f32 to vector<2x20xf32>
    %121 = arith.subf %120, %112 : vector<2x20xf32>
    %122 = arith.mulf %121, %119 : vector<2x20xf32>
    %123 = arith.mulf %112, %91 : vector<2x20xf32>
    %124 = arith.addf %122, %123 : vector<2x20xf32>
    %c4 = arith.constant 4 : index
    %c0_61 = arith.constant 0 : index
    %125 = vector.load %arg18[%c4, %c0_61] : memref<16x20xf32, #tpu.memory_space<vmem>>, vector<2x20xf32>
    tpu.vector_store %arg18[%c4, %c0_61], %124 {strides = array<i32>} : memref<16x20xf32, #tpu.memory_space<vmem>>, vector<2x20xf32>,
    %126 = vector.extract_strided_slice %6 {offsets = [6, 0], sizes = [2, 20], strides = [1, 1]} : vector<16x20xf32> to vector<2x20xf32>
    %cst_62 = arith.constant dense<0.000000e+00> : vector<2x20xf32>
    %127 = tpu.matmul %124, %20, %cst_62 {dimension_numbers = #tpu.dot_dimension_numbers<[1], [0], [0], [1], [0, 0, 1, 1], [], []>} : vector<2x20xf32>, vector<20x20xf32>, vector<2x20xf32> -> vector<2x20xf32>
    %128 = arith.addf %126, %127 : vector<2x20xf32>
    %cst_63 = arith.constant 0.000000e+00 : f32
    %129 = vector.broadcast %cst_63 : f32 to vector<2x20xf32>
    %130 = arith.subf %129, %128 : vector<2x20xf32>
    %131 = math.exp %130 : vector<2x20xf32>
    %cst_64 = arith.constant 1.000000e+00 : f32
    %132 = vector.broadcast %cst_64 : f32 to vector<2x20xf32>
    %133 = arith.addf %132, %131 : vector<2x20xf32>
    %cst_65 = arith.constant 1.000000e+00 : f32
    %134 = vector.broadcast %cst_65 : f32 to vector<2x20xf32>
    %135 = arith.divf %134, %133 : vector<2x20xf32>
    %136 = vector.extract_strided_slice %12 {offsets = [6, 0], sizes = [2, 20], strides = [1, 1]} : vector<16x20xf32> to vector<2x20xf32>
    %cst_66 = arith.constant dense<0.000000e+00> : vector<2x20xf32>
    %137 = tpu.matmul %124, %22, %cst_66 {dimension_numbers = #tpu.dot_dimension_numbers<[1], [0], [0], [1], [0, 0, 1, 1], [], []>} : vector<2x20xf32>, vector<20x20xf32>, vector<2x20xf32> -> vector<2x20xf32>
    %138 = arith.addf %136, %137 : vector<2x20xf32>
    %cst_67 = arith.constant 0.000000e+00 : f32
    %139 = vector.broadcast %cst_67 : f32 to vector<2x20xf32>
    %140 = arith.subf %139, %138 : vector<2x20xf32>
    %141 = math.exp %140 : vector<2x20xf32>
    %cst_68 = arith.constant 1.000000e+00 : f32
    %142 = vector.broadcast %cst_68 : f32 to vector<2x20xf32>
    %143 = arith.addf %142, %141 : vector<2x20xf32>
    %cst_69 = arith.constant 1.000000e+00 : f32
    %144 = vector.broadcast %cst_69 : f32 to vector<2x20xf32>
    %145 = arith.divf %144, %143 : vector<2x20xf32>
    %146 = vector.extract_strided_slice %18 {offsets = [6, 0], sizes = [2, 20], strides = [1, 1]} : vector<16x20xf32> to vector<2x20xf32>
    %cst_70 = arith.constant dense<0.000000e+00> : vector<2x20xf32>
    %147 = tpu.matmul %124, %24, %cst_70 {dimension_numbers = #tpu.dot_dimension_numbers<[1], [0], [0], [1], [0, 0, 1, 1], [], []>} : vector<2x20xf32>, vector<20x20xf32>, vector<2x20xf32> -> vector<2x20xf32>
    %148 = vector.broadcast %25 : vector<1x20xf32> to vector<2x20xf32>
    %149 = arith.addf %147, %148 : vector<2x20xf32>
    %150 = arith.mulf %135, %149 : vector<2x20xf32>
    %151 = arith.addf %146, %150 : vector<2x20xf32>
    %152 = math.tanh %151 : vector<2x20xf32>
    %cst_71 = arith.constant 1.000000e+00 : f32
    %153 = vector.broadcast %cst_71 : f32 to vector<2x20xf32>
    %154 = arith.subf %153, %145 : vector<2x20xf32>
    %155 = arith.mulf %154, %152 : vector<2x20xf32>
    %156 = arith.mulf %145, %124 : vector<2x20xf32>
    %157 = arith.addf %155, %156 : vector<2x20xf32>
    %c6 = arith.constant 6 : index
    %c0_72 = arith.constant 0 : index
    %158 = vector.load %arg18[%c6, %c0_72] : memref<16x20xf32, #tpu.memory_space<vmem>>, vector<2x20xf32>
    tpu.vector_store %arg18[%c6, %c0_72], %157 {strides = array<i32>} : memref<16x20xf32, #tpu.memory_space<vmem>>, vector<2x20xf32>,
    %159 = vector.extract_strided_slice %6 {offsets = [8, 0], sizes = [2, 20], strides = [1, 1]} : vector<16x20xf32> to vector<2x20xf32>
    %cst_73 = arith.constant dense<0.000000e+00> : vector<2x20xf32>
    %160 = tpu.matmul %157, %20, %cst_73 {dimension_numbers = #tpu.dot_dimension_numbers<[1], [0], [0], [1], [0, 0, 1, 1], [], []>} : vector<2x20xf32>, vector<20x20xf32>, vector<2x20xf32> -> vector<2x20xf32>
    %161 = arith.addf %159, %160 : vector<2x20xf32>
    %cst_74 = arith.constant 0.000000e+00 : f32
    %162 = vector.broadcast %cst_74 : f32 to vector<2x20xf32>
    %163 = arith.subf %162, %161 : vector<2x20xf32>
    %164 = math.exp %163 : vector<2x20xf32>
    %cst_75 = arith.constant 1.000000e+00 : f32
    %165 = vector.broadcast %cst_75 : f32 to vector<2x20xf32>
    %166 = arith.addf %165, %164 : vector<2x20xf32>
    %cst_76 = arith.constant 1.000000e+00 : f32
    %167 = vector.broadcast %cst_76 : f32 to vector<2x20xf32>
    %168 = arith.divf %167, %166 : vector<2x20xf32>
    %169 = vector.extract_strided_slice %12 {offsets = [8, 0], sizes = [2, 20], strides = [1, 1]} : vector<16x20xf32> to vector<2x20xf32>
    %cst_77 = arith.constant dense<0.000000e+00> : vector<2x20xf32>
    %170 = tpu.matmul %157, %22, %cst_77 {dimension_numbers = #tpu.dot_dimension_numbers<[1], [0], [0], [1], [0, 0, 1, 1], [], []>} : vector<2x20xf32>, vector<20x20xf32>, vector<2x20xf32> -> vector<2x20xf32>
    %171 = arith.addf %169, %170 : vector<2x20xf32>
    %cst_78 = arith.constant 0.000000e+00 : f32
    %172 = vector.broadcast %cst_78 : f32 to vector<2x20xf32>
    %173 = arith.subf %172, %171 : vector<2x20xf32>
    %174 = math.exp %173 : vector<2x20xf32>
    %cst_79 = arith.constant 1.000000e+00 : f32
    %175 = vector.broadcast %cst_79 : f32 to vector<2x20xf32>
    %176 = arith.addf %175, %174 : vector<2x20xf32>
    %cst_80 = arith.constant 1.000000e+00 : f32
    %177 = vector.broadcast %cst_80 : f32 to vector<2x20xf32>
    %178 = arith.divf %177, %176 : vector<2x20xf32>
    %179 = vector.extract_strided_slice %18 {offsets = [8, 0], sizes = [2, 20], strides = [1, 1]} : vector<16x20xf32> to vector<2x20xf32>
    %cst_81 = arith.constant dense<0.000000e+00> : vector<2x20xf32>
    %180 = tpu.matmul %157, %24, %cst_81 {dimension_numbers = #tpu.dot_dimension_numbers<[1], [0], [0], [1], [0, 0, 1, 1], [], []>} : vector<2x20xf32>, vector<20x20xf32>, vector<2x20xf32> -> vector<2x20xf32>
    %181 = vector.broadcast %25 : vector<1x20xf32> to vector<2x20xf32>
    %182 = arith.addf %180, %181 : vector<2x20xf32>
    %183 = arith.mulf %168, %182 : vector<2x20xf32>
    %184 = arith.addf %179, %183 : vector<2x20xf32>
    %185 = math.tanh %184 : vector<2x20xf32>
    %cst_82 = arith.constant 1.000000e+00 : f32
    %186 = vector.broadcast %cst_82 : f32 to vector<2x20xf32>
    %187 = arith.subf %186, %178 : vector<2x20xf32>
    %188 = arith.mulf %187, %185 : vector<2x20xf32>
    %189 = arith.mulf %178, %157 : vector<2x20xf32>
    %190 = arith.addf %188, %189 : vector<2x20xf32>
    %c8 = arith.constant 8 : index
    %c0_83 = arith.constant 0 : index
    %191 = vector.load %arg18[%c8, %c0_83] : memref<16x20xf32, #tpu.memory_space<vmem>>, vector<2x20xf32>
    tpu.vector_store %arg18[%c8, %c0_83], %190 {strides = array<i32>} : memref<16x20xf32, #tpu.memory_space<vmem>>, vector<2x20xf32>,
    %192 = vector.extract_strided_slice %6 {offsets = [10, 0], sizes = [2, 20], strides = [1, 1]} : vector<16x20xf32> to vector<2x20xf32>
    %cst_84 = arith.constant dense<0.000000e+00> : vector<2x20xf32>
    %193 = tpu.matmul %190, %20, %cst_84 {dimension_numbers = #tpu.dot_dimension_numbers<[1], [0], [0], [1], [0, 0, 1, 1], [], []>} : vector<2x20xf32>, vector<20x20xf32>, vector<2x20xf32> -> vector<2x20xf32>
    %194 = arith.addf %192, %193 : vector<2x20xf32>
    %cst_85 = arith.constant 0.000000e+00 : f32
    %195 = vector.broadcast %cst_85 : f32 to vector<2x20xf32>
    %196 = arith.subf %195, %194 : vector<2x20xf32>
    %197 = math.exp %196 : vector<2x20xf32>
    %cst_86 = arith.constant 1.000000e+00 : f32
    %198 = vector.broadcast %cst_86 : f32 to vector<2x20xf32>
    %199 = arith.addf %198, %197 : vector<2x20xf32>
    %cst_87 = arith.constant 1.000000e+00 : f32
    %200 = vector.broadcast %cst_87 : f32 to vector<2x20xf32>
    %201 = arith.divf %200, %199 : vector<2x20xf32>
    %202 = vector.extract_strided_slice %12 {offsets = [10, 0], sizes = [2, 20], strides = [1, 1]} : vector<16x20xf32> to vector<2x20xf32>
    %cst_88 = arith.constant dense<0.000000e+00> : vector<2x20xf32>
    %203 = tpu.matmul %190, %22, %cst_88 {dimension_numbers = #tpu.dot_dimension_numbers<[1], [0], [0], [1], [0, 0, 1, 1], [], []>} : vector<2x20xf32>, vector<20x20xf32>, vector<2x20xf32> -> vector<2x20xf32>
    %204 = arith.addf %202, %203 : vector<2x20xf32>
    %cst_89 = arith.constant 0.000000e+00 : f32
    %205 = vector.broadcast %cst_89 : f32 to vector<2x20xf32>
    %206 = arith.subf %205, %204 : vector<2x20xf32>
    %207 = math.exp %206 : vector<2x20xf32>
    %cst_90 = arith.constant 1.000000e+00 : f32
    %208 = vector.broadcast %cst_90 : f32 to vector<2x20xf32>
    %209 = arith.addf %208, %207 : vector<2x20xf32>
    %cst_91 = arith.constant 1.000000e+00 : f32
    %210 = vector.broadcast %cst_91 : f32 to vector<2x20xf32>
    %211 = arith.divf %210, %209 : vector<2x20xf32>
    %212 = vector.extract_strided_slice %18 {offsets = [10, 0], sizes = [2, 20], strides = [1, 1]} : vector<16x20xf32> to vector<2x20xf32>
    %cst_92 = arith.constant dense<0.000000e+00> : vector<2x20xf32>
    %213 = tpu.matmul %190, %24, %cst_92 {dimension_numbers = #tpu.dot_dimension_numbers<[1], [0], [0], [1], [0, 0, 1, 1], [], []>} : vector<2x20xf32>, vector<20x20xf32>, vector<2x20xf32> -> vector<2x20xf32>
    %214 = vector.broadcast %25 : vector<1x20xf32> to vector<2x20xf32>
    %215 = arith.addf %213, %214 : vector<2x20xf32>
    %216 = arith.mulf %201, %215 : vector<2x20xf32>
    %217 = arith.addf %212, %216 : vector<2x20xf32>
    %218 = math.tanh %217 : vector<2x20xf32>
    %cst_93 = arith.constant 1.000000e+00 : f32
    %219 = vector.broadcast %cst_93 : f32 to vector<2x20xf32>
    %220 = arith.subf %219, %211 : vector<2x20xf32>
    %221 = arith.mulf %220, %218 : vector<2x20xf32>
    %222 = arith.mulf %211, %190 : vector<2x20xf32>
    %223 = arith.addf %221, %222 : vector<2x20xf32>
    %c10 = arith.constant 10 : index
    %c0_94 = arith.constant 0 : index
    %224 = vector.load %arg18[%c10, %c0_94] : memref<16x20xf32, #tpu.memory_space<vmem>>, vector<2x20xf32>
    tpu.vector_store %arg18[%c10, %c0_94], %223 {strides = array<i32>} : memref<16x20xf32, #tpu.memory_space<vmem>>, vector<2x20xf32>,
    %225 = vector.extract_strided_slice %6 {offsets = [12, 0], sizes = [2, 20], strides = [1, 1]} : vector<16x20xf32> to vector<2x20xf32>
    %cst_95 = arith.constant dense<0.000000e+00> : vector<2x20xf32>
    %226 = tpu.matmul %223, %20, %cst_95 {dimension_numbers = #tpu.dot_dimension_numbers<[1], [0], [0], [1], [0, 0, 1, 1], [], []>} : vector<2x20xf32>, vector<20x20xf32>, vector<2x20xf32> -> vector<2x20xf32>
    %227 = arith.addf %225, %226 : vector<2x20xf32>
    %cst_96 = arith.constant 0.000000e+00 : f32
    %228 = vector.broadcast %cst_96 : f32 to vector<2x20xf32>
    %229 = arith.subf %228, %227 : vector<2x20xf32>
    %230 = math.exp %229 : vector<2x20xf32>
    %cst_97 = arith.constant 1.000000e+00 : f32
    %231 = vector.broadcast %cst_97 : f32 to vector<2x20xf32>
    %232 = arith.addf %231, %230 : vector<2x20xf32>
    %cst_98 = arith.constant 1.000000e+00 : f32
    %233 = vector.broadcast %cst_98 : f32 to vector<2x20xf32>
    %234 = arith.divf %233, %232 : vector<2x20xf32>
    %235 = vector.extract_strided_slice %12 {offsets = [12, 0], sizes = [2, 20], strides = [1, 1]} : vector<16x20xf32> to vector<2x20xf32>
    %cst_99 = arith.constant dense<0.000000e+00> : vector<2x20xf32>
    %236 = tpu.matmul %223, %22, %cst_99 {dimension_numbers = #tpu.dot_dimension_numbers<[1], [0], [0], [1], [0, 0, 1, 1], [], []>} : vector<2x20xf32>, vector<20x20xf32>, vector<2x20xf32> -> vector<2x20xf32>
    %237 = arith.addf %235, %236 : vector<2x20xf32>
    %cst_100 = arith.constant 0.000000e+00 : f32
    %238 = vector.broadcast %cst_100 : f32 to vector<2x20xf32>
    %239 = arith.subf %238, %237 : vector<2x20xf32>
    %240 = math.exp %239 : vector<2x20xf32>
    %cst_101 = arith.constant 1.000000e+00 : f32
    %241 = vector.broadcast %cst_101 : f32 to vector<2x20xf32>
    %242 = arith.addf %241, %240 : vector<2x20xf32>
    %cst_102 = arith.constant 1.000000e+00 : f32
    %243 = vector.broadcast %cst_102 : f32 to vector<2x20xf32>
    %244 = arith.divf %243, %242 : vector<2x20xf32>
    %245 = vector.extract_strided_slice %18 {offsets = [12, 0], sizes = [2, 20], strides = [1, 1]} : vector<16x20xf32> to vector<2x20xf32>
    %cst_103 = arith.constant dense<0.000000e+00> : vector<2x20xf32>
    %246 = tpu.matmul %223, %24, %cst_103 {dimension_numbers = #tpu.dot_dimension_numbers<[1], [0], [0], [1], [0, 0, 1, 1], [], []>} : vector<2x20xf32>, vector<20x20xf32>, vector<2x20xf32> -> vector<2x20xf32>
    %247 = vector.broadcast %25 : vector<1x20xf32> to vector<2x20xf32>
    %248 = arith.addf %246, %247 : vector<2x20xf32>
    %249 = arith.mulf %234, %248 : vector<2x20xf32>
    %250 = arith.addf %245, %249 : vector<2x20xf32>
    %251 = math.tanh %250 : vector<2x20xf32>
    %cst_104 = arith.constant 1.000000e+00 : f32
    %252 = vector.broadcast %cst_104 : f32 to vector<2x20xf32>
    %253 = arith.subf %252, %244 : vector<2x20xf32>
    %254 = arith.mulf %253, %251 : vector<2x20xf32>
    %255 = arith.mulf %244, %223 : vector<2x20xf32>
    %256 = arith.addf %254, %255 : vector<2x20xf32>
    %c12 = arith.constant 12 : index
    %c0_105 = arith.constant 0 : index
    %257 = vector.load %arg18[%c12, %c0_105] : memref<16x20xf32, #tpu.memory_space<vmem>>, vector<2x20xf32>
    tpu.vector_store %arg18[%c12, %c0_105], %256 {strides = array<i32>} : memref<16x20xf32, #tpu.memory_space<vmem>>, vector<2x20xf32>,
    %258 = vector.extract_strided_slice %6 {offsets = [14, 0], sizes = [2, 20], strides = [1, 1]} : vector<16x20xf32> to vector<2x20xf32>
    %cst_106 = arith.constant dense<0.000000e+00> : vector<2x20xf32>
    %259 = tpu.matmul %256, %20, %cst_106 {dimension_numbers = #tpu.dot_dimension_numbers<[1], [0], [0], [1], [0, 0, 1, 1], [], []>} : vector<2x20xf32>, vector<20x20xf32>, vector<2x20xf32> -> vector<2x20xf32>
    %260 = arith.addf %258, %259 : vector<2x20xf32>
    %cst_107 = arith.constant 0.000000e+00 : f32
    %261 = vector.broadcast %cst_107 : f32 to vector<2x20xf32>
    %262 = arith.subf %261, %260 : vector<2x20xf32>
    %263 = math.exp %262 : vector<2x20xf32>
    %cst_108 = arith.constant 1.000000e+00 : f32
    %264 = vector.broadcast %cst_108 : f32 to vector<2x20xf32>
    %265 = arith.addf %264, %263 : vector<2x20xf32>
    %cst_109 = arith.constant 1.000000e+00 : f32
    %266 = vector.broadcast %cst_109 : f32 to vector<2x20xf32>
    %267 = arith.divf %266, %265 : vector<2x20xf32>
    %268 = vector.extract_strided_slice %12 {offsets = [14, 0], sizes = [2, 20], strides = [1, 1]} : vector<16x20xf32> to vector<2x20xf32>
    %cst_110 = arith.constant dense<0.000000e+00> : vector<2x20xf32>
    %269 = tpu.matmul %256, %22, %cst_110 {dimension_numbers = #tpu.dot_dimension_numbers<[1], [0], [0], [1], [0, 0, 1, 1], [], []>} : vector<2x20xf32>, vector<20x20xf32>, vector<2x20xf32> -> vector<2x20xf32>
    %270 = arith.addf %268, %269 : vector<2x20xf32>
    %cst_111 = arith.constant 0.000000e+00 : f32
    %271 = vector.broadcast %cst_111 : f32 to vector<2x20xf32>
    %272 = arith.subf %271, %270 : vector<2x20xf32>
    %273 = math.exp %272 : vector<2x20xf32>
    %cst_112 = arith.constant 1.000000e+00 : f32
    %274 = vector.broadcast %cst_112 : f32 to vector<2x20xf32>
    %275 = arith.addf %274, %273 : vector<2x20xf32>
    %cst_113 = arith.constant 1.000000e+00 : f32
    %276 = vector.broadcast %cst_113 : f32 to vector<2x20xf32>
    %277 = arith.divf %276, %275 : vector<2x20xf32>
    %278 = vector.extract_strided_slice %18 {offsets = [14, 0], sizes = [2, 20], strides = [1, 1]} : vector<16x20xf32> to vector<2x20xf32>
    %cst_114 = arith.constant dense<0.000000e+00> : vector<2x20xf32>
    %279 = tpu.matmul %256, %24, %cst_114 {dimension_numbers = #tpu.dot_dimension_numbers<[1], [0], [0], [1], [0, 0, 1, 1], [], []>} : vector<2x20xf32>, vector<20x20xf32>, vector<2x20xf32> -> vector<2x20xf32>
    %280 = vector.broadcast %25 : vector<1x20xf32> to vector<2x20xf32>
    %281 = arith.addf %279, %280 : vector<2x20xf32>
    %282 = arith.mulf %267, %281 : vector<2x20xf32>
    %283 = arith.addf %278, %282 : vector<2x20xf32>
    %284 = math.tanh %283 : vector<2x20xf32>
    %cst_115 = arith.constant 1.000000e+00 : f32
    %285 = vector.broadcast %cst_115 : f32 to vector<2x20xf32>
    %286 = arith.subf %285, %277 : vector<2x20xf32>
    %287 = arith.mulf %286, %284 : vector<2x20xf32>
    %288 = arith.mulf %277, %256 : vector<2x20xf32>
    %289 = arith.addf %287, %288 : vector<2x20xf32>
    %c14 = arith.constant 14 : index
    %c0_116 = arith.constant 0 : index
    %290 = vector.load %arg18[%c14, %c0_116] : memref<16x20xf32, #tpu.memory_space<vmem>>, vector<2x20xf32>
    tpu.vector_store %arg18[%c14, %c0_116], %289 {strides = array<i32>} : memref<16x20xf32, #tpu.memory_space<vmem>>, vector<2x20xf32>,
    %c0_117 = arith.constant 0 : index
    %c0_118 = arith.constant 0 : index
    %291 = vector.load %arg18[%c0_117, %c0_118] : memref<16x20xf32, #tpu.memory_space<vmem>>, vector<16x20xf32>
    %c0_119 = arith.constant 0 : index
    %c0_120 = arith.constant 0 : index
    %c0_121 = arith.constant 0 : index
    %292 = vector.load %arg5[%c0_119, %c0_120, %c0_121] : memref<3x20x20xf32, #tpu.memory_space<vmem>>, vector<1x20x20xf32>
    %293 = vector.shape_cast %292 : vector<1x20x20xf32> to vector<20x20xf32>
    %cst_122 = arith.constant dense<0.000000e+00> : vector<16x20xf32>
    %294 = tpu.matmul %291, %293, %cst_122 {dimension_numbers = #tpu.dot_dimension_numbers<[1], [0], [0], [1], [0, 0, 1, 1], [], []>} : vector<16x20xf32>, vector<20x20xf32>, vector<16x20xf32> -> vector<16x20xf32>
    %c0_123 = arith.constant 0 : index
    %c0_124 = arith.constant 0 : index
    %295 = vector.load %arg7[%c0_123, %c0_124] : memref<4x20xf32, #tpu.memory_space<vmem>>, vector<1x20xf32>
    %296 = vector.broadcast %295 : vector<1x20xf32> to vector<16x20xf32>
    %297 = arith.addf %294, %296 : vector<16x20xf32>
    %c1_125 = arith.constant 1 : index
    %c0_126 = arith.constant 0 : index
    %c0_127 = arith.constant 0 : index
    %298 = vector.load %arg5[%c1_125, %c0_126, %c0_127] : memref<3x20x20xf32, #tpu.memory_space<vmem>>, vector<1x20x20xf32>
    %299 = vector.shape_cast %298 : vector<1x20x20xf32> to vector<20x20xf32>
    %cst_128 = arith.constant dense<0.000000e+00> : vector<16x20xf32>
    %300 = tpu.matmul %291, %299, %cst_128 {dimension_numbers = #tpu.dot_dimension_numbers<[1], [0], [0], [1], [0, 0, 1, 1], [], []>} : vector<16x20xf32>, vector<20x20xf32>, vector<16x20xf32> -> vector<16x20xf32>
    %c1_129 = arith.constant 1 : index
    %c0_130 = arith.constant 0 : index
    %301 = vector.load %arg7[%c1_129, %c0_130] : memref<4x20xf32, #tpu.memory_space<vmem>>, vector<1x20xf32>
    %302 = vector.broadcast %301 : vector<1x20xf32> to vector<16x20xf32>
    %303 = arith.addf %300, %302 : vector<16x20xf32>
    %c2_131 = arith.constant 2 : index
    %c0_132 = arith.constant 0 : index
    %c0_133 = arith.constant 0 : index
    %304 = vector.load %arg5[%c2_131, %c0_132, %c0_133] : memref<3x20x20xf32, #tpu.memory_space<vmem>>, vector<1x20x20xf32>
    %305 = vector.shape_cast %304 : vector<1x20x20xf32> to vector<20x20xf32>
    %cst_134 = arith.constant dense<0.000000e+00> : vector<16x20xf32>
    %306 = tpu.matmul %291, %305, %cst_134 {dimension_numbers = #tpu.dot_dimension_numbers<[1], [0], [0], [1], [0, 0, 1, 1], [], []>} : vector<16x20xf32>, vector<20x20xf32>, vector<16x20xf32> -> vector<16x20xf32>
    %c2_135 = arith.constant 2 : index
    %c0_136 = arith.constant 0 : index
    %307 = vector.load %arg7[%c2_135, %c0_136] : memref<4x20xf32, #tpu.memory_space<vmem>>, vector<1x20xf32>
    %308 = vector.broadcast %307 : vector<1x20xf32> to vector<16x20xf32>
    %309 = arith.addf %306, %308 : vector<16x20xf32>
    %c0_137 = arith.constant 0 : index
    %c0_138 = arith.constant 0 : index
    %c0_139 = arith.constant 0 : index
    %310 = vector.load %arg6[%c0_137, %c0_138, %c0_139] : memref<3x20x20xf32, #tpu.memory_space<vmem>>, vector<1x20x20xf32>
    %311 = vector.shape_cast %310 : vector<1x20x20xf32> to vector<20x20xf32>
    %c1_140 = arith.constant 1 : index
    %c0_141 = arith.constant 0 : index
    %c0_142 = arith.constant 0 : index
    %312 = vector.load %arg6[%c1_140, %c0_141, %c0_142] : memref<3x20x20xf32, #tpu.memory_space<vmem>>, vector<1x20x20xf32>
    %313 = vector.shape_cast %312 : vector<1x20x20xf32> to vector<20x20xf32>
    %c2_143 = arith.constant 2 : index
    %c0_144 = arith.constant 0 : index
    %c0_145 = arith.constant 0 : index
    %314 = vector.load %arg6[%c2_143, %c0_144, %c0_145] : memref<3x20x20xf32, #tpu.memory_space<vmem>>, vector<1x20x20xf32>
    %315 = vector.shape_cast %314 : vector<1x20x20xf32> to vector<20x20xf32>
    %c3_146 = arith.constant 3 : index
    %c0_147 = arith.constant 0 : index
    %316 = vector.load %arg7[%c3_146, %c0_147] : memref<4x20xf32, #tpu.memory_space<vmem>>, vector<1x20xf32>
    %cst_148 = arith.constant 0.000000e+00 : f32
    %317 = vector.broadcast %cst_148 : f32 to vector<2x20xf32>
    %318 = vector.extract_strided_slice %297 {offsets = [0, 0], sizes = [2, 20], strides = [1, 1]} : vector<16x20xf32> to vector<2x20xf32>
    %cst_149 = arith.constant dense<0.000000e+00> : vector<2x20xf32>
    %319 = tpu.matmul %317, %311, %cst_149 {dimension_numbers = #tpu.dot_dimension_numbers<[1], [0], [0], [1], [0, 0, 1, 1], [], []>} : vector<2x20xf32>, vector<20x20xf32>, vector<2x20xf32> -> vector<2x20xf32>
    %320 = arith.addf %318, %319 : vector<2x20xf32>
    %cst_150 = arith.constant 0.000000e+00 : f32
    %321 = vector.broadcast %cst_150 : f32 to vector<2x20xf32>
    %322 = arith.subf %321, %320 : vector<2x20xf32>
    %323 = math.exp %322 : vector<2x20xf32>
    %cst_151 = arith.constant 1.000000e+00 : f32
    %324 = vector.broadcast %cst_151 : f32 to vector<2x20xf32>
    %325 = arith.addf %324, %323 : vector<2x20xf32>
    %cst_152 = arith.constant 1.000000e+00 : f32
    %326 = vector.broadcast %cst_152 : f32 to vector<2x20xf32>
    %327 = arith.divf %326, %325 : vector<2x20xf32>
    %328 = vector.extract_strided_slice %303 {offsets = [0, 0], sizes = [2, 20], strides = [1, 1]} : vector<16x20xf32> to vector<2x20xf32>
    %cst_153 = arith.constant dense<0.000000e+00> : vector<2x20xf32>
    %329 = tpu.matmul %317, %313, %cst_153 {dimension_numbers = #tpu.dot_dimension_numbers<[1], [0], [0], [1], [0, 0, 1, 1], [], []>} : vector<2x20xf32>, vector<20x20xf32>, vector<2x20xf32> -> vector<2x20xf32>
    %330 = arith.addf %328, %329 : vector<2x20xf32>
    %cst_154 = arith.constant 0.000000e+00 : f32
    %331 = vector.broadcast %cst_154 : f32 to vector<2x20xf32>
    %332 = arith.subf %331, %330 : vector<2x20xf32>
    %333 = math.exp %332 : vector<2x20xf32>
    %cst_155 = arith.constant 1.000000e+00 : f32
    %334 = vector.broadcast %cst_155 : f32 to vector<2x20xf32>
    %335 = arith.addf %334, %333 : vector<2x20xf32>
    %cst_156 = arith.constant 1.000000e+00 : f32
    %336 = vector.broadcast %cst_156 : f32 to vector<2x20xf32>
    %337 = arith.divf %336, %335 : vector<2x20xf32>
    %338 = vector.extract_strided_slice %309 {offsets = [0, 0], sizes = [2, 20], strides = [1, 1]} : vector<16x20xf32> to vector<2x20xf32>
    %cst_157 = arith.constant dense<0.000000e+00> : vector<2x20xf32>
    %339 = tpu.matmul %317, %315, %cst_157 {dimension_numbers = #tpu.dot_dimension_numbers<[1], [0], [0], [1], [0, 0, 1, 1], [], []>} : vector<2x20xf32>, vector<20x20xf32>, vector<2x20xf32> -> vector<2x20xf32>
    %340 = vector.broadcast %316 : vector<1x20xf32> to vector<2x20xf32>
    %341 = arith.addf %339, %340 : vector<2x20xf32>
    %342 = arith.mulf %327, %341 : vector<2x20xf32>
    %343 = arith.addf %338, %342 : vector<2x20xf32>
    %344 = math.tanh %343 : vector<2x20xf32>
    %cst_158 = arith.constant 1.000000e+00 : f32
    %345 = vector.broadcast %cst_158 : f32 to vector<2x20xf32>
    %346 = arith.subf %345, %337 : vector<2x20xf32>
    %347 = arith.mulf %346, %344 : vector<2x20xf32>
    %348 = arith.mulf %337, %317 : vector<2x20xf32>
    %349 = arith.addf %347, %348 : vector<2x20xf32>
    %c0_159 = arith.constant 0 : index
    %c0_160 = arith.constant 0 : index
    %350 = vector.load %arg19[%c0_159, %c0_160] : memref<16x20xf32, #tpu.memory_space<vmem>>, vector<2x20xf32>
    tpu.vector_store %arg19[%c0_159, %c0_160], %349 {strides = array<i32>} : memref<16x20xf32, #tpu.memory_space<vmem>>, vector<2x20xf32>,
    %351 = vector.extract_strided_slice %297 {offsets = [2, 0], sizes = [2, 20], strides = [1, 1]} : vector<16x20xf32> to vector<2x20xf32>
    %cst_161 = arith.constant dense<0.000000e+00> : vector<2x20xf32>
    %352 = tpu.matmul %349, %311, %cst_161 {dimension_numbers = #tpu.dot_dimension_numbers<[1], [0], [0], [1], [0, 0, 1, 1], [], []>} : vector<2x20xf32>, vector<20x20xf32>, vector<2x20xf32> -> vector<2x20xf32>
    %353 = arith.addf %351, %352 : vector<2x20xf32>
    %cst_162 = arith.constant 0.000000e+00 : f32
    %354 = vector.broadcast %cst_162 : f32 to vector<2x20xf32>
    %355 = arith.subf %354, %353 : vector<2x20xf32>
    %356 = math.exp %355 : vector<2x20xf32>
    %cst_163 = arith.constant 1.000000e+00 : f32
    %357 = vector.broadcast %cst_163 : f32 to vector<2x20xf32>
    %358 = arith.addf %357, %356 : vector<2x20xf32>
    %cst_164 = arith.constant 1.000000e+00 : f32
    %359 = vector.broadcast %cst_164 : f32 to vector<2x20xf32>
    %360 = arith.divf %359, %358 : vector<2x20xf32>
    %361 = vector.extract_strided_slice %303 {offsets = [2, 0], sizes = [2, 20], strides = [1, 1]} : vector<16x20xf32> to vector<2x20xf32>
    %cst_165 = arith.constant dense<0.000000e+00> : vector<2x20xf32>
    %362 = tpu.matmul %349, %313, %cst_165 {dimension_numbers = #tpu.dot_dimension_numbers<[1], [0], [0], [1], [0, 0, 1, 1], [], []>} : vector<2x20xf32>, vector<20x20xf32>, vector<2x20xf32> -> vector<2x20xf32>
    %363 = arith.addf %361, %362 : vector<2x20xf32>
    %cst_166 = arith.constant 0.000000e+00 : f32
    %364 = vector.broadcast %cst_166 : f32 to vector<2x20xf32>
    %365 = arith.subf %364, %363 : vector<2x20xf32>
    %366 = math.exp %365 : vector<2x20xf32>
    %cst_167 = arith.constant 1.000000e+00 : f32
    %367 = vector.broadcast %cst_167 : f32 to vector<2x20xf32>
    %368 = arith.addf %367, %366 : vector<2x20xf32>
    %cst_168 = arith.constant 1.000000e+00 : f32
    %369 = vector.broadcast %cst_168 : f32 to vector<2x20xf32>
    %370 = arith.divf %369, %368 : vector<2x20xf32>
    %371 = vector.extract_strided_slice %309 {offsets = [2, 0], sizes = [2, 20], strides = [1, 1]} : vector<16x20xf32> to vector<2x20xf32>
    %cst_169 = arith.constant dense<0.000000e+00> : vector<2x20xf32>
    %372 = tpu.matmul %349, %315, %cst_169 {dimension_numbers = #tpu.dot_dimension_numbers<[1], [0], [0], [1], [0, 0, 1, 1], [], []>} : vector<2x20xf32>, vector<20x20xf32>, vector<2x20xf32> -> vector<2x20xf32>
    %373 = vector.broadcast %316 : vector<1x20xf32> to vector<2x20xf32>
    %374 = arith.addf %372, %373 : vector<2x20xf32>
    %375 = arith.mulf %360, %374 : vector<2x20xf32>
    %376 = arith.addf %371, %375 : vector<2x20xf32>
    %377 = math.tanh %376 : vector<2x20xf32>
    %cst_170 = arith.constant 1.000000e+00 : f32
    %378 = vector.broadcast %cst_170 : f32 to vector<2x20xf32>
    %379 = arith.subf %378, %370 : vector<2x20xf32>
    %380 = arith.mulf %379, %377 : vector<2x20xf32>
    %381 = arith.mulf %370, %349 : vector<2x20xf32>
    %382 = arith.addf %380, %381 : vector<2x20xf32>
    %c2_171 = arith.constant 2 : index
    %c0_172 = arith.constant 0 : index
    %383 = vector.load %arg19[%c2_171, %c0_172] : memref<16x20xf32, #tpu.memory_space<vmem>>, vector<2x20xf32>
    tpu.vector_store %arg19[%c2_171, %c0_172], %382 {strides = array<i32>} : memref<16x20xf32, #tpu.memory_space<vmem>>, vector<2x20xf32>,
    %384 = vector.extract_strided_slice %297 {offsets = [4, 0], sizes = [2, 20], strides = [1, 1]} : vector<16x20xf32> to vector<2x20xf32>
    %cst_173 = arith.constant dense<0.000000e+00> : vector<2x20xf32>
    %385 = tpu.matmul %382, %311, %cst_173 {dimension_numbers = #tpu.dot_dimension_numbers<[1], [0], [0], [1], [0, 0, 1, 1], [], []>} : vector<2x20xf32>, vector<20x20xf32>, vector<2x20xf32> -> vector<2x20xf32>
    %386 = arith.addf %384, %385 : vector<2x20xf32>
    %cst_174 = arith.constant 0.000000e+00 : f32
    %387 = vector.broadcast %cst_174 : f32 to vector<2x20xf32>
    %388 = arith.subf %387, %386 : vector<2x20xf32>
    %389 = math.exp %388 : vector<2x20xf32>
    %cst_175 = arith.constant 1.000000e+00 : f32
    %390 = vector.broadcast %cst_175 : f32 to vector<2x20xf32>
    %391 = arith.addf %390, %389 : vector<2x20xf32>
    %cst_176 = arith.constant 1.000000e+00 : f32
    %392 = vector.broadcast %cst_176 : f32 to vector<2x20xf32>
    %393 = arith.divf %392, %391 : vector<2x20xf32>
    %394 = vector.extract_strided_slice %303 {offsets = [4, 0], sizes = [2, 20], strides = [1, 1]} : vector<16x20xf32> to vector<2x20xf32>
    %cst_177 = arith.constant dense<0.000000e+00> : vector<2x20xf32>
    %395 = tpu.matmul %382, %313, %cst_177 {dimension_numbers = #tpu.dot_dimension_numbers<[1], [0], [0], [1], [0, 0, 1, 1], [], []>} : vector<2x20xf32>, vector<20x20xf32>, vector<2x20xf32> -> vector<2x20xf32>
    %396 = arith.addf %394, %395 : vector<2x20xf32>
    %cst_178 = arith.constant 0.000000e+00 : f32
    %397 = vector.broadcast %cst_178 : f32 to vector<2x20xf32>
    %398 = arith.subf %397, %396 : vector<2x20xf32>
    %399 = math.exp %398 : vector<2x20xf32>
    %cst_179 = arith.constant 1.000000e+00 : f32
    %400 = vector.broadcast %cst_179 : f32 to vector<2x20xf32>
    %401 = arith.addf %400, %399 : vector<2x20xf32>
    %cst_180 = arith.constant 1.000000e+00 : f32
    %402 = vector.broadcast %cst_180 : f32 to vector<2x20xf32>
    %403 = arith.divf %402, %401 : vector<2x20xf32>
    %404 = vector.extract_strided_slice %309 {offsets = [4, 0], sizes = [2, 20], strides = [1, 1]} : vector<16x20xf32> to vector<2x20xf32>
    %cst_181 = arith.constant dense<0.000000e+00> : vector<2x20xf32>
    %405 = tpu.matmul %382, %315, %cst_181 {dimension_numbers = #tpu.dot_dimension_numbers<[1], [0], [0], [1], [0, 0, 1, 1], [], []>} : vector<2x20xf32>, vector<20x20xf32>, vector<2x20xf32> -> vector<2x20xf32>
    %406 = vector.broadcast %316 : vector<1x20xf32> to vector<2x20xf32>
    %407 = arith.addf %405, %406 : vector<2x20xf32>
    %408 = arith.mulf %393, %407 : vector<2x20xf32>
    %409 = arith.addf %404, %408 : vector<2x20xf32>
    %410 = math.tanh %409 : vector<2x20xf32>
    %cst_182 = arith.constant 1.000000e+00 : f32
    %411 = vector.broadcast %cst_182 : f32 to vector<2x20xf32>
    %412 = arith.subf %411, %403 : vector<2x20xf32>
    %413 = arith.mulf %412, %410 : vector<2x20xf32>
    %414 = arith.mulf %403, %382 : vector<2x20xf32>
    %415 = arith.addf %413, %414 : vector<2x20xf32>
    %c4_183 = arith.constant 4 : index
    %c0_184 = arith.constant 0 : index
    %416 = vector.load %arg19[%c4_183, %c0_184] : memref<16x20xf32, #tpu.memory_space<vmem>>, vector<2x20xf32>
    tpu.vector_store %arg19[%c4_183, %c0_184], %415 {strides = array<i32>} : memref<16x20xf32, #tpu.memory_space<vmem>>, vector<2x20xf32>,
    %417 = vector.extract_strided_slice %297 {offsets = [6, 0], sizes = [2, 20], strides = [1, 1]} : vector<16x20xf32> to vector<2x20xf32>
    %cst_185 = arith.constant dense<0.000000e+00> : vector<2x20xf32>
    %418 = tpu.matmul %415, %311, %cst_185 {dimension_numbers = #tpu.dot_dimension_numbers<[1], [0], [0], [1], [0, 0, 1, 1], [], []>} : vector<2x20xf32>, vector<20x20xf32>, vector<2x20xf32> -> vector<2x20xf32>
    %419 = arith.addf %417, %418 : vector<2x20xf32>
    %cst_186 = arith.constant 0.000000e+00 : f32
    %420 = vector.broadcast %cst_186 : f32 to vector<2x20xf32>
    %421 = arith.subf %420, %419 : vector<2x20xf32>
    %422 = math.exp %421 : vector<2x20xf32>
    %cst_187 = arith.constant 1.000000e+00 : f32
    %423 = vector.broadcast %cst_187 : f32 to vector<2x20xf32>
    %424 = arith.addf %423, %422 : vector<2x20xf32>
    %cst_188 = arith.constant 1.000000e+00 : f32
    %425 = vector.broadcast %cst_188 : f32 to vector<2x20xf32>
    %426 = arith.divf %425, %424 : vector<2x20xf32>
    %427 = vector.extract_strided_slice %303 {offsets = [6, 0], sizes = [2, 20], strides = [1, 1]} : vector<16x20xf32> to vector<2x20xf32>
    %cst_189 = arith.constant dense<0.000000e+00> : vector<2x20xf32>
    %428 = tpu.matmul %415, %313, %cst_189 {dimension_numbers = #tpu.dot_dimension_numbers<[1], [0], [0], [1], [0, 0, 1, 1], [], []>} : vector<2x20xf32>, vector<20x20xf32>, vector<2x20xf32> -> vector<2x20xf32>
    %429 = arith.addf %427, %428 : vector<2x20xf32>
    %cst_190 = arith.constant 0.000000e+00 : f32
    %430 = vector.broadcast %cst_190 : f32 to vector<2x20xf32>
    %431 = arith.subf %430, %429 : vector<2x20xf32>
    %432 = math.exp %431 : vector<2x20xf32>
    %cst_191 = arith.constant 1.000000e+00 : f32
    %433 = vector.broadcast %cst_191 : f32 to vector<2x20xf32>
    %434 = arith.addf %433, %432 : vector<2x20xf32>
    %cst_192 = arith.constant 1.000000e+00 : f32
    %435 = vector.broadcast %cst_192 : f32 to vector<2x20xf32>
    %436 = arith.divf %435, %434 : vector<2x20xf32>
    %437 = vector.extract_strided_slice %309 {offsets = [6, 0], sizes = [2, 20], strides = [1, 1]} : vector<16x20xf32> to vector<2x20xf32>
    %cst_193 = arith.constant dense<0.000000e+00> : vector<2x20xf32>
    %438 = tpu.matmul %415, %315, %cst_193 {dimension_numbers = #tpu.dot_dimension_numbers<[1], [0], [0], [1], [0, 0, 1, 1], [], []>} : vector<2x20xf32>, vector<20x20xf32>, vector<2x20xf32> -> vector<2x20xf32>
    %439 = vector.broadcast %316 : vector<1x20xf32> to vector<2x20xf32>
    %440 = arith.addf %438, %439 : vector<2x20xf32>
    %441 = arith.mulf %426, %440 : vector<2x20xf32>
    %442 = arith.addf %437, %441 : vector<2x20xf32>
    %443 = math.tanh %442 : vector<2x20xf32>
    %cst_194 = arith.constant 1.000000e+00 : f32
    %444 = vector.broadcast %cst_194 : f32 to vector<2x20xf32>
    %445 = arith.subf %444, %436 : vector<2x20xf32>
    %446 = arith.mulf %445, %443 : vector<2x20xf32>
    %447 = arith.mulf %436, %415 : vector<2x20xf32>
    %448 = arith.addf %446, %447 : vector<2x20xf32>
    %c6_195 = arith.constant 6 : index
    %c0_196 = arith.constant 0 : index
    %449 = vector.load %arg19[%c6_195, %c0_196] : memref<16x20xf32, #tpu.memory_space<vmem>>, vector<2x20xf32>
    tpu.vector_store %arg19[%c6_195, %c0_196], %448 {strides = array<i32>} : memref<16x20xf32, #tpu.memory_space<vmem>>, vector<2x20xf32>,
    %450 = vector.extract_strided_slice %297 {offsets = [8, 0], sizes = [2, 20], strides = [1, 1]} : vector<16x20xf32> to vector<2x20xf32>
    %cst_197 = arith.constant dense<0.000000e+00> : vector<2x20xf32>
    %451 = tpu.matmul %448, %311, %cst_197 {dimension_numbers = #tpu.dot_dimension_numbers<[1], [0], [0], [1], [0, 0, 1, 1], [], []>} : vector<2x20xf32>, vector<20x20xf32>, vector<2x20xf32> -> vector<2x20xf32>
    %452 = arith.addf %450, %451 : vector<2x20xf32>
    %cst_198 = arith.constant 0.000000e+00 : f32
    %453 = vector.broadcast %cst_198 : f32 to vector<2x20xf32>
    %454 = arith.subf %453, %452 : vector<2x20xf32>
    %455 = math.exp %454 : vector<2x20xf32>
    %cst_199 = arith.constant 1.000000e+00 : f32
    %456 = vector.broadcast %cst_199 : f32 to vector<2x20xf32>
    %457 = arith.addf %456, %455 : vector<2x20xf32>
    %cst_200 = arith.constant 1.000000e+00 : f32
    %458 = vector.broadcast %cst_200 : f32 to vector<2x20xf32>
    %459 = arith.divf %458, %457 : vector<2x20xf32>
    %460 = vector.extract_strided_slice %303 {offsets = [8, 0], sizes = [2, 20], strides = [1, 1]} : vector<16x20xf32> to vector<2x20xf32>
    %cst_201 = arith.constant dense<0.000000e+00> : vector<2x20xf32>
    %461 = tpu.matmul %448, %313, %cst_201 {dimension_numbers = #tpu.dot_dimension_numbers<[1], [0], [0], [1], [0, 0, 1, 1], [], []>} : vector<2x20xf32>, vector<20x20xf32>, vector<2x20xf32> -> vector<2x20xf32>
    %462 = arith.addf %460, %461 : vector<2x20xf32>
    %cst_202 = arith.constant 0.000000e+00 : f32
    %463 = vector.broadcast %cst_202 : f32 to vector<2x20xf32>
    %464 = arith.subf %463, %462 : vector<2x20xf32>
    %465 = math.exp %464 : vector<2x20xf32>
    %cst_203 = arith.constant 1.000000e+00 : f32
    %466 = vector.broadcast %cst_203 : f32 to vector<2x20xf32>
    %467 = arith.addf %466, %465 : vector<2x20xf32>
    %cst_204 = arith.constant 1.000000e+00 : f32
    %468 = vector.broadcast %cst_204 : f32 to vector<2x20xf32>
    %469 = arith.divf %468, %467 : vector<2x20xf32>
    %470 = vector.extract_strided_slice %309 {offsets = [8, 0], sizes = [2, 20], strides = [1, 1]} : vector<16x20xf32> to vector<2x20xf32>
    %cst_205 = arith.constant dense<0.000000e+00> : vector<2x20xf32>
    %471 = tpu.matmul %448, %315, %cst_205 {dimension_numbers = #tpu.dot_dimension_numbers<[1], [0], [0], [1], [0, 0, 1, 1], [], []>} : vector<2x20xf32>, vector<20x20xf32>, vector<2x20xf32> -> vector<2x20xf32>
    %472 = vector.broadcast %316 : vector<1x20xf32> to vector<2x20xf32>
    %473 = arith.addf %471, %472 : vector<2x20xf32>
    %474 = arith.mulf %459, %473 : vector<2x20xf32>
    %475 = arith.addf %470, %474 : vector<2x20xf32>
    %476 = math.tanh %475 : vector<2x20xf32>
    %cst_206 = arith.constant 1.000000e+00 : f32
    %477 = vector.broadcast %cst_206 : f32 to vector<2x20xf32>
    %478 = arith.subf %477, %469 : vector<2x20xf32>
    %479 = arith.mulf %478, %476 : vector<2x20xf32>
    %480 = arith.mulf %469, %448 : vector<2x20xf32>
    %481 = arith.addf %479, %480 : vector<2x20xf32>
    %c8_207 = arith.constant 8 : index
    %c0_208 = arith.constant 0 : index
    %482 = vector.load %arg19[%c8_207, %c0_208] : memref<16x20xf32, #tpu.memory_space<vmem>>, vector<2x20xf32>
    tpu.vector_store %arg19[%c8_207, %c0_208], %481 {strides = array<i32>} : memref<16x20xf32, #tpu.memory_space<vmem>>, vector<2x20xf32>,
    %483 = vector.extract_strided_slice %297 {offsets = [10, 0], sizes = [2, 20], strides = [1, 1]} : vector<16x20xf32> to vector<2x20xf32>
    %cst_209 = arith.constant dense<0.000000e+00> : vector<2x20xf32>
    %484 = tpu.matmul %481, %311, %cst_209 {dimension_numbers = #tpu.dot_dimension_numbers<[1], [0], [0], [1], [0, 0, 1, 1], [], []>} : vector<2x20xf32>, vector<20x20xf32>, vector<2x20xf32> -> vector<2x20xf32>
    %485 = arith.addf %483, %484 : vector<2x20xf32>
    %cst_210 = arith.constant 0.000000e+00 : f32
    %486 = vector.broadcast %cst_210 : f32 to vector<2x20xf32>
    %487 = arith.subf %486, %485 : vector<2x20xf32>
    %488 = math.exp %487 : vector<2x20xf32>
    %cst_211 = arith.constant 1.000000e+00 : f32
    %489 = vector.broadcast %cst_211 : f32 to vector<2x20xf32>
    %490 = arith.addf %489, %488 : vector<2x20xf32>
    %cst_212 = arith.constant 1.000000e+00 : f32
    %491 = vector.broadcast %cst_212 : f32 to vector<2x20xf32>
    %492 = arith.divf %491, %490 : vector<2x20xf32>
    %493 = vector.extract_strided_slice %303 {offsets = [10, 0], sizes = [2, 20], strides = [1, 1]} : vector<16x20xf32> to vector<2x20xf32>
    %cst_213 = arith.constant dense<0.000000e+00> : vector<2x20xf32>
    %494 = tpu.matmul %481, %313, %cst_213 {dimension_numbers = #tpu.dot_dimension_numbers<[1], [0], [0], [1], [0, 0, 1, 1], [], []>} : vector<2x20xf32>, vector<20x20xf32>, vector<2x20xf32> -> vector<2x20xf32>
    %495 = arith.addf %493, %494 : vector<2x20xf32>
    %cst_214 = arith.constant 0.000000e+00 : f32
    %496 = vector.broadcast %cst_214 : f32 to vector<2x20xf32>
    %497 = arith.subf %496, %495 : vector<2x20xf32>
    %498 = math.exp %497 : vector<2x20xf32>
    %cst_215 = arith.constant 1.000000e+00 : f32
    %499 = vector.broadcast %cst_215 : f32 to vector<2x20xf32>
    %500 = arith.addf %499, %498 : vector<2x20xf32>
    %cst_216 = arith.constant 1.000000e+00 : f32
    %501 = vector.broadcast %cst_216 : f32 to vector<2x20xf32>
    %502 = arith.divf %501, %500 : vector<2x20xf32>
    %503 = vector.extract_strided_slice %309 {offsets = [10, 0], sizes = [2, 20], strides = [1, 1]} : vector<16x20xf32> to vector<2x20xf32>
    %cst_217 = arith.constant dense<0.000000e+00> : vector<2x20xf32>
    %504 = tpu.matmul %481, %315, %cst_217 {dimension_numbers = #tpu.dot_dimension_numbers<[1], [0], [0], [1], [0, 0, 1, 1], [], []>} : vector<2x20xf32>, vector<20x20xf32>, vector<2x20xf32> -> vector<2x20xf32>
    %505 = vector.broadcast %316 : vector<1x20xf32> to vector<2x20xf32>
    %506 = arith.addf %504, %505 : vector<2x20xf32>
    %507 = arith.mulf %492, %506 : vector<2x20xf32>
    %508 = arith.addf %503, %507 : vector<2x20xf32>
    %509 = math.tanh %508 : vector<2x20xf32>
    %cst_218 = arith.constant 1.000000e+00 : f32
    %510 = vector.broadcast %cst_218 : f32 to vector<2x20xf32>
    %511 = arith.subf %510, %502 : vector<2x20xf32>
    %512 = arith.mulf %511, %509 : vector<2x20xf32>
    %513 = arith.mulf %502, %481 : vector<2x20xf32>
    %514 = arith.addf %512, %513 : vector<2x20xf32>
    %c10_219 = arith.constant 10 : index
    %c0_220 = arith.constant 0 : index
    %515 = vector.load %arg19[%c10_219, %c0_220] : memref<16x20xf32, #tpu.memory_space<vmem>>, vector<2x20xf32>
    tpu.vector_store %arg19[%c10_219, %c0_220], %514 {strides = array<i32>} : memref<16x20xf32, #tpu.memory_space<vmem>>, vector<2x20xf32>,
    %516 = vector.extract_strided_slice %297 {offsets = [12, 0], sizes = [2, 20], strides = [1, 1]} : vector<16x20xf32> to vector<2x20xf32>
    %cst_221 = arith.constant dense<0.000000e+00> : vector<2x20xf32>
    %517 = tpu.matmul %514, %311, %cst_221 {dimension_numbers = #tpu.dot_dimension_numbers<[1], [0], [0], [1], [0, 0, 1, 1], [], []>} : vector<2x20xf32>, vector<20x20xf32>, vector<2x20xf32> -> vector<2x20xf32>
    %518 = arith.addf %516, %517 : vector<2x20xf32>
    %cst_222 = arith.constant 0.000000e+00 : f32
    %519 = vector.broadcast %cst_222 : f32 to vector<2x20xf32>
    %520 = arith.subf %519, %518 : vector<2x20xf32>
    %521 = math.exp %520 : vector<2x20xf32>
    %cst_223 = arith.constant 1.000000e+00 : f32
    %522 = vector.broadcast %cst_223 : f32 to vector<2x20xf32>
    %523 = arith.addf %522, %521 : vector<2x20xf32>
    %cst_224 = arith.constant 1.000000e+00 : f32
    %524 = vector.broadcast %cst_224 : f32 to vector<2x20xf32>
    %525 = arith.divf %524, %523 : vector<2x20xf32>
    %526 = vector.extract_strided_slice %303 {offsets = [12, 0], sizes = [2, 20], strides = [1, 1]} : vector<16x20xf32> to vector<2x20xf32>
    %cst_225 = arith.constant dense<0.000000e+00> : vector<2x20xf32>
    %527 = tpu.matmul %514, %313, %cst_225 {dimension_numbers = #tpu.dot_dimension_numbers<[1], [0], [0], [1], [0, 0, 1, 1], [], []>} : vector<2x20xf32>, vector<20x20xf32>, vector<2x20xf32> -> vector<2x20xf32>
    %528 = arith.addf %526, %527 : vector<2x20xf32>
    %cst_226 = arith.constant 0.000000e+00 : f32
    %529 = vector.broadcast %cst_226 : f32 to vector<2x20xf32>
    %530 = arith.subf %529, %528 : vector<2x20xf32>
    %531 = math.exp %530 : vector<2x20xf32>
    %cst_227 = arith.constant 1.000000e+00 : f32
    %532 = vector.broadcast %cst_227 : f32 to vector<2x20xf32>
    %533 = arith.addf %532, %531 : vector<2x20xf32>
    %cst_228 = arith.constant 1.000000e+00 : f32
    %534 = vector.broadcast %cst_228 : f32 to vector<2x20xf32>
    %535 = arith.divf %534, %533 : vector<2x20xf32>
    %536 = vector.extract_strided_slice %309 {offsets = [12, 0], sizes = [2, 20], strides = [1, 1]} : vector<16x20xf32> to vector<2x20xf32>
    %cst_229 = arith.constant dense<0.000000e+00> : vector<2x20xf32>
    %537 = tpu.matmul %514, %315, %cst_229 {dimension_numbers = #tpu.dot_dimension_numbers<[1], [0], [0], [1], [0, 0, 1, 1], [], []>} : vector<2x20xf32>, vector<20x20xf32>, vector<2x20xf32> -> vector<2x20xf32>
    %538 = vector.broadcast %316 : vector<1x20xf32> to vector<2x20xf32>
    %539 = arith.addf %537, %538 : vector<2x20xf32>
    %540 = arith.mulf %525, %539 : vector<2x20xf32>
    %541 = arith.addf %536, %540 : vector<2x20xf32>
    %542 = math.tanh %541 : vector<2x20xf32>
    %cst_230 = arith.constant 1.000000e+00 : f32
    %543 = vector.broadcast %cst_230 : f32 to vector<2x20xf32>
    %544 = arith.subf %543, %535 : vector<2x20xf32>
    %545 = arith.mulf %544, %542 : vector<2x20xf32>
    %546 = arith.mulf %535, %514 : vector<2x20xf32>
    %547 = arith.addf %545, %546 : vector<2x20xf32>
    %c12_231 = arith.constant 12 : index
    %c0_232 = arith.constant 0 : index
    %548 = vector.load %arg19[%c12_231, %c0_232] : memref<16x20xf32, #tpu.memory_space<vmem>>, vector<2x20xf32>
    tpu.vector_store %arg19[%c12_231, %c0_232], %547 {strides = array<i32>} : memref<16x20xf32, #tpu.memory_space<vmem>>, vector<2x20xf32>,
    %549 = vector.extract_strided_slice %297 {offsets = [14, 0], sizes = [2, 20], strides = [1, 1]} : vector<16x20xf32> to vector<2x20xf32>
    %cst_233 = arith.constant dense<0.000000e+00> : vector<2x20xf32>
    %550 = tpu.matmul %547, %311, %cst_233 {dimension_numbers = #tpu.dot_dimension_numbers<[1], [0], [0], [1], [0, 0, 1, 1], [], []>} : vector<2x20xf32>, vector<20x20xf32>, vector<2x20xf32> -> vector<2x20xf32>
    %551 = arith.addf %549, %550 : vector<2x20xf32>
    %cst_234 = arith.constant 0.000000e+00 : f32
    %552 = vector.broadcast %cst_234 : f32 to vector<2x20xf32>
    %553 = arith.subf %552, %551 : vector<2x20xf32>
    %554 = math.exp %553 : vector<2x20xf32>
    %cst_235 = arith.constant 1.000000e+00 : f32
    %555 = vector.broadcast %cst_235 : f32 to vector<2x20xf32>
    %556 = arith.addf %555, %554 : vector<2x20xf32>
    %cst_236 = arith.constant 1.000000e+00 : f32
    %557 = vector.broadcast %cst_236 : f32 to vector<2x20xf32>
    %558 = arith.divf %557, %556 : vector<2x20xf32>
    %559 = vector.extract_strided_slice %303 {offsets = [14, 0], sizes = [2, 20], strides = [1, 1]} : vector<16x20xf32> to vector<2x20xf32>
    %cst_237 = arith.constant dense<0.000000e+00> : vector<2x20xf32>
    %560 = tpu.matmul %547, %313, %cst_237 {dimension_numbers = #tpu.dot_dimension_numbers<[1], [0], [0], [1], [0, 0, 1, 1], [], []>} : vector<2x20xf32>, vector<20x20xf32>, vector<2x20xf32> -> vector<2x20xf32>
    %561 = arith.addf %559, %560 : vector<2x20xf32>
    %cst_238 = arith.constant 0.000000e+00 : f32
    %562 = vector.broadcast %cst_238 : f32 to vector<2x20xf32>
    %563 = arith.subf %562, %561 : vector<2x20xf32>
    %564 = math.exp %563 : vector<2x20xf32>
    %cst_239 = arith.constant 1.000000e+00 : f32
    %565 = vector.broadcast %cst_239 : f32 to vector<2x20xf32>
    %566 = arith.addf %565, %564 : vector<2x20xf32>
    %cst_240 = arith.constant 1.000000e+00 : f32
    %567 = vector.broadcast %cst_240 : f32 to vector<2x20xf32>
    %568 = arith.divf %567, %566 : vector<2x20xf32>
    %569 = vector.extract_strided_slice %309 {offsets = [14, 0], sizes = [2, 20], strides = [1, 1]} : vector<16x20xf32> to vector<2x20xf32>
    %cst_241 = arith.constant dense<0.000000e+00> : vector<2x20xf32>
    %570 = tpu.matmul %547, %315, %cst_241 {dimension_numbers = #tpu.dot_dimension_numbers<[1], [0], [0], [1], [0, 0, 1, 1], [], []>} : vector<2x20xf32>, vector<20x20xf32>, vector<2x20xf32> -> vector<2x20xf32>
    %571 = vector.broadcast %316 : vector<1x20xf32> to vector<2x20xf32>
    %572 = arith.addf %570, %571 : vector<2x20xf32>
    %573 = arith.mulf %558, %572 : vector<2x20xf32>
    %574 = arith.addf %569, %573 : vector<2x20xf32>
    %575 = math.tanh %574 : vector<2x20xf32>
    %cst_242 = arith.constant 1.000000e+00 : f32
    %576 = vector.broadcast %cst_242 : f32 to vector<2x20xf32>
    %577 = arith.subf %576, %568 : vector<2x20xf32>
    %578 = arith.mulf %577, %575 : vector<2x20xf32>
    %579 = arith.mulf %568, %547 : vector<2x20xf32>
    %580 = arith.addf %578, %579 : vector<2x20xf32>
    %c14_243 = arith.constant 14 : index
    %c0_244 = arith.constant 0 : index
    %581 = vector.load %arg19[%c14_243, %c0_244] : memref<16x20xf32, #tpu.memory_space<vmem>>, vector<2x20xf32>
    tpu.vector_store %arg19[%c14_243, %c0_244], %580 {strides = array<i32>} : memref<16x20xf32, #tpu.memory_space<vmem>>, vector<2x20xf32>,
    %c0_245 = arith.constant 0 : index
    %c0_246 = arith.constant 0 : index
    %582 = vector.load %arg19[%c0_245, %c0_246] : memref<16x20xf32, #tpu.memory_space<vmem>>, vector<16x20xf32>
    %c0_247 = arith.constant 0 : index
    %c0_248 = arith.constant 0 : index
    %c0_249 = arith.constant 0 : index
    %583 = vector.load %arg8[%c0_247, %c0_248, %c0_249] : memref<3x20x20xf32, #tpu.memory_space<vmem>>, vector<1x20x20xf32>
    %584 = vector.shape_cast %583 : vector<1x20x20xf32> to vector<20x20xf32>
    %cst_250 = arith.constant dense<0.000000e+00> : vector<16x20xf32>
    %585 = tpu.matmul %582, %584, %cst_250 {dimension_numbers = #tpu.dot_dimension_numbers<[1], [0], [0], [1], [0, 0, 1, 1], [], []>} : vector<16x20xf32>, vector<20x20xf32>, vector<16x20xf32> -> vector<16x20xf32>
    %c0_251 = arith.constant 0 : index
    %c0_252 = arith.constant 0 : index
    %586 = vector.load %arg10[%c0_251, %c0_252] : memref<4x20xf32, #tpu.memory_space<vmem>>, vector<1x20xf32>
    %587 = vector.broadcast %586 : vector<1x20xf32> to vector<16x20xf32>
    %588 = arith.addf %585, %587 : vector<16x20xf32>
    %c1_253 = arith.constant 1 : index
    %c0_254 = arith.constant 0 : index
    %c0_255 = arith.constant 0 : index
    %589 = vector.load %arg8[%c1_253, %c0_254, %c0_255] : memref<3x20x20xf32, #tpu.memory_space<vmem>>, vector<1x20x20xf32>
    %590 = vector.shape_cast %589 : vector<1x20x20xf32> to vector<20x20xf32>
    %cst_256 = arith.constant dense<0.000000e+00> : vector<16x20xf32>
    %591 = tpu.matmul %582, %590, %cst_256 {dimension_numbers = #tpu.dot_dimension_numbers<[1], [0], [0], [1], [0, 0, 1, 1], [], []>} : vector<16x20xf32>, vector<20x20xf32>, vector<16x20xf32> -> vector<16x20xf32>
    %c1_257 = arith.constant 1 : index
    %c0_258 = arith.constant 0 : index
    %592 = vector.load %arg10[%c1_257, %c0_258] : memref<4x20xf32, #tpu.memory_space<vmem>>, vector<1x20xf32>
    %593 = vector.broadcast %592 : vector<1x20xf32> to vector<16x20xf32>
    %594 = arith.addf %591, %593 : vector<16x20xf32>
    %c2_259 = arith.constant 2 : index
    %c0_260 = arith.constant 0 : index
    %c0_261 = arith.constant 0 : index
    %595 = vector.load %arg8[%c2_259, %c0_260, %c0_261] : memref<3x20x20xf32, #tpu.memory_space<vmem>>, vector<1x20x20xf32>
    %596 = vector.shape_cast %595 : vector<1x20x20xf32> to vector<20x20xf32>
    %cst_262 = arith.constant dense<0.000000e+00> : vector<16x20xf32>
    %597 = tpu.matmul %582, %596, %cst_262 {dimension_numbers = #tpu.dot_dimension_numbers<[1], [0], [0], [1], [0, 0, 1, 1], [], []>} : vector<16x20xf32>, vector<20x20xf32>, vector<16x20xf32> -> vector<16x20xf32>
    %c2_263 = arith.constant 2 : index
    %c0_264 = arith.constant 0 : index
    %598 = vector.load %arg10[%c2_263, %c0_264] : memref<4x20xf32, #tpu.memory_space<vmem>>, vector<1x20xf32>
    %599 = vector.broadcast %598 : vector<1x20xf32> to vector<16x20xf32>
    %600 = arith.addf %597, %599 : vector<16x20xf32>
    %c0_265 = arith.constant 0 : index
    %c0_266 = arith.constant 0 : index
    %c0_267 = arith.constant 0 : index
    %601 = vector.load %arg9[%c0_265, %c0_266, %c0_267] : memref<3x20x20xf32, #tpu.memory_space<vmem>>, vector<1x20x20xf32>
    %602 = vector.shape_cast %601 : vector<1x20x20xf32> to vector<20x20xf32>
    %c1_268 = arith.constant 1 : index
    %c0_269 = arith.constant 0 : index
    %c0_270 = arith.constant 0 : index
    %603 = vector.load %arg9[%c1_268, %c0_269, %c0_270] : memref<3x20x20xf32, #tpu.memory_space<vmem>>, vector<1x20x20xf32>
    %604 = vector.shape_cast %603 : vector<1x20x20xf32> to vector<20x20xf32>
    %c2_271 = arith.constant 2 : index
    %c0_272 = arith.constant 0 : index
    %c0_273 = arith.constant 0 : index
    %605 = vector.load %arg9[%c2_271, %c0_272, %c0_273] : memref<3x20x20xf32, #tpu.memory_space<vmem>>, vector<1x20x20xf32>
    %606 = vector.shape_cast %605 : vector<1x20x20xf32> to vector<20x20xf32>
    %c3_274 = arith.constant 3 : index
    %c0_275 = arith.constant 0 : index
    %607 = vector.load %arg10[%c3_274, %c0_275] : memref<4x20xf32, #tpu.memory_space<vmem>>, vector<1x20xf32>
    %cst_276 = arith.constant 0.000000e+00 : f32
    %608 = vector.broadcast %cst_276 : f32 to vector<2x20xf32>
    %609 = vector.extract_strided_slice %588 {offsets = [0, 0], sizes = [2, 20], strides = [1, 1]} : vector<16x20xf32> to vector<2x20xf32>
    %cst_277 = arith.constant dense<0.000000e+00> : vector<2x20xf32>
    %610 = tpu.matmul %608, %602, %cst_277 {dimension_numbers = #tpu.dot_dimension_numbers<[1], [0], [0], [1], [0, 0, 1, 1], [], []>} : vector<2x20xf32>, vector<20x20xf32>, vector<2x20xf32> -> vector<2x20xf32>
    %611 = arith.addf %609, %610 : vector<2x20xf32>
    %cst_278 = arith.constant 0.000000e+00 : f32
    %612 = vector.broadcast %cst_278 : f32 to vector<2x20xf32>
    %613 = arith.subf %612, %611 : vector<2x20xf32>
    %614 = math.exp %613 : vector<2x20xf32>
    %cst_279 = arith.constant 1.000000e+00 : f32
    %615 = vector.broadcast %cst_279 : f32 to vector<2x20xf32>
    %616 = arith.addf %615, %614 : vector<2x20xf32>
    %cst_280 = arith.constant 1.000000e+00 : f32
    %617 = vector.broadcast %cst_280 : f32 to vector<2x20xf32>
    %618 = arith.divf %617, %616 : vector<2x20xf32>
    %619 = vector.extract_strided_slice %594 {offsets = [0, 0], sizes = [2, 20], strides = [1, 1]} : vector<16x20xf32> to vector<2x20xf32>
    %cst_281 = arith.constant dense<0.000000e+00> : vector<2x20xf32>
    %620 = tpu.matmul %608, %604, %cst_281 {dimension_numbers = #tpu.dot_dimension_numbers<[1], [0], [0], [1], [0, 0, 1, 1], [], []>} : vector<2x20xf32>, vector<20x20xf32>, vector<2x20xf32> -> vector<2x20xf32>
    %621 = arith.addf %619, %620 : vector<2x20xf32>
    %cst_282 = arith.constant 0.000000e+00 : f32
    %622 = vector.broadcast %cst_282 : f32 to vector<2x20xf32>
    %623 = arith.subf %622, %621 : vector<2x20xf32>
    %624 = math.exp %623 : vector<2x20xf32>
    %cst_283 = arith.constant 1.000000e+00 : f32
    %625 = vector.broadcast %cst_283 : f32 to vector<2x20xf32>
    %626 = arith.addf %625, %624 : vector<2x20xf32>
    %cst_284 = arith.constant 1.000000e+00 : f32
    %627 = vector.broadcast %cst_284 : f32 to vector<2x20xf32>
    %628 = arith.divf %627, %626 : vector<2x20xf32>
    %629 = vector.extract_strided_slice %600 {offsets = [0, 0], sizes = [2, 20], strides = [1, 1]} : vector<16x20xf32> to vector<2x20xf32>
    %cst_285 = arith.constant dense<0.000000e+00> : vector<2x20xf32>
    %630 = tpu.matmul %608, %606, %cst_285 {dimension_numbers = #tpu.dot_dimension_numbers<[1], [0], [0], [1], [0, 0, 1, 1], [], []>} : vector<2x20xf32>, vector<20x20xf32>, vector<2x20xf32> -> vector<2x20xf32>
    %631 = vector.broadcast %607 : vector<1x20xf32> to vector<2x20xf32>
    %632 = arith.addf %630, %631 : vector<2x20xf32>
    %633 = arith.mulf %618, %632 : vector<2x20xf32>
    %634 = arith.addf %629, %633 : vector<2x20xf32>
    %635 = math.tanh %634 : vector<2x20xf32>
    %cst_286 = arith.constant 1.000000e+00 : f32
    %636 = vector.broadcast %cst_286 : f32 to vector<2x20xf32>
    %637 = arith.subf %636, %628 : vector<2x20xf32>
    %638 = arith.mulf %637, %635 : vector<2x20xf32>
    %639 = arith.mulf %628, %608 : vector<2x20xf32>
    %640 = arith.addf %638, %639 : vector<2x20xf32>
    %641 = vector.extract_strided_slice %640 {offsets = [1, 0], sizes = [1, 20], strides = [1, 1]} : vector<2x20xf32> to vector<1x20xf32>
    %c0_287 = arith.constant 0 : index
    %c0_288 = arith.constant 0 : index
    %642 = vector.load %arg20[%c0_287, %c0_288] : memref<8x20xf32, #tpu.memory_space<vmem>>, vector<1x20xf32>
    tpu.vector_store %arg20[%c0_287, %c0_288], %641 {strides = array<i32>} : memref<8x20xf32, #tpu.memory_space<vmem>>, vector<1x20xf32>,
    %643 = vector.extract_strided_slice %588 {offsets = [2, 0], sizes = [2, 20], strides = [1, 1]} : vector<16x20xf32> to vector<2x20xf32>
    %cst_289 = arith.constant dense<0.000000e+00> : vector<2x20xf32>
    %644 = tpu.matmul %640, %602, %cst_289 {dimension_numbers = #tpu.dot_dimension_numbers<[1], [0], [0], [1], [0, 0, 1, 1], [], []>} : vector<2x20xf32>, vector<20x20xf32>, vector<2x20xf32> -> vector<2x20xf32>
    %645 = arith.addf %643, %644 : vector<2x20xf32>
    %cst_290 = arith.constant 0.000000e+00 : f32
    %646 = vector.broadcast %cst_290 : f32 to vector<2x20xf32>
    %647 = arith.subf %646, %645 : vector<2x20xf32>
    %648 = math.exp %647 : vector<2x20xf32>
    %cst_291 = arith.constant 1.000000e+00 : f32
    %649 = vector.broadcast %cst_291 : f32 to vector<2x20xf32>
    %650 = arith.addf %649, %648 : vector<2x20xf32>
    %cst_292 = arith.constant 1.000000e+00 : f32
    %651 = vector.broadcast %cst_292 : f32 to vector<2x20xf32>
    %652 = arith.divf %651, %650 : vector<2x20xf32>
    %653 = vector.extract_strided_slice %594 {offsets = [2, 0], sizes = [2, 20], strides = [1, 1]} : vector<16x20xf32> to vector<2x20xf32>
    %cst_293 = arith.constant dense<0.000000e+00> : vector<2x20xf32>
    %654 = tpu.matmul %640, %604, %cst_293 {dimension_numbers = #tpu.dot_dimension_numbers<[1], [0], [0], [1], [0, 0, 1, 1], [], []>} : vector<2x20xf32>, vector<20x20xf32>, vector<2x20xf32> -> vector<2x20xf32>
    %655 = arith.addf %653, %654 : vector<2x20xf32>
    %cst_294 = arith.constant 0.000000e+00 : f32
    %656 = vector.broadcast %cst_294 : f32 to vector<2x20xf32>
    %657 = arith.subf %656, %655 : vector<2x20xf32>
    %658 = math.exp %657 : vector<2x20xf32>
    %cst_295 = arith.constant 1.000000e+00 : f32
    %659 = vector.broadcast %cst_295 : f32 to vector<2x20xf32>
    %660 = arith.addf %659, %658 : vector<2x20xf32>
    %cst_296 = arith.constant 1.000000e+00 : f32
    %661 = vector.broadcast %cst_296 : f32 to vector<2x20xf32>
    %662 = arith.divf %661, %660 : vector<2x20xf32>
    %663 = vector.extract_strided_slice %600 {offsets = [2, 0], sizes = [2, 20], strides = [1, 1]} : vector<16x20xf32> to vector<2x20xf32>
    %cst_297 = arith.constant dense<0.000000e+00> : vector<2x20xf32>
    %664 = tpu.matmul %640, %606, %cst_297 {dimension_numbers = #tpu.dot_dimension_numbers<[1], [0], [0], [1], [0, 0, 1, 1], [], []>} : vector<2x20xf32>, vector<20x20xf32>, vector<2x20xf32> -> vector<2x20xf32>
    %665 = vector.broadcast %607 : vector<1x20xf32> to vector<2x20xf32>
    %666 = arith.addf %664, %665 : vector<2x20xf32>
    %667 = arith.mulf %652, %666 : vector<2x20xf32>
    %668 = arith.addf %663, %667 : vector<2x20xf32>
    %669 = math.tanh %668 : vector<2x20xf32>
    %cst_298 = arith.constant 1.000000e+00 : f32
    %670 = vector.broadcast %cst_298 : f32 to vector<2x20xf32>
    %671 = arith.subf %670, %662 : vector<2x20xf32>
    %672 = arith.mulf %671, %669 : vector<2x20xf32>
    %673 = arith.mulf %662, %640 : vector<2x20xf32>
    %674 = arith.addf %672, %673 : vector<2x20xf32>
    %675 = vector.extract_strided_slice %674 {offsets = [1, 0], sizes = [1, 20], strides = [1, 1]} : vector<2x20xf32> to vector<1x20xf32>
    %c1_299 = arith.constant 1 : index
    %c0_300 = arith.constant 0 : index
    %676 = vector.load %arg20[%c1_299, %c0_300] : memref<8x20xf32, #tpu.memory_space<vmem>>, vector<1x20xf32>
    tpu.vector_store %arg20[%c1_299, %c0_300], %675 {strides = array<i32>} : memref<8x20xf32, #tpu.memory_space<vmem>>, vector<1x20xf32>,
    %677 = vector.extract_strided_slice %588 {offsets = [4, 0], sizes = [2, 20], strides = [1, 1]} : vector<16x20xf32> to vector<2x20xf32>
    %cst_301 = arith.constant dense<0.000000e+00> : vector<2x20xf32>
    %678 = tpu.matmul %674, %602, %cst_301 {dimension_numbers = #tpu.dot_dimension_numbers<[1], [0], [0], [1], [0, 0, 1, 1], [], []>} : vector<2x20xf32>, vector<20x20xf32>, vector<2x20xf32> -> vector<2x20xf32>
    %679 = arith.addf %677, %678 : vector<2x20xf32>
    %cst_302 = arith.constant 0.000000e+00 : f32
    %680 = vector.broadcast %cst_302 : f32 to vector<2x20xf32>
    %681 = arith.subf %680, %679 : vector<2x20xf32>
    %682 = math.exp %681 : vector<2x20xf32>
    %cst_303 = arith.constant 1.000000e+00 : f32
    %683 = vector.broadcast %cst_303 : f32 to vector<2x20xf32>
    %684 = arith.addf %683, %682 : vector<2x20xf32>
    %cst_304 = arith.constant 1.000000e+00 : f32
    %685 = vector.broadcast %cst_304 : f32 to vector<2x20xf32>
    %686 = arith.divf %685, %684 : vector<2x20xf32>
    %687 = vector.extract_strided_slice %594 {offsets = [4, 0], sizes = [2, 20], strides = [1, 1]} : vector<16x20xf32> to vector<2x20xf32>
    %cst_305 = arith.constant dense<0.000000e+00> : vector<2x20xf32>
    %688 = tpu.matmul %674, %604, %cst_305 {dimension_numbers = #tpu.dot_dimension_numbers<[1], [0], [0], [1], [0, 0, 1, 1], [], []>} : vector<2x20xf32>, vector<20x20xf32>, vector<2x20xf32> -> vector<2x20xf32>
    %689 = arith.addf %687, %688 : vector<2x20xf32>
    %cst_306 = arith.constant 0.000000e+00 : f32
    %690 = vector.broadcast %cst_306 : f32 to vector<2x20xf32>
    %691 = arith.subf %690, %689 : vector<2x20xf32>
    %692 = math.exp %691 : vector<2x20xf32>
    %cst_307 = arith.constant 1.000000e+00 : f32
    %693 = vector.broadcast %cst_307 : f32 to vector<2x20xf32>
    %694 = arith.addf %693, %692 : vector<2x20xf32>
    %cst_308 = arith.constant 1.000000e+00 : f32
    %695 = vector.broadcast %cst_308 : f32 to vector<2x20xf32>
    %696 = arith.divf %695, %694 : vector<2x20xf32>
    %697 = vector.extract_strided_slice %600 {offsets = [4, 0], sizes = [2, 20], strides = [1, 1]} : vector<16x20xf32> to vector<2x20xf32>
    %cst_309 = arith.constant dense<0.000000e+00> : vector<2x20xf32>
    %698 = tpu.matmul %674, %606, %cst_309 {dimension_numbers = #tpu.dot_dimension_numbers<[1], [0], [0], [1], [0, 0, 1, 1], [], []>} : vector<2x20xf32>, vector<20x20xf32>, vector<2x20xf32> -> vector<2x20xf32>
    %699 = vector.broadcast %607 : vector<1x20xf32> to vector<2x20xf32>
    %700 = arith.addf %698, %699 : vector<2x20xf32>
    %701 = arith.mulf %686, %700 : vector<2x20xf32>
    %702 = arith.addf %697, %701 : vector<2x20xf32>
    %703 = math.tanh %702 : vector<2x20xf32>
    %cst_310 = arith.constant 1.000000e+00 : f32
    %704 = vector.broadcast %cst_310 : f32 to vector<2x20xf32>
    %705 = arith.subf %704, %696 : vector<2x20xf32>
    %706 = arith.mulf %705, %703 : vector<2x20xf32>
    %707 = arith.mulf %696, %674 : vector<2x20xf32>
    %708 = arith.addf %706, %707 : vector<2x20xf32>
    %709 = vector.extract_strided_slice %708 {offsets = [1, 0], sizes = [1, 20], strides = [1, 1]} : vector<2x20xf32> to vector<1x20xf32>
    %c2_311 = arith.constant 2 : index
    %c0_312 = arith.constant 0 : index
    %710 = vector.load %arg20[%c2_311, %c0_312] : memref<8x20xf32, #tpu.memory_space<vmem>>, vector<1x20xf32>
    tpu.vector_store %arg20[%c2_311, %c0_312], %709 {strides = array<i32>} : memref<8x20xf32, #tpu.memory_space<vmem>>, vector<1x20xf32>,
    %711 = vector.extract_strided_slice %588 {offsets = [6, 0], sizes = [2, 20], strides = [1, 1]} : vector<16x20xf32> to vector<2x20xf32>
    %cst_313 = arith.constant dense<0.000000e+00> : vector<2x20xf32>
    %712 = tpu.matmul %708, %602, %cst_313 {dimension_numbers = #tpu.dot_dimension_numbers<[1], [0], [0], [1], [0, 0, 1, 1], [], []>} : vector<2x20xf32>, vector<20x20xf32>, vector<2x20xf32> -> vector<2x20xf32>
    %713 = arith.addf %711, %712 : vector<2x20xf32>
    %cst_314 = arith.constant 0.000000e+00 : f32
    %714 = vector.broadcast %cst_314 : f32 to vector<2x20xf32>
    %715 = arith.subf %714, %713 : vector<2x20xf32>
    %716 = math.exp %715 : vector<2x20xf32>
    %cst_315 = arith.constant 1.000000e+00 : f32
    %717 = vector.broadcast %cst_315 : f32 to vector<2x20xf32>
    %718 = arith.addf %717, %716 : vector<2x20xf32>
    %cst_316 = arith.constant 1.000000e+00 : f32
    %719 = vector.broadcast %cst_316 : f32 to vector<2x20xf32>
    %720 = arith.divf %719, %718 : vector<2x20xf32>
    %721 = vector.extract_strided_slice %594 {offsets = [6, 0], sizes = [2, 20], strides = [1, 1]} : vector<16x20xf32> to vector<2x20xf32>
    %cst_317 = arith.constant dense<0.000000e+00> : vector<2x20xf32>
    %722 = tpu.matmul %708, %604, %cst_317 {dimension_numbers = #tpu.dot_dimension_numbers<[1], [0], [0], [1], [0, 0, 1, 1], [], []>} : vector<2x20xf32>, vector<20x20xf32>, vector<2x20xf32> -> vector<2x20xf32>
    %723 = arith.addf %721, %722 : vector<2x20xf32>
    %cst_318 = arith.constant 0.000000e+00 : f32
    %724 = vector.broadcast %cst_318 : f32 to vector<2x20xf32>
    %725 = arith.subf %724, %723 : vector<2x20xf32>
    %726 = math.exp %725 : vector<2x20xf32>
    %cst_319 = arith.constant 1.000000e+00 : f32
    %727 = vector.broadcast %cst_319 : f32 to vector<2x20xf32>
    %728 = arith.addf %727, %726 : vector<2x20xf32>
    %cst_320 = arith.constant 1.000000e+00 : f32
    %729 = vector.broadcast %cst_320 : f32 to vector<2x20xf32>
    %730 = arith.divf %729, %728 : vector<2x20xf32>
    %731 = vector.extract_strided_slice %600 {offsets = [6, 0], sizes = [2, 20], strides = [1, 1]} : vector<16x20xf32> to vector<2x20xf32>
    %cst_321 = arith.constant dense<0.000000e+00> : vector<2x20xf32>
    %732 = tpu.matmul %708, %606, %cst_321 {dimension_numbers = #tpu.dot_dimension_numbers<[1], [0], [0], [1], [0, 0, 1, 1], [], []>} : vector<2x20xf32>, vector<20x20xf32>, vector<2x20xf32> -> vector<2x20xf32>
    %733 = vector.broadcast %607 : vector<1x20xf32> to vector<2x20xf32>
    %734 = arith.addf %732, %733 : vector<2x20xf32>
    %735 = arith.mulf %720, %734 : vector<2x20xf32>
    %736 = arith.addf %731, %735 : vector<2x20xf32>
    %737 = math.tanh %736 : vector<2x20xf32>
    %cst_322 = arith.constant 1.000000e+00 : f32
    %738 = vector.broadcast %cst_322 : f32 to vector<2x20xf32>
    %739 = arith.subf %738, %730 : vector<2x20xf32>
    %740 = arith.mulf %739, %737 : vector<2x20xf32>
    %741 = arith.mulf %730, %708 : vector<2x20xf32>
    %742 = arith.addf %740, %741 : vector<2x20xf32>
    %743 = vector.extract_strided_slice %742 {offsets = [1, 0], sizes = [1, 20], strides = [1, 1]} : vector<2x20xf32> to vector<1x20xf32>
    %c3_323 = arith.constant 3 : index
    %c0_324 = arith.constant 0 : index
    %744 = vector.load %arg20[%c3_323, %c0_324] : memref<8x20xf32, #tpu.memory_space<vmem>>, vector<1x20xf32>
    tpu.vector_store %arg20[%c3_323, %c0_324], %743 {strides = array<i32>} : memref<8x20xf32, #tpu.memory_space<vmem>>, vector<1x20xf32>,
    %745 = vector.extract_strided_slice %588 {offsets = [8, 0], sizes = [2, 20], strides = [1, 1]} : vector<16x20xf32> to vector<2x20xf32>
    %cst_325 = arith.constant dense<0.000000e+00> : vector<2x20xf32>
    %746 = tpu.matmul %742, %602, %cst_325 {dimension_numbers = #tpu.dot_dimension_numbers<[1], [0], [0], [1], [0, 0, 1, 1], [], []>} : vector<2x20xf32>, vector<20x20xf32>, vector<2x20xf32> -> vector<2x20xf32>
    %747 = arith.addf %745, %746 : vector<2x20xf32>
    %cst_326 = arith.constant 0.000000e+00 : f32
    %748 = vector.broadcast %cst_326 : f32 to vector<2x20xf32>
    %749 = arith.subf %748, %747 : vector<2x20xf32>
    %750 = math.exp %749 : vector<2x20xf32>
    %cst_327 = arith.constant 1.000000e+00 : f32
    %751 = vector.broadcast %cst_327 : f32 to vector<2x20xf32>
    %752 = arith.addf %751, %750 : vector<2x20xf32>
    %cst_328 = arith.constant 1.000000e+00 : f32
    %753 = vector.broadcast %cst_328 : f32 to vector<2x20xf32>
    %754 = arith.divf %753, %752 : vector<2x20xf32>
    %755 = vector.extract_strided_slice %594 {offsets = [8, 0], sizes = [2, 20], strides = [1, 1]} : vector<16x20xf32> to vector<2x20xf32>
    %cst_329 = arith.constant dense<0.000000e+00> : vector<2x20xf32>
    %756 = tpu.matmul %742, %604, %cst_329 {dimension_numbers = #tpu.dot_dimension_numbers<[1], [0], [0], [1], [0, 0, 1, 1], [], []>} : vector<2x20xf32>, vector<20x20xf32>, vector<2x20xf32> -> vector<2x20xf32>
    %757 = arith.addf %755, %756 : vector<2x20xf32>
    %cst_330 = arith.constant 0.000000e+00 : f32
    %758 = vector.broadcast %cst_330 : f32 to vector<2x20xf32>
    %759 = arith.subf %758, %757 : vector<2x20xf32>
    %760 = math.exp %759 : vector<2x20xf32>
    %cst_331 = arith.constant 1.000000e+00 : f32
    %761 = vector.broadcast %cst_331 : f32 to vector<2x20xf32>
    %762 = arith.addf %761, %760 : vector<2x20xf32>
    %cst_332 = arith.constant 1.000000e+00 : f32
    %763 = vector.broadcast %cst_332 : f32 to vector<2x20xf32>
    %764 = arith.divf %763, %762 : vector<2x20xf32>
    %765 = vector.extract_strided_slice %600 {offsets = [8, 0], sizes = [2, 20], strides = [1, 1]} : vector<16x20xf32> to vector<2x20xf32>
    %cst_333 = arith.constant dense<0.000000e+00> : vector<2x20xf32>
    %766 = tpu.matmul %742, %606, %cst_333 {dimension_numbers = #tpu.dot_dimension_numbers<[1], [0], [0], [1], [0, 0, 1, 1], [], []>} : vector<2x20xf32>, vector<20x20xf32>, vector<2x20xf32> -> vector<2x20xf32>
    %767 = vector.broadcast %607 : vector<1x20xf32> to vector<2x20xf32>
    %768 = arith.addf %766, %767 : vector<2x20xf32>
    %769 = arith.mulf %754, %768 : vector<2x20xf32>
    %770 = arith.addf %765, %769 : vector<2x20xf32>
    %771 = math.tanh %770 : vector<2x20xf32>
    %cst_334 = arith.constant 1.000000e+00 : f32
    %772 = vector.broadcast %cst_334 : f32 to vector<2x20xf32>
    %773 = arith.subf %772, %764 : vector<2x20xf32>
    %774 = arith.mulf %773, %771 : vector<2x20xf32>
    %775 = arith.mulf %764, %742 : vector<2x20xf32>
    %776 = arith.addf %774, %775 : vector<2x20xf32>
    %777 = vector.extract_strided_slice %776 {offsets = [1, 0], sizes = [1, 20], strides = [1, 1]} : vector<2x20xf32> to vector<1x20xf32>
    %c4_335 = arith.constant 4 : index
    %c0_336 = arith.constant 0 : index
    %778 = vector.load %arg20[%c4_335, %c0_336] : memref<8x20xf32, #tpu.memory_space<vmem>>, vector<1x20xf32>
    tpu.vector_store %arg20[%c4_335, %c0_336], %777 {strides = array<i32>} : memref<8x20xf32, #tpu.memory_space<vmem>>, vector<1x20xf32>,
    %779 = vector.extract_strided_slice %588 {offsets = [10, 0], sizes = [2, 20], strides = [1, 1]} : vector<16x20xf32> to vector<2x20xf32>
    %cst_337 = arith.constant dense<0.000000e+00> : vector<2x20xf32>
    %780 = tpu.matmul %776, %602, %cst_337 {dimension_numbers = #tpu.dot_dimension_numbers<[1], [0], [0], [1], [0, 0, 1, 1], [], []>} : vector<2x20xf32>, vector<20x20xf32>, vector<2x20xf32> -> vector<2x20xf32>
    %781 = arith.addf %779, %780 : vector<2x20xf32>
    %cst_338 = arith.constant 0.000000e+00 : f32
    %782 = vector.broadcast %cst_338 : f32 to vector<2x20xf32>
    %783 = arith.subf %782, %781 : vector<2x20xf32>
    %784 = math.exp %783 : vector<2x20xf32>
    %cst_339 = arith.constant 1.000000e+00 : f32
    %785 = vector.broadcast %cst_339 : f32 to vector<2x20xf32>
    %786 = arith.addf %785, %784 : vector<2x20xf32>
    %cst_340 = arith.constant 1.000000e+00 : f32
    %787 = vector.broadcast %cst_340 : f32 to vector<2x20xf32>
    %788 = arith.divf %787, %786 : vector<2x20xf32>
    %789 = vector.extract_strided_slice %594 {offsets = [10, 0], sizes = [2, 20], strides = [1, 1]} : vector<16x20xf32> to vector<2x20xf32>
    %cst_341 = arith.constant dense<0.000000e+00> : vector<2x20xf32>
    %790 = tpu.matmul %776, %604, %cst_341 {dimension_numbers = #tpu.dot_dimension_numbers<[1], [0], [0], [1], [0, 0, 1, 1], [], []>} : vector<2x20xf32>, vector<20x20xf32>, vector<2x20xf32> -> vector<2x20xf32>
    %791 = arith.addf %789, %790 : vector<2x20xf32>
    %cst_342 = arith.constant 0.000000e+00 : f32
    %792 = vector.broadcast %cst_342 : f32 to vector<2x20xf32>
    %793 = arith.subf %792, %791 : vector<2x20xf32>
    %794 = math.exp %793 : vector<2x20xf32>
    %cst_343 = arith.constant 1.000000e+00 : f32
    %795 = vector.broadcast %cst_343 : f32 to vector<2x20xf32>
    %796 = arith.addf %795, %794 : vector<2x20xf32>
    %cst_344 = arith.constant 1.000000e+00 : f32
    %797 = vector.broadcast %cst_344 : f32 to vector<2x20xf32>
    %798 = arith.divf %797, %796 : vector<2x20xf32>
    %799 = vector.extract_strided_slice %600 {offsets = [10, 0], sizes = [2, 20], strides = [1, 1]} : vector<16x20xf32> to vector<2x20xf32>
    %cst_345 = arith.constant dense<0.000000e+00> : vector<2x20xf32>
    %800 = tpu.matmul %776, %606, %cst_345 {dimension_numbers = #tpu.dot_dimension_numbers<[1], [0], [0], [1], [0, 0, 1, 1], [], []>} : vector<2x20xf32>, vector<20x20xf32>, vector<2x20xf32> -> vector<2x20xf32>
    %801 = vector.broadcast %607 : vector<1x20xf32> to vector<2x20xf32>
    %802 = arith.addf %800, %801 : vector<2x20xf32>
    %803 = arith.mulf %788, %802 : vector<2x20xf32>
    %804 = arith.addf %799, %803 : vector<2x20xf32>
    %805 = math.tanh %804 : vector<2x20xf32>
    %cst_346 = arith.constant 1.000000e+00 : f32
    %806 = vector.broadcast %cst_346 : f32 to vector<2x20xf32>
    %807 = arith.subf %806, %798 : vector<2x20xf32>
    %808 = arith.mulf %807, %805 : vector<2x20xf32>
    %809 = arith.mulf %798, %776 : vector<2x20xf32>
    %810 = arith.addf %808, %809 : vector<2x20xf32>
    %811 = vector.extract_strided_slice %810 {offsets = [1, 0], sizes = [1, 20], strides = [1, 1]} : vector<2x20xf32> to vector<1x20xf32>
    %c5 = arith.constant 5 : index
    %c0_347 = arith.constant 0 : index
    %812 = vector.load %arg20[%c5, %c0_347] : memref<8x20xf32, #tpu.memory_space<vmem>>, vector<1x20xf32>
    tpu.vector_store %arg20[%c5, %c0_347], %811 {strides = array<i32>} : memref<8x20xf32, #tpu.memory_space<vmem>>, vector<1x20xf32>,
    %813 = vector.extract_strided_slice %588 {offsets = [12, 0], sizes = [2, 20], strides = [1, 1]} : vector<16x20xf32> to vector<2x20xf32>
    %cst_348 = arith.constant dense<0.000000e+00> : vector<2x20xf32>
    %814 = tpu.matmul %810, %602, %cst_348 {dimension_numbers = #tpu.dot_dimension_numbers<[1], [0], [0], [1], [0, 0, 1, 1], [], []>} : vector<2x20xf32>, vector<20x20xf32>, vector<2x20xf32> -> vector<2x20xf32>
    %815 = arith.addf %813, %814 : vector<2x20xf32>
    %cst_349 = arith.constant 0.000000e+00 : f32
    %816 = vector.broadcast %cst_349 : f32 to vector<2x20xf32>
    %817 = arith.subf %816, %815 : vector<2x20xf32>
    %818 = math.exp %817 : vector<2x20xf32>
    %cst_350 = arith.constant 1.000000e+00 : f32
    %819 = vector.broadcast %cst_350 : f32 to vector<2x20xf32>
    %820 = arith.addf %819, %818 : vector<2x20xf32>
    %cst_351 = arith.constant 1.000000e+00 : f32
    %821 = vector.broadcast %cst_351 : f32 to vector<2x20xf32>
    %822 = arith.divf %821, %820 : vector<2x20xf32>
    %823 = vector.extract_strided_slice %594 {offsets = [12, 0], sizes = [2, 20], strides = [1, 1]} : vector<16x20xf32> to vector<2x20xf32>
    %cst_352 = arith.constant dense<0.000000e+00> : vector<2x20xf32>
    %824 = tpu.matmul %810, %604, %cst_352 {dimension_numbers = #tpu.dot_dimension_numbers<[1], [0], [0], [1], [0, 0, 1, 1], [], []>} : vector<2x20xf32>, vector<20x20xf32>, vector<2x20xf32> -> vector<2x20xf32>
    %825 = arith.addf %823, %824 : vector<2x20xf32>
    %cst_353 = arith.constant 0.000000e+00 : f32
    %826 = vector.broadcast %cst_353 : f32 to vector<2x20xf32>
    %827 = arith.subf %826, %825 : vector<2x20xf32>
    %828 = math.exp %827 : vector<2x20xf32>
    %cst_354 = arith.constant 1.000000e+00 : f32
    %829 = vector.broadcast %cst_354 : f32 to vector<2x20xf32>
    %830 = arith.addf %829, %828 : vector<2x20xf32>
    %cst_355 = arith.constant 1.000000e+00 : f32
    %831 = vector.broadcast %cst_355 : f32 to vector<2x20xf32>
    %832 = arith.divf %831, %830 : vector<2x20xf32>
    %833 = vector.extract_strided_slice %600 {offsets = [12, 0], sizes = [2, 20], strides = [1, 1]} : vector<16x20xf32> to vector<2x20xf32>
    %cst_356 = arith.constant dense<0.000000e+00> : vector<2x20xf32>
    %834 = tpu.matmul %810, %606, %cst_356 {dimension_numbers = #tpu.dot_dimension_numbers<[1], [0], [0], [1], [0, 0, 1, 1], [], []>} : vector<2x20xf32>, vector<20x20xf32>, vector<2x20xf32> -> vector<2x20xf32>
    %835 = vector.broadcast %607 : vector<1x20xf32> to vector<2x20xf32>
    %836 = arith.addf %834, %835 : vector<2x20xf32>
    %837 = arith.mulf %822, %836 : vector<2x20xf32>
    %838 = arith.addf %833, %837 : vector<2x20xf32>
    %839 = math.tanh %838 : vector<2x20xf32>
    %cst_357 = arith.constant 1.000000e+00 : f32
    %840 = vector.broadcast %cst_357 : f32 to vector<2x20xf32>
    %841 = arith.subf %840, %832 : vector<2x20xf32>
    %842 = arith.mulf %841, %839 : vector<2x20xf32>
    %843 = arith.mulf %832, %810 : vector<2x20xf32>
    %844 = arith.addf %842, %843 : vector<2x20xf32>
    %845 = vector.extract_strided_slice %844 {offsets = [1, 0], sizes = [1, 20], strides = [1, 1]} : vector<2x20xf32> to vector<1x20xf32>
    %c6_358 = arith.constant 6 : index
    %c0_359 = arith.constant 0 : index
    %846 = vector.load %arg20[%c6_358, %c0_359] : memref<8x20xf32, #tpu.memory_space<vmem>>, vector<1x20xf32>
    tpu.vector_store %arg20[%c6_358, %c0_359], %845 {strides = array<i32>} : memref<8x20xf32, #tpu.memory_space<vmem>>, vector<1x20xf32>,
    %847 = vector.extract_strided_slice %588 {offsets = [14, 0], sizes = [2, 20], strides = [1, 1]} : vector<16x20xf32> to vector<2x20xf32>
    %cst_360 = arith.constant dense<0.000000e+00> : vector<2x20xf32>
    %848 = tpu.matmul %844, %602, %cst_360 {dimension_numbers = #tpu.dot_dimension_numbers<[1], [0], [0], [1], [0, 0, 1, 1], [], []>} : vector<2x20xf32>, vector<20x20xf32>, vector<2x20xf32> -> vector<2x20xf32>
    %849 = arith.addf %847, %848 : vector<2x20xf32>
    %cst_361 = arith.constant 0.000000e+00 : f32
    %850 = vector.broadcast %cst_361 : f32 to vector<2x20xf32>
    %851 = arith.subf %850, %849 : vector<2x20xf32>
    %852 = math.exp %851 : vector<2x20xf32>
    %cst_362 = arith.constant 1.000000e+00 : f32
    %853 = vector.broadcast %cst_362 : f32 to vector<2x20xf32>
    %854 = arith.addf %853, %852 : vector<2x20xf32>
    %cst_363 = arith.constant 1.000000e+00 : f32
    %855 = vector.broadcast %cst_363 : f32 to vector<2x20xf32>
    %856 = arith.divf %855, %854 : vector<2x20xf32>
    %857 = vector.extract_strided_slice %594 {offsets = [14, 0], sizes = [2, 20], strides = [1, 1]} : vector<16x20xf32> to vector<2x20xf32>
    %cst_364 = arith.constant dense<0.000000e+00> : vector<2x20xf32>
    %858 = tpu.matmul %844, %604, %cst_364 {dimension_numbers = #tpu.dot_dimension_numbers<[1], [0], [0], [1], [0, 0, 1, 1], [], []>} : vector<2x20xf32>, vector<20x20xf32>, vector<2x20xf32> -> vector<2x20xf32>
    %859 = arith.addf %857, %858 : vector<2x20xf32>
    %cst_365 = arith.constant 0.000000e+00 : f32
    %860 = vector.broadcast %cst_365 : f32 to vector<2x20xf32>
    %861 = arith.subf %860, %859 : vector<2x20xf32>
    %862 = math.exp %861 : vector<2x20xf32>
    %cst_366 = arith.constant 1.000000e+00 : f32
    %863 = vector.broadcast %cst_366 : f32 to vector<2x20xf32>
    %864 = arith.addf %863, %862 : vector<2x20xf32>
    %cst_367 = arith.constant 1.000000e+00 : f32
    %865 = vector.broadcast %cst_367 : f32 to vector<2x20xf32>
    %866 = arith.divf %865, %864 : vector<2x20xf32>
    %867 = vector.extract_strided_slice %600 {offsets = [14, 0], sizes = [2, 20], strides = [1, 1]} : vector<16x20xf32> to vector<2x20xf32>
    %cst_368 = arith.constant dense<0.000000e+00> : vector<2x20xf32>
    %868 = tpu.matmul %844, %606, %cst_368 {dimension_numbers = #tpu.dot_dimension_numbers<[1], [0], [0], [1], [0, 0, 1, 1], [], []>} : vector<2x20xf32>, vector<20x20xf32>, vector<2x20xf32> -> vector<2x20xf32>
    %869 = vector.broadcast %607 : vector<1x20xf32> to vector<2x20xf32>
    %870 = arith.addf %868, %869 : vector<2x20xf32>
    %871 = arith.mulf %856, %870 : vector<2x20xf32>
    %872 = arith.addf %867, %871 : vector<2x20xf32>
    %873 = math.tanh %872 : vector<2x20xf32>
    %cst_369 = arith.constant 1.000000e+00 : f32
    %874 = vector.broadcast %cst_369 : f32 to vector<2x20xf32>
    %875 = arith.subf %874, %866 : vector<2x20xf32>
    %876 = arith.mulf %875, %873 : vector<2x20xf32>
    %877 = arith.mulf %866, %844 : vector<2x20xf32>
    %878 = arith.addf %876, %877 : vector<2x20xf32>
    %879 = vector.extract_strided_slice %878 {offsets = [1, 0], sizes = [1, 20], strides = [1, 1]} : vector<2x20xf32> to vector<1x20xf32>
    %c7 = arith.constant 7 : index
    %c0_370 = arith.constant 0 : index
    %880 = vector.load %arg20[%c7, %c0_370] : memref<8x20xf32, #tpu.memory_space<vmem>>, vector<1x20xf32>
    tpu.vector_store %arg20[%c7, %c0_370], %879 {strides = array<i32>} : memref<8x20xf32, #tpu.memory_space<vmem>>, vector<1x20xf32>,
    %c0_371 = arith.constant 0 : index
    %c0_372 = arith.constant 0 : index
    %881 = vector.load %arg20[%c0_371, %c0_372] : memref<8x20xf32, #tpu.memory_space<vmem>>, vector<8x20xf32>
    %c0_373 = arith.constant 0 : index
    %c0_374 = arith.constant 0 : index
    %882 = vector.load %arg11[%c0_373, %c0_374] : memref<20x7xf32, #tpu.memory_space<vmem>>, vector<20x7xf32>
    %cst_375 = arith.constant dense<0.000000e+00> : vector<8x7xf32>
    %883 = tpu.matmul %881, %882, %cst_375 {dimension_numbers = #tpu.dot_dimension_numbers<[1], [0], [0], [1], [0, 0, 1, 1], [], []>} : vector<8x20xf32>, vector<20x7xf32>, vector<8x7xf32> -> vector<8x7xf32>
    %c0_376 = arith.constant 0 : index
    %c0_377 = arith.constant 0 : index
    %884 = vector.load %arg12[%c0_376, %c0_377] : memref<1x7xf32, #tpu.memory_space<vmem>>, vector<1x7xf32>
    %885 = vector.broadcast %884 : vector<1x7xf32> to vector<8x7xf32>
    %886 = arith.addf %883, %885 : vector<8x7xf32>
    %cst_378 = arith.constant dense<0xFF800000> : vector<8xf32>
    %887 = vector.multi_reduction <maximumf>, %886, %cst_378 [1] : vector<8x7xf32> to vector<8xf32>
    %888 = vector.shape_cast %887 : vector<8xf32> to vector<8x1xf32>
    %889 = vector.broadcast %888 : vector<8x1xf32> to vector<8x7xf32>
    %890 = arith.subf %886, %889 : vector<8x7xf32>
    %891 = math.exp %890 : vector<8x7xf32>
    %cst_379 = arith.constant dense<0.000000e+00> : vector<8xf32>
    %892 = vector.multi_reduction <add>, %891, %cst_379 [1] : vector<8x7xf32> to vector<8xf32>
    %893 = vector.shape_cast %892 : vector<8xf32> to vector<8x1xf32>
    %894 = math.log %893 : vector<8x1xf32>
    %895 = vector.broadcast %894 : vector<8x1xf32> to vector<8x7xf32>
    %896 = arith.subf %890, %895 : vector<8x7xf32>
    %c0_380 = arith.constant 0 : index
    %c0_381 = arith.constant 0 : index
    %897 = vector.load %arg13[%c0_380, %c0_381] : memref<20x64xf32, #tpu.memory_space<vmem>>, vector<20x64xf32>
    %cst_382 = arith.constant dense<0.000000e+00> : vector<8x64xf32>
    %898 = tpu.matmul %881, %897, %cst_382 {dimension_numbers = #tpu.dot_dimension_numbers<[1], [0], [0], [1], [0, 0, 1, 1], [], []>} : vector<8x20xf32>, vector<20x64xf32>, vector<8x64xf32> -> vector<8x64xf32>
    %c0_383 = arith.constant 0 : index
    %c0_384 = arith.constant 0 : index
    %899 = vector.load %arg14[%c0_383, %c0_384] : memref<1x64xf32, #tpu.memory_space<vmem>>, vector<1x64xf32>
    %900 = vector.broadcast %899 : vector<1x64xf32> to vector<8x64xf32>
    %901 = arith.addf %898, %900 : vector<8x64xf32>
    %cst_385 = arith.constant 0.000000e+00 : f32
    %902 = vector.broadcast %cst_385 : f32 to vector<8x64xf32>
    %903 = arith.subf %902, %901 : vector<8x64xf32>
    %904 = math.exp %903 : vector<8x64xf32>
    %cst_386 = arith.constant 1.000000e+00 : f32
    %905 = vector.broadcast %cst_386 : f32 to vector<8x64xf32>
    %906 = arith.addf %905, %904 : vector<8x64xf32>
    %cst_387 = arith.constant 1.000000e+00 : f32
    %907 = vector.broadcast %cst_387 : f32 to vector<8x64xf32>
    %908 = arith.divf %907, %906 : vector<8x64xf32>
    %c0_388 = arith.constant 0 : index
    %c0_389 = arith.constant 0 : index
    %909 = vector.load %arg15[%c0_388, %c0_389] : memref<64x7xf32, #tpu.memory_space<vmem>>, vector<64x7xf32>
    %cst_390 = arith.constant dense<0.000000e+00> : vector<8x7xf32>
    %910 = tpu.matmul %908, %909, %cst_390 {dimension_numbers = #tpu.dot_dimension_numbers<[1], [0], [0], [1], [0, 0, 1, 1], [], []>} : vector<8x64xf32>, vector<64x7xf32>, vector<8x7xf32> -> vector<8x7xf32>
    %c0_391 = arith.constant 0 : index
    %c0_392 = arith.constant 0 : index
    %911 = vector.load %arg16[%c0_391, %c0_392] : memref<1x7xf32, #tpu.memory_space<vmem>>, vector<1x7xf32>
    %912 = vector.broadcast %911 : vector<1x7xf32> to vector<8x7xf32>
    %913 = arith.addf %910, %912 : vector<8x7xf32>
    %cst_393 = arith.constant 0.000000e+00 : f32
    %914 = vector.broadcast %cst_393 : f32 to vector<8x7xf32>
    %915 = arith.subf %914, %913 : vector<8x7xf32>
    %916 = math.exp %915 : vector<8x7xf32>
    %cst_394 = arith.constant 1.000000e+00 : f32
    %917 = vector.broadcast %cst_394 : f32 to vector<8x7xf32>
    %918 = arith.addf %917, %916 : vector<8x7xf32>
    %cst_395 = arith.constant 1.000000e+00 : f32
    %919 = vector.broadcast %cst_395 : f32 to vector<8x7xf32>
    %920 = arith.divf %919, %918 : vector<8x7xf32>
    %cst_396 = arith.constant 0.899999976 : f32
    %921 = vector.broadcast %cst_396 : f32 to vector<8x7xf32>
    %922 = arith.mulf %920, %921 : vector<8x7xf32>
    %cst_397 = arith.constant 1.000000e-01 : f32
    %923 = vector.broadcast %cst_397 : f32 to vector<8x7xf32>
    %924 = arith.addf %922, %923 : vector<8x7xf32>
    %925 = tpu.concatenate %924, %886, %896 in 1 : vector<8x7xf32>, vector<8x7xf32>, vector<8x7xf32> -> vector<8x21xf32>
    %c0_398 = arith.constant 0 : index
    %c0_399 = arith.constant 0 : index
    %926 = vector.load %arg17[%c0_398, %c0_399] : memref<8x21xf32, #tpu.memory_space<vmem>>, vector<8x21xf32>
    tpu.vector_store %arg17[%c0_398, %c0_399], %925 {strides = array<i32>} : memref<8x21xf32, #tpu.memory_space<vmem>>, vector<8x21xf32>,
    return
  }
  func.func @transform_0(%arg0: i32) -> (i32, i32) {
    %c0_i32 = arith.constant 0 : i32
    %c0_i32_0 = arith.constant 0 : i32
    %c0_i32_1 = arith.constant 0 : i32
    return %c0_i32, %c0_i32_0 : i32, i32
  }
  func.func @transform_1(%arg0: i32) -> (i32, i32, i32) {
    %c0_i32 = arith.constant 0 : i32
    %c0_i32_0 = arith.constant 0 : i32
    %c0_i32_1 = arith.constant 0 : i32
    %c0_i32_2 = arith.constant 0 : i32
    return %c0_i32, %c0_i32_0, %c0_i32_1 : i32, i32, i32
  }
  func.func @transform_2(%arg0: i32) -> (i32, i32, i32) {
    %c0_i32 = arith.constant 0 : i32
    %c0_i32_0 = arith.constant 0 : i32
    %c0_i32_1 = arith.constant 0 : i32
    %c0_i32_2 = arith.constant 0 : i32
    return %c0_i32, %c0_i32_0, %c0_i32_1 : i32, i32, i32
  }
  func.func @transform_3(%arg0: i32) -> (i32, i32) {
    %c0_i32 = arith.constant 0 : i32
    %c0_i32_0 = arith.constant 0 : i32
    %c0_i32_1 = arith.constant 0 : i32
    return %c0_i32, %c0_i32_0 : i32, i32
  }
  func.func @transform_4(%arg0: i32) -> (i32, i32, i32) {
    %c0_i32 = arith.constant 0 : i32
    %c0_i32_0 = arith.constant 0 : i32
    %c0_i32_1 = arith.constant 0 : i32
    %c0_i32_2 = arith.constant 0 : i32
    return %c0_i32, %c0_i32_0, %c0_i32_1 : i32, i32, i32
  }
  func.func @transform_5(%arg0: i32) -> (i32, i32, i32) {
    %c0_i32 = arith.constant 0 : i32
    %c0_i32_0 = arith.constant 0 : i32
    %c0_i32_1 = arith.constant 0 : i32
    %c0_i32_2 = arith.constant 0 : i32
    return %c0_i32, %c0_i32_0, %c0_i32_1 : i32, i32, i32
  }
  func.func @transform_6(%arg0: i32) -> (i32, i32) {
    %c0_i32 = arith.constant 0 : i32
    %c0_i32_0 = arith.constant 0 : i32
    %c0_i32_1 = arith.constant 0 : i32
    return %c0_i32, %c0_i32_0 : i32, i32
  }
  func.func @transform_7(%arg0: i32) -> (i32, i32, i32) {
    %c0_i32 = arith.constant 0 : i32
    %c0_i32_0 = arith.constant 0 : i32
    %c0_i32_1 = arith.constant 0 : i32
    %c0_i32_2 = arith.constant 0 : i32
    return %c0_i32, %c0_i32_0, %c0_i32_1 : i32, i32, i32
  }
  func.func @transform_8(%arg0: i32) -> (i32, i32, i32) {
    %c0_i32 = arith.constant 0 : i32
    %c0_i32_0 = arith.constant 0 : i32
    %c0_i32_1 = arith.constant 0 : i32
    %c0_i32_2 = arith.constant 0 : i32
    return %c0_i32, %c0_i32_0, %c0_i32_1 : i32, i32, i32
  }
  func.func @transform_9(%arg0: i32) -> (i32, i32) {
    %c0_i32 = arith.constant 0 : i32
    %c0_i32_0 = arith.constant 0 : i32
    %c0_i32_1 = arith.constant 0 : i32
    return %c0_i32, %c0_i32_0 : i32, i32
  }
  func.func @transform_10(%arg0: i32) -> (i32, i32) {
    %c0_i32 = arith.constant 0 : i32
    %c0_i32_0 = arith.constant 0 : i32
    %c0_i32_1 = arith.constant 0 : i32
    return %c0_i32, %c0_i32_0 : i32, i32
  }
  func.func @transform_11(%arg0: i32) -> (i32, i32) {
    %c0_i32 = arith.constant 0 : i32
    %c0_i32_0 = arith.constant 0 : i32
    %c0_i32_1 = arith.constant 0 : i32
    return %c0_i32, %c0_i32_0 : i32, i32
  }
  func.func @transform_12(%arg0: i32) -> (i32, i32) {
    %c0_i32 = arith.constant 0 : i32
    %c0_i32_0 = arith.constant 0 : i32
    %c0_i32_1 = arith.constant 0 : i32
    return %c0_i32, %c0_i32_0 : i32, i32
  }
  func.func @transform_13(%arg0: i32) -> (i32, i32) {
    %c0_i32 = arith.constant 0 : i32
    %c0_i32_0 = arith.constant 0 : i32
    %c0_i32_1 = arith.constant 0 : i32
    return %c0_i32, %c0_i32_0 : i32, i32
  }
  func.func @transform_14(%arg0: i32) -> (i32, i32) {
    %c0_i32 = arith.constant 0 : i32
    %c0_i32_0 = arith.constant 0 : i32
    %c0_i32_1 = arith.constant 0 : i32
    return %c0_i32, %c0_i32_0 : i32, i32
  }
  func.func @transform_15(%arg0: i32) -> (i32, i32) {
    %c0_i32 = arith.constant 0 : i32
    %c0_i32_0 = arith.constant 0 : i32
    %c0_i32_1 = arith.constant 0 : i32
    return %c0_i32, %c0_i32_0 : i32, i32
  }
  func.func @transform_16(%arg0: i32) -> (i32, i32) {
    %c0_i32 = arith.constant 0 : i32
    %c0_i32_0 = arith.constant 0 : i32
    %c0_i32_1 = arith.constant 0 : i32
    return %c0_i32, %c0_i32_0 : i32, i32
  }
}

</mosaic_0001>

<llo_original>
// kernel: tpu_custom_call.1
$region0: #{tpu_custom_call.1}
  #allocation0 [shape = 'u32[]', space=smem, size = 0x4, offset = 0x4, fixed_abs, tag = 'smem constant byte address 0x4 - core index']
  #allocation1 [shape = 'u32[144,128]{1,0:T(1,128)}', space=vmem, size = 0x12000, scoped, tag = 'internal scratch']
  #allocation2 [shape = 'f32[16,20]{1,0:T(8,128)}', space=vmem, size = 0x2000, scoped, tag = 'scratch operand']
  #allocation3 [shape = 'f32[16,20]{1,0:T(8,128)}', space=vmem, size = 0x2000, scoped, tag = 'scratch operand']
  #allocation4 [shape = 'f32[8,20]{1,0:T(8,128)}', space=vmem, size = 0x1000, scoped, tag = 'scratch operand']
  %s0 = inlined_call_operand.vmem [shape: f32[16,50], index: 0, kind: input, shape index: {}]
  %s1 = inlined_call_operand.vmem [shape: f32[3,50,20], index: 1, kind: input, shape index: {}]
  %s2 = inlined_call_operand.vmem [shape: f32[3,20,20], index: 2, kind: input, shape index: {}]
  %s3 = inlined_call_operand.vmem [shape: f32[4,20], index: 3, kind: input, shape index: {}]
  %s4 = inlined_call_operand.vmem [shape: f32[3,20,20], index: 4, kind: input, shape index: {}]
  %s5 = inlined_call_operand.vmem [shape: f32[3,20,20], index: 5, kind: input, shape index: {}]
  %s6 = inlined_call_operand.vmem [shape: f32[4,20], index: 6, kind: input, shape index: {}]
  %s7 = inlined_call_operand.hbm [shape: f32[3,20,20], index: 7, kind: input, shape index: {}]
  %s8 = inlined_call_operand.hbm [shape: f32[3,20,20], index: 8, kind: input, shape index: {}]
  %s9 = inlined_call_operand.vmem [shape: f32[4,20], index: 9, kind: input, shape index: {}]
  %s10 = inlined_call_operand.vmem [shape: f32[20,7], index: 10, kind: input, shape index: {}]
  %s11 = inlined_call_operand.vmem [shape: f32[1,7], index: 11, kind: input, shape index: {}]
  %s12 = inlined_call_operand.vmem [shape: f32[20,64], index: 12, kind: input, shape index: {}]
  %s13 = inlined_call_operand.vmem [shape: f32[1,64], index: 13, kind: input, shape index: {}]
  %s14 = inlined_call_operand.vmem [shape: f32[64,7], index: 14, kind: input, shape index: {}]
  %s15 = inlined_call_operand.vmem [shape: f32[1,7], index: 15, kind: input, shape index: {}]
  %s16 = inlined_call_operand.hbm [shape: f32[8,21], index: 16, kind: output, shape index: {}]
  %s17 = sld [smem:[#allocation0]]
  $region82: #{tpu_custom_call.1} parent=0
    _
  %s19 = ssub.s32 1, %s17
  %s20 = scalar_select 0, %s19, %s17
  $region1: #{tpu_custom_call.1} parent=0
    #allocation5 [shape = 'u8[36864]{0}', space=vmem, size = 0x9000, scoped, tag = 'input window, operand 7, single buffered']
    #allocation6 [shape = 's32[1]{0}', space=sflag, size = 0x4, scoped, tag = 'scoped memory for tpu_custom_call.1']
    #allocation7 [shape = 's32[1]{0}', space=sflag, size = 0x4, scoped, tag = 'scoped memory for tpu_custom_call.1']
    #allocation8 [shape = 'u8[36864]{0}', space=vmem, size = 0x9000, scoped, tag = 'input window, operand 8, single buffered']
    #allocation9 [shape = 's32[1]{0}', space=sflag, size = 0x4, scoped, tag = 'scoped memory for tpu_custom_call.1']
    #allocation10 [shape = 'u8[4096]{0}', space=vmem, size = 0x1000, scoped, tag = 'output window, operand 0, single buffered']
    %21 = vsyncpa [#allocation6], 0
    %22 = vsyncpa [#allocation9], 0
    %23 = vsyncpa [#allocation7], 0
    // Predicated region
    $region2: #{tpu_custom_call.1} parent=1 // pred_check
      _
    $region3: #{tpu_custom_call.1} parent=1 // pred_check_branch
      %25 = sbr.rel (0) target = $region5
    $region4: #{tpu_custom_call.1} parent=1 // pred_region
      _
    $region5: #{tpu_custom_call.1} parent=1 // pred_fallthru
      _
    // Predicated region
    $region6: #{tpu_custom_call.1} parent=1 // pred_check
      _
    $region7: #{tpu_custom_call.1} parent=1 // pred_check_branch
      %27 = sbr.rel (0) target = $region9
    $region8: #{tpu_custom_call.1} parent=1 // pred_region
      _
    $region9: #{tpu_custom_call.1} parent=1 // pred_fallthru
      _
    // Predicated region
    $region10: #{tpu_custom_call.1} parent=1 // pred_check
      _
    $region11: #{tpu_custom_call.1} parent=1 // pred_check_branch
      %29 = sbr.rel (0) target = $region13
    $region12: #{tpu_custom_call.1} parent=1 // pred_region
      _
    $region13: #{tpu_custom_call.1} parent=1 // pred_fallthru
      _
    // Predicated region
    $region14: #{tpu_custom_call.1} parent=1 // pred_check
      _
    $region15: #{tpu_custom_call.1} parent=1 // pred_check_branch
      %31 = sbr.rel (0) target = $region17
    $region16: #{tpu_custom_call.1} parent=1 // pred_region
      _
    $region17: #{tpu_custom_call.1} parent=1 // pred_fallthru
      _
    // Predicated region
    $region18: #{tpu_custom_call.1} parent=1 // pred_check
      _
    $region19: #{tpu_custom_call.1} parent=1 // pred_check_branch
      %33 = sbr.rel (0) target = $region21
    $region20: #{tpu_custom_call.1} parent=1 // pred_region
      _
    $region21: #{tpu_custom_call.1} parent=1 // pred_fallthru
      _
    // Predicated region
    $region22: #{tpu_custom_call.1} parent=1 // pred_check
      _
    $region23: #{tpu_custom_call.1} parent=1 // pred_check_branch
      %35 = sbr.rel (0) target = $region25
    $region24: #{tpu_custom_call.1} parent=1 // pred_region
      _
    $region25: #{tpu_custom_call.1} parent=1 // pred_fallthru
      _
    // Predicated region
    $region26: #{tpu_custom_call.1} parent=1 // pred_check
      _
    $region27: #{tpu_custom_call.1} parent=1 // pred_check_branch
      %37 = sbr.rel (0) target = $region29
    $region28: #{tpu_custom_call.1} parent=1 // pred_region
      _
    $region29: #{tpu_custom_call.1} parent=1 // pred_fallthru
      _
    // Predicated region
    $region30: #{tpu_custom_call.1} parent=1 // pred_check
      _
    $region31: #{tpu_custom_call.1} parent=1 // pred_check_branch
      %39 = sbr.rel (0) target = $region33
    $region32: #{tpu_custom_call.1} parent=1 // pred_region
      %s41 = ssub.s32 1152, 1152
      %42 = vsyncadd [#allocation6], %s41
      %s43 = sshll.u32 [#allocation5], 4
      %s44 = int_to_ptr.vmem [resolvable:$true] %s43
      %49 = dma.hbm_to_vmem [thread:$0]  %s7, 1152, %s44, [#allocation6], 128, 128, 8
    $region33: #{tpu_custom_call.1} parent=1 // pred_fallthru
      _
    // Predicated region
    $region34: #{tpu_custom_call.1} parent=1 // pred_check
      _
    $region35: #{tpu_custom_call.1} parent=1 // pred_check_branch
      %51 = sbr.rel (0) target = $region37
    $region36: #{tpu_custom_call.1} parent=1 // pred_region
      %s53 = ssub.s32 1152, 1152
      %54 = vsyncadd [#allocation9], %s53
      %s55 = sshll.u32 [#allocation8], 4
      %s56 = int_to_ptr.vmem [resolvable:$true] %s55
      %61 = dma.hbm_to_vmem [thread:$0]  %s8, 1152, %s56, [#allocation9], 128, 128, 8
    $region37: #{tpu_custom_call.1} parent=1 // pred_fallthru
      _
    // Predicated region
    $region38: #{tpu_custom_call.1} parent=1 // pred_check
      _
    $region39: #{tpu_custom_call.1} parent=1 // pred_check_branch
      %63 = sbr.rel (0) target = $region41
    $region40: #{tpu_custom_call.1} parent=1 // pred_region
      _
    $region41: #{tpu_custom_call.1} parent=1 // pred_fallthru
      _
    // Predicated region
    $region42: #{tpu_custom_call.1} parent=1 // pred_check
      _
    $region43: #{tpu_custom_call.1} parent=1 // pred_check_branch
      %65 = sbr.rel (0) target = $region45
    $region44: #{tpu_custom_call.1} parent=1 // pred_region
      _
    $region45: #{tpu_custom_call.1} parent=1 // pred_fallthru
      _
    // Predicated region
    $region46: #{tpu_custom_call.1} parent=1 // pred_check
      _
    $region47: #{tpu_custom_call.1} parent=1 // pred_check_branch
      %67 = sbr.rel (0) target = $region49
    $region48: #{tpu_custom_call.1} parent=1 // pred_region
      _
    $region49: #{tpu_custom_call.1} parent=1 // pred_fallthru
      _
    // Predicated region
    $region50: #{tpu_custom_call.1} parent=1 // pred_check
      _
    $region51: #{tpu_custom_call.1} parent=1 // pred_check_branch
      %69 = sbr.rel (0) target = $region53
    $region52: #{tpu_custom_call.1} parent=1 // pred_region
      _
    $region53: #{tpu_custom_call.1} parent=1 // pred_fallthru
      _
    // Predicated region
    $region54: #{tpu_custom_call.1} parent=1 // pred_check
      _
    $region55: #{tpu_custom_call.1} parent=1 // pred_check_branch
      %71 = sbr.rel (0) target = $region57
    $region56: #{tpu_custom_call.1} parent=1 // pred_region
      _
    $region57: #{tpu_custom_call.1} parent=1 // pred_fallthru
      _
    // Predicated region
    $region58: #{tpu_custom_call.1} parent=1 // pred_check
      _
    $region59: #{tpu_custom_call.1} parent=1 // pred_check_branch
      %73 = sbr.rel (0) target = $region61
    $region60: #{tpu_custom_call.1} parent=1 // pred_region
      _
    $region61: #{tpu_custom_call.1} parent=1 // pred_fallthru
      _
    // Predicated region
    $region62: #{tpu_custom_call.1} parent=1 // pred_check
      _
    $region63: #{tpu_custom_call.1} parent=1 // pred_check_branch
      %75 = sbr.rel (0) target = $region65
    $region64: #{tpu_custom_call.1} parent=1 // pred_region
      _
    $region65: #{tpu_custom_call.1} parent=1 // pred_fallthru
      _
    // Predicated region
    $region66: #{tpu_custom_call.1} parent=1 // pred_check
      _
    $region67: #{tpu_custom_call.1} parent=1 // pred_check_branch
      %77 = sbr.rel (0) target = $region69
    $region68: #{tpu_custom_call.1} parent=1 // pred_region
      %78 = dma.done [#allocation6], 1152
    $region69: #{tpu_custom_call.1} parent=1 // pred_fallthru
      _
    // Predicated region
    $region70: #{tpu_custom_call.1} parent=1 // pred_check
      _
    $region71: #{tpu_custom_call.1} parent=1 // pred_check_branch
      %80 = sbr.rel (0) target = $region73
    $region72: #{tpu_custom_call.1} parent=1 // pred_region
      %81 = dma.done [#allocation9], 1152
    $region73: #{tpu_custom_call.1} parent=1 // pred_fallthru
      _
    %v82 = vld [vmem:[%s0] sm:$0xff]
    %v83 = vld [vmem:[%s0 + $0x8] sm:$0xff]
    %v84 = vld [vmem:[%s1] sm:$0xff]
    %v85 = vld [vmem:[%s1 + $0x8] sm:$0xff]
    %v86 = vld [vmem:[%s1 + $0x10] sm:$0xff]
    %v87 = vld [vmem:[%s1 + $0x18] sm:$0xff]
    %v88 = vld [vmem:[%s1 + $0x20] sm:$0xff]
    %v89 = vld [vmem:[%s1 + $0x28] sm:$0xff]
    %v90 = vld [vmem:[%s1 + $0x30] sm:$0x3]
    %v91 = vld [vmem:[%s3] sm:$0x1]
    %v92 = vlaneseq
    %v93 = vshrl.u32 %v92, 7
    %v94 = vsub.s32 0, %v93
    %v95 = vrot.slane %v91, %v94
    %vm96 = vcmask 408576
    %v98 = vsel %vm96, %v82, 0
    %v101 = vsel %vm96, %v83, 0
    %vm103 = vcmask 1041408
    %v105 = vsel %vm103, %v90, 0
    %107 = vmatprep.subr.mxu0 0.0
    %108 = vmatpush1.msra.mxu0 %v84
    %109 = vmatprep.subr.mxu0 0.0
    %110 = vmatpush1.msra.mxu0 %v85
    %111 = vmatprep.subr.mxu0 0.0
    %112 = vmatpush1.msra.mxu0 %v86
    %113 = vmatprep.subr.mxu0 0.0
    %114 = vmatpush1.msra.mxu0 %v87
    %115 = vmatprep.subr.mxu0 0.0
    %116 = vmatpush1.msra.mxu0 %v88
    %117 = vmatprep.subr.mxu0 0.0
    %118 = vmatpush1.msra.mxu0 %v89
    %119 = vmatprep.subr.mxu0 0.0
    %120 = vmatpush1.msra.mxu0 %v105
    %121 = vmatprep.subr.mxu0 0.0
    %122 = vmatpush1.msra.mxu0 0.0
    %123 = vmatprep.subr.mxu0 0.0
    %124 = vmatpush1.msra.mxu0 0.0
    %125 = vmatprep.subr.mxu0 0.0
    %126 = vmatpush1.msra.mxu0 0.0
    %127 = vmatprep.subr.mxu0 0.0
    %128 = vmatpush1.msra.mxu0 0.0
    %129 = vmatprep.subr.mxu0 0.0
    %130 = vmatpush1.msra.mxu0 0.0
    %131 = vmatprep.subr.mxu0 0.0
    %132 = vmatpush1.msra.mxu0 0.0
    %133 = vmatprep.subr.mxu0 0.0
    %134 = vmatpush1.msra.mxu0 0.0
    %135 = vmatprep.subr.mxu0 0.0
    %136 = vmatpush1.msra.mxu0 0.0
    %137 = vmatprep.subr.mxu0 0.0
    %138 = vmatpush1.msra.mxu0 0.0
    %139 = vmatprep.subr.mxu0 0.0
    %140 = vmatpush1.msra.mxu0 0.0
    %141 = vmatprep.subr.mxu0 0.0
    %142 = vmatpush1.msra.mxu0 0.0
    %143 = vmatprep.subr.mxu0 0.0
    %144 = vmatpush1.msra.mxu0 0.0
    %145 = vmatprep.subr.mxu0 0.0
    %146 = vmatpush1.msra.mxu0 0.0
    %147 = vmatprep.subr.mxu0 0.0
    %148 = vmatpush1.msra.mxu0 0.0
    %149 = vmatprep.subr.mxu0 0.0
    %150 = vmatpush1.msra.mxu0 0.0
    %151 = vmatprep.subr.mxu0 0.0
    %152 = vmatpush1.msra.mxu0 0.0
    %153 = vmatprep.subr.mxu0 0.0
    %154 = vmatpush1.msra.mxu0 0.0
    %155 = vmatprep.subr.mxu0 0.0
    %156 = vmatpush1.msra.mxu0 0.0
    %157 = vmatprep.subr.mxu0 0.0
    %158 = vmatpush1.msra.mxu0 0.0
    %159 = vmatprep.subr.mxu0 0.0
    %160 = vmatpush1.msra.mxu0 0.0
    %161 = vmatprep.subr.mxu0 0.0
    %162 = vmatpush1.msra.mxu0 0.0
    %163 = vmatprep.subr.mxu0 0.0
    %164 = vmatpush1.msra.mxu0 0.0
    %165 = vmatprep.subr.mxu0 0.0
    %166 = vmatpush1.msra.mxu0 0.0
    %167 = vmatprep.subr.mxu0 0.0
    %168 = vmatpush1.msra.mxu0 0.0
    %169 = vmatprep.subr.mxu0 0.0
    %170 = vmatpush1.msra.mxu0 0.0
    %171 = vmatprep.mubr.f32.mxu0 0.0
    %172 = vmatmul.mubr.f32.gmra.mrb[0].mxu0 %v98
    %v173 = vpop.f32.mrb[0].mxu0
    %v174 = vadd.f32 %v95, %v173
    %v175 = vpop.f32.mrb[0].mxu0
    %176 = vmatprep.mubr.f32.mxu0 0.0
    %177 = vmatmul.mubr.f32.gmra.mrb[0].mxu0 %v101
    %v178 = vpop.f32.mrb[0].mxu0
    %v179 = vadd.f32 %v95, %v178
    %v180 = vpop.f32.mrb[0].mxu0
    %181 = vdwg.mxu0
    %s182 = scalar_lea.vmem %s1, 56
    %v183 = vld [vmem:[%s182] sm:$0xff]
    %v184 = vld [vmem:[%s182 + $0x8] sm:$0xff]
    %v185 = vld [vmem:[%s182 + $0x10] sm:$0xff]
    %v186 = vld [vmem:[%s182 + $0x18] sm:$0xff]
    %v187 = vld [vmem:[%s182 + $0x20] sm:$0xff]
    %v188 = vld [vmem:[%s182 + $0x28] sm:$0xff]
    %v189 = vld [vmem:[%s182 + $0x30] sm:$0x3]
    %v190 = vld [vmem:[%s3 + $0x1] sm:$0x1]
    %v191 = vlaneseq
    %v192 = vshrl.u32 %v191, 7
    %v193 = vsub.s32 0, %v192
    %v194 = vrot.slane %v190, %v193
    %v196 = vsel %vm103, %v189, 0
    %198 = vmatprep.subr.mxu0 0.0
    %199 = vmatpush1.msra.mxu0 %v183
    %200 = vmatprep.subr.mxu0 0.0
    %201 = vmatpush1.msra.mxu0 %v184
    %202 = vmatprep.subr.mxu0 0.0
    %203 = vmatpush1.msra.mxu0 %v185
    %204 = vmatprep.subr.mxu0 0.0
    %205 = vmatpush1.msra.mxu0 %v186
    %206 = vmatprep.subr.mxu0 0.0
    %207 = vmatpush1.msra.mxu0 %v187
    %208 = vmatprep.subr.mxu0 0.0
    %209 = vmatpush1.msra.mxu0 %v188
    %210 = vmatprep.subr.mxu0 0.0
    %211 = vmatpush1.msra.mxu0 %v196
    %212 = vmatprep.subr.mxu0 0.0
    %213 = vmatpush1.msra.mxu0 0.0
    %214 = vmatprep.subr.mxu0 0.0
    %215 = vmatpush1.msra.mxu0 0.0
    %216 = vmatprep.subr.mxu0 0.0
    %217 = vmatpush1.msra.mxu0 0.0
    %218 = vmatprep.subr.mxu0 0.0
    %219 = vmatpush1.msra.mxu0 0.0
    %220 = vmatprep.subr.mxu0 0.0
    %221 = vmatpush1.msra.mxu0 0.0
    %222 = vmatprep.subr.mxu0 0.0
    %223 = vmatpush1.msra.mxu0 0.0
    %224 = vmatprep.subr.mxu0 0.0
    %225 = vmatpush1.msra.mxu0 0.0
    %226 = vmatprep.subr.mxu0 0.0
    %227 = vmatpush1.msra.mxu0 0.0
    %228 = vmatprep.subr.mxu0 0.0
    %229 = vmatpush1.msra.mxu0 0.0
    %230 = vmatprep.subr.mxu0 0.0
    %231 = vmatpush1.msra.mxu0 0.0
    %232 = vmatprep.subr.mxu0 0.0
    %233 = vmatpush1.msra.mxu0 0.0
    %234 = vmatprep.subr.mxu0 0.0
    %235 = vmatpush1.msra.mxu0 0.0
    %236 = vmatprep.subr.mxu0 0.0
    %237 = vmatpush1.msra.mxu0 0.0
    %238 = vmatprep.subr.mxu0 0.0
    %239 = vmatpush1.msra.mxu0 0.0
    %240 = vmatprep.subr.mxu0 0.0
    %241 = vmatpush1.msra.mxu0 0.0
    %242 = vmatprep.subr.mxu0 0.0
    %243 = vmatpush1.msra.mxu0 0.0
    %244 = vmatprep.subr.mxu0 0.0
    %245 = vmatpush1.msra.mxu0 0.0
    %246 = vmatprep.subr.mxu0 0.0
    %247 = vmatpush1.msra.mxu0 0.0
    %248 = vmatprep.subr.mxu0 0.0
    %249 = vmatpush1.msra.mxu0 0.0
    %250 = vmatprep.subr.mxu0 0.0
    %251 = vmatpush1.msra.mxu0 0.0
    %252 = vmatprep.subr.mxu0 0.0
    %253 = vmatpush1.msra.mxu0 0.0
    %254 = vmatprep.subr.mxu0 0.0
    %255 = vmatpush1.msra.mxu0 0.0
    %256 = vmatprep.subr.mxu0 0.0
    %257 = vmatpush1.msra.mxu0 0.0
    %258 = vmatprep.subr.mxu0 0.0
    %259 = vmatpush1.msra.mxu0 0.0
    %260 = vmatprep.subr.mxu0 0.0
    %261 = vmatpush1.msra.mxu0 0.0
    %262 = vmatprep.mubr.f32.mxu0 0.0
    %263 = vmatmul.mubr.f32.gmra.mrb[0].mxu0 %v98
    %v264 = vpop.f32.mrb[0].mxu0
    %v265 = vadd.f32 %v194, %v264
    %v266 = vpop.f32.mrb[0].mxu0
    %267 = vmatprep.mubr.f32.mxu0 0.0
    %268 = vmatmul.mubr.f32.gmra.mrb[0].mxu0 %v101
    %v269 = vpop.f32.mrb[0].mxu0
    %v270 = vadd.f32 %v194, %v269
    %v271 = vpop.f32.mrb[0].mxu0
    %272 = vdwg.mxu0
    %s273 = scalar_lea.vmem %s1, 112
    %v274 = vld [vmem:[%s273] sm:$0xff]
    %v275 = vld [vmem:[%s273 + $0x8] sm:$0xff]
    %v276 = vld [vmem:[%s273 + $0x10] sm:$0xff]
    %v277 = vld [vmem:[%s273 + $0x18] sm:$0xff]
    %v278 = vld [vmem:[%s273 + $0x20] sm:$0xff]
    %v279 = vld [vmem:[%s273 + $0x28] sm:$0xff]
    %v280 = vld [vmem:[%s273 + $0x30] sm:$0x3]
    %v281 = vld [vmem:[%s3 + $0x2] sm:$0x1]
    %v282 = vlaneseq
    %v283 = vshrl.u32 %v282, 7
    %v284 = vsub.s32 0, %v283
    %v285 = vrot.slane %v281, %v284
    %v287 = vsel %vm103, %v280, 0
    %289 = vmatprep.subr.mxu0 0.0
    %290 = vmatpush1.msra.mxu0 %v274
    %291 = vmatprep.subr.mxu0 0.0
    %292 = vmatpush1.msra.mxu0 %v275
    %293 = vmatprep.subr.mxu0 0.0
    %294 = vmatpush1.msra.mxu0 %v276
    %295 = vmatprep.subr.mxu0 0.0
    %296 = vmatpush1.msra.mxu0 %v277
    %297 = vmatprep.subr.mxu0 0.0
    %298 = vmatpush1.msra.mxu0 %v278
    %299 = vmatprep.subr.mxu0 0.0
    %300 = vmatpush1.msra.mxu0 %v279
    %301 = vmatprep.subr.mxu0 0.0
    %302 = vmatpush1.msra.mxu0 %v287
    %303 = vmatprep.subr.mxu0 0.0
    %304 = vmatpush1.msra.mxu0 0.0
    %305 = vmatprep.subr.mxu0 0.0
    %306 = vmatpush1.msra.mxu0 0.0
    %307 = vmatprep.subr.mxu0 0.0
    %308 = vmatpush1.msra.mxu0 0.0
    %309 = vmatprep.subr.mxu0 0.0
    %310 = vmatpush1.msra.mxu0 0.0
    %311 = vmatprep.subr.mxu0 0.0
    %312 = vmatpush1.msra.mxu0 0.0
    %313 = vmatprep.subr.mxu0 0.0
    %314 = vmatpush1.msra.mxu0 0.0
    %315 = vmatprep.subr.mxu0 0.0
    %316 = vmatpush1.msra.mxu0 0.0
    %317 = vmatprep.subr.mxu0 0.0
    %318 = vmatpush1.msra.mxu0 0.0
    %319 = vmatprep.subr.mxu0 0.0
    %320 = vmatpush1.msra.mxu0 0.0
    %321 = vmatprep.subr.mxu0 0.0
    %322 = vmatpush1.msra.mxu0 0.0
    %323 = vmatprep.subr.mxu0 0.0
    %324 = vmatpush1.msra.mxu0 0.0
    %325 = vmatprep.subr.mxu0 0.0
    %326 = vmatpush1.msra.mxu0 0.0
    %327 = vmatprep.subr.mxu0 0.0
    %328 = vmatpush1.msra.mxu0 0.0
    %329 = vmatprep.subr.mxu0 0.0
    %330 = vmatpush1.msra.mxu0 0.0
    %331 = vmatprep.subr.mxu0 0.0
    %332 = vmatpush1.msra.mxu0 0.0
    %333 = vmatprep.subr.mxu0 0.0
    %334 = vmatpush1.msra.mxu0 0.0
    %335 = vmatprep.subr.mxu0 0.0
    %336 = vmatpush1.msra.mxu0 0.0
    %337 = vmatprep.subr.mxu0 0.0
    %338 = vmatpush1.msra.mxu0 0.0
    %339 = vmatprep.subr.mxu0 0.0
    %340 = vmatpush1.msra.mxu0 0.0
    %341 = vmatprep.subr.mxu0 0.0
    %342 = vmatpush1.msra.mxu0 0.0
    %343 = vmatprep.subr.mxu0 0.0
    %344 = vmatpush1.msra.mxu0 0.0
    %345 = vmatprep.subr.mxu0 0.0
    %346 = vmatpush1.msra.mxu0 0.0
    %347 = vmatprep.subr.mxu0 0.0
    %348 = vmatpush1.msra.mxu0 0.0
    %349 = vmatprep.subr.mxu0 0.0
    %350 = vmatpush1.msra.mxu0 0.0
    %351 = vmatprep.subr.mxu0 0.0
    %352 = vmatpush1.msra.mxu0 0.0
    %353 = vmatprep.mubr.f32.mxu0 0.0
    %354 = vmatmul.mubr.f32.gmra.mrb[0].mxu0 %v98
    %v355 = vpop.f32.mrb[0].mxu0
    %v356 = vadd.f32 %v285, %v355
    %v357 = vpop.f32.mrb[0].mxu0
    %358 = vmatprep.mubr.f32.mxu0 0.0
    %359 = vmatmul.mubr.f32.gmra.mrb[0].mxu0 %v101
    %v360 = vpop.f32.mrb[0].mxu0
    %v361 = vadd.f32 %v285, %v360
    %v362 = vpop.f32.mrb[0].mxu0
    %363 = vdwg.mxu0
    %v364 = vld [vmem:[%s2] sm:$0xff]
    %v365 = vld [vmem:[%s2 + $0x8] sm:$0xff]
    %v366 = vld [vmem:[%s2 + $0x10] sm:$0xf]
    %s367 = scalar_lea.vmem %s2, 24
    %v368 = vld [vmem:[%s367] sm:$0xff]
    %v369 = vld [vmem:[%s367 + $0x8] sm:$0xff]
    %v370 = vld [vmem:[%s367 + $0x10] sm:$0xf]
    %s371 = scalar_lea.vmem %s2, 48
    %v372 = vld [vmem:[%s371] sm:$0xff]
    %v373 = vld [vmem:[%s371 + $0x8] sm:$0xff]
    %v374 = vld [vmem:[%s371 + $0x10] sm:$0xf]
    %v375 = vld [vmem:[%s3 + $0x3] sm:$0x1]
    %vm376 = vcmask 162816
    %v378 = vsel %vm376, 0.0, 0
    %vm380 = vcmask 1043456
    %v382 = vsel %vm380, %v366, 0
    %384 = vmatprep.subr.mxu0 0.0
    %385 = vmatpush1.msra.mxu0 %v364
    %386 = vmatprep.subr.mxu0 0.0
    %387 = vmatpush1.msra.mxu0 %v365
    %388 = vmatprep.subr.mxu0 0.0
    %389 = vmatpush1.msra.mxu0 %v382
    %390 = vmatprep.subr.mxu0 0.0
    %391 = vmatpush1.msra.mxu0 0.0
    %392 = vmatprep.subr.mxu0 0.0
    %393 = vmatpush1.msra.mxu0 0.0
    %394 = vmatprep.subr.mxu0 0.0
    %395 = vmatpush1.msra.mxu0 0.0
    %396 = vmatprep.subr.mxu0 0.0
    %397 = vmatpush1.msra.mxu0 0.0
    %398 = vmatprep.subr.mxu0 0.0
    %399 = vmatpush1.msra.mxu0 0.0
    %400 = vmatprep.subr.mxu0 0.0
    %401 = vmatpush1.msra.mxu0 0.0
    %402 = vmatprep.subr.mxu0 0.0
    %403 = vmatpush1.msra.mxu0 0.0
    %404 = vmatprep.subr.mxu0 0.0
    %405 = vmatpush1.msra.mxu0 0.0
    %406 = vmatprep.subr.mxu0 0.0
    %407 = vmatpush1.msra.mxu0 0.0
    %408 = vmatprep.subr.mxu0 0.0
    %409 = vmatpush1.msra.mxu0 0.0
    %410 = vmatprep.subr.mxu0 0.0
    %411 = vmatpush1.msra.mxu0 0.0
    %412 = vmatprep.subr.mxu0 0.0
    %413 = vmatpush1.msra.mxu0 0.0
    %414 = vmatprep.subr.mxu0 0.0
    %415 = vmatpush1.msra.mxu0 0.0
    %416 = vmatprep.subr.mxu0 0.0
    %417 = vmatpush1.msra.mxu0 0.0
    %418 = vmatprep.subr.mxu0 0.0
    %419 = vmatpush1.msra.mxu0 0.0
    %420 = vmatprep.subr.mxu0 0.0
    %421 = vmatpush1.msra.mxu0 0.0
    %422 = vmatprep.subr.mxu0 0.0
    %423 = vmatpush1.msra.mxu0 0.0
    %424 = vmatprep.subr.mxu0 0.0
    %425 = vmatpush1.msra.mxu0 0.0
    %426 = vmatprep.subr.mxu0 0.0
    %427 = vmatpush1.msra.mxu0 0.0
    %428 = vmatprep.subr.mxu0 0.0
    %429 = vmatpush1.msra.mxu0 0.0
    %430 = vmatprep.subr.mxu0 0.0
    %431 = vmatpush1.msra.mxu0 0.0
    %432 = vmatprep.subr.mxu0 0.0
    %433 = vmatpush1.msra.mxu0 0.0
    %434 = vmatprep.subr.mxu0 0.0
    %435 = vmatpush1.msra.mxu0 0.0
    %436 = vmatprep.subr.mxu0 0.0
    %437 = vmatpush1.msra.mxu0 0.0
    %438 = vmatprep.subr.mxu0 0.0
    %439 = vmatpush1.msra.mxu0 0.0
    %440 = vmatprep.subr.mxu0 0.0
    %441 = vmatpush1.msra.mxu0 0.0
    %442 = vmatprep.subr.mxu0 0.0
    %443 = vmatpush1.msra.mxu0 0.0
    %444 = vmatprep.subr.mxu0 0.0
    %445 = vmatpush1.msra.mxu0 0.0
    %446 = vmatprep.subr.mxu0 0.0
    %447 = vmatpush1.msra.mxu0 0.0
    %448 = vmatprep.mubr.f32.mxu0 0.0
    %449 = vmatmul.mubr.f32.gmra.mrb[0].mxu0 %v378
    %v450 = vpop.f32.mrb[0].mxu0
    %v451 = vadd.f32 0.0, %v450
    %v452 = vpop.f32.mrb[0].mxu0
    %453 = vdwg.mxu0
    %v454 = vadd.f32 %v174, %v451
    %v455 = vsub.f32 0.0, %v454
    %v456 = vmul.f32 %v455, 1.442695
    %v457 = vpow.pop %v456
    %v458 = vadd.f32 %v457, 1.0
    %v459 = vrcp.pop %v458
    %v460 = vmul.f32 1.0, %v459
    %v462 = vsel %vm380, %v370, 0
    %464 = vmatprep.subr.mxu0 0.0
    %465 = vmatpush1.msra.mxu0 %v368
    %466 = vmatprep.subr.mxu0 0.0
    %467 = vmatpush1.msra.mxu0 %v369
    %468 = vmatprep.subr.mxu0 0.0
    %469 = vmatpush1.msra.mxu0 %v462
    %470 = vmatprep.subr.mxu0 0.0
    %471 = vmatpush1.msra.mxu0 0.0
    %472 = vmatprep.subr.mxu0 0.0
    %473 = vmatpush1.msra.mxu0 0.0
    %474 = vmatprep.subr.mxu0 0.0
    %475 = vmatpush1.msra.mxu0 0.0
    %476 = vmatprep.subr.mxu0 0.0
    %477 = vmatpush1.msra.mxu0 0.0
    %478 = vmatprep.subr.mxu0 0.0
    %479 = vmatpush1.msra.mxu0 0.0
    %480 = vmatprep.subr.mxu0 0.0
    %481 = vmatpush1.msra.mxu0 0.0
    %482 = vmatprep.subr.mxu0 0.0
    %483 = vmatpush1.msra.mxu0 0.0
    %484 = vmatprep.subr.mxu0 0.0
    %485 = vmatpush1.msra.mxu0 0.0
    %486 = vmatprep.subr.mxu0 0.0
    %487 = vmatpush1.msra.mxu0 0.0
    %488 = vmatprep.subr.mxu0 0.0
    %489 = vmatpush1.msra.mxu0 0.0
    %490 = vmatprep.subr.mxu0 0.0
    %491 = vmatpush1.msra.mxu0 0.0
    %492 = vmatprep.subr.mxu0 0.0
    %493 = vmatpush1.msra.mxu0 0.0
    %494 = vmatprep.subr.mxu0 0.0
    %495 = vmatpush1.msra.mxu0 0.0
    %496 = vmatprep.subr.mxu0 0.0
    %497 = vmatpush1.msra.mxu0 0.0
    %498 = vmatprep.subr.mxu0 0.0
    %499 = vmatpush1.msra.mxu0 0.0
    %500 = vmatprep.subr.mxu0 0.0
    %501 = vmatpush1.msra.mxu0 0.0
    %502 = vmatprep.subr.mxu0 0.0
    %503 = vmatpush1.msra.mxu0 0.0
    %504 = vmatprep.subr.mxu0 0.0
    %505 = vmatpush1.msra.mxu0 0.0
    %506 = vmatprep.subr.mxu0 0.0
    %507 = vmatpush1.msra.mxu0 0.0
    %508 = vmatprep.subr.mxu0 0.0
    %509 = vmatpush1.msra.mxu0 0.0
    %510 = vmatprep.subr.mxu0 0.0
    %511 = vmatpush1.msra.mxu0 0.0
    %512 = vmatprep.subr.mxu0 0.0
    %513 = vmatpush1.msra.mxu0 0.0
    %514 = vmatprep.subr.mxu0 0.0
    %515 = vmatpush1.msra.mxu0 0.0
    %516 = vmatprep.subr.mxu0 0.0
    %517 = vmatpush1.msra.mxu0 0.0
    %518 = vmatprep.subr.mxu0 0.0
    %519 = vmatpush1.msra.mxu0 0.0
    %520 = vmatprep.subr.mxu0 0.0
    %521 = vmatpush1.msra.mxu0 0.0
    %522 = vmatprep.subr.mxu0 0.0
    %523 = vmatpush1.msra.mxu0 0.0
    %524 = vmatprep.subr.mxu0 0.0
    %525 = vmatpush1.msra.mxu0 0.0
    %526 = vmatprep.subr.mxu0 0.0
    %527 = vmatpush1.msra.mxu0 0.0
    %528 = vmatprep.mubr.f32.mxu0 0.0
    %529 = vmatmul.mubr.f32.gmra.mrb[0].mxu0 %v378
    %v530 = vpop.f32.mrb[0].mxu0
    %v531 = vadd.f32 0.0, %v530
    %v532 = vpop.f32.mrb[0].mxu0
    %533 = vdwg.mxu0
    %v534 = vadd.f32 %v265, %v531
    %v535 = vsub.f32 0.0, %v534
    %v536 = vmul.f32 %v535, 1.442695
    %v537 = vpow.pop %v536
    %v538 = vadd.f32 %v537, 1.0
    %v539 = vrcp.pop %v538
    %v540 = vmul.f32 1.0, %v539
    %v541 = vlaneseq
    %v542 = vshrl.u32 %v541, 7
    %v543 = vsub.s32 0, %v542
    %v544 = vrot.slane %v375, %v543
    %v546 = vsel %vm380, %v374, 0
    %548 = vmatprep.subr.mxu0 0.0
    %549 = vmatpush1.msra.mxu0 %v372
    %550 = vmatprep.subr.mxu0 0.0
    %551 = vmatpush1.msra.mxu0 %v373
    %552 = vmatprep.subr.mxu0 0.0
    %553 = vmatpush1.msra.mxu0 %v546
    %554 = vmatprep.subr.mxu0 0.0
    %555 = vmatpush1.msra.mxu0 0.0
    %556 = vmatprep.subr.mxu0 0.0
    %557 = vmatpush1.msra.mxu0 0.0
    %558 = vmatprep.subr.mxu0 0.0
    %559 = vmatpush1.msra.mxu0 0.0
    %560 = vmatprep.subr.mxu0 0.0
    %561 = vmatpush1.msra.mxu0 0.0
    %562 = vmatprep.subr.mxu0 0.0
    %563 = vmatpush1.msra.mxu0 0.0
    %564 = vmatprep.subr.mxu0 0.0
    %565 = vmatpush1.msra.mxu0 0.0
    %566 = vmatprep.subr.mxu0 0.0
    %567 = vmatpush1.msra.mxu0 0.0
    %568 = vmatprep.subr.mxu0 0.0
    %569 = vmatpush1.msra.mxu0 0.0
    %570 = vmatprep.subr.mxu0 0.0
    %571 = vmatpush1.msra.mxu0 0.0
    %572 = vmatprep.subr.mxu0 0.0
    %573 = vmatpush1.msra.mxu0 0.0
    %574 = vmatprep.subr.mxu0 0.0
    %575 = vmatpush1.msra.mxu0 0.0
    %576 = vmatprep.subr.mxu0 0.0
    %577 = vmatpush1.msra.mxu0 0.0
    %578 = vmatprep.subr.mxu0 0.0
    %579 = vmatpush1.msra.mxu0 0.0
    %580 = vmatprep.subr.mxu0 0.0
    %581 = vmatpush1.msra.mxu0 0.0
    %582 = vmatprep.subr.mxu0 0.0
    %583 = vmatpush1.msra.mxu0 0.0
    %584 = vmatprep.subr.mxu0 0.0
    %585 = vmatpush1.msra.mxu0 0.0
    %586 = vmatprep.subr.mxu0 0.0
    %587 = vmatpush1.msra.mxu0 0.0
    %588 = vmatprep.subr.mxu0 0.0
    %589 = vmatpush1.msra.mxu0 0.0
    %590 = vmatprep.subr.mxu0 0.0
    %591 = vmatpush1.msra.mxu0 0.0
    %592 = vmatprep.subr.mxu0 0.0
    %593 = vmatpush1.msra.mxu0 0.0
    %594 = vmatprep.subr.mxu0 0.0
    %595 = vmatpush1.msra.mxu0 0.0
    %596 = vmatprep.subr.mxu0 0.0
    %597 = vmatpush1.msra.mxu0 0.0
    %598 = vmatprep.subr.mxu0 0.0
    %599 = vmatpush1.msra.mxu0 0.0
    %600 = vmatprep.subr.mxu0 0.0
    %601 = vmatpush1.msra.mxu0 0.0
    %602 = vmatprep.subr.mxu0 0.0
    %603 = vmatpush1.msra.mxu0 0.0
    %604 = vmatprep.subr.mxu0 0.0
    %605 = vmatpush1.msra.mxu0 0.0
    %606 = vmatprep.subr.mxu0 0.0
    %607 = vmatpush1.msra.mxu0 0.0
    %608 = vmatprep.subr.mxu0 0.0
    %609 = vmatpush1.msra.mxu0 0.0
    %610 = vmatprep.subr.mxu0 0.0
    %611 = vmatpush1.msra.mxu0 0.0
    %612 = vmatprep.mubr.f32.mxu0 0.0
    %613 = vmatmul.mubr.f32.gmra.mrb[0].mxu0 %v378
    %v614 = vpop.f32.mrb[0].mxu0
    %v615 = vadd.f32 %v544, %v614
    %v616 = vpop.f32.mrb[0].mxu0
    %617 = vdwg.mxu0
    %v618 = vmul.f32 %v460, %v615
    %v619 = vadd.f32 %v356, %v618
    %v620 = vtanh.pop %v619
    %v621 = vsub.f32 1.0, %v540
    %v622 = vmul.f32 %v621, %v620
    %v623 = vmul.f32 %v540, 0.0
    %v624 = vadd.f32 %v622, %v623
    %vm625 = vcmask 156672
    %626 = vst.msk [vmem:[#allocation2] sm:$0x3] %vm625, %v624
    %v628 = vsel %vm376, %v624, 0
    %630 = vmatprep.subr.mxu0 0.0
    %631 = vmatpush1.msra.mxu0 %v364
    %632 = vmatprep.subr.mxu0 0.0
    %633 = vmatpush1.msra.mxu0 %v365
    %634 = vmatprep.subr.mxu0 0.0
    %635 = vmatpush1.msra.mxu0 %v382
    %636 = vmatprep.subr.mxu0 0.0
    %637 = vmatpush1.msra.mxu0 0.0
    %638 = vmatprep.subr.mxu0 0.0
    %639 = vmatpush1.msra.mxu0 0.0
    %640 = vmatprep.subr.mxu0 0.0
    %641 = vmatpush1.msra.mxu0 0.0
    %642 = vmatprep.subr.mxu0 0.0
    %643 = vmatpush1.msra.mxu0 0.0
    %644 = vmatprep.subr.mxu0 0.0
    %645 = vmatpush1.msra.mxu0 0.0
    %646 = vmatprep.subr.mxu0 0.0
    %647 = vmatpush1.msra.mxu0 0.0
    %648 = vmatprep.subr.mxu0 0.0
    %649 = vmatpush1.msra.mxu0 0.0
    %650 = vmatprep.subr.mxu0 0.0
    %651 = vmatpush1.msra.mxu0 0.0
    %652 = vmatprep.subr.mxu0 0.0
    %653 = vmatpush1.msra.mxu0 0.0
    %654 = vmatprep.subr.mxu0 0.0
    %655 = vmatpush1.msra.mxu0 0.0
    %656 = vmatprep.subr.mxu0 0.0
    %657 = vmatpush1.msra.mxu0 0.0
    %658 = vmatprep.subr.mxu0 0.0
    %659 = vmatpush1.msra.mxu0 0.0
    %660 = vmatprep.subr.mxu0 0.0
    %661 = vmatpush1.msra.mxu0 0.0
    %662 = vmatprep.subr.mxu0 0.0
    %663 = vmatpush1.msra.mxu0 0.0
    %664 = vmatprep.subr.mxu0 0.0
    %665 = vmatpush1.msra.mxu0 0.0
    %666 = vmatprep.subr.mxu0 0.0
    %667 = vmatpush1.msra.mxu0 0.0
    %668 = vmatprep.subr.mxu0 0.0
    %669 = vmatpush1.msra.mxu0 0.0
    %670 = vmatprep.subr.mxu0 0.0
    %671 = vmatpush1.msra.mxu0 0.0
    %672 = vmatprep.subr.mxu0 0.0
    %673 = vmatpush1.msra.mxu0 0.0
    %674 = vmatprep.subr.mxu0 0.0
    %675 = vmatpush1.msra.mxu0 0.0
    %676 = vmatprep.subr.mxu0 0.0
    %677 = vmatpush1.msra.mxu0 0.0
    %678 = vmatprep.subr.mxu0 0.0
    %679 = vmatpush1.msra.mxu0 0.0
    %680 = vmatprep.subr.mxu0 0.0
    %681 = vmatpush1.msra.mxu0 0.0
    %682 = vmatprep.subr.mxu0 0.0
    %683 = vmatpush1.msra.mxu0 0.0
    %684 = vmatprep.subr.mxu0 0.0
    %685 = vmatpush1.msra.mxu0 0.0
    %686 = vmatprep.subr.mxu0 0.0
    %687 = vmatpush1.msra.mxu0 0.0
    %688 = vmatprep.subr.mxu0 0.0
    %689 = vmatpush1.msra.mxu0 0.0
    %690 = vmatprep.subr.mxu0 0.0
    %691 = vmatpush1.msra.mxu0 0.0
    %692 = vmatprep.subr.mxu0 0.0
    %693 = vmatpush1.msra.mxu0 0.0
    %694 = vmatprep.mubr.f32.mxu0 0.0
    %695 = vmatmul.mubr.f32.gmra.mrb[0].mxu0 %v628
    %v696 = vpop.f32.mrb[0].mxu0
    %v697 = vadd.f32 0.0, %v696
    %v698 = vpop.f32.mrb[0].mxu0
    %699 = vdwg.mxu0
    %v701 = vrot.slane %v697, 6
    %v703 = vadd.f32 %v174, %v701
    %v704 = vsub.f32 0.0, %v703
    %v705 = vmul.f32 %v704, 1.442695
    %v706 = vpow.pop %v705
    %v707 = vadd.f32 %v706, 1.0
    %v708 = vrcp.pop %v707
    %v709 = vmul.f32 1.0, %v708
    %710 = vmatprep.subr.mxu0 0.0
    %711 = vmatpush1.msra.mxu0 %v368
    %712 = vmatprep.subr.mxu0 0.0
    %713 = vmatpush1.msra.mxu0 %v369
    %714 = vmatprep.subr.mxu0 0.0
    %715 = vmatpush1.msra.mxu0 %v462
    %716 = vmatprep.subr.mxu0 0.0
    %717 = vmatpush1.msra.mxu0 0.0
    %718 = vmatprep.subr.mxu0 0.0
    %719 = vmatpush1.msra.mxu0 0.0
    %720 = vmatprep.subr.mxu0 0.0
    %721 = vmatpush1.msra.mxu0 0.0
    %722 = vmatprep.subr.mxu0 0.0
    %723 = vmatpush1.msra.mxu0 0.0
    %724 = vmatprep.subr.mxu0 0.0
    %725 = vmatpush1.msra.mxu0 0.0
    %726 = vmatprep.subr.mxu0 0.0
    %727 = vmatpush1.msra.mxu0 0.0
    %728 = vmatprep.subr.mxu0 0.0
    %729 = vmatpush1.msra.mxu0 0.0
    %730 = vmatprep.subr.mxu0 0.0
    %731 = vmatpush1.msra.mxu0 0.0
    %732 = vmatprep.subr.mxu0 0.0
    %733 = vmatpush1.msra.mxu0 0.0
    %734 = vmatprep.subr.mxu0 0.0
    %735 = vmatpush1.msra.mxu0 0.0
    %736 = vmatprep.subr.mxu0 0.0
    %737 = vmatpush1.msra.mxu0 0.0
    %738 = vmatprep.subr.mxu0 0.0
    %739 = vmatpush1.msra.mxu0 0.0
    %740 = vmatprep.subr.mxu0 0.0
    %741 = vmatpush1.msra.mxu0 0.0
    %742 = vmatprep.subr.mxu0 0.0
    %743 = vmatpush1.msra.mxu0 0.0
    %744 = vmatprep.subr.mxu0 0.0
    %745 = vmatpush1.msra.mxu0 0.0
    %746 = vmatprep.subr.mxu0 0.0
    %747 = vmatpush1.msra.mxu0 0.0
    %748 = vmatprep.subr.mxu0 0.0
    %749 = vmatpush1.msra.mxu0 0.0
    %750 = vmatprep.subr.mxu0 0.0
    %751 = vmatpush1.msra.mxu0 0.0
    %752 = vmatprep.subr.mxu0 0.0
    %753 = vmatpush1.msra.mxu0 0.0
    %754 = vmatprep.subr.mxu0 0.0
    %755 = vmatpush1.msra.mxu0 0.0
    %756 = vmatprep.subr.mxu0 0.0
    %757 = vmatpush1.msra.mxu0 0.0
    %758 = vmatprep.subr.mxu0 0.0
    %759 = vmatpush1.msra.mxu0 0.0
    %760 = vmatprep.subr.mxu0 0.0
    %761 = vmatpush1.msra.mxu0 0.0
    %762 = vmatprep.subr.mxu0 0.0
    %763 = vmatpush1.msra.mxu0 0.0
    %764 = vmatprep.subr.mxu0 0.0
    %765 = vmatpush1.msra.mxu0 0.0
    %766 = vmatprep.subr.mxu0 0.0
    %767 = vmatpush1.msra.mxu0 0.0
    %768 = vmatprep.subr.mxu0 0.0
    %769 = vmatpush1.msra.mxu0 0.0
    %770 = vmatprep.subr.mxu0 0.0
    %771 = vmatpush1.msra.mxu0 0.0
    %772 = vmatprep.subr.mxu0 0.0
    %773 = vmatpush1.msra.mxu0 0.0
    %774 = vmatprep.mubr.f32.mxu0 0.0
    %775 = vmatmul.mubr.f32.gmra.mrb[0].mxu0 %v628
    %v776 = vpop.f32.mrb[0].mxu0
    %v777 = vadd.f32 0.0, %v776
    %v778 = vpop.f32.mrb[0].mxu0
    %779 = vdwg.mxu0
    %v781 = vrot.slane %v777, 6
    %v783 = vadd.f32 %v265, %v781
    %v784 = vsub.f32 0.0, %v783
    %v785 = vmul.f32 %v784, 1.442695
    %v786 = vpow.pop %v785
    %v787 = vadd.f32 %v786, 1.0
    %v788 = vrcp.pop %v787
    %v789 = vmul.f32 1.0, %v788
    %790 = vmatprep.subr.mxu0 0.0
    %791 = vmatpush1.msra.mxu0 %v372
    %792 = vmatprep.subr.mxu0 0.0
    %793 = vmatpush1.msra.mxu0 %v373
    %794 = vmatprep.subr.mxu0 0.0
    %795 = vmatpush1.msra.mxu0 %v546
    %796 = vmatprep.subr.mxu0 0.0
    %797 = vmatpush1.msra.mxu0 0.0
    %798 = vmatprep.subr.mxu0 0.0
    %799 = vmatpush1.msra.mxu0 0.0
    %800 = vmatprep.subr.mxu0 0.0
    %801 = vmatpush1.msra.mxu0 0.0
    %802 = vmatprep.subr.mxu0 0.0
    %803 = vmatpush1.msra.mxu0 0.0
    %804 = vmatprep.subr.mxu0 0.0
    %805 = vmatpush1.msra.mxu0 0.0
    %806 = vmatprep.subr.mxu0 0.0
    %807 = vmatpush1.msra.mxu0 0.0
    %808 = vmatprep.subr.mxu0 0.0
    %809 = vmatpush1.msra.mxu0 0.0
    %810 = vmatprep.subr.mxu0 0.0
    %811 = vmatpush1.msra.mxu0 0.0
    %812 = vmatprep.subr.mxu0 0.0
    %813 = vmatpush1.msra.mxu0 0.0
    %814 = vmatprep.subr.mxu0 0.0
    %815 = vmatpush1.msra.mxu0 0.0
    %816 = vmatprep.subr.mxu0 0.0
    %817 = vmatpush1.msra.mxu0 0.0
    %818 = vmatprep.subr.mxu0 0.0
    %819 = vmatpush1.msra.mxu0 0.0
    %820 = vmatprep.subr.mxu0 0.0
    %821 = vmatpush1.msra.mxu0 0.0
    %822 = vmatprep.subr.mxu0 0.0
    %823 = vmatpush1.msra.mxu0 0.0
    %824 = vmatprep.subr.mxu0 0.0
    %825 = vmatpush1.msra.mxu0 0.0
    %826 = vmatprep.subr.mxu0 0.0
    %827 = vmatpush1.msra.mxu0 0.0
    %828 = vmatprep.subr.mxu0 0.0
    %829 = vmatpush1.msra.mxu0 0.0
    %830 = vmatprep.subr.mxu0 0.0
    %831 = vmatpush1.msra.mxu0 0.0
    %832 = vmatprep.subr.mxu0 0.0
    %833 = vmatpush1.msra.mxu0 0.0
    %834 = vmatprep.subr.mxu0 0.0
    %835 = vmatpush1.msra.mxu0 0.0
    %836 = vmatprep.subr.mxu0 0.0
    %837 = vmatpush1.msra.mxu0 0.0
    %838 = vmatprep.subr.mxu0 0.0
    %839 = vmatpush1.msra.mxu0 0.0
    %840 = vmatprep.subr.mxu0 0.0
    %841 = vmatpush1.msra.mxu0 0.0
    %842 = vmatprep.subr.mxu0 0.0
    %843 = vmatpush1.msra.mxu0 0.0
    %844 = vmatprep.subr.mxu0 0.0
    %845 = vmatpush1.msra.mxu0 0.0
    %846 = vmatprep.subr.mxu0 0.0
    %847 = vmatpush1.msra.mxu0 0.0
    %848 = vmatprep.subr.mxu0 0.0
    %849 = vmatpush1.msra.mxu0 0.0
    %850 = vmatprep.subr.mxu0 0.0
    %851 = vmatpush1.msra.mxu0 0.0
    %852 = vmatprep.subr.mxu0 0.0
    %853 = vmatpush1.msra.mxu0 0.0
    %854 = vmatprep.mubr.f32.mxu0 0.0
    %855 = vmatmul.mubr.f32.gmra.mrb[0].mxu0 %v628
    %v856 = vpop.f32.mrb[0].mxu0
    %v857 = vadd.f32 %v544, %v856
    %v858 = vpop.f32.mrb[0].mxu0
    %859 = vdwg.mxu0
    %v861 = vrot.slane %v857, 6
    %v863 = vmul.f32 %v709, %v861
    %v864 = vadd.f32 %v356, %v863
    %v865 = vtanh.pop %v864
    %v866 = vsub.f32 1.0, %v789
    %v867 = vmul.f32 %v866, %v865
    %v868 = vrot.slane %v624, 6
    %v870 = vmul.f32 %v789, %v868
    %v871 = vadd.f32 %v867, %v870
    %vm872 = vcmask 158722
    %873 = vst.msk [vmem:[#allocation2] sm:$0xc] %vm872, %v871
    %v875 = vrot.slane %v871, 2
    %v876 = vsel %vm376, %v875, 0
    %878 = vmatprep.subr.mxu0 0.0
    %879 = vmatpush1.msra.mxu0 %v364
    %880 = vmatprep.subr.mxu0 0.0
    %881 = vmatpush1.msra.mxu0 %v365
    %882 = vmatprep.subr.mxu0 0.0
    %883 = vmatpush1.msra.mxu0 %v382
    %884 = vmatprep.subr.mxu0 0.0
    %885 = vmatpush1.msra.mxu0 0.0
    %886 = vmatprep.subr.mxu0 0.0
    %887 = vmatpush1.msra.mxu0 0.0
    %888 = vmatprep.subr.mxu0 0.0
    %889 = vmatpush1.msra.mxu0 0.0
    %890 = vmatprep.subr.mxu0 0.0
    %891 = vmatpush1.msra.mxu0 0.0
    %892 = vmatprep.subr.mxu0 0.0
    %893 = vmatpush1.msra.mxu0 0.0
    %894 = vmatprep.subr.mxu0 0.0
    %895 = vmatpush1.msra.mxu0 0.0
    %896 = vmatprep.subr.mxu0 0.0
    %897 = vmatpush1.msra.mxu0 0.0
    %898 = vmatprep.subr.mxu0 0.0
    %899 = vmatpush1.msra.mxu0 0.0
    %900 = vmatprep.subr.mxu0 0.0
    %901 = vmatpush1.msra.mxu0 0.0
    %902 = vmatprep.subr.mxu0 0.0
    %903 = vmatpush1.msra.mxu0 0.0
    %904 = vmatprep.subr.mxu0 0.0
    %905 = vmatpush1.msra.mxu0 0.0
    %906 = vmatprep.subr.mxu0 0.0
    %907 = vmatpush1.msra.mxu0 0.0
    %908 = vmatprep.subr.mxu0 0.0
    %909 = vmatpush1.msra.mxu0 0.0
    %910 = vmatprep.subr.mxu0 0.0
    %911 = vmatpush1.msra.mxu0 0.0
    %912 = vmatprep.subr.mxu0 0.0
    %913 = vmatpush1.msra.mxu0 0.0
    %914 = vmatprep.subr.mxu0 0.0
    %915 = vmatpush1.msra.mxu0 0.0
    %916 = vmatprep.subr.mxu0 0.0
    %917 = vmatpush1.msra.mxu0 0.0
    %918 = vmatprep.subr.mxu0 0.0
    %919 = vmatpush1.msra.mxu0 0.0
    %920 = vmatprep.subr.mxu0 0.0
    %921 = vmatpush1.msra.mxu0 0.0
    %922 = vmatprep.subr.mxu0 0.0
    %923 = vmatpush1.msra.mxu0 0.0
    %924 = vmatprep.subr.mxu0 0.0
    %925 = vmatpush1.msra.mxu0 0.0
    %926 = vmatprep.subr.mxu0 0.0
    %927 = vmatpush1.msra.mxu0 0.0
    %928 = vmatprep.subr.mxu0 0.0
    %929 = vmatpush1.msra.mxu0 0.0
    %930 = vmatprep.subr.mxu0 0.0
    %931 = vmatpush1.msra.mxu0 0.0
    %932 = vmatprep.subr.mxu0 0.0
    %933 = vmatpush1.msra.mxu0 0.0
    %934 = vmatprep.subr.mxu0 0.0
    %935 = vmatpush1.msra.mxu0 0.0
    %936 = vmatprep.subr.mxu0 0.0
    %937 = vmatpush1.msra.mxu0 0.0
    %938 = vmatprep.subr.mxu0 0.0
    %939 = vmatpush1.msra.mxu0 0.0
    %940 = vmatprep.subr.mxu0 0.0
    %941 = vmatpush1.msra.mxu0 0.0
    %942 = vmatprep.mubr.f32.mxu0 0.0
    %943 = vmatmul.mubr.f32.gmra.mrb[0].mxu0 %v876
    %v944 = vpop.f32.mrb[0].mxu0
    %v945 = vadd.f32 0.0, %v944
    %v946 = vpop.f32.mrb[0].mxu0
    %947 = vdwg.mxu0
    %v949 = vrot.slane %v945, 4
    %v951 = vadd.f32 %v174, %v949
    %v952 = vsub.f32 0.0, %v951
    %v953 = vmul.f32 %v952, 1.442695
    %v954 = vpow.pop %v953
    %v955 = vadd.f32 %v954, 1.0
    %v956 = vrcp.pop %v955
    %v957 = vmul.f32 1.0, %v956
    %958 = vmatprep.subr.mxu0 0.0
    %959 = vmatpush1.msra.mxu0 %v368
    %960 = vmatprep.subr.mxu0 0.0
    %961 = vmatpush1.msra.mxu0 %v369
    %962 = vmatprep.subr.mxu0 0.0
    %963 = vmatpush1.msra.mxu0 %v462
    %964 = vmatprep.subr.mxu0 0.0
    %965 = vmatpush1.msra.mxu0 0.0
    %966 = vmatprep.subr.mxu0 0.0
    %967 = vmatpush1.msra.mxu0 0.0
    %968 = vmatprep.subr.mxu0 0.0
    %969 = vmatpush1.msra.mxu0 0.0
    %970 = vmatprep.subr.mxu0 0.0
    %971 = vmatpush1.msra.mxu0 0.0
    %972 = vmatprep.subr.mxu0 0.0
    %973 = vmatpush1.msra.mxu0 0.0
    %974 = vmatprep.subr.mxu0 0.0
    %975 = vmatpush1.msra.mxu0 0.0
    %976 = vmatprep.subr.mxu0 0.0
    %977 = vmatpush1.msra.mxu0 0.0
    %978 = vmatprep.subr.mxu0 0.0
    %979 = vmatpush1.msra.mxu0 0.0
    %980 = vmatprep.subr.mxu0 0.0
    %981 = vmatpush1.msra.mxu0 0.0
    %982 = vmatprep.subr.mxu0 0.0
    %983 = vmatpush1.msra.mxu0 0.0
    %984 = vmatprep.subr.mxu0 0.0
    %985 = vmatpush1.msra.mxu0 0.0
    %986 = vmatprep.subr.mxu0 0.0
    %987 = vmatpush1.msra.mxu0 0.0
    %988 = vmatprep.subr.mxu0 0.0
    %989 = vmatpush1.msra.mxu0 0.0
    %990 = vmatprep.subr.mxu0 0.0
    %991 = vmatpush1.msra.mxu0 0.0
    %992 = vmatprep.subr.mxu0 0.0
    %993 = vmatpush1.msra.mxu0 0.0
    %994 = vmatprep.subr.mxu0 0.0
    %995 = vmatpush1.msra.mxu0 0.0
    %996 = vmatprep.subr.mxu0 0.0
    %997 = vmatpush1.msra.mxu0 0.0
    %998 = vmatprep.subr.mxu0 0.0
    %999 = vmatpush1.msra.mxu0 0.0
    %1000 = vmatprep.subr.mxu0 0.0
    %1001 = vmatpush1.msra.mxu0 0.0
    %1002 = vmatprep.subr.mxu0 0.0
    %1003 = vmatpush1.msra.mxu0 0.0
    %1004 = vmatprep.subr.mxu0 0.0
    %1005 = vmatpush1.msra.mxu0 0.0
    %1006 = vmatprep.subr.mxu0 0.0
    %1007 = vmatpush1.msra.mxu0 0.0
    %1008 = vmatprep.subr.mxu0 0.0
    %1009 = vmatpush1.msra.mxu0 0.0
    %1010 = vmatprep.subr.mxu0 0.0
    %1011 = vmatpush1.msra.mxu0 0.0
    %1012 = vmatprep.subr.mxu0 0.0
    %1013 = vmatpush1.msra.mxu0 0.0
    %1014 = vmatprep.subr.mxu0 0.0
    %1015 = vmatpush1.msra.mxu0 0.0
    %1016 = vmatprep.subr.mxu0 0.0
    %1017 = vmatpush1.msra.mxu0 0.0
    %1018 = vmatprep.subr.mxu0 0.0
    %1019 = vmatpush1.msra.mxu0 0.0
    %1020 = vmatprep.subr.mxu0 0.0
    %1021 = vmatpush1.msra.mxu0 0.0
    %1022 = vmatprep.mubr.f32.mxu0 0.0
    %1023 = vmatmul.mubr.f32.gmra.mrb[0].mxu0 %v876
    %v1024 = vpop.f32.mrb[0].mxu0
    %v1025 = vadd.f32 0.0, %v1024
    %v1026 = vpop.f32.mrb[0].mxu0
    %1027 = vdwg.mxu0
    %v1029 = vrot.slane %v1025, 4
    %v1031 = vadd.f32 %v265, %v1029
    %v1032 = vsub.f32 0.0, %v1031
    %v1033 = vmul.f32 %v1032, 1.442695
    %v1034 = vpow.pop %v1033
    %v1035 = vadd.f32 %v1034, 1.0
    %v1036 = vrcp.pop %v1035
    %v1037 = vmul.f32 1.0, %v1036
    %1038 = vmatprep.subr.mxu0 0.0
    %1039 = vmatpush1.msra.mxu0 %v372
    %1040 = vmatprep.subr.mxu0 0.0
    %1041 = vmatpush1.msra.mxu0 %v373
    %1042 = vmatprep.subr.mxu0 0.0
    %1043 = vmatpush1.msra.mxu0 %v546
    %1044 = vmatprep.subr.mxu0 0.0
    %1045 = vmatpush1.msra.mxu0 0.0
    %1046 = vmatprep.subr.mxu0 0.0
    %1047 = vmatpush1.msra.mxu0 0.0
    %1048 = vmatprep.subr.mxu0 0.0
    %1049 = vmatpush1.msra.mxu0 0.0
    %1050 = vmatprep.subr.mxu0 0.0
    %1051 = vmatpush1.msra.mxu0 0.0
    %1052 = vmatprep.subr.mxu0 0.0
    %1053 = vmatpush1.msra.mxu0 0.0
    %1054 = vmatprep.subr.mxu0 0.0
    %1055 = vmatpush1.msra.mxu0 0.0
    %1056 = vmatprep.subr.mxu0 0.0
    %1057 = vmatpush1.msra.mxu0 0.0
    %1058 = vmatprep.subr.mxu0 0.0
    %1059 = vmatpush1.msra.mxu0 0.0
    %1060 = vmatprep.subr.mxu0 0.0
    %1061 = vmatpush1.msra.mxu0 0.0
    %1062 = vmatprep.subr.mxu0 0.0
    %1063 = vmatpush1.msra.mxu0 0.0
    %1064 = vmatprep.subr.mxu0 0.0
    %1065 = vmatpush1.msra.mxu0 0.0
    %1066 = vmatprep.subr.mxu0 0.0
    %1067 = vmatpush1.msra.mxu0 0.0
    %1068 = vmatprep.subr.mxu0 0.0
    %1069 = vmatpush1.msra.mxu0 0.0
    %1070 = vmatprep.subr.mxu0 0.0
    %1071 = vmatpush1.msra.mxu0 0.0
    %1072 = vmatprep.subr.mxu0 0.0
    %1073 = vmatpush1.msra.mxu0 0.0
    %1074 = vmatprep.subr.mxu0 0.0
    %1075 = vmatpush1.msra.mxu0 0.0
    %1076 = vmatprep.subr.mxu0 0.0
    %1077 = vmatpush1.msra.mxu0 0.0
    %1078 = vmatprep.subr.mxu0 0.0
    %1079 = vmatpush1.msra.mxu0 0.0
    %1080 = vmatprep.subr.mxu0 0.0
    %1081 = vmatpush1.msra.mxu0 0.0
    %1082 = vmatprep.subr.mxu0 0.0
    %1083 = vmatpush1.msra.mxu0 0.0
    %1084 = vmatprep.subr.mxu0 0.0
    %1085 = vmatpush1.msra.mxu0 0.0
    %1086 = vmatprep.subr.mxu0 0.0
    %1087 = vmatpush1.msra.mxu0 0.0
    %1088 = vmatprep.subr.mxu0 0.0
    %1089 = vmatpush1.msra.mxu0 0.0
    %1090 = vmatprep.subr.mxu0 0.0
    %1091 = vmatpush1.msra.mxu0 0.0
    %1092 = vmatprep.subr.mxu0 0.0
    %1093 = vmatpush1.msra.mxu0 0.0
    %1094 = vmatprep.subr.mxu0 0.0
    %1095 = vmatpush1.msra.mxu0 0.0
    %1096 = vmatprep.subr.mxu0 0.0
    %1097 = vmatpush1.msra.mxu0 0.0
    %1098 = vmatprep.subr.mxu0 0.0
    %1099 = vmatpush1.msra.mxu0 0.0
    %1100 = vmatprep.subr.mxu0 0.0
    %1101 = vmatpush1.msra.mxu0 0.0
    %1102 = vmatprep.mubr.f32.mxu0 0.0
    %1103 = vmatmul.mubr.f32.gmra.mrb[0].mxu0 %v876
    %v1104 = vpop.f32.mrb[0].mxu0
    %v1105 = vadd.f32 %v544, %v1104
    %v1106 = vpop.f32.mrb[0].mxu0
    %1107 = vdwg.mxu0
    %v1109 = vrot.slane %v1105, 4
    %v1111 = vmul.f32 %v957, %v1109
    %v1112 = vadd.f32 %v356, %v1111
    %v1113 = vtanh.pop %v1112
    %v1114 = vsub.f32 1.0, %v1037
    %v1115 = vmul.f32 %v1114, %v1113
    %v1116 = vrot.slane %v871, 6
    %v1118 = vmul.f32 %v1037, %v1116
    %v1119 = vadd.f32 %v1115, %v1118
    %vm1120 = vcmask 160772
    %1121 = vst.msk [vmem:[#allocation2] sm:$0x30] %vm1120, %v1119
    %v1123 = vrot.slane %v1119, 4
    %v1124 = vsel %vm376, %v1123, 0
    %1126 = vmatprep.subr.mxu0 0.0
    %1127 = vmatpush1.msra.mxu0 %v364
    %1128 = vmatprep.subr.mxu0 0.0
    %1129 = vmatpush1.msra.mxu0 %v365
    %1130 = vmatprep.subr.mxu0 0.0
    %1131 = vmatpush1.msra.mxu0 %v382
    %1132 = vmatprep.subr.mxu0 0.0
    %1133 = vmatpush1.msra.mxu0 0.0
    %1134 = vmatprep.subr.mxu0 0.0
    %1135 = vmatpush1.msra.mxu0 0.0
    %1136 = vmatprep.subr.mxu0 0.0
    %1137 = vmatpush1.msra.mxu0 0.0
    %1138 = vmatprep.subr.mxu0 0.0
    %1139 = vmatpush1.msra.mxu0 0.0
    %1140 = vmatprep.subr.mxu0 0.0
    %1141 = vmatpush1.msra.mxu0 0.0
    %1142 = vmatprep.subr.mxu0 0.0
    %1143 = vmatpush1.msra.mxu0 0.0
    %1144 = vmatprep.subr.mxu0 0.0
    %1145 = vmatpush1.msra.mxu0 0.0
    %1146 = vmatprep.subr.mxu0 0.0
    %1147 = vmatpush1.msra.mxu0 0.0
    %1148 = vmatprep.subr.mxu0 0.0
    %1149 = vmatpush1.msra.mxu0 0.0
    %1150 = vmatprep.subr.mxu0 0.0
    %1151 = vmatpush1.msra.mxu0 0.0
    %1152 = vmatprep.subr.mxu0 0.0
    %1153 = vmatpush1.msra.mxu0 0.0
    %1154 = vmatprep.subr.mxu0 0.0
    %1155 = vmatpush1.msra.mxu0 0.0
    %1156 = vmatprep.subr.mxu0 0.0
    %1157 = vmatpush1.msra.mxu0 0.0
    %1158 = vmatprep.subr.mxu0 0.0
    %1159 = vmatpush1.msra.mxu0 0.0
    %1160 = vmatprep.subr.mxu0 0.0
    %1161 = vmatpush1.msra.mxu0 0.0
    %1162 = vmatprep.subr.mxu0 0.0
    %1163 = vmatpush1.msra.mxu0 0.0
    %1164 = vmatprep.subr.mxu0 0.0
    %1165 = vmatpush1.msra.mxu0 0.0
    %1166 = vmatprep.subr.mxu0 0.0
    %1167 = vmatpush1.msra.mxu0 0.0
    %1168 = vmatprep.subr.mxu0 0.0
    %1169 = vmatpush1.msra.mxu0 0.0
    %1170 = vmatprep.subr.mxu0 0.0
    %1171 = vmatpush1.msra.mxu0 0.0
    %1172 = vmatprep.subr.mxu0 0.0
    %1173 = vmatpush1.msra.mxu0 0.0
    %1174 = vmatprep.subr.mxu0 0.0
    %1175 = vmatpush1.msra.mxu0 0.0
    %1176 = vmatprep.subr.mxu0 0.0
    %1177 = vmatpush1.msra.mxu0 0.0
    %1178 = vmatprep.subr.mxu0 0.0
    %1179 = vmatpush1.msra.mxu0 0.0
    %1180 = vmatprep.subr.mxu0 0.0
    %1181 = vmatpush1.msra.mxu0 0.0
    %1182 = vmatprep.subr.mxu0 0.0
    %1183 = vmatpush1.msra.mxu0 0.0
    %1184 = vmatprep.subr.mxu0 0.0
    %1185 = vmatpush1.msra.mxu0 0.0
    %1186 = vmatprep.subr.mxu0 0.0
    %1187 = vmatpush1.msra.mxu0 0.0
    %1188 = vmatprep.subr.mxu0 0.0
    %1189 = vmatpush1.msra.mxu0 0.0
    %1190 = vmatprep.mubr.f32.mxu0 0.0
    %1191 = vmatmul.mubr.f32.gmra.mrb[0].mxu0 %v1124
    %v1192 = vpop.f32.mrb[0].mxu0
    %v1193 = vadd.f32 0.0, %v1192
    %v1194 = vpop.f32.mrb[0].mxu0
    %1195 = vdwg.mxu0
    %v1197 = vrot.slane %v1193, 2
    %v1199 = vadd.f32 %v174, %v1197
    %v1200 = vsub.f32 0.0, %v1199
    %v1201 = vmul.f32 %v1200, 1.442695
    %v1202 = vpow.pop %v1201
    %v1203 = vadd.f32 %v1202, 1.0
    %v1204 = vrcp.pop %v1203
    %v1205 = vmul.f32 1.0, %v1204
    %1206 = vmatprep.subr.mxu0 0.0
    %1207 = vmatpush1.msra.mxu0 %v368
    %1208 = vmatprep.subr.mxu0 0.0
    %1209 = vmatpush1.msra.mxu0 %v369
    %1210 = vmatprep.subr.mxu0 0.0
    %1211 = vmatpush1.msra.mxu0 %v462
    %1212 = vmatprep.subr.mxu0 0.0
    %1213 = vmatpush1.msra.mxu0 0.0
    %1214 = vmatprep.subr.mxu0 0.0
    %1215 = vmatpush1.msra.mxu0 0.0
    %1216 = vmatprep.subr.mxu0 0.0
    %1217 = vmatpush1.msra.mxu0 0.0
    %1218 = vmatprep.subr.mxu0 0.0
    %1219 = vmatpush1.msra.mxu0 0.0
    %1220 = vmatprep.subr.mxu0 0.0
    %1221 = vmatpush1.msra.mxu0 0.0
    %1222 = vmatprep.subr.mxu0 0.0
    %1223 = vmatpush1.msra.mxu0 0.0
    %1224 = vmatprep.subr.mxu0 0.0
    %1225 = vmatpush1.msra.mxu0 0.0
    %1226 = vmatprep.subr.mxu0 0.0
    %1227 = vmatpush1.msra.mxu0 0.0
    %1228 = vmatprep.subr.mxu0 0.0
    %1229 = vmatpush1.msra.mxu0 0.0
    %1230 = vmatprep.subr.mxu0 0.0
    %1231 = vmatpush1.msra.mxu0 0.0
    %1232 = vmatprep.subr.mxu0 0.0
    %1233 = vmatpush1.msra.mxu0 0.0
    %1234 = vmatprep.subr.mxu0 0.0
    %1235 = vmatpush1.msra.mxu0 0.0
    %1236 = vmatprep.subr.mxu0 0.0
    %1237 = vmatpush1.msra.mxu0 0.0
    %1238 = vmatprep.subr.mxu0 0.0
    %1239 = vmatpush1.msra.mxu0 0.0
    %1240 = vmatprep.subr.mxu0 0.0
    %1241 = vmatpush1.msra.mxu0 0.0
    %1242 = vmatprep.subr.mxu0 0.0
    %1243 = vmatpush1.msra.mxu0 0.0
    %1244 = vmatprep.subr.mxu0 0.0
    %1245 = vmatpush1.msra.mxu0 0.0
    %1246 = vmatprep.subr.mxu0 0.0
    %1247 = vmatpush1.msra.mxu0 0.0
    %1248 = vmatprep.subr.mxu0 0.0
    %1249 = vmatpush1.msra.mxu0 0.0
    %1250 = vmatprep.subr.mxu0 0.0
    %1251 = vmatpush1.msra.mxu0 0.0
    %1252 = vmatprep.subr.mxu0 0.0
    %1253 = vmatpush1.msra.mxu0 0.0
    %1254 = vmatprep.subr.mxu0 0.0
    %1255 = vmatpush1.msra.mxu0 0.0
    %1256 = vmatprep.subr.mxu0 0.0
    %1257 = vmatpush1.msra.mxu0 0.0
    %1258 = vmatprep.subr.mxu0 0.0
    %1259 = vmatpush1.msra.mxu0 0.0
    %1260 = vmatprep.subr.mxu0 0.0
    %1261 = vmatpush1.msra.mxu0 0.0
    %1262 = vmatprep.subr.mxu0 0.0
    %1263 = vmatpush1.msra.mxu0 0.0
    %1264 = vmatprep.subr.mxu0 0.0
    %1265 = vmatpush1.msra.mxu0 0.0
    %1266 = vmatprep.subr.mxu0 0.0
    %1267 = vmatpush1.msra.mxu0 0.0
    %1268 = vmatprep.subr.mxu0 0.0
    %1269 = vmatpush1.msra.mxu0 0.0
    %1270 = vmatprep.mubr.f32.mxu0 0.0
    %1271 = vmatmul.mubr.f32.gmra.mrb[0].mxu0 %v1124
    %v1272 = vpop.f32.mrb[0].mxu0
    %v1273 = vadd.f32 0.0, %v1272
    %v1274 = vpop.f32.mrb[0].mxu0
    %1275 = vdwg.mxu0
    %v1277 = vrot.slane %v1273, 2
    %v1279 = vadd.f32 %v265, %v1277
    %v1280 = vsub.f32 0.0, %v1279
    %v1281 = vmul.f32 %v1280, 1.442695
    %v1282 = vpow.pop %v1281
    %v1283 = vadd.f32 %v1282, 1.0
    %v1284 = vrcp.pop %v1283
    %v1285 = vmul.f32 1.0, %v1284
    %1286 = vmatprep.subr.mxu0 0.0
    %1287 = vmatpush1.msra.mxu0 %v372
    %1288 = vmatprep.subr.mxu0 0.0
    %1289 = vmatpush1.msra.mxu0 %v373
    %1290 = vmatprep.subr.mxu0 0.0
    %1291 = vmatpush1.msra.mxu0 %v546
    %1292 = vmatprep.subr.mxu0 0.0
    %1293 = vmatpush1.msra.mxu0 0.0
    %1294 = vmatprep.subr.mxu0 0.0
    %1295 = vmatpush1.msra.mxu0 0.0
    %1296 = vmatprep.subr.mxu0 0.0
    %1297 = vmatpush1.msra.mxu0 0.0
    %1298 = vmatprep.subr.mxu0 0.0
    %1299 = vmatpush1.msra.mxu0 0.0
    %1300 = vmatprep.subr.mxu0 0.0
    %1301 = vmatpush1.msra.mxu0 0.0
    %1302 = vmatprep.subr.mxu0 0.0
    %1303 = vmatpush1.msra.mxu0 0.0
    %1304 = vmatprep.subr.mxu0 0.0
    %1305 = vmatpush1.msra.mxu0 0.0
    %1306 = vmatprep.subr.mxu0 0.0
    %1307 = vmatpush1.msra.mxu0 0.0
    %1308 = vmatprep.subr.mxu0 0.0
    %1309 = vmatpush1.msra.mxu0 0.0
    %1310 = vmatprep.subr.mxu0 0.0
    %1311 = vmatpush1.msra.mxu0 0.0
    %1312 = vmatprep.subr.mxu0 0.0
    %1313 = vmatpush1.msra.mxu0 0.0
    %1314 = vmatprep.subr.mxu0 0.0
    %1315 = vmatpush1.msra.mxu0 0.0
    %1316 = vmatprep.subr.mxu0 0.0
    %1317 = vmatpush1.msra.mxu0 0.0
    %1318 = vmatprep.subr.mxu0 0.0
    %1319 = vmatpush1.msra.mxu0 0.0
    %1320 = vmatprep.subr.mxu0 0.0
    %1321 = vmatpush1.msra.mxu0 0.0
    %1322 = vmatprep.subr.mxu0 0.0
    %1323 = vmatpush1.msra.mxu0 0.0
    %1324 = vmatprep.subr.mxu0 0.0
    %1325 = vmatpush1.msra.mxu0 0.0
    %1326 = vmatprep.subr.mxu0 0.0
    %1327 = vmatpush1.msra.mxu0 0.0
    %1328 = vmatprep.subr.mxu0 0.0
    %1329 = vmatpush1.msra.mxu0 0.0
    %1330 = vmatprep.subr.mxu0 0.0
    %1331 = vmatpush1.msra.mxu0 0.0
    %1332 = vmatprep.subr.mxu0 0.0
    %1333 = vmatpush1.msra.mxu0 0.0
    %1334 = vmatprep.subr.mxu0 0.0
    %1335 = vmatpush1.msra.mxu0 0.0
    %1336 = vmatprep.subr.mxu0 0.0
    %1337 = vmatpush1.msra.mxu0 0.0
    %1338 = vmatprep.subr.mxu0 0.0
    %1339 = vmatpush1.msra.mxu0 0.0
    %1340 = vmatprep.subr.mxu0 0.0
    %1341 = vmatpush1.msra.mxu0 0.0
    %1342 = vmatprep.subr.mxu0 0.0
    %1343 = vmatpush1.msra.mxu0 0.0
    %1344 = vmatprep.subr.mxu0 0.0
    %1345 = vmatpush1.msra.mxu0 0.0
    %1346 = vmatprep.subr.mxu0 0.0
    %1347 = vmatpush1.msra.mxu0 0.0
    %1348 = vmatprep.subr.mxu0 0.0
    %1349 = vmatpush1.msra.mxu0 0.0
    %1350 = vmatprep.mubr.f32.mxu0 0.0
    %1351 = vmatmul.mubr.f32.gmra.mrb[0].mxu0 %v1124
    %v1352 = vpop.f32.mrb[0].mxu0
    %v1353 = vadd.f32 %v544, %v1352
    %v1354 = vpop.f32.mrb[0].mxu0
    %1355 = vdwg.mxu0
    %v1357 = vrot.slane %v1353, 2
    %v1359 = vmul.f32 %v1205, %v1357
    %v1360 = vadd.f32 %v356, %v1359
    %v1361 = vtanh.pop %v1360
    %v1362 = vsub.f32 1.0, %v1285
    %v1363 = vmul.f32 %v1362, %v1361
    %v1364 = vrot.slane %v1119, 6
    %v1366 = vmul.f32 %v1285, %v1364
    %v1367 = vadd.f32 %v1363, %v1366
    %vm1368 = vcmask 162822
    %1369 = vst.msk [vmem:[#allocation2] sm:$0xc0] %vm1368, %v1367
    %v1371 = vrot.slane %v1367, 6
    %v1372 = vsel %vm376, %v1371, 0
    %1374 = vmatprep.subr.mxu0 0.0
    %1375 = vmatpush1.msra.mxu0 %v364
    %1376 = vmatprep.subr.mxu0 0.0
    %1377 = vmatpush1.msra.mxu0 %v365
    %1378 = vmatprep.subr.mxu0 0.0
    %1379 = vmatpush1.msra.mxu0 %v382
    %1380 = vmatprep.subr.mxu0 0.0
    %1381 = vmatpush1.msra.mxu0 0.0
    %1382 = vmatprep.subr.mxu0 0.0
    %1383 = vmatpush1.msra.mxu0 0.0
    %1384 = vmatprep.subr.mxu0 0.0
    %1385 = vmatpush1.msra.mxu0 0.0
    %1386 = vmatprep.subr.mxu0 0.0
    %1387 = vmatpush1.msra.mxu0 0.0
    %1388 = vmatprep.subr.mxu0 0.0
    %1389 = vmatpush1.msra.mxu0 0.0
    %1390 = vmatprep.subr.mxu0 0.0
    %1391 = vmatpush1.msra.mxu0 0.0
    %1392 = vmatprep.subr.mxu0 0.0
    %1393 = vmatpush1.msra.mxu0 0.0
    %1394 = vmatprep.subr.mxu0 0.0
    %1395 = vmatpush1.msra.mxu0 0.0
    %1396 = vmatprep.subr.mxu0 0.0
    %1397 = vmatpush1.msra.mxu0 0.0
    %1398 = vmatprep.subr.mxu0 0.0
    %1399 = vmatpush1.msra.mxu0 0.0
    %1400 = vmatprep.subr.mxu0 0.0
    %1401 = vmatpush1.msra.mxu0 0.0
    %1402 = vmatprep.subr.mxu0 0.0
    %1403 = vmatpush1.msra.mxu0 0.0
    %1404 = vmatprep.subr.mxu0 0.0
    %1405 = vmatpush1.msra.mxu0 0.0
    %1406 = vmatprep.subr.mxu0 0.0
    %1407 = vmatpush1.msra.mxu0 0.0
    %1408 = vmatprep.subr.mxu0 0.0
    %1409 = vmatpush1.msra.mxu0 0.0
    %1410 = vmatprep.subr.mxu0 0.0
    %1411 = vmatpush1.msra.mxu0 0.0
    %1412 = vmatprep.subr.mxu0 0.0
    %1413 = vmatpush1.msra.mxu0 0.0
    %1414 = vmatprep.subr.mxu0 0.0
    %1415 = vmatpush1.msra.mxu0 0.0
    %1416 = vmatprep.subr.mxu0 0.0
    %1417 = vmatpush1.msra.mxu0 0.0
    %1418 = vmatprep.subr.mxu0 0.0
    %1419 = vmatpush1.msra.mxu0 0.0
    %1420 = vmatprep.subr.mxu0 0.0
    %1421 = vmatpush1.msra.mxu0 0.0
    %1422 = vmatprep.subr.mxu0 0.0
    %1423 = vmatpush1.msra.mxu0 0.0
    %1424 = vmatprep.subr.mxu0 0.0
    %1425 = vmatpush1.msra.mxu0 0.0
    %1426 = vmatprep.subr.mxu0 0.0
    %1427 = vmatpush1.msra.mxu0 0.0
    %1428 = vmatprep.subr.mxu0 0.0
    %1429 = vmatpush1.msra.mxu0 0.0
    %1430 = vmatprep.subr.mxu0 0.0
    %1431 = vmatpush1.msra.mxu0 0.0
    %1432 = vmatprep.subr.mxu0 0.0
    %1433 = vmatpush1.msra.mxu0 0.0
    %1434 = vmatprep.subr.mxu0 0.0
    %1435 = vmatpush1.msra.mxu0 0.0
    %1436 = vmatprep.subr.mxu0 0.0
    %1437 = vmatpush1.msra.mxu0 0.0
    %1438 = vmatprep.mubr.f32.mxu0 0.0
    %1439 = vmatmul.mubr.f32.gmra.mrb[0].mxu0 %v1372
    %v1440 = vpop.f32.mrb[0].mxu0
    %v1441 = vadd.f32 0.0, %v1440
    %v1442 = vpop.f32.mrb[0].mxu0
    %1443 = vdwg.mxu0
    %v1444 = vadd.f32 %v179, %v1441
    %v1445 = vsub.f32 0.0, %v1444
    %v1446 = vmul.f32 %v1445, 1.442695
    %v1447 = vpow.pop %v1446
    %v1448 = vadd.f32 %v1447, 1.0
    %v1449 = vrcp.pop %v1448
    %v1450 = vmul.f32 1.0, %v1449
    %1451 = vmatprep.subr.mxu0 0.0
    %1452 = vmatpush1.msra.mxu0 %v368
    %1453 = vmatprep.subr.mxu0 0.0
    %1454 = vmatpush1.msra.mxu0 %v369
    %1455 = vmatprep.subr.mxu0 0.0
    %1456 = vmatpush1.msra.mxu0 %v462
    %1457 = vmatprep.subr.mxu0 0.0
    %1458 = vmatpush1.msra.mxu0 0.0
    %1459 = vmatprep.subr.mxu0 0.0
    %1460 = vmatpush1.msra.mxu0 0.0
    %1461 = vmatprep.subr.mxu0 0.0
    %1462 = vmatpush1.msra.mxu0 0.0
    %1463 = vmatprep.subr.mxu0 0.0
    %1464 = vmatpush1.msra.mxu0 0.0
    %1465 = vmatprep.subr.mxu0 0.0
    %1466 = vmatpush1.msra.mxu0 0.0
    %1467 = vmatprep.subr.mxu0 0.0
    %1468 = vmatpush1.msra.mxu0 0.0
    %1469 = vmatprep.subr.mxu0 0.0
    %1470 = vmatpush1.msra.mxu0 0.0
    %1471 = vmatprep.subr.mxu0 0.0
    %1472 = vmatpush1.msra.mxu0 0.0
    %1473 = vmatprep.subr.mxu0 0.0
    %1474 = vmatpush1.msra.mxu0 0.0
    %1475 = vmatprep.subr.mxu0 0.0
    %1476 = vmatpush1.msra.mxu0 0.0
    %1477 = vmatprep.subr.mxu0 0.0
    %1478 = vmatpush1.msra.mxu0 0.0
    %1479 = vmatprep.subr.mxu0 0.0
    %1480 = vmatpush1.msra.mxu0 0.0
    %1481 = vmatprep.subr.mxu0 0.0
    %1482 = vmatpush1.msra.mxu0 0.0
    %1483 = vmatprep.subr.mxu0 0.0
    %1484 = vmatpush1.msra.mxu0 0.0
    %1485 = vmatprep.subr.mxu0 0.0
    %1486 = vmatpush1.msra.mxu0 0.0
    %1487 = vmatprep.subr.mxu0 0.0
    %1488 = vmatpush1.msra.mxu0 0.0
    %1489 = vmatprep.subr.mxu0 0.0
    %1490 = vmatpush1.msra.mxu0 0.0
    %1491 = vmatprep.subr.mxu0 0.0
    %1492 = vmatpush1.msra.mxu0 0.0
    %1493 = vmatprep.subr.mxu0 0.0
    %1494 = vmatpush1.msra.mxu0 0.0
    %1495 = vmatprep.subr.mxu0 0.0
    %1496 = vmatpush1.msra.mxu0 0.0
    %1497 = vmatprep.subr.mxu0 0.0
    %1498 = vmatpush1.msra.mxu0 0.0
    %1499 = vmatprep.subr.mxu0 0.0
    %1500 = vmatpush1.msra.mxu0 0.0
    %1501 = vmatprep.subr.mxu0 0.0
    %1502 = vmatpush1.msra.mxu0 0.0
    %1503 = vmatprep.subr.mxu0 0.0
    %1504 = vmatpush1.msra.mxu0 0.0
    %1505 = vmatprep.subr.mxu0 0.0
    %1506 = vmatpush1.msra.mxu0 0.0
    %1507 = vmatprep.subr.mxu0 0.0
    %1508 = vmatpush1.msra.mxu0 0.0
    %1509 = vmatprep.subr.mxu0 0.0
    %1510 = vmatpush1.msra.mxu0 0.0
    %1511 = vmatprep.subr.mxu0 0.0
    %1512 = vmatpush1.msra.mxu0 0.0
    %1513 = vmatprep.subr.mxu0 0.0
    %1514 = vmatpush1.msra.mxu0 0.0
    %1515 = vmatprep.mubr.f32.mxu0 0.0
    %1516 = vmatmul.mubr.f32.gmra.mrb[0].mxu0 %v1372
    %v1517 = vpop.f32.mrb[0].mxu0
    %v1518 = vadd.f32 0.0, %v1517
    %v1519 = vpop.f32.mrb[0].mxu0
    %1520 = vdwg.mxu0
    %v1521 = vadd.f32 %v270, %v1518
    %v1522 = vsub.f32 0.0, %v1521
    %v1523 = vmul.f32 %v1522, 1.442695
    %v1524 = vpow.pop %v1523
    %v1525 = vadd.f32 %v1524, 1.0
    %v1526 = vrcp.pop %v1525
    %v1527 = vmul.f32 1.0, %v1526
    %1528 = vmatprep.subr.mxu0 0.0
    %1529 = vmatpush1.msra.mxu0 %v372
    %1530 = vmatprep.subr.mxu0 0.0
    %1531 = vmatpush1.msra.mxu0 %v373
    %1532 = vmatprep.subr.mxu0 0.0
    %1533 = vmatpush1.msra.mxu0 %v546
    %1534 = vmatprep.subr.mxu0 0.0
    %1535 = vmatpush1.msra.mxu0 0.0
    %1536 = vmatprep.subr.mxu0 0.0
    %1537 = vmatpush1.msra.mxu0 0.0
    %1538 = vmatprep.subr.mxu0 0.0
    %1539 = vmatpush1.msra.mxu0 0.0
    %1540 = vmatprep.subr.mxu0 0.0
    %1541 = vmatpush1.msra.mxu0 0.0
    %1542 = vmatprep.subr.mxu0 0.0
    %1543 = vmatpush1.msra.mxu0 0.0
    %1544 = vmatprep.subr.mxu0 0.0
    %1545 = vmatpush1.msra.mxu0 0.0
    %1546 = vmatprep.subr.mxu0 0.0
    %1547 = vmatpush1.msra.mxu0 0.0
    %1548 = vmatprep.subr.mxu0 0.0
    %1549 = vmatpush1.msra.mxu0 0.0
    %1550 = vmatprep.subr.mxu0 0.0
    %1551 = vmatpush1.msra.mxu0 0.0
    %1552 = vmatprep.subr.mxu0 0.0
    %1553 = vmatpush1.msra.mxu0 0.0
    %1554 = vmatprep.subr.mxu0 0.0
    %1555 = vmatpush1.msra.mxu0 0.0
    %1556 = vmatprep.subr.mxu0 0.0
    %1557 = vmatpush1.msra.mxu0 0.0
    %1558 = vmatprep.subr.mxu0 0.0
    %1559 = vmatpush1.msra.mxu0 0.0
    %1560 = vmatprep.subr.mxu0 0.0
    %1561 = vmatpush1.msra.mxu0 0.0
    %1562 = vmatprep.subr.mxu0 0.0
    %1563 = vmatpush1.msra.mxu0 0.0
    %1564 = vmatprep.subr.mxu0 0.0
    %1565 = vmatpush1.msra.mxu0 0.0
    %1566 = vmatprep.subr.mxu0 0.0
    %1567 = vmatpush1.msra.mxu0 0.0
    %1568 = vmatprep.subr.mxu0 0.0
    %1569 = vmatpush1.msra.mxu0 0.0
    %1570 = vmatprep.subr.mxu0 0.0
    %1571 = vmatpush1.msra.mxu0 0.0
    %1572 = vmatprep.subr.mxu0 0.0
    %1573 = vmatpush1.msra.mxu0 0.0
    %1574 = vmatprep.subr.mxu0 0.0
    %1575 = vmatpush1.msra.mxu0 0.0
    %1576 = vmatprep.subr.mxu0 0.0
    %1577 = vmatpush1.msra.mxu0 0.0
    %1578 = vmatprep.subr.mxu0 0.0
    %1579 = vmatpush1.msra.mxu0 0.0
    %1580 = vmatprep.subr.mxu0 0.0
    %1581 = vmatpush1.msra.mxu0 0.0
    %1582 = vmatprep.subr.mxu0 0.0
    %1583 = vmatpush1.msra.mxu0 0.0
    %1584 = vmatprep.subr.mxu0 0.0
    %1585 = vmatpush1.msra.mxu0 0.0
    %1586 = vmatprep.subr.mxu0 0.0
    %1587 = vmatpush1.msra.mxu0 0.0
    %1588 = vmatprep.subr.mxu0 0.0
    %1589 = vmatpush1.msra.mxu0 0.0
    %1590 = vmatprep.subr.mxu0 0.0
    %1591 = vmatpush1.msra.mxu0 0.0
    %1592 = vmatprep.mubr.f32.mxu0 0.0
    %1593 = vmatmul.mubr.f32.gmra.mrb[0].mxu0 %v1372
    %v1594 = vpop.f32.mrb[0].mxu0
    %v1595 = vadd.f32 %v544, %v1594
    %v1596 = vpop.f32.mrb[0].mxu0
    %1597 = vdwg.mxu0
    %v1598 = vmul.f32 %v1450, %v1595
    %v1599 = vadd.f32 %v361, %v1598
    %v1600 = vtanh.pop %v1599
    %v1601 = vsub.f32 1.0, %v1527
    %v1602 = vmul.f32 %v1601, %v1600
    %v1604 = vmul.f32 %v1527, %v1371
    %v1605 = vadd.f32 %v1602, %v1604
    %1606 = vst.msk [vmem:[#allocation2 + $0x8] sm:$0x3] %vm625, %v1605
    %v1608 = vsel %vm376, %v1605, 0
    %1610 = vmatprep.subr.mxu0 0.0
    %1611 = vmatpush1.msra.mxu0 %v364
    %1612 = vmatprep.subr.mxu0 0.0
    %1613 = vmatpush1.msra.mxu0 %v365
    %1614 = vmatprep.subr.mxu0 0.0
    %1615 = vmatpush1.msra.mxu0 %v382
    %1616 = vmatprep.subr.mxu0 0.0
    %1617 = vmatpush1.msra.mxu0 0.0
    %1618 = vmatprep.subr.mxu0 0.0
    %1619 = vmatpush1.msra.mxu0 0.0
    %1620 = vmatprep.subr.mxu0 0.0
    %1621 = vmatpush1.msra.mxu0 0.0
    %1622 = vmatprep.subr.mxu0 0.0
    %1623 = vmatpush1.msra.mxu0 0.0
    %1624 = vmatprep.subr.mxu0 0.0
    %1625 = vmatpush1.msra.mxu0 0.0
    %1626 = vmatprep.subr.mxu0 0.0
    %1627 = vmatpush1.msra.mxu0 0.0
    %1628 = vmatprep.subr.mxu0 0.0
    %1629 = vmatpush1.msra.mxu0 0.0
    %1630 = vmatprep.subr.mxu0 0.0
    %1631 = vmatpush1.msra.mxu0 0.0
    %1632 = vmatprep.subr.mxu0 0.0
    %1633 = vmatpush1.msra.mxu0 0.0
    %1634 = vmatprep.subr.mxu0 0.0
    %1635 = vmatpush1.msra.mxu0 0.0
    %1636 = vmatprep.subr.mxu0 0.0
    %1637 = vmatpush1.msra.mxu0 0.0
    %1638 = vmatprep.subr.mxu0 0.0
    %1639 = vmatpush1.msra.mxu0 0.0
    %1640 = vmatprep.subr.mxu0 0.0
    %1641 = vmatpush1.msra.mxu0 0.0
    %1642 = vmatprep.subr.mxu0 0.0
    %1643 = vmatpush1.msra.mxu0 0.0
    %1644 = vmatprep.subr.mxu0 0.0
    %1645 = vmatpush1.msra.mxu0 0.0
    %1646 = vmatprep.subr.mxu0 0.0
    %1647 = vmatpush1.msra.mxu0 0.0
    %1648 = vmatprep.subr.mxu0 0.0
    %1649 = vmatpush1.msra.mxu0 0.0
    %1650 = vmatprep.subr.mxu0 0.0
    %1651 = vmatpush1.msra.mxu0 0.0
    %1652 = vmatprep.subr.mxu0 0.0
    %1653 = vmatpush1.msra.mxu0 0.0
    %1654 = vmatprep.subr.mxu0 0.0
    %1655 = vmatpush1.msra.mxu0 0.0
    %1656 = vmatprep.subr.mxu0 0.0
    %1657 = vmatpush1.msra.mxu0 0.0
    %1658 = vmatprep.subr.mxu0 0.0
    %1659 = vmatpush1.msra.mxu0 0.0
    %1660 = vmatprep.subr.mxu0 0.0
    %1661 = vmatpush1.msra.mxu0 0.0
    %1662 = vmatprep.subr.mxu0 0.0
    %1663 = vmatpush1.msra.mxu0 0.0
    %1664 = vmatprep.subr.mxu0 0.0
    %1665 = vmatpush1.msra.mxu0 0.0
    %1666 = vmatprep.subr.mxu0 0.0
    %1667 = vmatpush1.msra.mxu0 0.0
    %1668 = vmatprep.subr.mxu0 0.0
    %1669 = vmatpush1.msra.mxu0 0.0
    %1670 = vmatprep.subr.mxu0 0.0
    %1671 = vmatpush1.msra.mxu0 0.0
    %1672 = vmatprep.subr.mxu0 0.0
    %1673 = vmatpush1.msra.mxu0 0.0
    %1674 = vmatprep.mubr.f32.mxu0 0.0
    %1675 = vmatmul.mubr.f32.gmra.mrb[0].mxu0 %v1608
    %v1676 = vpop.f32.mrb[0].mxu0
    %v1677 = vadd.f32 0.0, %v1676
    %v1678 = vpop.f32.mrb[0].mxu0
    %1679 = vdwg.mxu0
    %v1681 = vrot.slane %v1677, 6
    %v1683 = vadd.f32 %v179, %v1681
    %v1684 = vsub.f32 0.0, %v1683
    %v1685 = vmul.f32 %v1684, 1.442695
    %v1686 = vpow.pop %v1685
    %v1687 = vadd.f32 %v1686, 1.0
    %v1688 = vrcp.pop %v1687
    %v1689 = vmul.f32 1.0, %v1688
    %1690 = vmatprep.subr.mxu0 0.0
    %1691 = vmatpush1.msra.mxu0 %v368
    %1692 = vmatprep.subr.mxu0 0.0
    %1693 = vmatpush1.msra.mxu0 %v369
    %1694 = vmatprep.subr.mxu0 0.0
    %1695 = vmatpush1.msra.mxu0 %v462
    %1696 = vmatprep.subr.mxu0 0.0
    %1697 = vmatpush1.msra.mxu0 0.0
    %1698 = vmatprep.subr.mxu0 0.0
    %1699 = vmatpush1.msra.mxu0 0.0
    %1700 = vmatprep.subr.mxu0 0.0
    %1701 = vmatpush1.msra.mxu0 0.0
    %1702 = vmatprep.subr.mxu0 0.0
    %1703 = vmatpush1.msra.mxu0 0.0
    %1704 = vmatprep.subr.mxu0 0.0
    %1705 = vmatpush1.msra.mxu0 0.0
    %1706 = vmatprep.subr.mxu0 0.0
    %1707 = vmatpush1.msra.mxu0 0.0
    %1708 = vmatprep.subr.mxu0 0.0
    %1709 = vmatpush1.msra.mxu0 0.0
    %1710 = vmatprep.subr.mxu0 0.0
    %1711 = vmatpush1.msra.mxu0 0.0
    %1712 = vmatprep.subr.mxu0 0.0
    %1713 = vmatpush1.msra.mxu0 0.0
    %1714 = vmatprep.subr.mxu0 0.0
    %1715 = vmatpush1.msra.mxu0 0.0
    %1716 = vmatprep.subr.mxu0 0.0
    %1717 = vmatpush1.msra.mxu0 0.0
    %1718 = vmatprep.subr.mxu0 0.0
    %1719 = vmatpush1.msra.mxu0 0.0
    %1720 = vmatprep.subr.mxu0 0.0
    %1721 = vmatpush1.msra.mxu0 0.0
    %1722 = vmatprep.subr.mxu0 0.0
    %1723 = vmatpush1.msra.mxu0 0.0
    %1724 = vmatprep.subr.mxu0 0.0
    %1725 = vmatpush1.msra.mxu0 0.0
    %1726 = vmatprep.subr.mxu0 0.0
    %1727 = vmatpush1.msra.mxu0 0.0
    %1728 = vmatprep.subr.mxu0 0.0
    %1729 = vmatpush1.msra.mxu0 0.0
    %1730 = vmatprep.subr.mxu0 0.0
    %1731 = vmatpush1.msra.mxu0 0.0
    %1732 = vmatprep.subr.mxu0 0.0
    %1733 = vmatpush1.msra.mxu0 0.0
    %1734 = vmatprep.subr.mxu0 0.0
    %1735 = vmatpush1.msra.mxu0 0.0
    %1736 = vmatprep.subr.mxu0 0.0
    %1737 = vmatpush1.msra.mxu0 0.0
    %1738 = vmatprep.subr.mxu0 0.0
    %1739 = vmatpush1.msra.mxu0 0.0
    %1740 = vmatprep.subr.mxu0 0.0
    %1741 = vmatpush1.msra.mxu0 0.0
    %1742 = vmatprep.subr.mxu0 0.0
    %1743 = vmatpush1.msra.mxu0 0.0
    %1744 = vmatprep.subr.mxu0 0.0
    %1745 = vmatpush1.msra.mxu0 0.0
    %1746 = vmatprep.subr.mxu0 0.0
    %1747 = vmatpush1.msra.mxu0 0.0
    %1748 = vmatprep.subr.mxu0 0.0
    %1749 = vmatpush1.msra.mxu0 0.0
    %1750 = vmatprep.subr.mxu0 0.0
    %1751 = vmatpush1.msra.mxu0 0.0
    %1752 = vmatprep.subr.mxu0 0.0
    %1753 = vmatpush1.msra.mxu0 0.0
    %1754 = vmatprep.mubr.f32.mxu0 0.0
    %1755 = vmatmul.mubr.f32.gmra.mrb[0].mxu0 %v1608
    %v1756 = vpop.f32.mrb[0].mxu0
    %v1757 = vadd.f32 0.0, %v1756
    %v1758 = vpop.f32.mrb[0].mxu0
    %1759 = vdwg.mxu0
    %v1761 = vrot.slane %v1757, 6
    %v1763 = vadd.f32 %v270, %v1761
    %v1764 = vsub.f32 0.0, %v1763
    %v1765 = vmul.f32 %v1764, 1.442695
    %v1766 = vpow.pop %v1765
    %v1767 = vadd.f32 %v1766, 1.0
    %v1768 = vrcp.pop %v1767
    %v1769 = vmul.f32 1.0, %v1768
    %1770 = vmatprep.subr.mxu0 0.0
    %1771 = vmatpush1.msra.mxu0 %v372
    %1772 = vmatprep.subr.mxu0 0.0
    %1773 = vmatpush1.msra.mxu0 %v373
    %1774 = vmatprep.subr.mxu0 0.0
    %1775 = vmatpush1.msra.mxu0 %v546
    %1776 = vmatprep.subr.mxu0 0.0
    %1777 = vmatpush1.msra.mxu0 0.0
    %1778 = vmatprep.subr.mxu0 0.0
    %1779 = vmatpush1.msra.mxu0 0.0
    %1780 = vmatprep.subr.mxu0 0.0
    %1781 = vmatpush1.msra.mxu0 0.0
    %1782 = vmatprep.subr.mxu0 0.0
    %1783 = vmatpush1.msra.mxu0 0.0
    %1784 = vmatprep.subr.mxu0 0.0
    %1785 = vmatpush1.msra.mxu0 0.0
    %1786 = vmatprep.subr.mxu0 0.0
    %1787 = vmatpush1.msra.mxu0 0.0
    %1788 = vmatprep.subr.mxu0 0.0
    %1789 = vmatpush1.msra.mxu0 0.0
    %1790 = vmatprep.subr.mxu0 0.0
    %1791 = vmatpush1.msra.mxu0 0.0
    %1792 = vmatprep.subr.mxu0 0.0
    %1793 = vmatpush1.msra.mxu0 0.0
    %1794 = vmatprep.subr.mxu0 0.0
    %1795 = vmatpush1.msra.mxu0 0.0
    %1796 = vmatprep.subr.mxu0 0.0
    %1797 = vmatpush1.msra.mxu0 0.0
    %1798 = vmatprep.subr.mxu0 0.0
    %1799 = vmatpush1.msra.mxu0 0.0
    %1800 = vmatprep.subr.mxu0 0.0
    %1801 = vmatpush1.msra.mxu0 0.0
    %1802 = vmatprep.subr.mxu0 0.0
    %1803 = vmatpush1.msra.mxu0 0.0
    %1804 = vmatprep.subr.mxu0 0.0
    %1805 = vmatpush1.msra.mxu0 0.0
    %1806 = vmatprep.subr.mxu0 0.0
    %1807 = vmatpush1.msra.mxu0 0.0
    %1808 = vmatprep.subr.mxu0 0.0
    %1809 = vmatpush1.msra.mxu0 0.0
    %1810 = vmatprep.subr.mxu0 0.0
    %1811 = vmatpush1.msra.mxu0 0.0
    %1812 = vmatprep.subr.mxu0 0.0
    %1813 = vmatpush1.msra.mxu0 0.0
    %1814 = vmatprep.subr.mxu0 0.0
    %1815 = vmatpush1.msra.mxu0 0.0
    %1816 = vmatprep.subr.mxu0 0.0
    %1817 = vmatpush1.msra.mxu0 0.0
    %1818 = vmatprep.subr.mxu0 0.0
    %1819 = vmatpush1.msra.mxu0 0.0
    %1820 = vmatprep.subr.mxu0 0.0
    %1821 = vmatpush1.msra.mxu0 0.0
    %1822 = vmatprep.subr.mxu0 0.0
    %1823 = vmatpush1.msra.mxu0 0.0
    %1824 = vmatprep.subr.mxu0 0.0
    %1825 = vmatpush1.msra.mxu0 0.0
    %1826 = vmatprep.subr.mxu0 0.0
    %1827 = vmatpush1.msra.mxu0 0.0
    %1828 = vmatprep.subr.mxu0 0.0
    %1829 = vmatpush1.msra.mxu0 0.0
    %1830 = vmatprep.subr.mxu0 0.0
    %1831 = vmatpush1.msra.mxu0 0.0
    %1832 = vmatprep.subr.mxu0 0.0
    %1833 = vmatpush1.msra.mxu0 0.0
    %1834 = vmatprep.mubr.f32.mxu0 0.0
    %1835 = vmatmul.mubr.f32.gmra.mrb[0].mxu0 %v1608
    %v1836 = vpop.f32.mrb[0].mxu0
    %v1837 = vadd.f32 %v544, %v1836
    %v1838 = vpop.f32.mrb[0].mxu0
    %1839 = vdwg.mxu0
    %v1841 = vrot.slane %v1837, 6
    %v1843 = vmul.f32 %v1689, %v1841
    %v1844 = vadd.f32 %v361, %v1843
    %v1845 = vtanh.pop %v1844
    %v1846 = vsub.f32 1.0, %v1769
    %v1847 = vmul.f32 %v1846, %v1845
    %v1848 = vrot.slane %v1605, 6
    %v1850 = vmul.f32 %v1769, %v1848
    %v1851 = vadd.f32 %v1847, %v1850
    %1852 = vst.msk [vmem:[#allocation2 + $0x8] sm:$0xc] %vm872, %v1851
    %v1854 = vrot.slane %v1851, 2
    %v1855 = vsel %vm376, %v1854, 0
    %1857 = vmatprep.subr.mxu0 0.0
    %1858 = vmatpush1.msra.mxu0 %v364
    %1859 = vmatprep.subr.mxu0 0.0
    %1860 = vmatpush1.msra.mxu0 %v365
    %1861 = vmatprep.subr.mxu0 0.0
    %1862 = vmatpush1.msra.mxu0 %v382
    %1863 = vmatprep.subr.mxu0 0.0
    %1864 = vmatpush1.msra.mxu0 0.0
    %1865 = vmatprep.subr.mxu0 0.0
    %1866 = vmatpush1.msra.mxu0 0.0
    %1867 = vmatprep.subr.mxu0 0.0
    %1868 = vmatpush1.msra.mxu0 0.0
    %1869 = vmatprep.subr.mxu0 0.0
    %1870 = vmatpush1.msra.mxu0 0.0
    %1871 = vmatprep.subr.mxu0 0.0
    %1872 = vmatpush1.msra.mxu0 0.0
    %1873 = vmatprep.subr.mxu0 0.0
    %1874 = vmatpush1.msra.mxu0 0.0
    %1875 = vmatprep.subr.mxu0 0.0
    %1876 = vmatpush1.msra.mxu0 0.0
    %1877 = vmatprep.subr.mxu0 0.0
    %1878 = vmatpush1.msra.mxu0 0.0
    %1879 = vmatprep.subr.mxu0 0.0
    %1880 = vmatpush1.msra.mxu0 0.0
    %1881 = vmatprep.subr.mxu0 0.0
    %1882 = vmatpush1.msra.mxu0 0.0
    %1883 = vmatprep.subr.mxu0 0.0
    %1884 = vmatpush1.msra.mxu0 0.0
    %1885 = vmatprep.subr.mxu0 0.0
    %1886 = vmatpush1.msra.mxu0 0.0
    %1887 = vmatprep.subr.mxu0 0.0
    %1888 = vmatpush1.msra.mxu0 0.0
    %1889 = vmatprep.subr.mxu0 0.0
    %1890 = vmatpush1.msra.mxu0 0.0
    %1891 = vmatprep.subr.mxu0 0.0
    %1892 = vmatpush1.msra.mxu0 0.0
    %1893 = vmatprep.subr.mxu0 0.0
    %1894 = vmatpush1.msra.mxu0 0.0
    %1895 = vmatprep.subr.mxu0 0.0
    %1896 = vmatpush1.msra.mxu0 0.0
    %1897 = vmatprep.subr.mxu0 0.0
    %1898 = vmatpush1.msra.mxu0 0.0
    %1899 = vmatprep.subr.mxu0 0.0
    %1900 = vmatpush1.msra.mxu0 0.0
    %1901 = vmatprep.subr.mxu0 0.0
    %1902 = vmatpush1.msra.mxu0 0.0
    %1903 = vmatprep.subr.mxu0 0.0
    %1904 = vmatpush1.msra.mxu0 0.0
    %1905 = vmatprep.subr.mxu0 0.0
    %1906 = vmatpush1.msra.mxu0 0.0
    %1907 = vmatprep.subr.mxu0 0.0
    %1908 = vmatpush1.msra.mxu0 0.0
    %1909 = vmatprep.subr.mxu0 0.0
    %1910 = vmatpush1.msra.mxu0 0.0
    %1911 = vmatprep.subr.mxu0 0.0
    %1912 = vmatpush1.msra.mxu0 0.0
    %1913 = vmatprep.subr.mxu0 0.0
    %1914 = vmatpush1.msra.mxu0 0.0
    %1915 = vmatprep.subr.mxu0 0.0
    %1916 = vmatpush1.msra.mxu0 0.0
    %1917 = vmatprep.subr.mxu0 0.0
    %1918 = vmatpush1.msra.mxu0 0.0
    %1919 = vmatprep.subr.mxu0 0.0
    %1920 = vmatpush1.msra.mxu0 0.0
    %1921 = vmatprep.mubr.f32.mxu0 0.0
    %1922 = vmatmul.mubr.f32.gmra.mrb[0].mxu0 %v1855
    %v1923 = vpop.f32.mrb[0].mxu0
    %v1924 = vadd.f32 0.0, %v1923
    %v1925 = vpop.f32.mrb[0].mxu0
    %1926 = vdwg.mxu0
    %v1928 = vrot.slane %v1924, 4
    %v1930 = vadd.f32 %v179, %v1928
    %v1931 = vsub.f32 0.0, %v1930
    %v1932 = vmul.f32 %v1931, 1.442695
    %v1933 = vpow.pop %v1932
    %v1934 = vadd.f32 %v1933, 1.0
    %v1935 = vrcp.pop %v1934
    %v1936 = vmul.f32 1.0, %v1935
    %1937 = vmatprep.subr.mxu0 0.0
    %1938 = vmatpush1.msra.mxu0 %v368
    %1939 = vmatprep.subr.mxu0 0.0
    %1940 = vmatpush1.msra.mxu0 %v369
    %1941 = vmatprep.subr.mxu0 0.0
    %1942 = vmatpush1.msra.mxu0 %v462
    %1943 = vmatprep.subr.mxu0 0.0
    %1944 = vmatpush1.msra.mxu0 0.0
    %1945 = vmatprep.subr.mxu0 0.0
    %1946 = vmatpush1.msra.mxu0 0.0
    %1947 = vmatprep.subr.mxu0 0.0
    %1948 = vmatpush1.msra.mxu0 0.0
    %1949 = vmatprep.subr.mxu0 0.0
    %1950 = vmatpush1.msra.mxu0 0.0
    %1951 = vmatprep.subr.mxu0 0.0
    %1952 = vmatpush1.msra.mxu0 0.0
    %1953 = vmatprep.subr.mxu0 0.0
    %1954 = vmatpush1.msra.mxu0 0.0
    %1955 = vmatprep.subr.mxu0 0.0
    %1956 = vmatpush1.msra.mxu0 0.0
    %1957 = vmatprep.subr.mxu0 0.0
    %1958 = vmatpush1.msra.mxu0 0.0
    %1959 = vmatprep.subr.mxu0 0.0
    %1960 = vmatpush1.msra.mxu0 0.0
    %1961 = vmatprep.subr.mxu0 0.0
    %1962 = vmatpush1.msra.mxu0 0.0
    %1963 = vmatprep.subr.mxu0 0.0
    %1964 = vmatpush1.msra.mxu0 0.0
    %1965 = vmatprep.subr.mxu0 0.0
    %1966 = vmatpush1.msra.mxu0 0.0
    %1967 = vmatprep.subr.mxu0 0.0
    %1968 = vmatpush1.msra.mxu0 0.0
    %1969 = vmatprep.subr.mxu0 0.0
    %1970 = vmatpush1.msra.mxu0 0.0
    %1971 = vmatprep.subr.mxu0 0.0
    %1972 = vmatpush1.msra.mxu0 0.0
    %1973 = vmatprep.subr.mxu0 0.0
    %1974 = vmatpush1.msra.mxu0 0.0
    %1975 = vmatprep.subr.mxu0 0.0
    %1976 = vmatpush1.msra.mxu0 0.0
    %1977 = vmatprep.subr.mxu0 0.0
    %1978 = vmatpush1.msra.mxu0 0.0
    %1979 = vmatprep.subr.mxu0 0.0
    %1980 = vmatpush1.msra.mxu0 0.0
    %1981 = vmatprep.subr.mxu0 0.0
    %1982 = vmatpush1.msra.mxu0 0.0
    %1983 = vmatprep.subr.mxu0 0.0
    %1984 = vmatpush1.msra.mxu0 0.0
    %1985 = vmatprep.subr.mxu0 0.0
    %1986 = vmatpush1.msra.mxu0 0.0
    %1987 = vmatprep.subr.mxu0 0.0
    %1988 = vmatpush1.msra.mxu0 0.0
    %1989 = vmatprep.subr.mxu0 0.0
    %1990 = vmatpush1.msra.mxu0 0.0
    %1991 = vmatprep.subr.mxu0 0.0
    %1992 = vmatpush1.msra.mxu0 0.0
    %1993 = vmatprep.subr.mxu0 0.0
    %1994 = vmatpush1.msra.mxu0 0.0
    %1995 = vmatprep.subr.mxu0 0.0
    %1996 = vmatpush1.msra.mxu0 0.0
    %1997 = vmatprep.subr.mxu0 0.0
    %1998 = vmatpush1.msra.mxu0 0.0
    %1999 = vmatprep.subr.mxu0 0.0
    %2000 = vmatpush1.msra.mxu0 0.0
    %2001 = vmatprep.mubr.f32.mxu0 0.0
    %2002 = vmatmul.mubr.f32.gmra.mrb[0].mxu0 %v1855
    %v2003 = vpop.f32.mrb[0].mxu0
    %v2004 = vadd.f32 0.0, %v2003
    %v2005 = vpop.f32.mrb[0].mxu0
    %2006 = vdwg.mxu0
    %v2008 = vrot.slane %v2004, 4
    %v2010 = vadd.f32 %v270, %v2008
    %v2011 = vsub.f32 0.0, %v2010
    %v2012 = vmul.f32 %v2011, 1.442695
    %v2013 = vpow.pop %v2012
    %v2014 = vadd.f32 %v2013, 1.0
    %v2015 = vrcp.pop %v2014
    %v2016 = vmul.f32 1.0, %v2015
    %2017 = vmatprep.subr.mxu0 0.0
    %2018 = vmatpush1.msra.mxu0 %v372
    %2019 = vmatprep.subr.mxu0 0.0
    %2020 = vmatpush1.msra.mxu0 %v373
    %2021 = vmatprep.subr.mxu0 0.0
    %2022 = vmatpush1.msra.mxu0 %v546
    %2023 = vmatprep.subr.mxu0 0.0
    %2024 = vmatpush1.msra.mxu0 0.0
    %2025 = vmatprep.subr.mxu0 0.0
    %2026 = vmatpush1.msra.mxu0 0.0
    %2027 = vmatprep.subr.mxu0 0.0
    %2028 = vmatpush1.msra.mxu0 0.0
    %2029 = vmatprep.subr.mxu0 0.0
    %2030 = vmatpush1.msra.mxu0 0.0
    %2031 = vmatprep.subr.mxu0 0.0
    %2032 = vmatpush1.msra.mxu0 0.0
    %2033 = vmatprep.subr.mxu0 0.0
    %2034 = vmatpush1.msra.mxu0 0.0
    %2035 = vmatprep.subr.mxu0 0.0
    %2036 = vmatpush1.msra.mxu0 0.0
    %2037 = vmatprep.subr.mxu0 0.0
    %2038 = vmatpush1.msra.mxu0 0.0
    %2039 = vmatprep.subr.mxu0 0.0
    %2040 = vmatpush1.msra.mxu0 0.0
    %2041 = vmatprep.subr.mxu0 0.0
    %2042 = vmatpush1.msra.mxu0 0.0
    %2043 = vmatprep.subr.mxu0 0.0
    %2044 = vmatpush1.msra.mxu0 0.0
    %2045 = vmatprep.subr.mxu0 0.0
    %2046 = vmatpush1.msra.mxu0 0.0
    %2047 = vmatprep.subr.mxu0 0.0
    %2048 = vmatpush1.msra.mxu0 0.0
    %2049 = vmatprep.subr.mxu0 0.0
    %2050 = vmatpush1.msra.mxu0 0.0
    %2051 = vmatprep.subr.mxu0 0.0
    %2052 = vmatpush1.msra.mxu0 0.0
    %2053 = vmatprep.subr.mxu0 0.0
    %2054 = vmatpush1.msra.mxu0 0.0
    %2055 = vmatprep.subr.mxu0 0.0
    %2056 = vmatpush1.msra.mxu0 0.0
    %2057 = vmatprep.subr.mxu0 0.0
    %2058 = vmatpush1.msra.mxu0 0.0
    %2059 = vmatprep.subr.mxu0 0.0
    %2060 = vmatpush1.msra.mxu0 0.0
    %2061 = vmatprep.subr.mxu0 0.0
    %2062 = vmatpush1.msra.mxu0 0.0
    %2063 = vmatprep.subr.mxu0 0.0
    %2064 = vmatpush1.msra.mxu0 0.0
    %2065 = vmatprep.subr.mxu0 0.0
    %2066 = vmatpush1.msra.mxu0 0.0
    %2067 = vmatprep.subr.mxu0 0.0
    %2068 = vmatpush1.msra.mxu0 0.0
    %2069 = vmatprep.subr.mxu0 0.0
    %2070 = vmatpush1.msra.mxu0 0.0
    %2071 = vmatprep.subr.mxu0 0.0
    %2072 = vmatpush1.msra.mxu0 0.0
    %2073 = vmatprep.subr.mxu0 0.0
    %2074 = vmatpush1.msra.mxu0 0.0
    %2075 = vmatprep.subr.mxu0 0.0
    %2076 = vmatpush1.msra.mxu0 0.0
    %2077 = vmatprep.subr.mxu0 0.0
    %2078 = vmatpush1.msra.mxu0 0.0
    %2079 = vmatprep.subr.mxu0 0.0
    %2080 = vmatpush1.msra.mxu0 0.0
    %2081 = vmatprep.mubr.f32.mxu0 0.0
    %2082 = vmatmul.mubr.f32.gmra.mrb[0].mxu0 %v1855
    %v2083 = vpop.f32.mrb[0].mxu0
    %v2084 = vadd.f32 %v544, %v2083
    %v2085 = vpop.f32.mrb[0].mxu0
    %2086 = vdwg.mxu0
    %v2088 = vrot.slane %v2084, 4
    %v2090 = vmul.f32 %v1936, %v2088
    %v2091 = vadd.f32 %v361, %v2090
    %v2092 = vtanh.pop %v2091
    %v2093 = vsub.f32 1.0, %v2016
    %v2094 = vmul.f32 %v2093, %v2092
    %v2095 = vrot.slane %v1851, 6
    %v2097 = vmul.f32 %v2016, %v2095
    %v2098 = vadd.f32 %v2094, %v2097
    %2099 = vst.msk [vmem:[#allocation2 + $0x8] sm:$0x30] %vm1120, %v2098
    %v2101 = vrot.slane %v2098, 4
    %v2102 = vsel %vm376, %v2101, 0
    %2104 = vmatprep.subr.mxu0 0.0
    %2105 = vmatpush1.msra.mxu0 %v364
    %2106 = vmatprep.subr.mxu0 0.0
    %2107 = vmatpush1.msra.mxu0 %v365
    %2108 = vmatprep.subr.mxu0 0.0
    %2109 = vmatpush1.msra.mxu0 %v382
    %2110 = vmatprep.subr.mxu0 0.0
    %2111 = vmatpush1.msra.mxu0 0.0
    %2112 = vmatprep.subr.mxu0 0.0
    %2113 = vmatpush1.msra.mxu0 0.0
    %2114 = vmatprep.subr.mxu0 0.0
    %2115 = vmatpush1.msra.mxu0 0.0
    %2116 = vmatprep.subr.mxu0 0.0
    %2117 = vmatpush1.msra.mxu0 0.0
    %2118 = vmatprep.subr.mxu0 0.0
    %2119 = vmatpush1.msra.mxu0 0.0
    %2120 = vmatprep.subr.mxu0 0.0
    %2121 = vmatpush1.msra.mxu0 0.0
    %2122 = vmatprep.subr.mxu0 0.0
    %2123 = vmatpush1.msra.mxu0 0.0
    %2124 = vmatprep.subr.mxu0 0.0
    %2125 = vmatpush1.msra.mxu0 0.0
    %2126 = vmatprep.subr.mxu0 0.0
    %2127 = vmatpush1.msra.mxu0 0.0
    %2128 = vmatprep.subr.mxu0 0.0
    %2129 = vmatpush1.msra.mxu0 0.0
    %2130 = vmatprep.subr.mxu0 0.0
    %2131 = vmatpush1.msra.mxu0 0.0
    %2132 = vmatprep.subr.mxu0 0.0
    %2133 = vmatpush1.msra.mxu0 0.0
    %2134 = vmatprep.subr.mxu0 0.0
    %2135 = vmatpush1.msra.mxu0 0.0
    %2136 = vmatprep.subr.mxu0 0.0
    %2137 = vmatpush1.msra.mxu0 0.0
    %2138 = vmatprep.subr.mxu0 0.0
    %2139 = vmatpush1.msra.mxu0 0.0
    %2140 = vmatprep.subr.mxu0 0.0
    %2141 = vmatpush1.msra.mxu0 0.0
    %2142 = vmatprep.subr.mxu0 0.0
    %2143 = vmatpush1.msra.mxu0 0.0
    %2144 = vmatprep.subr.mxu0 0.0
    %2145 = vmatpush1.msra.mxu0 0.0
    %2146 = vmatprep.subr.mxu0 0.0
    %2147 = vmatpush1.msra.mxu0 0.0
    %2148 = vmatprep.subr.mxu0 0.0
    %2149 = vmatpush1.msra.mxu0 0.0
    %2150 = vmatprep.subr.mxu0 0.0
    %2151 = vmatpush1.msra.mxu0 0.0
    %2152 = vmatprep.subr.mxu0 0.0
    %2153 = vmatpush1.msra.mxu0 0.0
    %2154 = vmatprep.subr.mxu0 0.0
    %2155 = vmatpush1.msra.mxu0 0.0
    %2156 = vmatprep.subr.mxu0 0.0
    %2157 = vmatpush1.msra.mxu0 0.0
    %2158 = vmatprep.subr.mxu0 0.0
    %2159 = vmatpush1.msra.mxu0 0.0
    %2160 = vmatprep.subr.mxu0 0.0
    %2161 = vmatpush1.msra.mxu0 0.0
    %2162 = vmatprep.subr.mxu0 0.0
    %2163 = vmatpush1.msra.mxu0 0.0
    %2164 = vmatprep.subr.mxu0 0.0
    %2165 = vmatpush1.msra.mxu0 0.0
    %2166 = vmatprep.subr.mxu0 0.0
    %2167 = vmatpush1.msra.mxu0 0.0
    %2168 = vmatprep.mubr.f32.mxu0 0.0
    %2169 = vmatmul.mubr.f32.gmra.mrb[0].mxu0 %v2102
    %v2170 = vpop.f32.mrb[0].mxu0
    %v2171 = vadd.f32 0.0, %v2170
    %v2172 = vpop.f32.mrb[0].mxu0
    %2173 = vdwg.mxu0
    %v2175 = vrot.slane %v2171, 2
    %v2177 = vadd.f32 %v179, %v2175
    %v2178 = vsub.f32 0.0, %v2177
    %v2179 = vmul.f32 %v2178, 1.442695
    %v2180 = vpow.pop %v2179
    %v2181 = vadd.f32 %v2180, 1.0
    %v2182 = vrcp.pop %v2181
    %v2183 = vmul.f32 1.0, %v2182
    %2184 = vmatprep.subr.mxu0 0.0
    %2185 = vmatpush1.msra.mxu0 %v368
    %2186 = vmatprep.subr.mxu0 0.0
    %2187 = vmatpush1.msra.mxu0 %v369
    %2188 = vmatprep.subr.mxu0 0.0
    %2189 = vmatpush1.msra.mxu0 %v462
    %2190 = vmatprep.subr.mxu0 0.0
    %2191 = vmatpush1.msra.mxu0 0.0
    %2192 = vmatprep.subr.mxu0 0.0
    %2193 = vmatpush1.msra.mxu0 0.0
    %2194 = vmatprep.subr.mxu0 0.0
    %2195 = vmatpush1.msra.mxu0 0.0
    %2196 = vmatprep.subr.mxu0 0.0
    %2197 = vmatpush1.msra.mxu0 0.0
    %2198 = vmatprep.subr.mxu0 0.0
    %2199 = vmatpush1.msra.mxu0 0.0
    %2200 = vmatprep.subr.mxu0 0.0
    %2201 = vmatpush1.msra.mxu0 0.0
    %2202 = vmatprep.subr.mxu0 0.0
    %2203 = vmatpush1.msra.mxu0 0.0
    %2204 = vmatprep.subr.mxu0 0.0
    %2205 = vmatpush1.msra.mxu0 0.0
    %2206 = vmatprep.subr.mxu0 0.0
    %2207 = vmatpush1.msra.mxu0 0.0
    %2208 = vmatprep.subr.mxu0 0.0
    %2209 = vmatpush1.msra.mxu0 0.0
    %2210 = vmatprep.subr.mxu0 0.0
    %2211 = vmatpush1.msra.mxu0 0.0
    %2212 = vmatprep.subr.mxu0 0.0
    %2213 = vmatpush1.msra.mxu0 0.0
    %2214 = vmatprep.subr.mxu0 0.0
    %2215 = vmatpush1.msra.mxu0 0.0
    %2216 = vmatprep.subr.mxu0 0.0
    %2217 = vmatpush1.msra.mxu0 0.0
    %2218 = vmatprep.subr.mxu0 0.0
    %2219 = vmatpush1.msra.mxu0 0.0
    %2220 = vmatprep.subr.mxu0 0.0
    %2221 = vmatpush1.msra.mxu0 0.0
    %2222 = vmatprep.subr.mxu0 0.0
    %2223 = vmatpush1.msra.mxu0 0.0
    %2224 = vmatprep.subr.mxu0 0.0
    %2225 = vmatpush1.msra.mxu0 0.0
    %2226 = vmatprep.subr.mxu0 0.0
    %2227 = vmatpush1.msra.mxu0 0.0
    %2228 = vmatprep.subr.mxu0 0.0
    %2229 = vmatpush1.msra.mxu0 0.0
    %2230 = vmatprep.subr.mxu0 0.0
    %2231 = vmatpush1.msra.mxu0 0.0
    %2232 = vmatprep.subr.mxu0 0.0
    %2233 = vmatpush1.msra.mxu0 0.0
    %2234 = vmatprep.subr.mxu0 0.0
    %2235 = vmatpush1.msra.mxu0 0.0
    %2236 = vmatprep.subr.mxu0 0.0
    %2237 = vmatpush1.msra.mxu0 0.0
    %2238 = vmatprep.subr.mxu0 0.0
    %2239 = vmatpush1.msra.mxu0 0.0
    %2240 = vmatprep.subr.mxu0 0.0
    %2241 = vmatpush1.msra.mxu0 0.0
    %2242 = vmatprep.subr.mxu0 0.0
    %2243 = vmatpush1.msra.mxu0 0.0
    %2244 = vmatprep.subr.mxu0 0.0
    %2245 = vmatpush1.msra.mxu0 0.0
    %2246 = vmatprep.subr.mxu0 0.0
    %2247 = vmatpush1.msra.mxu0 0.0
    %2248 = vmatprep.mubr.f32.mxu0 0.0
    %2249 = vmatmul.mubr.f32.gmra.mrb[0].mxu0 %v2102
    %v2250 = vpop.f32.mrb[0].mxu0
    %v2251 = vadd.f32 0.0, %v2250
    %v2252 = vpop.f32.mrb[0].mxu0
    %2253 = vdwg.mxu0
    %v2255 = vrot.slane %v2251, 2
    %v2257 = vadd.f32 %v270, %v2255
    %v2258 = vsub.f32 0.0, %v2257
    %v2259 = vmul.f32 %v2258, 1.442695
    %v2260 = vpow.pop %v2259
    %v2261 = vadd.f32 %v2260, 1.0
    %v2262 = vrcp.pop %v2261
    %v2263 = vmul.f32 1.0, %v2262
    %2264 = vmatprep.subr.mxu0 0.0
    %2265 = vmatpush1.msra.mxu0 %v372
    %2266 = vmatprep.subr.mxu0 0.0
    %2267 = vmatpush1.msra.mxu0 %v373
    %2268 = vmatprep.subr.mxu0 0.0
    %2269 = vmatpush1.msra.mxu0 %v546
    %2270 = vmatprep.subr.mxu0 0.0
    %2271 = vmatpush1.msra.mxu0 0.0
    %2272 = vmatprep.subr.mxu0 0.0
    %2273 = vmatpush1.msra.mxu0 0.0
    %2274 = vmatprep.subr.mxu0 0.0
    %2275 = vmatpush1.msra.mxu0 0.0
    %2276 = vmatprep.subr.mxu0 0.0
    %2277 = vmatpush1.msra.mxu0 0.0
    %2278 = vmatprep.subr.mxu0 0.0
    %2279 = vmatpush1.msra.mxu0 0.0
    %2280 = vmatprep.subr.mxu0 0.0
    %2281 = vmatpush1.msra.mxu0 0.0
    %2282 = vmatprep.subr.mxu0 0.0
    %2283 = vmatpush1.msra.mxu0 0.0
    %2284 = vmatprep.subr.mxu0 0.0
    %2285 = vmatpush1.msra.mxu0 0.0
    %2286 = vmatprep.subr.mxu0 0.0
    %2287 = vmatpush1.msra.mxu0 0.0
    %2288 = vmatprep.subr.mxu0 0.0
    %2289 = vmatpush1.msra.mxu0 0.0
    %2290 = vmatprep.subr.mxu0 0.0
    %2291 = vmatpush1.msra.mxu0 0.0
    %2292 = vmatprep.subr.mxu0 0.0
    %2293 = vmatpush1.msra.mxu0 0.0
    %2294 = vmatprep.subr.mxu0 0.0
    %2295 = vmatpush1.msra.mxu0 0.0
    %2296 = vmatprep.subr.mxu0 0.0
    %2297 = vmatpush1.msra.mxu0 0.0
    %2298 = vmatprep.subr.mxu0 0.0
    %2299 = vmatpush1.msra.mxu0 0.0
    %2300 = vmatprep.subr.mxu0 0.0
    %2301 = vmatpush1.msra.mxu0 0.0
    %2302 = vmatprep.subr.mxu0 0.0
    %2303 = vmatpush1.msra.mxu0 0.0
    %2304 = vmatprep.subr.mxu0 0.0
    %2305 = vmatpush1.msra.mxu0 0.0
    %2306 = vmatprep.subr.mxu0 0.0
    %2307 = vmatpush1.msra.mxu0 0.0
    %2308 = vmatprep.subr.mxu0 0.0
    %2309 = vmatpush1.msra.mxu0 0.0
    %2310 = vmatprep.subr.mxu0 0.0
    %2311 = vmatpush1.msra.mxu0 0.0
    %2312 = vmatprep.subr.mxu0 0.0
    %2313 = vmatpush1.msra.mxu0 0.0
    %2314 = vmatprep.subr.mxu0 0.0
    %2315 = vmatpush1.msra.mxu0 0.0
    %2316 = vmatprep.subr.mxu0 0.0
    %2317 = vmatpush1.msra.mxu0 0.0
    %2318 = vmatprep.subr.mxu0 0.0
    %2319 = vmatpush1.msra.mxu0 0.0
    %2320 = vmatprep.subr.mxu0 0.0
    %2321 = vmatpush1.msra.mxu0 0.0
    %2322 = vmatprep.subr.mxu0 0.0
    %2323 = vmatpush1.msra.mxu0 0.0
    %2324 = vmatprep.subr.mxu0 0.0
    %2325 = vmatpush1.msra.mxu0 0.0
    %2326 = vmatprep.subr.mxu0 0.0
    %2327 = vmatpush1.msra.mxu0 0.0
    %2328 = vmatprep.mubr.f32.mxu0 0.0
    %2329 = vmatmul.mubr.f32.gmra.mrb[0].mxu0 %v2102
    %v2330 = vpop.f32.mrb[0].mxu0
    %v2331 = vadd.f32 %v544, %v2330
    %v2332 = vpop.f32.mrb[0].mxu0
    %2333 = vdwg.mxu0
    %v2335 = vrot.slane %v2331, 2
    %v2337 = vmul.f32 %v2183, %v2335
    %v2338 = vadd.f32 %v361, %v2337
    %v2339 = vtanh.pop %v2338
    %v2340 = vsub.f32 1.0, %v2263
    %v2341 = vmul.f32 %v2340, %v2339
    %v2342 = vrot.slane %v2098, 6
    %v2344 = vmul.f32 %v2263, %v2342
    %v2345 = vadd.f32 %v2341, %v2344
    %2346 = vst.msk [vmem:[#allocation2 + $0x8] sm:$0xc0] %vm1368, %v2345
    %v2347 = vld [vmem:[#allocation2] sm:$0xff]
    %v2348 = vld [vmem:[#allocation2 + $0x8] sm:$0xff]
    %v2349 = vld [vmem:[%s4] sm:$0xff]
    %v2350 = vld [vmem:[%s4 + $0x8] sm:$0xff]
    %v2351 = vld [vmem:[%s4 + $0x10] sm:$0xf]
    %v2352 = vld [vmem:[%s6] sm:$0x1]
    %v2353 = vlaneseq
    %v2354 = vshrl.u32 %v2353, 7
    %v2355 = vsub.s32 0, %v2354
    %v2356 = vrot.slane %v2352, %v2355
    %v2358 = vsel %vm376, %v2347, 0
    %v2361 = vsel %vm376, %v2348, 0
    %v2364 = vsel %vm380, %v2351, 0
    %2366 = vmatprep.subr.mxu0 0.0
    %2367 = vmatpush1.msra.mxu0 %v2349
    %2368 = vmatprep.subr.mxu0 0.0
    %2369 = vmatpush1.msra.mxu0 %v2350
    %2370 = vmatprep.subr.mxu0 0.0
    %2371 = vmatpush1.msra.mxu0 %v2364
    %2372 = vmatprep.subr.mxu0 0.0
    %2373 = vmatpush1.msra.mxu0 0.0
    %2374 = vmatprep.subr.mxu0 0.0
    %2375 = vmatpush1.msra.mxu0 0.0
    %2376 = vmatprep.subr.mxu0 0.0
    %2377 = vmatpush1.msra.mxu0 0.0
    %2378 = vmatprep.subr.mxu0 0.0
    %2379 = vmatpush1.msra.mxu0 0.0
    %2380 = vmatprep.subr.mxu0 0.0
    %2381 = vmatpush1.msra.mxu0 0.0
    %2382 = vmatprep.subr.mxu0 0.0
    %2383 = vmatpush1.msra.mxu0 0.0
    %2384 = vmatprep.subr.mxu0 0.0
    %2385 = vmatpush1.msra.mxu0 0.0
    %2386 = vmatprep.subr.mxu0 0.0
    %2387 = vmatpush1.msra.mxu0 0.0
    %2388 = vmatprep.subr.mxu0 0.0
    %2389 = vmatpush1.msra.mxu0 0.0
    %2390 = vmatprep.subr.mxu0 0.0
    %2391 = vmatpush1.msra.mxu0 0.0
    %2392 = vmatprep.subr.mxu0 0.0
    %2393 = vmatpush1.msra.mxu0 0.0
    %2394 = vmatprep.subr.mxu0 0.0
    %2395 = vmatpush1.msra.mxu0 0.0
    %2396 = vmatprep.subr.mxu0 0.0
    %2397 = vmatpush1.msra.mxu0 0.0
    %2398 = vmatprep.subr.mxu0 0.0
    %2399 = vmatpush1.msra.mxu0 0.0
    %2400 = vmatprep.subr.mxu0 0.0
    %2401 = vmatpush1.msra.mxu0 0.0
    %2402 = vmatprep.subr.mxu0 0.0
    %2403 = vmatpush1.msra.mxu0 0.0
    %2404 = vmatprep.subr.mxu0 0.0
    %2405 = vmatpush1.msra.mxu0 0.0
    %2406 = vmatprep.subr.mxu0 0.0
    %2407 = vmatpush1.msra.mxu0 0.0
    %2408 = vmatprep.subr.mxu0 0.0
    %2409 = vmatpush1.msra.mxu0 0.0
    %2410 = vmatprep.subr.mxu0 0.0
    %2411 = vmatpush1.msra.mxu0 0.0
    %2412 = vmatprep.subr.mxu0 0.0
    %2413 = vmatpush1.msra.mxu0 0.0
    %2414 = vmatprep.subr.mxu0 0.0
    %2415 = vmatpush1.msra.mxu0 0.0
    %2416 = vmatprep.subr.mxu0 0.0
    %2417 = vmatpush1.msra.mxu0 0.0
    %2418 = vmatprep.subr.mxu0 0.0
    %2419 = vmatpush1.msra.mxu0 0.0
    %2420 = vmatprep.subr.mxu0 0.0
    %2421 = vmatpush1.msra.mxu0 0.0
    %2422 = vmatprep.subr.mxu0 0.0
    %2423 = vmatpush1.msra.mxu0 0.0
    %2424 = vmatprep.subr.mxu0 0.0
    %2425 = vmatpush1.msra.mxu0 0.0
    %2426 = vmatprep.subr.mxu0 0.0
    %2427 = vmatpush1.msra.mxu0 0.0
    %2428 = vmatprep.subr.mxu0 0.0
    %2429 = vmatpush1.msra.mxu0 0.0
    %2430 = vmatprep.mubr.f32.mxu0 0.0
    %2431 = vmatmul.mubr.f32.gmra.mrb[0].mxu0 %v2358
    %v2432 = vpop.f32.mrb[0].mxu0
    %v2433 = vadd.f32 %v2356, %v2432
    %v2434 = vpop.f32.mrb[0].mxu0
    %2435 = vmatprep.mubr.f32.mxu0 0.0
    %2436 = vmatmul.mubr.f32.gmra.mrb[0].mxu0 %v2361
    %v2437 = vpop.f32.mrb[0].mxu0
    %v2438 = vadd.f32 %v2356, %v2437
    %v2439 = vpop.f32.mrb[0].mxu0
    %2440 = vdwg.mxu0
    %s2441 = scalar_lea.vmem %s4, 24
    %v2442 = vld [vmem:[%s2441] sm:$0xff]
    %v2443 = vld [vmem:[%s2441 + $0x8] sm:$0xff]
    %v2444 = vld [vmem:[%s2441 + $0x10] sm:$0xf]
    %v2445 = vld [vmem:[%s6 + $0x1] sm:$0x1]
    %v2446 = vlaneseq
    %v2447 = vshrl.u32 %v2446, 7
    %v2448 = vsub.s32 0, %v2447
    %v2449 = vrot.slane %v2445, %v2448
    %v2451 = vsel %vm380, %v2444, 0
    %2453 = vmatprep.subr.mxu0 0.0
    %2454 = vmatpush1.msra.mxu0 %v2442
    %2455 = vmatprep.subr.mxu0 0.0
    %2456 = vmatpush1.msra.mxu0 %v2443
    %2457 = vmatprep.subr.mxu0 0.0
    %2458 = vmatpush1.msra.mxu0 %v2451
    %2459 = vmatprep.subr.mxu0 0.0
    %2460 = vmatpush1.msra.mxu0 0.0
    %2461 = vmatprep.subr.mxu0 0.0
    %2462 = vmatpush1.msra.mxu0 0.0
    %2463 = vmatprep.subr.mxu0 0.0
    %2464 = vmatpush1.msra.mxu0 0.0
    %2465 = vmatprep.subr.mxu0 0.0
    %2466 = vmatpush1.msra.mxu0 0.0
    %2467 = vmatprep.subr.mxu0 0.0
    %2468 = vmatpush1.msra.mxu0 0.0
    %2469 = vmatprep.subr.mxu0 0.0
    %2470 = vmatpush1.msra.mxu0 0.0
    %2471 = vmatprep.subr.mxu0 0.0
    %2472 = vmatpush1.msra.mxu0 0.0
    %2473 = vmatprep.subr.mxu0 0.0
    %2474 = vmatpush1.msra.mxu0 0.0
    %2475 = vmatprep.subr.mxu0 0.0
    %2476 = vmatpush1.msra.mxu0 0.0
    %2477 = vmatprep.subr.mxu0 0.0
    %2478 = vmatpush1.msra.mxu0 0.0
    %2479 = vmatprep.subr.mxu0 0.0
    %2480 = vmatpush1.msra.mxu0 0.0
    %2481 = vmatprep.subr.mxu0 0.0
    %2482 = vmatpush1.msra.mxu0 0.0
    %2483 = vmatprep.subr.mxu0 0.0
    %2484 = vmatpush1.msra.mxu0 0.0
    %2485 = vmatprep.subr.mxu0 0.0
    %2486 = vmatpush1.msra.mxu0 0.0
    %2487 = vmatprep.subr.mxu0 0.0
    %2488 = vmatpush1.msra.mxu0 0.0
    %2489 = vmatprep.subr.mxu0 0.0
    %2490 = vmatpush1.msra.mxu0 0.0
    %2491 = vmatprep.subr.mxu0 0.0
    %2492 = vmatpush1.msra.mxu0 0.0
    %2493 = vmatprep.subr.mxu0 0.0
    %2494 = vmatpush1.msra.mxu0 0.0
    %2495 = vmatprep.subr.mxu0 0.0
    %2496 = vmatpush1.msra.mxu0 0.0
    %2497 = vmatprep.subr.mxu0 0.0
    %2498 = vmatpush1.msra.mxu0 0.0
    %2499 = vmatprep.subr.mxu0 0.0
    %2500 = vmatpush1.msra.mxu0 0.0
    %2501 = vmatprep.subr.mxu0 0.0
    %2502 = vmatpush1.msra.mxu0 0.0
    %2503 = vmatprep.subr.mxu0 0.0
    %2504 = vmatpush1.msra.mxu0 0.0
    %2505 = vmatprep.subr.mxu0 0.0
    %2506 = vmatpush1.msra.mxu0 0.0
    %2507 = vmatprep.subr.mxu0 0.0
    %2508 = vmatpush1.msra.mxu0 0.0
    %2509 = vmatprep.subr.mxu0 0.0
    %2510 = vmatpush1.msra.mxu0 0.0
    %2511 = vmatprep.subr.mxu0 0.0
    %2512 = vmatpush1.msra.mxu0 0.0
    %2513 = vmatprep.subr.mxu0 0.0
    %2514 = vmatpush1.msra.mxu0 0.0
    %2515 = vmatprep.subr.mxu0 0.0
    %2516 = vmatpush1.msra.mxu0 0.0
    %2517 = vmatprep.mubr.f32.mxu0 0.0
    %2518 = vmatmul.mubr.f32.gmra.mrb[0].mxu0 %v2358
    %v2519 = vpop.f32.mrb[0].mxu0
    %v2520 = vadd.f32 %v2449, %v2519
    %v2521 = vpop.f32.mrb[0].mxu0
    %2522 = vmatprep.mubr.f32.mxu0 0.0
    %2523 = vmatmul.mubr.f32.gmra.mrb[0].mxu0 %v2361
    %v2524 = vpop.f32.mrb[0].mxu0
    %v2525 = vadd.f32 %v2449, %v2524
    %v2526 = vpop.f32.mrb[0].mxu0
    %2527 = vdwg.mxu0
    %s2528 = scalar_lea.vmem %s4, 48
    %v2529 = vld [vmem:[%s2528] sm:$0xff]
    %v2530 = vld [vmem:[%s2528 + $0x8] sm:$0xff]
    %v2531 = vld [vmem:[%s2528 + $0x10] sm:$0xf]
    %v2532 = vld [vmem:[%s6 + $0x2] sm:$0x1]
    %v2533 = vlaneseq
    %v2534 = vshrl.u32 %v2533, 7
    %v2535 = vsub.s32 0, %v2534
    %v2536 = vrot.slane %v2532, %v2535
    %v2538 = vsel %vm380, %v2531, 0
    %2540 = vmatprep.subr.mxu0 0.0
    %2541 = vmatpush1.msra.mxu0 %v2529
    %2542 = vmatprep.subr.mxu0 0.0
    %2543 = vmatpush1.msra.mxu0 %v2530
    %2544 = vmatprep.subr.mxu0 0.0
    %2545 = vmatpush1.msra.mxu0 %v2538
    %2546 = vmatprep.subr.mxu0 0.0
    %2547 = vmatpush1.msra.mxu0 0.0
    %2548 = vmatprep.subr.mxu0 0.0
    %2549 = vmatpush1.msra.mxu0 0.0
    %2550 = vmatprep.subr.mxu0 0.0
    %2551 = vmatpush1.msra.mxu0 0.0
    %2552 = vmatprep.subr.mxu0 0.0
    %2553 = vmatpush1.msra.mxu0 0.0
    %2554 = vmatprep.subr.mxu0 0.0
    %2555 = vmatpush1.msra.mxu0 0.0
    %2556 = vmatprep.subr.mxu0 0.0
    %2557 = vmatpush1.msra.mxu0 0.0
    %2558 = vmatprep.subr.mxu0 0.0
    %2559 = vmatpush1.msra.mxu0 0.0
    %2560 = vmatprep.subr.mxu0 0.0
    %2561 = vmatpush1.msra.mxu0 0.0
    %2562 = vmatprep.subr.mxu0 0.0
    %2563 = vmatpush1.msra.mxu0 0.0
    %2564 = vmatprep.subr.mxu0 0.0
    %2565 = vmatpush1.msra.mxu0 0.0
    %2566 = vmatprep.subr.mxu0 0.0
    %2567 = vmatpush1.msra.mxu0 0.0
    %2568 = vmatprep.subr.mxu0 0.0
    %2569 = vmatpush1.msra.mxu0 0.0
    %2570 = vmatprep.subr.mxu0 0.0
    %2571 = vmatpush1.msra.mxu0 0.0
    %2572 = vmatprep.subr.mxu0 0.0
    %2573 = vmatpush1.msra.mxu0 0.0
    %2574 = vmatprep.subr.mxu0 0.0
    %2575 = vmatpush1.msra.mxu0 0.0
    %2576 = vmatprep.subr.mxu0 0.0
    %2577 = vmatpush1.msra.mxu0 0.0
    %2578 = vmatprep.subr.mxu0 0.0
    %2579 = vmatpush1.msra.mxu0 0.0
    %2580 = vmatprep.subr.mxu0 0.0
    %2581 = vmatpush1.msra.mxu0 0.0
    %2582 = vmatprep.subr.mxu0 0.0
    %2583 = vmatpush1.msra.mxu0 0.0
    %2584 = vmatprep.subr.mxu0 0.0
    %2585 = vmatpush1.msra.mxu0 0.0
    %2586 = vmatprep.subr.mxu0 0.0
    %2587 = vmatpush1.msra.mxu0 0.0
    %2588 = vmatprep.subr.mxu0 0.0
    %2589 = vmatpush1.msra.mxu0 0.0
    %2590 = vmatprep.subr.mxu0 0.0
    %2591 = vmatpush1.msra.mxu0 0.0
    %2592 = vmatprep.subr.mxu0 0.0
    %2593 = vmatpush1.msra.mxu0 0.0
    %2594 = vmatprep.subr.mxu0 0.0
    %2595 = vmatpush1.msra.mxu0 0.0
    %2596 = vmatprep.subr.mxu0 0.0
    %2597 = vmatpush1.msra.mxu0 0.0
    %2598 = vmatprep.subr.mxu0 0.0
    %2599 = vmatpush1.msra.mxu0 0.0
    %2600 = vmatprep.subr.mxu0 0.0
    %2601 = vmatpush1.msra.mxu0 0.0
    %2602 = vmatprep.subr.mxu0 0.0
    %2603 = vmatpush1.msra.mxu0 0.0
    %2604 = vmatprep.mubr.f32.mxu0 0.0
    %2605 = vmatmul.mubr.f32.gmra.mrb[0].mxu0 %v2358
    %v2606 = vpop.f32.mrb[0].mxu0
    %v2607 = vadd.f32 %v2536, %v2606
    %v2608 = vpop.f32.mrb[0].mxu0
    %2609 = vmatprep.mubr.f32.mxu0 0.0
    %2610 = vmatmul.mubr.f32.gmra.mrb[0].mxu0 %v2361
    %v2611 = vpop.f32.mrb[0].mxu0
    %v2612 = vadd.f32 %v2536, %v2611
    %v2613 = vpop.f32.mrb[0].mxu0
    %2614 = vdwg.mxu0
    %v2615 = vld [vmem:[%s5] sm:$0xff]
    %v2616 = vld [vmem:[%s5 + $0x8] sm:$0xff]
    %v2617 = vld [vmem:[%s5 + $0x10] sm:$0xf]
    %s2618 = scalar_lea.vmem %s5, 24
    %v2619 = vld [vmem:[%s2618] sm:$0xff]
    %v2620 = vld [vmem:[%s2618 + $0x8] sm:$0xff]
    %v2621 = vld [vmem:[%s2618 + $0x10] sm:$0xf]
    %s2622 = scalar_lea.vmem %s5, 48
    %v2623 = vld [vmem:[%s2622] sm:$0xff]
    %v2624 = vld [vmem:[%s2622 + $0x8] sm:$0xff]
    %v2625 = vld [vmem:[%s2622 + $0x10] sm:$0xf]
    %v2626 = vld [vmem:[%s6 + $0x3] sm:$0x1]
    %v2628 = vsel %vm380, %v2617, 0
    %2630 = vmatprep.subr.mxu0 0.0
    %2631 = vmatpush1.msra.mxu0 %v2615
    %2632 = vmatprep.subr.mxu0 0.0
    %2633 = vmatpush1.msra.mxu0 %v2616
    %2634 = vmatprep.subr.mxu0 0.0
    %2635 = vmatpush1.msra.mxu0 %v2628
    %2636 = vmatprep.subr.mxu0 0.0
    %2637 = vmatpush1.msra.mxu0 0.0
    %2638 = vmatprep.subr.mxu0 0.0
    %2639 = vmatpush1.msra.mxu0 0.0
    %2640 = vmatprep.subr.mxu0 0.0
    %2641 = vmatpush1.msra.mxu0 0.0
    %2642 = vmatprep.subr.mxu0 0.0
    %2643 = vmatpush1.msra.mxu0 0.0
    %2644 = vmatprep.subr.mxu0 0.0
    %2645 = vmatpush1.msra.mxu0 0.0
    %2646 = vmatprep.subr.mxu0 0.0
    %2647 = vmatpush1.msra.mxu0 0.0
    %2648 = vmatprep.subr.mxu0 0.0
    %2649 = vmatpush1.msra.mxu0 0.0
    %2650 = vmatprep.subr.mxu0 0.0
    %2651 = vmatpush1.msra.mxu0 0.0
    %2652 = vmatprep.subr.mxu0 0.0
    %2653 = vmatpush1.msra.mxu0 0.0
    %2654 = vmatprep.subr.mxu0 0.0
    %2655 = vmatpush1.msra.mxu0 0.0
    %2656 = vmatprep.subr.mxu0 0.0
    %2657 = vmatpush1.msra.mxu0 0.0
    %2658 = vmatprep.subr.mxu0 0.0
    %2659 = vmatpush1.msra.mxu0 0.0
    %2660 = vmatprep.subr.mxu0 0.0
    %2661 = vmatpush1.msra.mxu0 0.0
    %2662 = vmatprep.subr.mxu0 0.0
    %2663 = vmatpush1.msra.mxu0 0.0
    %2664 = vmatprep.subr.mxu0 0.0
    %2665 = vmatpush1.msra.mxu0 0.0
    %2666 = vmatprep.subr.mxu0 0.0
    %2667 = vmatpush1.msra.mxu0 0.0
    %2668 = vmatprep.subr.mxu0 0.0
    %2669 = vmatpush1.msra.mxu0 0.0
    %2670 = vmatprep.subr.mxu0 0.0
    %2671 = vmatpush1.msra.mxu0 0.0
    %2672 = vmatprep.subr.mxu0 0.0
    %2673 = vmatpush1.msra.mxu0 0.0
    %2674 = vmatprep.subr.mxu0 0.0
    %2675 = vmatpush1.msra.mxu0 0.0
    %2676 = vmatprep.subr.mxu0 0.0
    %2677 = vmatpush1.msra.mxu0 0.0
    %2678 = vmatprep.subr.mxu0 0.0
    %2679 = vmatpush1.msra.mxu0 0.0
    %2680 = vmatprep.subr.mxu0 0.0
    %2681 = vmatpush1.msra.mxu0 0.0
    %2682 = vmatprep.subr.mxu0 0.0
    %2683 = vmatpush1.msra.mxu0 0.0
    %2684 = vmatprep.subr.mxu0 0.0
    %2685 = vmatpush1.msra.mxu0 0.0
    %2686 = vmatprep.subr.mxu0 0.0
    %2687 = vmatpush1.msra.mxu0 0.0
    %2688 = vmatprep.subr.mxu0 0.0
    %2689 = vmatpush1.msra.mxu0 0.0
    %2690 = vmatprep.subr.mxu0 0.0
    %2691 = vmatpush1.msra.mxu0 0.0
    %2692 = vmatprep.subr.mxu0 0.0
    %2693 = vmatpush1.msra.mxu0 0.0
    %2694 = vmatprep.mubr.f32.mxu0 0.0
    %2695 = vmatmul.mubr.f32.gmra.mrb[0].mxu0 %v378
    %v2696 = vpop.f32.mrb[0].mxu0
    %v2697 = vadd.f32 0.0, %v2696
    %v2698 = vpop.f32.mrb[0].mxu0
    %2699 = vdwg.mxu0
    %v2700 = vadd.f32 %v2433, %v2697
    %v2701 = vsub.f32 0.0, %v2700
    %v2702 = vmul.f32 %v2701, 1.442695
    %v2703 = vpow.pop %v2702
    %v2704 = vadd.f32 %v2703, 1.0
    %v2705 = vrcp.pop %v2704
    %v2706 = vmul.f32 1.0, %v2705
    %v2708 = vsel %vm380, %v2621, 0
    %2710 = vmatprep.subr.mxu0 0.0
    %2711 = vmatpush1.msra.mxu0 %v2619
    %2712 = vmatprep.subr.mxu0 0.0
    %2713 = vmatpush1.msra.mxu0 %v2620
    %2714 = vmatprep.subr.mxu0 0.0
    %2715 = vmatpush1.msra.mxu0 %v2708
    %2716 = vmatprep.subr.mxu0 0.0
    %2717 = vmatpush1.msra.mxu0 0.0
    %2718 = vmatprep.subr.mxu0 0.0
    %2719 = vmatpush1.msra.mxu0 0.0
    %2720 = vmatprep.subr.mxu0 0.0
    %2721 = vmatpush1.msra.mxu0 0.0
    %2722 = vmatprep.subr.mxu0 0.0
    %2723 = vmatpush1.msra.mxu0 0.0
    %2724 = vmatprep.subr.mxu0 0.0
    %2725 = vmatpush1.msra.mxu0 0.0
    %2726 = vmatprep.subr.mxu0 0.0
    %2727 = vmatpush1.msra.mxu0 0.0
    %2728 = vmatprep.subr.mxu0 0.0
    %2729 = vmatpush1.msra.mxu0 0.0
    %2730 = vmatprep.subr.mxu0 0.0
    %2731 = vmatpush1.msra.mxu0 0.0
    %2732 = vmatprep.subr.mxu0 0.0
    %2733 = vmatpush1.msra.mxu0 0.0
    %2734 = vmatprep.subr.mxu0 0.0
    %2735 = vmatpush1.msra.mxu0 0.0
    %2736 = vmatprep.subr.mxu0 0.0
    %2737 = vmatpush1.msra.mxu0 0.0
    %2738 = vmatprep.subr.mxu0 0.0
    %2739 = vmatpush1.msra.mxu0 0.0
    %2740 = vmatprep.subr.mxu0 0.0
    %2741 = vmatpush1.msra.mxu0 0.0
    %2742 = vmatprep.subr.mxu0 0.0
    %2743 = vmatpush1.msra.mxu0 0.0
    %2744 = vmatprep.subr.mxu0 0.0
    %2745 = vmatpush1.msra.mxu0 0.0
    %2746 = vmatprep.subr.mxu0 0.0
    %2747 = vmatpush1.msra.mxu0 0.0
    %2748 = vmatprep.subr.mxu0 0.0
    %2749 = vmatpush1.msra.mxu0 0.0
    %2750 = vmatprep.subr.mxu0 0.0
    %2751 = vmatpush1.msra.mxu0 0.0
    %2752 = vmatprep.subr.mxu0 0.0
    %2753 = vmatpush1.msra.mxu0 0.0
    %2754 = vmatprep.subr.mxu0 0.0
    %2755 = vmatpush1.msra.mxu0 0.0
    %2756 = vmatprep.subr.mxu0 0.0
    %2757 = vmatpush1.msra.mxu0 0.0
    %2758 = vmatprep.subr.mxu0 0.0
    %2759 = vmatpush1.msra.mxu0 0.0
    %2760 = vmatprep.subr.mxu0 0.0
    %2761 = vmatpush1.msra.mxu0 0.0
    %2762 = vmatprep.subr.mxu0 0.0
    %2763 = vmatpush1.msra.mxu0 0.0
    %2764 = vmatprep.subr.mxu0 0.0
    %2765 = vmatpush1.msra.mxu0 0.0
    %2766 = vmatprep.subr.mxu0 0.0
    %2767 = vmatpush1.msra.mxu0 0.0
    %2768 = vmatprep.subr.mxu0 0.0
    %2769 = vmatpush1.msra.mxu0 0.0
    %2770 = vmatprep.subr.mxu0 0.0
    %2771 = vmatpush1.msra.mxu0 0.0
    %2772 = vmatprep.subr.mxu0 0.0
    %2773 = vmatpush1.msra.mxu0 0.0
    %2774 = vmatprep.mubr.f32.mxu0 0.0
    %2775 = vmatmul.mubr.f32.gmra.mrb[0].mxu0 %v378
    %v2776 = vpop.f32.mrb[0].mxu0
    %v2777 = vadd.f32 0.0, %v2776
    %v2778 = vpop.f32.mrb[0].mxu0
    %2779 = vdwg.mxu0
    %v2780 = vadd.f32 %v2520, %v2777
    %v2781 = vsub.f32 0.0, %v2780
    %v2782 = vmul.f32 %v2781, 1.442695
    %v2783 = vpow.pop %v2782
    %v2784 = vadd.f32 %v2783, 1.0
    %v2785 = vrcp.pop %v2784
    %v2786 = vmul.f32 1.0, %v2785
    %v2787 = vlaneseq
    %v2788 = vshrl.u32 %v2787, 7
    %v2789 = vsub.s32 0, %v2788
    %v2790 = vrot.slane %v2626, %v2789
    %v2792 = vsel %vm380, %v2625, 0
    %2794 = vmatprep.subr.mxu0 0.0
    %2795 = vmatpush1.msra.mxu0 %v2623
    %2796 = vmatprep.subr.mxu0 0.0
    %2797 = vmatpush1.msra.mxu0 %v2624
    %2798 = vmatprep.subr.mxu0 0.0
    %2799 = vmatpush1.msra.mxu0 %v2792
    %2800 = vmatprep.subr.mxu0 0.0
    %2801 = vmatpush1.msra.mxu0 0.0
    %2802 = vmatprep.subr.mxu0 0.0
    %2803 = vmatpush1.msra.mxu0 0.0
    %2804 = vmatprep.subr.mxu0 0.0
    %2805 = vmatpush1.msra.mxu0 0.0
    %2806 = vmatprep.subr.mxu0 0.0
    %2807 = vmatpush1.msra.mxu0 0.0
    %2808 = vmatprep.subr.mxu0 0.0
    %2809 = vmatpush1.msra.mxu0 0.0
    %2810 = vmatprep.subr.mxu0 0.0
    %2811 = vmatpush1.msra.mxu0 0.0
    %2812 = vmatprep.subr.mxu0 0.0
    %2813 = vmatpush1.msra.mxu0 0.0
    %2814 = vmatprep.subr.mxu0 0.0
    %2815 = vmatpush1.msra.mxu0 0.0
    %2816 = vmatprep.subr.mxu0 0.0
    %2817 = vmatpush1.msra.mxu0 0.0
    %2818 = vmatprep.subr.mxu0 0.0
    %2819 = vmatpush1.msra.mxu0 0.0
    %2820 = vmatprep.subr.mxu0 0.0
    %2821 = vmatpush1.msra.mxu0 0.0
    %2822 = vmatprep.subr.mxu0 0.0
    %2823 = vmatpush1.msra.mxu0 0.0
    %2824 = vmatprep.subr.mxu0 0.0
    %2825 = vmatpush1.msra.mxu0 0.0
    %2826 = vmatprep.subr.mxu0 0.0
    %2827 = vmatpush1.msra.mxu0 0.0
    %2828 = vmatprep.subr.mxu0 0.0
    %2829 = vmatpush1.msra.mxu0 0.0
    %2830 = vmatprep.subr.mxu0 0.0
    %2831 = vmatpush1.msra.mxu0 0.0
    %2832 = vmatprep.subr.mxu0 0.0
    %2833 = vmatpush1.msra.mxu0 0.0
    %2834 = vmatprep.subr.mxu0 0.0
    %2835 = vmatpush1.msra.mxu0 0.0
    %2836 = vmatprep.subr.mxu0 0.0
    %2837 = vmatpush1.msra.mxu0 0.0
    %2838 = vmatprep.subr.mxu0 0.0
    %2839 = vmatpush1.msra.mxu0 0.0
    %2840 = vmatprep.subr.mxu0 0.0
    %2841 = vmatpush1.msra.mxu0 0.0
    %2842 = vmatprep.subr.mxu0 0.0
    %2843 = vmatpush1.msra.mxu0 0.0
    %2844 = vmatprep.subr.mxu0 0.0
    %2845 = vmatpush1.msra.mxu0 0.0
    %2846 = vmatprep.subr.mxu0 0.0
    %2847 = vmatpush1.msra.mxu0 0.0
    %2848 = vmatprep.subr.mxu0 0.0
    %2849 = vmatpush1.msra.mxu0 0.0
    %2850 = vmatprep.subr.mxu0 0.0
    %2851 = vmatpush1.msra.mxu0 0.0
    %2852 = vmatprep.subr.mxu0 0.0
    %2853 = vmatpush1.msra.mxu0 0.0
    %2854 = vmatprep.subr.mxu0 0.0
    %2855 = vmatpush1.msra.mxu0 0.0
    %2856 = vmatprep.subr.mxu0 0.0
    %2857 = vmatpush1.msra.mxu0 0.0
    %2858 = vmatprep.mubr.f32.mxu0 0.0
    %2859 = vmatmul.mubr.f32.gmra.mrb[0].mxu0 %v378
    %v2860 = vpop.f32.mrb[0].mxu0
    %v2861 = vadd.f32 %v2790, %v2860
    %v2862 = vpop.f32.mrb[0].mxu0
    %2863 = vdwg.mxu0
    %v2864 = vmul.f32 %v2706, %v2861
    %v2865 = vadd.f32 %v2607, %v2864
    %v2866 = vtanh.pop %v2865
    %v2867 = vsub.f32 1.0, %v2786
    %v2868 = vmul.f32 %v2867, %v2866
    %v2869 = vmul.f32 %v2786, 0.0
    %v2870 = vadd.f32 %v2868, %v2869
    %2871 = vst.msk [vmem:[#allocation3] sm:$0x3] %vm625, %v2870
    %v2873 = vsel %vm376, %v2870, 0
    %2875 = vmatprep.subr.mxu0 0.0
    %2876 = vmatpush1.msra.mxu0 %v2615
    %2877 = vmatprep.subr.mxu0 0.0
    %2878 = vmatpush1.msra.mxu0 %v2616
    %2879 = vmatprep.subr.mxu0 0.0
    %2880 = vmatpush1.msra.mxu0 %v2628
    %2881 = vmatprep.subr.mxu0 0.0
    %2882 = vmatpush1.msra.mxu0 0.0
    %2883 = vmatprep.subr.mxu0 0.0
    %2884 = vmatpush1.msra.mxu0 0.0
    %2885 = vmatprep.subr.mxu0 0.0
    %2886 = vmatpush1.msra.mxu0 0.0
    %2887 = vmatprep.subr.mxu0 0.0
    %2888 = vmatpush1.msra.mxu0 0.0
    %2889 = vmatprep.subr.mxu0 0.0
    %2890 = vmatpush1.msra.mxu0 0.0
    %2891 = vmatprep.subr.mxu0 0.0
    %2892 = vmatpush1.msra.mxu0 0.0
    %2893 = vmatprep.subr.mxu0 0.0
    %2894 = vmatpush1.msra.mxu0 0.0
    %2895 = vmatprep.subr.mxu0 0.0
    %2896 = vmatpush1.msra.mxu0 0.0
    %2897 = vmatprep.subr.mxu0 0.0
    %2898 = vmatpush1.msra.mxu0 0.0
    %2899 = vmatprep.subr.mxu0 0.0
    %2900 = vmatpush1.msra.mxu0 0.0
    %2901 = vmatprep.subr.mxu0 0.0
    %2902 = vmatpush1.msra.mxu0 0.0
    %2903 = vmatprep.subr.mxu0 0.0
    %2904 = vmatpush1.msra.mxu0 0.0
    %2905 = vmatprep.subr.mxu0 0.0
    %2906 = vmatpush1.msra.mxu0 0.0
    %2907 = vmatprep.subr.mxu0 0.0
    %2908 = vmatpush1.msra.mxu0 0.0
    %2909 = vmatprep.subr.mxu0 0.0
    %2910 = vmatpush1.msra.mxu0 0.0
    %2911 = vmatprep.subr.mxu0 0.0
    %2912 = vmatpush1.msra.mxu0 0.0
    %2913 = vmatprep.subr.mxu0 0.0
    %2914 = vmatpush1.msra.mxu0 0.0
    %2915 = vmatprep.subr.mxu0 0.0
    %2916 = vmatpush1.msra.mxu0 0.0
    %2917 = vmatprep.subr.mxu0 0.0
    %2918 = vmatpush1.msra.mxu0 0.0
    %2919 = vmatprep.subr.mxu0 0.0
    %2920 = vmatpush1.msra.mxu0 0.0
    %2921 = vmatprep.subr.mxu0 0.0
    %2922 = vmatpush1.msra.mxu0 0.0
    %2923 = vmatprep.subr.mxu0 0.0
    %2924 = vmatpush1.msra.mxu0 0.0
    %2925 = vmatprep.subr.mxu0 0.0
    %2926 = vmatpush1.msra.mxu0 0.0
    %2927 = vmatprep.subr.mxu0 0.0
    %2928 = vmatpush1.msra.mxu0 0.0
    %2929 = vmatprep.subr.mxu0 0.0
    %2930 = vmatpush1.msra.mxu0 0.0
    %2931 = vmatprep.subr.mxu0 0.0
    %2932 = vmatpush1.msra.mxu0 0.0
    %2933 = vmatprep.subr.mxu0 0.0
    %2934 = vmatpush1.msra.mxu0 0.0
    %2935 = vmatprep.subr.mxu0 0.0
    %2936 = vmatpush1.msra.mxu0 0.0
    %2937 = vmatprep.subr.mxu0 0.0
    %2938 = vmatpush1.msra.mxu0 0.0
    %2939 = vmatprep.mubr.f32.mxu0 0.0
    %2940 = vmatmul.mubr.f32.gmra.mrb[0].mxu0 %v2873
    %v2941 = vpop.f32.mrb[0].mxu0
    %v2942 = vadd.f32 0.0, %v2941
    %v2943 = vpop.f32.mrb[0].mxu0
    %2944 = vdwg.mxu0
    %v2946 = vrot.slane %v2942, 6
    %v2948 = vadd.f32 %v2433, %v2946
    %v2949 = vsub.f32 0.0, %v2948
    %v2950 = vmul.f32 %v2949, 1.442695
    %v2951 = vpow.pop %v2950
    %v2952 = vadd.f32 %v2951, 1.0
    %v2953 = vrcp.pop %v2952
    %v2954 = vmul.f32 1.0, %v2953
    %2955 = vmatprep.subr.mxu0 0.0
    %2956 = vmatpush1.msra.mxu0 %v2619
    %2957 = vmatprep.subr.mxu0 0.0
    %2958 = vmatpush1.msra.mxu0 %v2620
    %2959 = vmatprep.subr.mxu0 0.0
    %2960 = vmatpush1.msra.mxu0 %v2708
    %2961 = vmatprep.subr.mxu0 0.0
    %2962 = vmatpush1.msra.mxu0 0.0
    %2963 = vmatprep.subr.mxu0 0.0
    %2964 = vmatpush1.msra.mxu0 0.0
    %2965 = vmatprep.subr.mxu0 0.0
    %2966 = vmatpush1.msra.mxu0 0.0
    %2967 = vmatprep.subr.mxu0 0.0
    %2968 = vmatpush1.msra.mxu0 0.0
    %2969 = vmatprep.subr.mxu0 0.0
    %2970 = vmatpush1.msra.mxu0 0.0
    %2971 = vmatprep.subr.mxu0 0.0
    %2972 = vmatpush1.msra.mxu0 0.0
    %2973 = vmatprep.subr.mxu0 0.0
    %2974 = vmatpush1.msra.mxu0 0.0
    %2975 = vmatprep.subr.mxu0 0.0
    %2976 = vmatpush1.msra.mxu0 0.0
    %2977 = vmatprep.subr.mxu0 0.0
    %2978 = vmatpush1.msra.mxu0 0.0
    %2979 = vmatprep.subr.mxu0 0.0
    %2980 = vmatpush1.msra.mxu0 0.0
    %2981 = vmatprep.subr.mxu0 0.0
    %2982 = vmatpush1.msra.mxu0 0.0
    %2983 = vmatprep.subr.mxu0 0.0
    %2984 = vmatpush1.msra.mxu0 0.0
    %2985 = vmatprep.subr.mxu0 0.0
    %2986 = vmatpush1.msra.mxu0 0.0
    %2987 = vmatprep.subr.mxu0 0.0
    %2988 = vmatpush1.msra.mxu0 0.0
    %2989 = vmatprep.subr.mxu0 0.0
    %2990 = vmatpush1.msra.mxu0 0.0
    %2991 = vmatprep.subr.mxu0 0.0
    %2992 = vmatpush1.msra.mxu0 0.0
    %2993 = vmatprep.subr.mxu0 0.0
    %2994 = vmatpush1.msra.mxu0 0.0
    %2995 = vmatprep.subr.mxu0 0.0
    %2996 = vmatpush1.msra.mxu0 0.0
    %2997 = vmatprep.subr.mxu0 0.0
    %2998 = vmatpush1.msra.mxu0 0.0
    %2999 = vmatprep.subr.mxu0 0.0
    %3000 = vmatpush1.msra.mxu0 0.0
    %3001 = vmatprep.subr.mxu0 0.0
    %3002 = vmatpush1.msra.mxu0 0.0
    %3003 = vmatprep.subr.mxu0 0.0
    %3004 = vmatpush1.msra.mxu0 0.0
    %3005 = vmatprep.subr.mxu0 0.0
    %3006 = vmatpush1.msra.mxu0 0.0
    %3007 = vmatprep.subr.mxu0 0.0
    %3008 = vmatpush1.msra.mxu0 0.0
    %3009 = vmatprep.subr.mxu0 0.0
    %3010 = vmatpush1.msra.mxu0 0.0
    %3011 = vmatprep.subr.mxu0 0.0
    %3012 = vmatpush1.msra.mxu0 0.0
    %3013 = vmatprep.subr.mxu0 0.0
    %3014 = vmatpush1.msra.mxu0 0.0
    %3015 = vmatprep.subr.mxu0 0.0
    %3016 = vmatpush1.msra.mxu0 0.0
    %3017 = vmatprep.subr.mxu0 0.0
    %3018 = vmatpush1.msra.mxu0 0.0
    %3019 = vmatprep.mubr.f32.mxu0 0.0
    %3020 = vmatmul.mubr.f32.gmra.mrb[0].mxu0 %v2873
    %v3021 = vpop.f32.mrb[0].mxu0
    %v3022 = vadd.f32 0.0, %v3021
    %v3023 = vpop.f32.mrb[0].mxu0
    %3024 = vdwg.mxu0
    %v3026 = vrot.slane %v3022, 6
    %v3028 = vadd.f32 %v2520, %v3026
    %v3029 = vsub.f32 0.0, %v3028
    %v3030 = vmul.f32 %v3029, 1.442695
    %v3031 = vpow.pop %v3030
    %v3032 = vadd.f32 %v3031, 1.0
    %v3033 = vrcp.pop %v3032
    %v3034 = vmul.f32 1.0, %v3033
    %3035 = vmatprep.subr.mxu0 0.0
    %3036 = vmatpush1.msra.mxu0 %v2623
    %3037 = vmatprep.subr.mxu0 0.0
    %3038 = vmatpush1.msra.mxu0 %v2624
    %3039 = vmatprep.subr.mxu0 0.0
    %3040 = vmatpush1.msra.mxu0 %v2792
    %3041 = vmatprep.subr.mxu0 0.0
    %3042 = vmatpush1.msra.mxu0 0.0
    %3043 = vmatprep.subr.mxu0 0.0
    %3044 = vmatpush1.msra.mxu0 0.0
    %3045 = vmatprep.subr.mxu0 0.0
    %3046 = vmatpush1.msra.mxu0 0.0
    %3047 = vmatprep.subr.mxu0 0.0
    %3048 = vmatpush1.msra.mxu0 0.0
    %3049 = vmatprep.subr.mxu0 0.0
    %3050 = vmatpush1.msra.mxu0 0.0
    %3051 = vmatprep.subr.mxu0 0.0
    %3052 = vmatpush1.msra.mxu0 0.0
    %3053 = vmatprep.subr.mxu0 0.0
    %3054 = vmatpush1.msra.mxu0 0.0
    %3055 = vmatprep.subr.mxu0 0.0
    %3056 = vmatpush1.msra.mxu0 0.0
    %3057 = vmatprep.subr.mxu0 0.0
    %3058 = vmatpush1.msra.mxu0 0.0
    %3059 = vmatprep.subr.mxu0 0.0
    %3060 = vmatpush1.msra.mxu0 0.0
    %3061 = vmatprep.subr.mxu0 0.0
    %3062 = vmatpush1.msra.mxu0 0.0
    %3063 = vmatprep.subr.mxu0 0.0
    %3064 = vmatpush1.msra.mxu0 0.0
    %3065 = vmatprep.subr.mxu0 0.0
    %3066 = vmatpush1.msra.mxu0 0.0
    %3067 = vmatprep.subr.mxu0 0.0
    %3068 = vmatpush1.msra.mxu0 0.0
    %3069 = vmatprep.subr.mxu0 0.0
    %3070 = vmatpush1.msra.mxu0 0.0
    %3071 = vmatprep.subr.mxu0 0.0
    %3072 = vmatpush1.msra.mxu0 0.0
    %3073 = vmatprep.subr.mxu0 0.0
    %3074 = vmatpush1.msra.mxu0 0.0
    %3075 = vmatprep.subr.mxu0 0.0
    %3076 = vmatpush1.msra.mxu0 0.0
    %3077 = vmatprep.subr.mxu0 0.0
    %3078 = vmatpush1.msra.mxu0 0.0
    %3079 = vmatprep.subr.mxu0 0.0
    %3080 = vmatpush1.msra.mxu0 0.0
    %3081 = vmatprep.subr.mxu0 0.0
    %3082 = vmatpush1.msra.mxu0 0.0
    %3083 = vmatprep.subr.mxu0 0.0
    %3084 = vmatpush1.msra.mxu0 0.0
    %3085 = vmatprep.subr.mxu0 0.0
    %3086 = vmatpush1.msra.mxu0 0.0
    %3087 = vmatprep.subr.mxu0 0.0
    %3088 = vmatpush1.msra.mxu0 0.0
    %3089 = vmatprep.subr.mxu0 0.0
    %3090 = vmatpush1.msra.mxu0 0.0
    %3091 = vmatprep.subr.mxu0 0.0
    %3092 = vmatpush1.msra.mxu0 0.0
    %3093 = vmatprep.subr.mxu0 0.0
    %3094 = vmatpush1.msra.mxu0 0.0
    %3095 = vmatprep.subr.mxu0 0.0
    %3096 = vmatpush1.msra.mxu0 0.0
    %3097 = vmatprep.subr.mxu0 0.0
    %3098 = vmatpush1.msra.mxu0 0.0
    %3099 = vmatprep.mubr.f32.mxu0 0.0
    %3100 = vmatmul.mubr.f32.gmra.mrb[0].mxu0 %v2873
    %v3101 = vpop.f32.mrb[0].mxu0
    %v3102 = vadd.f32 %v2790, %v3101
    %v3103 = vpop.f32.mrb[0].mxu0
    %3104 = vdwg.mxu0
    %v3106 = vrot.slane %v3102, 6
    %v3108 = vmul.f32 %v2954, %v3106
    %v3109 = vadd.f32 %v2607, %v3108
    %v3110 = vtanh.pop %v3109
    %v3111 = vsub.f32 1.0, %v3034
    %v3112 = vmul.f32 %v3111, %v3110
    %v3113 = vrot.slane %v2870, 6
    %v3115 = vmul.f32 %v3034, %v3113
    %v3116 = vadd.f32 %v3112, %v3115
    %3117 = vst.msk [vmem:[#allocation3] sm:$0xc] %vm872, %v3116
    %v3119 = vrot.slane %v3116, 2
    %v3120 = vsel %vm376, %v3119, 0
    %3122 = vmatprep.subr.mxu0 0.0
    %3123 = vmatpush1.msra.mxu0 %v2615
    %3124 = vmatprep.subr.mxu0 0.0
    %3125 = vmatpush1.msra.mxu0 %v2616
    %3126 = vmatprep.subr.mxu0 0.0
    %3127 = vmatpush1.msra.mxu0 %v2628
    %3128 = vmatprep.subr.mxu0 0.0
    %3129 = vmatpush1.msra.mxu0 0.0
    %3130 = vmatprep.subr.mxu0 0.0
    %3131 = vmatpush1.msra.mxu0 0.0
    %3132 = vmatprep.subr.mxu0 0.0
    %3133 = vmatpush1.msra.mxu0 0.0
    %3134 = vmatprep.subr.mxu0 0.0
    %3135 = vmatpush1.msra.mxu0 0.0
    %3136 = vmatprep.subr.mxu0 0.0
    %3137 = vmatpush1.msra.mxu0 0.0
    %3138 = vmatprep.subr.mxu0 0.0
    %3139 = vmatpush1.msra.mxu0 0.0
    %3140 = vmatprep.subr.mxu0 0.0
    %3141 = vmatpush1.msra.mxu0 0.0
    %3142 = vmatprep.subr.mxu0 0.0
    %3143 = vmatpush1.msra.mxu0 0.0
    %3144 = vmatprep.subr.mxu0 0.0
    %3145 = vmatpush1.msra.mxu0 0.0
    %3146 = vmatprep.subr.mxu0 0.0
    %3147 = vmatpush1.msra.mxu0 0.0
    %3148 = vmatprep.subr.mxu0 0.0
    %3149 = vmatpush1.msra.mxu0 0.0
    %3150 = vmatprep.subr.mxu0 0.0
    %3151 = vmatpush1.msra.mxu0 0.0
    %3152 = vmatprep.subr.mxu0 0.0
    %3153 = vmatpush1.msra.mxu0 0.0
    %3154 = vmatprep.subr.mxu0 0.0
    %3155 = vmatpush1.msra.mxu0 0.0
    %3156 = vmatprep.subr.mxu0 0.0
    %3157 = vmatpush1.msra.mxu0 0.0
    %3158 = vmatprep.subr.mxu0 0.0
    %3159 = vmatpush1.msra.mxu0 0.0
    %3160 = vmatprep.subr.mxu0 0.0
    %3161 = vmatpush1.msra.mxu0 0.0
    %3162 = vmatprep.subr.mxu0 0.0
    %3163 = vmatpush1.msra.mxu0 0.0
    %3164 = vmatprep.subr.mxu0 0.0
    %3165 = vmatpush1.msra.mxu0 0.0
    %3166 = vmatprep.subr.mxu0 0.0
    %3167 = vmatpush1.msra.mxu0 0.0
    %3168 = vmatprep.subr.mxu0 0.0
    %3169 = vmatpush1.msra.mxu0 0.0
    %3170 = vmatprep.subr.mxu0 0.0
    %3171 = vmatpush1.msra.mxu0 0.0
    %3172 = vmatprep.subr.mxu0 0.0
    %3173 = vmatpush1.msra.mxu0 0.0
    %3174 = vmatprep.subr.mxu0 0.0
    %3175 = vmatpush1.msra.mxu0 0.0
    %3176 = vmatprep.subr.mxu0 0.0
    %3177 = vmatpush1.msra.mxu0 0.0
    %3178 = vmatprep.subr.mxu0 0.0
    %3179 = vmatpush1.msra.mxu0 0.0
    %3180 = vmatprep.subr.mxu0 0.0
    %3181 = vmatpush1.msra.mxu0 0.0
    %3182 = vmatprep.subr.mxu0 0.0
    %3183 = vmatpush1.msra.mxu0 0.0
    %3184 = vmatprep.subr.mxu0 0.0
    %3185 = vmatpush1.msra.mxu0 0.0
    %3186 = vmatprep.mubr.f32.mxu0 0.0
    %3187 = vmatmul.mubr.f32.gmra.mrb[0].mxu0 %v3120
    %v3188 = vpop.f32.mrb[0].mxu0
    %v3189 = vadd.f32 0.0, %v3188
    %v3190 = vpop.f32.mrb[0].mxu0
    %3191 = vdwg.mxu0
    %v3193 = vrot.slane %v3189, 4
    %v3195 = vadd.f32 %v2433, %v3193
    %v3196 = vsub.f32 0.0, %v3195
    %v3197 = vmul.f32 %v3196, 1.442695
    %v3198 = vpow.pop %v3197
    %v3199 = vadd.f32 %v3198, 1.0
    %v3200 = vrcp.pop %v3199
    %v3201 = vmul.f32 1.0, %v3200
    %3202 = vmatprep.subr.mxu0 0.0
    %3203 = vmatpush1.msra.mxu0 %v2619
    %3204 = vmatprep.subr.mxu0 0.0
    %3205 = vmatpush1.msra.mxu0 %v2620
    %3206 = vmatprep.subr.mxu0 0.0
    %3207 = vmatpush1.msra.mxu0 %v2708
    %3208 = vmatprep.subr.mxu0 0.0
    %3209 = vmatpush1.msra.mxu0 0.0
    %3210 = vmatprep.subr.mxu0 0.0
    %3211 = vmatpush1.msra.mxu0 0.0
    %3212 = vmatprep.subr.mxu0 0.0
    %3213 = vmatpush1.msra.mxu0 0.0
    %3214 = vmatprep.subr.mxu0 0.0
    %3215 = vmatpush1.msra.mxu0 0.0
    %3216 = vmatprep.subr.mxu0 0.0
    %3217 = vmatpush1.msra.mxu0 0.0
    %3218 = vmatprep.subr.mxu0 0.0
    %3219 = vmatpush1.msra.mxu0 0.0
    %3220 = vmatprep.subr.mxu0 0.0
    %3221 = vmatpush1.msra.mxu0 0.0
    %3222 = vmatprep.subr.mxu0 0.0
    %3223 = vmatpush1.msra.mxu0 0.0
    %3224 = vmatprep.subr.mxu0 0.0
    %3225 = vmatpush1.msra.mxu0 0.0
    %3226 = vmatprep.subr.mxu0 0.0
    %3227 = vmatpush1.msra.mxu0 0.0
    %3228 = vmatprep.subr.mxu0 0.0
    %3229 = vmatpush1.msra.mxu0 0.0
    %3230 = vmatprep.subr.mxu0 0.0
    %3231 = vmatpush1.msra.mxu0 0.0
    %3232 = vmatprep.subr.mxu0 0.0
    %3233 = vmatpush1.msra.mxu0 0.0
    %3234 = vmatprep.subr.mxu0 0.0
    %3235 = vmatpush1.msra.mxu0 0.0
    %3236 = vmatprep.subr.mxu0 0.0
    %3237 = vmatpush1.msra.mxu0 0.0
    %3238 = vmatprep.subr.mxu0 0.0
    %3239 = vmatpush1.msra.mxu0 0.0
    %3240 = vmatprep.subr.mxu0 0.0
    %3241 = vmatpush1.msra.mxu0 0.0
    %3242 = vmatprep.subr.mxu0 0.0
    %3243 = vmatpush1.msra.mxu0 0.0
    %3244 = vmatprep.subr.mxu0 0.0
    %3245 = vmatpush1.msra.mxu0 0.0
    %3246 = vmatprep.subr.mxu0 0.0
    %3247 = vmatpush1.msra.mxu0 0.0
    %3248 = vmatprep.subr.mxu0 0.0
    %3249 = vmatpush1.msra.mxu0 0.0
    %3250 = vmatprep.subr.mxu0 0.0
    %3251 = vmatpush1.msra.mxu0 0.0
    %3252 = vmatprep.subr.mxu0 0.0
    %3253 = vmatpush1.msra.mxu0 0.0
    %3254 = vmatprep.subr.mxu0 0.0
    %3255 = vmatpush1.msra.mxu0 0.0
    %3256 = vmatprep.subr.mxu0 0.0
    %3257 = vmatpush1.msra.mxu0 0.0
    %3258 = vmatprep.subr.mxu0 0.0
    %3259 = vmatpush1.msra.mxu0 0.0
    %3260 = vmatprep.subr.mxu0 0.0
    %3261 = vmatpush1.msra.mxu0 0.0
    %3262 = vmatprep.subr.mxu0 0.0
    %3263 = vmatpush1.msra.mxu0 0.0
    %3264 = vmatprep.subr.mxu0 0.0
    %3265 = vmatpush1.msra.mxu0 0.0
    %3266 = vmatprep.mubr.f32.mxu0 0.0
    %3267 = vmatmul.mubr.f32.gmra.mrb[0].mxu0 %v3120
    %v3268 = vpop.f32.mrb[0].mxu0
    %v3269 = vadd.f32 0.0, %v3268
    %v3270 = vpop.f32.mrb[0].mxu0
    %3271 = vdwg.mxu0
    %v3273 = vrot.slane %v3269, 4
    %v3275 = vadd.f32 %v2520, %v3273
    %v3276 = vsub.f32 0.0, %v3275
    %v3277 = vmul.f32 %v3276, 1.442695
    %v3278 = vpow.pop %v3277
    %v3279 = vadd.f32 %v3278, 1.0
    %v3280 = vrcp.pop %v3279
    %v3281 = vmul.f32 1.0, %v3280
    %3282 = vmatprep.subr.mxu0 0.0
    %3283 = vmatpush1.msra.mxu0 %v2623
    %3284 = vmatprep.subr.mxu0 0.0
    %3285 = vmatpush1.msra.mxu0 %v2624
    %3286 = vmatprep.subr.mxu0 0.0
    %3287 = vmatpush1.msra.mxu0 %v2792
    %3288 = vmatprep.subr.mxu0 0.0
    %3289 = vmatpush1.msra.mxu0 0.0
    %3290 = vmatprep.subr.mxu0 0.0
    %3291 = vmatpush1.msra.mxu0 0.0
    %3292 = vmatprep.subr.mxu0 0.0
    %3293 = vmatpush1.msra.mxu0 0.0
    %3294 = vmatprep.subr.mxu0 0.0
    %3295 = vmatpush1.msra.mxu0 0.0
    %3296 = vmatprep.subr.mxu0 0.0
    %3297 = vmatpush1.msra.mxu0 0.0
    %3298 = vmatprep.subr.mxu0 0.0
    %3299 = vmatpush1.msra.mxu0 0.0
    %3300 = vmatprep.subr.mxu0 0.0
    %3301 = vmatpush1.msra.mxu0 0.0
    %3302 = vmatprep.subr.mxu0 0.0
    %3303 = vmatpush1.msra.mxu0 0.0
    %3304 = vmatprep.subr.mxu0 0.0
    %3305 = vmatpush1.msra.mxu0 0.0
    %3306 = vmatprep.subr.mxu0 0.0
    %3307 = vmatpush1.msra.mxu0 0.0
    %3308 = vmatprep.subr.mxu0 0.0
    %3309 = vmatpush1.msra.mxu0 0.0
    %3310 = vmatprep.subr.mxu0 0.0
    %3311 = vmatpush1.msra.mxu0 0.0
    %3312 = vmatprep.subr.mxu0 0.0
    %3313 = vmatpush1.msra.mxu0 0.0
    %3314 = vmatprep.subr.mxu0 0.0
    %3315 = vmatpush1.msra.mxu0 0.0
    %3316 = vmatprep.subr.mxu0 0.0
    %3317 = vmatpush1.msra.mxu0 0.0
    %3318 = vmatprep.subr.mxu0 0.0
    %3319 = vmatpush1.msra.mxu0 0.0
    %3320 = vmatprep.subr.mxu0 0.0
    %3321 = vmatpush1.msra.mxu0 0.0
    %3322 = vmatprep.subr.mxu0 0.0
    %3323 = vmatpush1.msra.mxu0 0.0
    %3324 = vmatprep.subr.mxu0 0.0
    %3325 = vmatpush1.msra.mxu0 0.0
    %3326 = vmatprep.subr.mxu0 0.0
    %3327 = vmatpush1.msra.mxu0 0.0
    %3328 = vmatprep.subr.mxu0 0.0
    %3329 = vmatpush1.msra.mxu0 0.0
    %3330 = vmatprep.subr.mxu0 0.0
    %3331 = vmatpush1.msra.mxu0 0.0
    %3332 = vmatprep.subr.mxu0 0.0
    %3333 = vmatpush1.msra.mxu0 0.0
    %3334 = vmatprep.subr.mxu0 0.0
    %3335 = vmatpush1.msra.mxu0 0.0
    %3336 = vmatprep.subr.mxu0 0.0
    %3337 = vmatpush1.msra.mxu0 0.0
    %3338 = vmatprep.subr.mxu0 0.0
    %3339 = vmatpush1.msra.mxu0 0.0
    %3340 = vmatprep.subr.mxu0 0.0
    %3341 = vmatpush1.msra.mxu0 0.0
    %3342 = vmatprep.subr.mxu0 0.0
    %3343 = vmatpush1.msra.mxu0 0.0
    %3344 = vmatprep.subr.mxu0 0.0
    %3345 = vmatpush1.msra.mxu0 0.0
    %3346 = vmatprep.mubr.f32.mxu0 0.0
    %3347 = vmatmul.mubr.f32.gmra.mrb[0].mxu0 %v3120
    %v3348 = vpop.f32.mrb[0].mxu0
    %v3349 = vadd.f32 %v2790, %v3348
    %v3350 = vpop.f32.mrb[0].mxu0
    %3351 = vdwg.mxu0
    %v3353 = vrot.slane %v3349, 4
    %v3355 = vmul.f32 %v3201, %v3353
    %v3356 = vadd.f32 %v2607, %v3355
    %v3357 = vtanh.pop %v3356
    %v3358 = vsub.f32 1.0, %v3281
    %v3359 = vmul.f32 %v3358, %v3357
    %v3360 = vrot.slane %v3116, 6
    %v3362 = vmul.f32 %v3281, %v3360
    %v3363 = vadd.f32 %v3359, %v3362
    %3364 = vst.msk [vmem:[#allocation3] sm:$0x30] %vm1120, %v3363
    %v3366 = vrot.slane %v3363, 4
    %v3367 = vsel %vm376, %v3366, 0
    %3369 = vmatprep.subr.mxu0 0.0
    %3370 = vmatpush1.msra.mxu0 %v2615
    %3371 = vmatprep.subr.mxu0 0.0
    %3372 = vmatpush1.msra.mxu0 %v2616
    %3373 = vmatprep.subr.mxu0 0.0
    %3374 = vmatpush1.msra.mxu0 %v2628
    %3375 = vmatprep.subr.mxu0 0.0
    %3376 = vmatpush1.msra.mxu0 0.0
    %3377 = vmatprep.subr.mxu0 0.0
    %3378 = vmatpush1.msra.mxu0 0.0
    %3379 = vmatprep.subr.mxu0 0.0
    %3380 = vmatpush1.msra.mxu0 0.0
    %3381 = vmatprep.subr.mxu0 0.0
    %3382 = vmatpush1.msra.mxu0 0.0
    %3383 = vmatprep.subr.mxu0 0.0
    %3384 = vmatpush1.msra.mxu0 0.0
    %3385 = vmatprep.subr.mxu0 0.0
    %3386 = vmatpush1.msra.mxu0 0.0
    %3387 = vmatprep.subr.mxu0 0.0
    %3388 = vmatpush1.msra.mxu0 0.0
    %3389 = vmatprep.subr.mxu0 0.0
    %3390 = vmatpush1.msra.mxu0 0.0
    %3391 = vmatprep.subr.mxu0 0.0
    %3392 = vmatpush1.msra.mxu0 0.0
    %3393 = vmatprep.subr.mxu0 0.0
    %3394 = vmatpush1.msra.mxu0 0.0
    %3395 = vmatprep.subr.mxu0 0.0
    %3396 = vmatpush1.msra.mxu0 0.0
    %3397 = vmatprep.subr.mxu0 0.0
    %3398 = vmatpush1.msra.mxu0 0.0
    %3399 = vmatprep.subr.mxu0 0.0
    %3400 = vmatpush1.msra.mxu0 0.0
    %3401 = vmatprep.subr.mxu0 0.0
    %3402 = vmatpush1.msra.mxu0 0.0
    %3403 = vmatprep.subr.mxu0 0.0
    %3404 = vmatpush1.msra.mxu0 0.0
    %3405 = vmatprep.subr.mxu0 0.0
    %3406 = vmatpush1.msra.mxu0 0.0
    %3407 = vmatprep.subr.mxu0 0.0
    %3408 = vmatpush1.msra.mxu0 0.0
    %3409 = vmatprep.subr.mxu0 0.0
    %3410 = vmatpush1.msra.mxu0 0.0
    %3411 = vmatprep.subr.mxu0 0.0
    %3412 = vmatpush1.msra.mxu0 0.0
    %3413 = vmatprep.subr.mxu0 0.0
    %3414 = vmatpush1.msra.mxu0 0.0
    %3415 = vmatprep.subr.mxu0 0.0
    %3416 = vmatpush1.msra.mxu0 0.0
    %3417 = vmatprep.subr.mxu0 0.0
    %3418 = vmatpush1.msra.mxu0 0.0
    %3419 = vmatprep.subr.mxu0 0.0
    %3420 = vmatpush1.msra.mxu0 0.0
    %3421 = vmatprep.subr.mxu0 0.0
    %3422 = vmatpush1.msra.mxu0 0.0
    %3423 = vmatprep.subr.mxu0 0.0
    %3424 = vmatpush1.msra.mxu0 0.0
    %3425 = vmatprep.subr.mxu0 0.0
    %3426 = vmatpush1.msra.mxu0 0.0
    %3427 = vmatprep.subr.mxu0 0.0
    %3428 = vmatpush1.msra.mxu0 0.0
    %3429 = vmatprep.subr.mxu0 0.0
    %3430 = vmatpush1.msra.mxu0 0.0
    %3431 = vmatprep.subr.mxu0 0.0
    %3432 = vmatpush1.msra.mxu0 0.0
    %3433 = vmatprep.mubr.f32.mxu0 0.0
    %3434 = vmatmul.mubr.f32.gmra.mrb[0].mxu0 %v3367
    %v3435 = vpop.f32.mrb[0].mxu0
    %v3436 = vadd.f32 0.0, %v3435
    %v3437 = vpop.f32.mrb[0].mxu0
    %3438 = vdwg.mxu0
    %v3440 = vrot.slane %v3436, 2
    %v3442 = vadd.f32 %v2433, %v3440
    %v3443 = vsub.f32 0.0, %v3442
    %v3444 = vmul.f32 %v3443, 1.442695
    %v3445 = vpow.pop %v3444
    %v3446 = vadd.f32 %v3445, 1.0
    %v3447 = vrcp.pop %v3446
    %v3448 = vmul.f32 1.0, %v3447
    %3449 = vmatprep.subr.mxu0 0.0
    %3450 = vmatpush1.msra.mxu0 %v2619
    %3451 = vmatprep.subr.mxu0 0.0
    %3452 = vmatpush1.msra.mxu0 %v2620
    %3453 = vmatprep.subr.mxu0 0.0
    %3454 = vmatpush1.msra.mxu0 %v2708
    %3455 = vmatprep.subr.mxu0 0.0
    %3456 = vmatpush1.msra.mxu0 0.0
    %3457 = vmatprep.subr.mxu0 0.0
    %3458 = vmatpush1.msra.mxu0 0.0
    %3459 = vmatprep.subr.mxu0 0.0
    %3460 = vmatpush1.msra.mxu0 0.0
    %3461 = vmatprep.subr.mxu0 0.0
    %3462 = vmatpush1.msra.mxu0 0.0
    %3463 = vmatprep.subr.mxu0 0.0
    %3464 = vmatpush1.msra.mxu0 0.0
    %3465 = vmatprep.subr.mxu0 0.0
    %3466 = vmatpush1.msra.mxu0 0.0
    %3467 = vmatprep.subr.mxu0 0.0
    %3468 = vmatpush1.msra.mxu0 0.0
    %3469 = vmatprep.subr.mxu0 0.0
    %3470 = vmatpush1.msra.mxu0 0.0
    %3471 = vmatprep.subr.mxu0 0.0
    %3472 = vmatpush1.msra.mxu0 0.0
    %3473 = vmatprep.subr.mxu0 0.0
    %3474 = vmatpush1.msra.mxu0 0.0
    %3475 = vmatprep.subr.mxu0 0.0
    %3476 = vmatpush1.msra.mxu0 0.0
    %3477 = vmatprep.subr.mxu0 0.0
    %3478 = vmatpush1.msra.mxu0 0.0
    %3479 = vmatprep.subr.mxu0 0.0
    %3480 = vmatpush1.msra.mxu0 0.0
    %3481 = vmatprep.subr.mxu0 0.0
    %3482 = vmatpush1.msra.mxu0 0.0
    %3483 = vmatprep.subr.mxu0 0.0
    %3484 = vmatpush1.msra.mxu0 0.0
    %3485 = vmatprep.subr.mxu0 0.0
    %3486 = vmatpush1.msra.mxu0 0.0
    %3487 = vmatprep.subr.mxu0 0.0
    %3488 = vmatpush1.msra.mxu0 0.0
    %3489 = vmatprep.subr.mxu0 0.0
    %3490 = vmatpush1.msra.mxu0 0.0
    %3491 = vmatprep.subr.mxu0 0.0
    %3492 = vmatpush1.msra.mxu0 0.0
    %3493 = vmatprep.subr.mxu0 0.0
    %3494 = vmatpush1.msra.mxu0 0.0
    %3495 = vmatprep.subr.mxu0 0.0
    %3496 = vmatpush1.msra.mxu0 0.0
    %3497 = vmatprep.subr.mxu0 0.0
    %3498 = vmatpush1.msra.mxu0 0.0
    %3499 = vmatprep.subr.mxu0 0.0
    %3500 = vmatpush1.msra.mxu0 0.0
    %3501 = vmatprep.subr.mxu0 0.0
    %3502 = vmatpush1.msra.mxu0 0.0
    %3503 = vmatprep.subr.mxu0 0.0
    %3504 = vmatpush1.msra.mxu0 0.0
    %3505 = vmatprep.subr.mxu0 0.0
    %3506 = vmatpush1.msra.mxu0 0.0
    %3507 = vmatprep.subr.mxu0 0.0
    %3508 = vmatpush1.msra.mxu0 0.0
    %3509 = vmatprep.subr.mxu0 0.0
    %3510 = vmatpush1.msra.mxu0 0.0
    %3511 = vmatprep.subr.mxu0 0.0
    %3512 = vmatpush1.msra.mxu0 0.0
    %3513 = vmatprep.mubr.f32.mxu0 0.0
    %3514 = vmatmul.mubr.f32.gmra.mrb[0].mxu0 %v3367
    %v3515 = vpop.f32.mrb[0].mxu0
    %v3516 = vadd.f32 0.0, %v3515
    %v3517 = vpop.f32.mrb[0].mxu0
    %3518 = vdwg.mxu0
    %v3520 = vrot.slane %v3516, 2
    %v3522 = vadd.f32 %v2520, %v3520
    %v3523 = vsub.f32 0.0, %v3522
    %v3524 = vmul.f32 %v3523, 1.442695
    %v3525 = vpow.pop %v3524
    %v3526 = vadd.f32 %v3525, 1.0
    %v3527 = vrcp.pop %v3526
    %v3528 = vmul.f32 1.0, %v3527
    %3529 = vmatprep.subr.mxu0 0.0
    %3530 = vmatpush1.msra.mxu0 %v2623
    %3531 = vmatprep.subr.mxu0 0.0
    %3532 = vmatpush1.msra.mxu0 %v2624
    %3533 = vmatprep.subr.mxu0 0.0
    %3534 = vmatpush1.msra.mxu0 %v2792
    %3535 = vmatprep.subr.mxu0 0.0
    %3536 = vmatpush1.msra.mxu0 0.0
    %3537 = vmatprep.subr.mxu0 0.0
    %3538 = vmatpush1.msra.mxu0 0.0
    %3539 = vmatprep.subr.mxu0 0.0
    %3540 = vmatpush1.msra.mxu0 0.0
    %3541 = vmatprep.subr.mxu0 0.0
    %3542 = vmatpush1.msra.mxu0 0.0
    %3543 = vmatprep.subr.mxu0 0.0
    %3544 = vmatpush1.msra.mxu0 0.0
    %3545 = vmatprep.subr.mxu0 0.0
    %3546 = vmatpush1.msra.mxu0 0.0
    %3547 = vmatprep.subr.mxu0 0.0
    %3548 = vmatpush1.msra.mxu0 0.0
    %3549 = vmatprep.subr.mxu0 0.0
    %3550 = vmatpush1.msra.mxu0 0.0
    %3551 = vmatprep.subr.mxu0 0.0
    %3552 = vmatpush1.msra.mxu0 0.0
    %3553 = vmatprep.subr.mxu0 0.0
    %3554 = vmatpush1.msra.mxu0 0.0
    %3555 = vmatprep.subr.mxu0 0.0
    %3556 = vmatpush1.msra.mxu0 0.0
    %3557 = vmatprep.subr.mxu0 0.0
    %3558 = vmatpush1.msra.mxu0 0.0
    %3559 = vmatprep.subr.mxu0 0.0
    %3560 = vmatpush1.msra.mxu0 0.0
    %3561 = vmatprep.subr.mxu0 0.0
    %3562 = vmatpush1.msra.mxu0 0.0
    %3563 = vmatprep.subr.mxu0 0.0
    %3564 = vmatpush1.msra.mxu0 0.0
    %3565 = vmatprep.subr.mxu0 0.0
    %3566 = vmatpush1.msra.mxu0 0.0
    %3567 = vmatprep.subr.mxu0 0.0
    %3568 = vmatpush1.msra.mxu0 0.0
    %3569 = vmatprep.subr.mxu0 0.0
    %3570 = vmatpush1.msra.mxu0 0.0
    %3571 = vmatprep.subr.mxu0 0.0
    %3572 = vmatpush1.msra.mxu0 0.0
    %3573 = vmatprep.subr.mxu0 0.0
    %3574 = vmatpush1.msra.mxu0 0.0
    %3575 = vmatprep.subr.mxu0 0.0
    %3576 = vmatpush1.msra.mxu0 0.0
    %3577 = vmatprep.subr.mxu0 0.0
    %3578 = vmatpush1.msra.mxu0 0.0
    %3579 = vmatprep.subr.mxu0 0.0
    %3580 = vmatpush1.msra.mxu0 0.0
    %3581 = vmatprep.subr.mxu0 0.0
    %3582 = vmatpush1.msra.mxu0 0.0
    %3583 = vmatprep.subr.mxu0 0.0
    %3584 = vmatpush1.msra.mxu0 0.0
    %3585 = vmatprep.subr.mxu0 0.0
    %3586 = vmatpush1.msra.mxu0 0.0
    %3587 = vmatprep.subr.mxu0 0.0
    %3588 = vmatpush1.msra.mxu0 0.0
    %3589 = vmatprep.subr.mxu0 0.0
    %3590 = vmatpush1.msra.mxu0 0.0
    %3591 = vmatprep.subr.mxu0 0.0
    %3592 = vmatpush1.msra.mxu0 0.0
    %3593 = vmatprep.mubr.f32.mxu0 0.0
    %3594 = vmatmul.mubr.f32.gmra.mrb[0].mxu0 %v3367
    %v3595 = vpop.f32.mrb[0].mxu0
    %v3596 = vadd.f32 %v2790, %v3595
    %v3597 = vpop.f32.mrb[0].mxu0
    %3598 = vdwg.mxu0
    %v3600 = vrot.slane %v3596, 2
    %v3602 = vmul.f32 %v3448, %v3600
    %v3603 = vadd.f32 %v2607, %v3602
    %v3604 = vtanh.pop %v3603
    %v3605 = vsub.f32 1.0, %v3528
    %v3606 = vmul.f32 %v3605, %v3604
    %v3607 = vrot.slane %v3363, 6
    %v3609 = vmul.f32 %v3528, %v3607
    %v3610 = vadd.f32 %v3606, %v3609
    %3611 = vst.msk [vmem:[#allocation3] sm:$0xc0] %vm1368, %v3610
    %v3613 = vrot.slane %v3610, 6
    %v3614 = vsel %vm376, %v3613, 0
    %3616 = vmatprep.subr.mxu0 0.0
    %3617 = vmatpush1.msra.mxu0 %v2615
    %3618 = vmatprep.subr.mxu0 0.0
    %3619 = vmatpush1.msra.mxu0 %v2616
    %3620 = vmatprep.subr.mxu0 0.0
    %3621 = vmatpush1.msra.mxu0 %v2628
    %3622 = vmatprep.subr.mxu0 0.0
    %3623 = vmatpush1.msra.mxu0 0.0
    %3624 = vmatprep.subr.mxu0 0.0
    %3625 = vmatpush1.msra.mxu0 0.0
    %3626 = vmatprep.subr.mxu0 0.0
    %3627 = vmatpush1.msra.mxu0 0.0
    %3628 = vmatprep.subr.mxu0 0.0
    %3629 = vmatpush1.msra.mxu0 0.0
    %3630 = vmatprep.subr.mxu0 0.0
    %3631 = vmatpush1.msra.mxu0 0.0
    %3632 = vmatprep.subr.mxu0 0.0
    %3633 = vmatpush1.msra.mxu0 0.0
    %3634 = vmatprep.subr.mxu0 0.0
    %3635 = vmatpush1.msra.mxu0 0.0
    %3636 = vmatprep.subr.mxu0 0.0
    %3637 = vmatpush1.msra.mxu0 0.0
    %3638 = vmatprep.subr.mxu0 0.0
    %3639 = vmatpush1.msra.mxu0 0.0
    %3640 = vmatprep.subr.mxu0 0.0
    %3641 = vmatpush1.msra.mxu0 0.0
    %3642 = vmatprep.subr.mxu0 0.0
    %3643 = vmatpush1.msra.mxu0 0.0
    %3644 = vmatprep.subr.mxu0 0.0
    %3645 = vmatpush1.msra.mxu0 0.0
    %3646 = vmatprep.subr.mxu0 0.0
    %3647 = vmatpush1.msra.mxu0 0.0
    %3648 = vmatprep.subr.mxu0 0.0
    %3649 = vmatpush1.msra.mxu0 0.0
    %3650 = vmatprep.subr.mxu0 0.0
    %3651 = vmatpush1.msra.mxu0 0.0
    %3652 = vmatprep.subr.mxu0 0.0
    %3653 = vmatpush1.msra.mxu0 0.0
    %3654 = vmatprep.subr.mxu0 0.0
    %3655 = vmatpush1.msra.mxu0 0.0
    %3656 = vmatprep.subr.mxu0 0.0
    %3657 = vmatpush1.msra.mxu0 0.0
    %3658 = vmatprep.subr.mxu0 0.0
    %3659 = vmatpush1.msra.mxu0 0.0
    %3660 = vmatprep.subr.mxu0 0.0
    %3661 = vmatpush1.msra.mxu0 0.0
    %3662 = vmatprep.subr.mxu0 0.0
    %3663 = vmatpush1.msra.mxu0 0.0
    %3664 = vmatprep.subr.mxu0 0.0
    %3665 = vmatpush1.msra.mxu0 0.0
    %3666 = vmatprep.subr.mxu0 0.0
    %3667 = vmatpush1.msra.mxu0 0.0
    %3668 = vmatprep.subr.mxu0 0.0
    %3669 = vmatpush1.msra.mxu0 0.0
    %3670 = vmatprep.subr.mxu0 0.0
    %3671 = vmatpush1.msra.mxu0 0.0
    %3672 = vmatprep.subr.mxu0 0.0
    %3673 = vmatpush1.msra.mxu0 0.0
    %3674 = vmatprep.subr.mxu0 0.0
    %3675 = vmatpush1.msra.mxu0 0.0
    %3676 = vmatprep.subr.mxu0 0.0
    %3677 = vmatpush1.msra.mxu0 0.0
    %3678 = vmatprep.subr.mxu0 0.0
    %3679 = vmatpush1.msra.mxu0 0.0
    %3680 = vmatprep.mubr.f32.mxu0 0.0
    %3681 = vmatmul.mubr.f32.gmra.mrb[0].mxu0 %v3614
    %v3682 = vpop.f32.mrb[0].mxu0
    %v3683 = vadd.f32 0.0, %v3682
    %v3684 = vpop.f32.mrb[0].mxu0
    %3685 = vdwg.mxu0
    %v3686 = vadd.f32 %v2438, %v3683
    %v3687 = vsub.f32 0.0, %v3686
    %v3688 = vmul.f32 %v3687, 1.442695
    %v3689 = vpow.pop %v3688
    %v3690 = vadd.f32 %v3689, 1.0
    %v3691 = vrcp.pop %v3690
    %v3692 = vmul.f32 1.0, %v3691
    %3693 = vmatprep.subr.mxu0 0.0
    %3694 = vmatpush1.msra.mxu0 %v2619
    %3695 = vmatprep.subr.mxu0 0.0
    %3696 = vmatpush1.msra.mxu0 %v2620
    %3697 = vmatprep.subr.mxu0 0.0
    %3698 = vmatpush1.msra.mxu0 %v2708
    %3699 = vmatprep.subr.mxu0 0.0
    %3700 = vmatpush1.msra.mxu0 0.0
    %3701 = vmatprep.subr.mxu0 0.0
    %3702 = vmatpush1.msra.mxu0 0.0
    %3703 = vmatprep.subr.mxu0 0.0
    %3704 = vmatpush1.msra.mxu0 0.0
    %3705 = vmatprep.subr.mxu0 0.0
    %3706 = vmatpush1.msra.mxu0 0.0
    %3707 = vmatprep.subr.mxu0 0.0
    %3708 = vmatpush1.msra.mxu0 0.0
    %3709 = vmatprep.subr.mxu0 0.0
    %3710 = vmatpush1.msra.mxu0 0.0
    %3711 = vmatprep.subr.mxu0 0.0
    %3712 = vmatpush1.msra.mxu0 0.0
    %3713 = vmatprep.subr.mxu0 0.0
    %3714 = vmatpush1.msra.mxu0 0.0
    %3715 = vmatprep.subr.mxu0 0.0
    %3716 = vmatpush1.msra.mxu0 0.0
    %3717 = vmatprep.subr.mxu0 0.0
    %3718 = vmatpush1.msra.mxu0 0.0
    %3719 = vmatprep.subr.mxu0 0.0
    %3720 = vmatpush1.msra.mxu0 0.0
    %3721 = vmatprep.subr.mxu0 0.0
    %3722 = vmatpush1.msra.mxu0 0.0
    %3723 = vmatprep.subr.mxu0 0.0
    %3724 = vmatpush1.msra.mxu0 0.0
    %3725 = vmatprep.subr.mxu0 0.0
    %3726 = vmatpush1.msra.mxu0 0.0
    %3727 = vmatprep.subr.mxu0 0.0
    %3728 = vmatpush1.msra.mxu0 0.0
    %3729 = vmatprep.subr.mxu0 0.0
    %3730 = vmatpush1.msra.mxu0 0.0
    %3731 = vmatprep.subr.mxu0 0.0
    %3732 = vmatpush1.msra.mxu0 0.0
    %3733 = vmatprep.subr.mxu0 0.0
    %3734 = vmatpush1.msra.mxu0 0.0
    %3735 = vmatprep.subr.mxu0 0.0
    %3736 = vmatpush1.msra.mxu0 0.0
    %3737 = vmatprep.subr.mxu0 0.0
    %3738 = vmatpush1.msra.mxu0 0.0
    %3739 = vmatprep.subr.mxu0 0.0
    %3740 = vmatpush1.msra.mxu0 0.0
    %3741 = vmatprep.subr.mxu0 0.0
    %3742 = vmatpush1.msra.mxu0 0.0
    %3743 = vmatprep.subr.mxu0 0.0
    %3744 = vmatpush1.msra.mxu0 0.0
    %3745 = vmatprep.subr.mxu0 0.0
    %3746 = vmatpush1.msra.mxu0 0.0
    %3747 = vmatprep.subr.mxu0 0.0
    %3748 = vmatpush1.msra.mxu0 0.0
    %3749 = vmatprep.subr.mxu0 0.0
    %3750 = vmatpush1.msra.mxu0 0.0
    %3751 = vmatprep.subr.mxu0 0.0
    %3752 = vmatpush1.msra.mxu0 0.0
    %3753 = vmatprep.subr.mxu0 0.0
    %3754 = vmatpush1.msra.mxu0 0.0
    %3755 = vmatprep.subr.mxu0 0.0
    %3756 = vmatpush1.msra.mxu0 0.0
    %3757 = vmatprep.mubr.f32.mxu0 0.0
    %3758 = vmatmul.mubr.f32.gmra.mrb[0].mxu0 %v3614
    %v3759 = vpop.f32.mrb[0].mxu0
    %v3760 = vadd.f32 0.0, %v3759
    %v3761 = vpop.f32.mrb[0].mxu0
    %3762 = vdwg.mxu0
    %v3763 = vadd.f32 %v2525, %v3760
    %v3764 = vsub.f32 0.0, %v3763
    %v3765 = vmul.f32 %v3764, 1.442695
    %v3766 = vpow.pop %v3765
    %v3767 = vadd.f32 %v3766, 1.0
    %v3768 = vrcp.pop %v3767
    %v3769 = vmul.f32 1.0, %v3768
    %3770 = vmatprep.subr.mxu0 0.0
    %3771 = vmatpush1.msra.mxu0 %v2623
    %3772 = vmatprep.subr.mxu0 0.0
    %3773 = vmatpush1.msra.mxu0 %v2624
    %3774 = vmatprep.subr.mxu0 0.0
    %3775 = vmatpush1.msra.mxu0 %v2792
    %3776 = vmatprep.subr.mxu0 0.0
    %3777 = vmatpush1.msra.mxu0 0.0
    %3778 = vmatprep.subr.mxu0 0.0
    %3779 = vmatpush1.msra.mxu0 0.0
    %3780 = vmatprep.subr.mxu0 0.0
    %3781 = vmatpush1.msra.mxu0 0.0
    %3782 = vmatprep.subr.mxu0 0.0
    %3783 = vmatpush1.msra.mxu0 0.0
    %3784 = vmatprep.subr.mxu0 0.0
    %3785 = vmatpush1.msra.mxu0 0.0
    %3786 = vmatprep.subr.mxu0 0.0
    %3787 = vmatpush1.msra.mxu0 0.0
    %3788 = vmatprep.subr.mxu0 0.0
    %3789 = vmatpush1.msra.mxu0 0.0
    %3790 = vmatprep.subr.mxu0 0.0
    %3791 = vmatpush1.msra.mxu0 0.0
    %3792 = vmatprep.subr.mxu0 0.0
    %3793 = vmatpush1.msra.mxu0 0.0
    %3794 = vmatprep.subr.mxu0 0.0
    %3795 = vmatpush1.msra.mxu0 0.0
    %3796 = vmatprep.subr.mxu0 0.0
    %3797 = vmatpush1.msra.mxu0 0.0
    %3798 = vmatprep.subr.mxu0 0.0
    %3799 = vmatpush1.msra.mxu0 0.0
    %3800 = vmatprep.subr.mxu0 0.0
    %3801 = vmatpush1.msra.mxu0 0.0
    %3802 = vmatprep.subr.mxu0 0.0
    %3803 = vmatpush1.msra.mxu0 0.0
    %3804 = vmatprep.subr.mxu0 0.0
    %3805 = vmatpush1.msra.mxu0 0.0
    %3806 = vmatprep.subr.mxu0 0.0
    %3807 = vmatpush1.msra.mxu0 0.0
    %3808 = vmatprep.subr.mxu0 0.0
    %3809 = vmatpush1.msra.mxu0 0.0
    %3810 = vmatprep.subr.mxu0 0.0
    %3811 = vmatpush1.msra.mxu0 0.0
    %3812 = vmatprep.subr.mxu0 0.0
    %3813 = vmatpush1.msra.mxu0 0.0
    %3814 = vmatprep.subr.mxu0 0.0
    %3815 = vmatpush1.msra.mxu0 0.0
    %3816 = vmatprep.subr.mxu0 0.0
    %3817 = vmatpush1.msra.mxu0 0.0
    %3818 = vmatprep.subr.mxu0 0.0
    %3819 = vmatpush1.msra.mxu0 0.0
    %3820 = vmatprep.subr.mxu0 0.0
    %3821 = vmatpush1.msra.mxu0 0.0
    %3822 = vmatprep.subr.mxu0 0.0
    %3823 = vmatpush1.msra.mxu0 0.0
    %3824 = vmatprep.subr.mxu0 0.0
    %3825 = vmatpush1.msra.mxu0 0.0
    %3826 = vmatprep.subr.mxu0 0.0
    %3827 = vmatpush1.msra.mxu0 0.0
    %3828 = vmatprep.subr.mxu0 0.0
    %3829 = vmatpush1.msra.mxu0 0.0
    %3830 = vmatprep.subr.mxu0 0.0
    %3831 = vmatpush1.msra.mxu0 0.0
    %3832 = vmatprep.subr.mxu0 0.0
    %3833 = vmatpush1.msra.mxu0 0.0
    %3834 = vmatprep.mubr.f32.mxu0 0.0
    %3835 = vmatmul.mubr.f32.gmra.mrb[0].mxu0 %v3614
    %v3836 = vpop.f32.mrb[0].mxu0
    %v3837 = vadd.f32 %v2790, %v3836
    %v3838 = vpop.f32.mrb[0].mxu0
    %3839 = vdwg.mxu0
    %v3840 = vmul.f32 %v3692, %v3837
    %v3841 = vadd.f32 %v2612, %v3840
    %v3842 = vtanh.pop %v3841
    %v3843 = vsub.f32 1.0, %v3769
    %v3844 = vmul.f32 %v3843, %v3842
    %v3846 = vmul.f32 %v3769, %v3613
    %v3847 = vadd.f32 %v3844, %v3846
    %3848 = vst.msk [vmem:[#allocation3 + $0x8] sm:$0x3] %vm625, %v3847
    %v3850 = vsel %vm376, %v3847, 0
    %3852 = vmatprep.subr.mxu0 0.0
    %3853 = vmatpush1.msra.mxu0 %v2615
    %3854 = vmatprep.subr.mxu0 0.0
    %3855 = vmatpush1.msra.mxu0 %v2616
    %3856 = vmatprep.subr.mxu0 0.0
    %3857 = vmatpush1.msra.mxu0 %v2628
    %3858 = vmatprep.subr.mxu0 0.0
    %3859 = vmatpush1.msra.mxu0 0.0
    %3860 = vmatprep.subr.mxu0 0.0
    %3861 = vmatpush1.msra.mxu0 0.0
    %3862 = vmatprep.subr.mxu0 0.0
    %3863 = vmatpush1.msra.mxu0 0.0
    %3864 = vmatprep.subr.mxu0 0.0
    %3865 = vmatpush1.msra.mxu0 0.0
    %3866 = vmatprep.subr.mxu0 0.0
    %3867 = vmatpush1.msra.mxu0 0.0
    %3868 = vmatprep.subr.mxu0 0.0
    %3869 = vmatpush1.msra.mxu0 0.0
    %3870 = vmatprep.subr.mxu0 0.0
    %3871 = vmatpush1.msra.mxu0 0.0
    %3872 = vmatprep.subr.mxu0 0.0
    %3873 = vmatpush1.msra.mxu0 0.0
    %3874 = vmatprep.subr.mxu0 0.0
    %3875 = vmatpush1.msra.mxu0 0.0
    %3876 = vmatprep.subr.mxu0 0.0
    %3877 = vmatpush1.msra.mxu0 0.0
    %3878 = vmatprep.subr.mxu0 0.0
    %3879 = vmatpush1.msra.mxu0 0.0
    %3880 = vmatprep.subr.mxu0 0.0
    %3881 = vmatpush1.msra.mxu0 0.0
    %3882 = vmatprep.subr.mxu0 0.0
    %3883 = vmatpush1.msra.mxu0 0.0
    %3884 = vmatprep.subr.mxu0 0.0
    %3885 = vmatpush1.msra.mxu0 0.0
    %3886 = vmatprep.subr.mxu0 0.0
    %3887 = vmatpush1.msra.mxu0 0.0
    %3888 = vmatprep.subr.mxu0 0.0
    %3889 = vmatpush1.msra.mxu0 0.0
    %3890 = vmatprep.subr.mxu0 0.0
    %3891 = vmatpush1.msra.mxu0 0.0
    %3892 = vmatprep.subr.mxu0 0.0
    %3893 = vmatpush1.msra.mxu0 0.0
    %3894 = vmatprep.subr.mxu0 0.0
    %3895 = vmatpush1.msra.mxu0 0.0
    %3896 = vmatprep.subr.mxu0 0.0
    %3897 = vmatpush1.msra.mxu0 0.0
    %3898 = vmatprep.subr.mxu0 0.0
    %3899 = vmatpush1.msra.mxu0 0.0
    %3900 = vmatprep.subr.mxu0 0.0
    %3901 = vmatpush1.msra.mxu0 0.0
    %3902 = vmatprep.subr.mxu0 0.0
    %3903 = vmatpush1.msra.mxu0 0.0
    %3904 = vmatprep.subr.mxu0 0.0
    %3905 = vmatpush1.msra.mxu0 0.0
    %3906 = vmatprep.subr.mxu0 0.0
    %3907 = vmatpush1.msra.mxu0 0.0
    %3908 = vmatprep.subr.mxu0 0.0
    %3909 = vmatpush1.msra.mxu0 0.0
    %3910 = vmatprep.subr.mxu0 0.0
    %3911 = vmatpush1.msra.mxu0 0.0
    %3912 = vmatprep.subr.mxu0 0.0
    %3913 = vmatpush1.msra.mxu0 0.0
    %3914 = vmatprep.subr.mxu0 0.0
    %3915 = vmatpush1.msra.mxu0 0.0
    %3916 = vmatprep.mubr.f32.mxu0 0.0
    %3917 = vmatmul.mubr.f32.gmra.mrb[0].mxu0 %v3850
    %v3918 = vpop.f32.mrb[0].mxu0
    %v3919 = vadd.f32 0.0, %v3918
    %v3920 = vpop.f32.mrb[0].mxu0
    %3921 = vdwg.mxu0
    %v3923 = vrot.slane %v3919, 6
    %v3925 = vadd.f32 %v2438, %v3923
    %v3926 = vsub.f32 0.0, %v3925
    %v3927 = vmul.f32 %v3926, 1.442695
    %v3928 = vpow.pop %v3927
    %v3929 = vadd.f32 %v3928, 1.0
    %v3930 = vrcp.pop %v3929
    %v3931 = vmul.f32 1.0, %v3930
    %3932 = vmatprep.subr.mxu0 0.0
    %3933 = vmatpush1.msra.mxu0 %v2619
    %3934 = vmatprep.subr.mxu0 0.0
    %3935 = vmatpush1.msra.mxu0 %v2620
    %3936 = vmatprep.subr.mxu0 0.0
    %3937 = vmatpush1.msra.mxu0 %v2708
    %3938 = vmatprep.subr.mxu0 0.0
    %3939 = vmatpush1.msra.mxu0 0.0
    %3940 = vmatprep.subr.mxu0 0.0
    %3941 = vmatpush1.msra.mxu0 0.0
    %3942 = vmatprep.subr.mxu0 0.0
    %3943 = vmatpush1.msra.mxu0 0.0
    %3944 = vmatprep.subr.mxu0 0.0
    %3945 = vmatpush1.msra.mxu0 0.0
    %3946 = vmatprep.subr.mxu0 0.0
    %3947 = vmatpush1.msra.mxu0 0.0
    %3948 = vmatprep.subr.mxu0 0.0
    %3949 = vmatpush1.msra.mxu0 0.0
    %3950 = vmatprep.subr.mxu0 0.0
    %3951 = vmatpush1.msra.mxu0 0.0
    %3952 = vmatprep.subr.mxu0 0.0
    %3953 = vmatpush1.msra.mxu0 0.0
    %3954 = vmatprep.subr.mxu0 0.0
    %3955 = vmatpush1.msra.mxu0 0.0
    %3956 = vmatprep.subr.mxu0 0.0
    %3957 = vmatpush1.msra.mxu0 0.0
    %3958 = vmatprep.subr.mxu0 0.0
    %3959 = vmatpush1.msra.mxu0 0.0
    %3960 = vmatprep.subr.mxu0 0.0
    %3961 = vmatpush1.msra.mxu0 0.0
    %3962 = vmatprep.subr.mxu0 0.0
    %3963 = vmatpush1.msra.mxu0 0.0
    %3964 = vmatprep.subr.mxu0 0.0
    %3965 = vmatpush1.msra.mxu0 0.0
    %3966 = vmatprep.subr.mxu0 0.0
    %3967 = vmatpush1.msra.mxu0 0.0
    %3968 = vmatprep.subr.mxu0 0.0
    %3969 = vmatpush1.msra.mxu0 0.0
    %3970 = vmatprep.subr.mxu0 0.0
    %3971 = vmatpush1.msra.mxu0 0.0
    %3972 = vmatprep.subr.mxu0 0.0
    %3973 = vmatpush1.msra.mxu0 0.0
    %3974 = vmatprep.subr.mxu0 0.0
    %3975 = vmatpush1.msra.mxu0 0.0
    %3976 = vmatprep.subr.mxu0 0.0
    %3977 = vmatpush1.msra.mxu0 0.0
    %3978 = vmatprep.subr.mxu0 0.0
    %3979 = vmatpush1.msra.mxu0 0.0
    %3980 = vmatprep.subr.mxu0 0.0
    %3981 = vmatpush1.msra.mxu0 0.0
    %3982 = vmatprep.subr.mxu0 0.0
    %3983 = vmatpush1.msra.mxu0 0.0
    %3984 = vmatprep.subr.mxu0 0.0
    %3985 = vmatpush1.msra.mxu0 0.0
    %3986 = vmatprep.subr.mxu0 0.0
    %3987 = vmatpush1.msra.mxu0 0.0
    %3988 = vmatprep.subr.mxu0 0.0
    %3989 = vmatpush1.msra.mxu0 0.0
    %3990 = vmatprep.subr.mxu0 0.0
    %3991 = vmatpush1.msra.mxu0 0.0
    %3992 = vmatprep.subr.mxu0 0.0
    %3993 = vmatpush1.msra.mxu0 0.0
    %3994 = vmatprep.subr.mxu0 0.0
    %3995 = vmatpush1.msra.mxu0 0.0
    %3996 = vmatprep.mubr.f32.mxu0 0.0
    %3997 = vmatmul.mubr.f32.gmra.mrb[0].mxu0 %v3850
    %v3998 = vpop.f32.mrb[0].mxu0
    %v3999 = vadd.f32 0.0, %v3998
    %v4000 = vpop.f32.mrb[0].mxu0
    %4001 = vdwg.mxu0
    %v4003 = vrot.slane %v3999, 6
    %v4005 = vadd.f32 %v2525, %v4003
    %v4006 = vsub.f32 0.0, %v4005
    %v4007 = vmul.f32 %v4006, 1.442695
    %v4008 = vpow.pop %v4007
    %v4009 = vadd.f32 %v4008, 1.0
    %v4010 = vrcp.pop %v4009
    %v4011 = vmul.f32 1.0, %v4010
    %4012 = vmatprep.subr.mxu0 0.0
    %4013 = vmatpush1.msra.mxu0 %v2623
    %4014 = vmatprep.subr.mxu0 0.0
    %4015 = vmatpush1.msra.mxu0 %v2624
    %4016 = vmatprep.subr.mxu0 0.0
    %4017 = vmatpush1.msra.mxu0 %v2792
    %4018 = vmatprep.subr.mxu0 0.0
    %4019 = vmatpush1.msra.mxu0 0.0
    %4020 = vmatprep.subr.mxu0 0.0
    %4021 = vmatpush1.msra.mxu0 0.0
    %4022 = vmatprep.subr.mxu0 0.0
    %4023 = vmatpush1.msra.mxu0 0.0
    %4024 = vmatprep.subr.mxu0 0.0
    %4025 = vmatpush1.msra.mxu0 0.0
    %4026 = vmatprep.subr.mxu0 0.0
    %4027 = vmatpush1.msra.mxu0 0.0
    %4028 = vmatprep.subr.mxu0 0.0
    %4029 = vmatpush1.msra.mxu0 0.0
    %4030 = vmatprep.subr.mxu0 0.0
    %4031 = vmatpush1.msra.mxu0 0.0
    %4032 = vmatprep.subr.mxu0 0.0
    %4033 = vmatpush1.msra.mxu0 0.0
    %4034 = vmatprep.subr.mxu0 0.0
    %4035 = vmatpush1.msra.mxu0 0.0
    %4036 = vmatprep.subr.mxu0 0.0
    %4037 = vmatpush1.msra.mxu0 0.0
    %4038 = vmatprep.subr.mxu0 0.0
    %4039 = vmatpush1.msra.mxu0 0.0
    %4040 = vmatprep.subr.mxu0 0.0
    %4041 = vmatpush1.msra.mxu0 0.0
    %4042 = vmatprep.subr.mxu0 0.0
    %4043 = vmatpush1.msra.mxu0 0.0
    %4044 = vmatprep.subr.mxu0 0.0
    %4045 = vmatpush1.msra.mxu0 0.0
    %4046 = vmatprep.subr.mxu0 0.0
    %4047 = vmatpush1.msra.mxu0 0.0
    %4048 = vmatprep.subr.mxu0 0.0
    %4049 = vmatpush1.msra.mxu0 0.0
    %4050 = vmatprep.subr.mxu0 0.0
    %4051 = vmatpush1.msra.mxu0 0.0
    %4052 = vmatprep.subr.mxu0 0.0
    %4053 = vmatpush1.msra.mxu0 0.0
    %4054 = vmatprep.subr.mxu0 0.0
    %4055 = vmatpush1.msra.mxu0 0.0
    %4056 = vmatprep.subr.mxu0 0.0
    %4057 = vmatpush1.msra.mxu0 0.0
    %4058 = vmatprep.subr.mxu0 0.0
    %4059 = vmatpush1.msra.mxu0 0.0
    %4060 = vmatprep.subr.mxu0 0.0
    %4061 = vmatpush1.msra.mxu0 0.0
    %4062 = vmatprep.subr.mxu0 0.0
    %4063 = vmatpush1.msra.mxu0 0.0
    %4064 = vmatprep.subr.mxu0 0.0
    %4065 = vmatpush1.msra.mxu0 0.0
    %4066 = vmatprep.subr.mxu0 0.0
    %4067 = vmatpush1.msra.mxu0 0.0
    %4068 = vmatprep.subr.mxu0 0.0
    %4069 = vmatpush1.msra.mxu0 0.0
    %4070 = vmatprep.subr.mxu0 0.0
    %4071 = vmatpush1.msra.mxu0 0.0
    %4072 = vmatprep.subr.mxu0 0.0
    %4073 = vmatpush1.msra.mxu0 0.0
    %4074 = vmatprep.subr.mxu0 0.0
    %4075 = vmatpush1.msra.mxu0 0.0
    %4076 = vmatprep.mubr.f32.mxu0 0.0
    %4077 = vmatmul.mubr.f32.gmra.mrb[0].mxu0 %v3850
    %v4078 = vpop.f32.mrb[0].mxu0
    %v4079 = vadd.f32 %v2790, %v4078
    %v4080 = vpop.f32.mrb[0].mxu0
    %4081 = vdwg.mxu0
    %v4083 = vrot.slane %v4079, 6
    %v4085 = vmul.f32 %v3931, %v4083
    %v4086 = vadd.f32 %v2612, %v4085
    %v4087 = vtanh.pop %v4086
    %v4088 = vsub.f32 1.0, %v4011
    %v4089 = vmul.f32 %v4088, %v4087
    %v4090 = vrot.slane %v3847, 6
    %v4092 = vmul.f32 %v4011, %v4090
    %v4093 = vadd.f32 %v4089, %v4092
    %4094 = vst.msk [vmem:[#allocation3 + $0x8] sm:$0xc] %vm872, %v4093
    %v4096 = vrot.slane %v4093, 2
    %v4097 = vsel %vm376, %v4096, 0
    %4099 = vmatprep.subr.mxu0 0.0
    %4100 = vmatpush1.msra.mxu0 %v2615
    %4101 = vmatprep.subr.mxu0 0.0
    %4102 = vmatpush1.msra.mxu0 %v2616
    %4103 = vmatprep.subr.mxu0 0.0
    %4104 = vmatpush1.msra.mxu0 %v2628
    %4105 = vmatprep.subr.mxu0 0.0
    %4106 = vmatpush1.msra.mxu0 0.0
    %4107 = vmatprep.subr.mxu0 0.0
    %4108 = vmatpush1.msra.mxu0 0.0
    %4109 = vmatprep.subr.mxu0 0.0
    %4110 = vmatpush1.msra.mxu0 0.0
    %4111 = vmatprep.subr.mxu0 0.0
    %4112 = vmatpush1.msra.mxu0 0.0
    %4113 = vmatprep.subr.mxu0 0.0
    %4114 = vmatpush1.msra.mxu0 0.0
    %4115 = vmatprep.subr.mxu0 0.0
    %4116 = vmatpush1.msra.mxu0 0.0
    %4117 = vmatprep.subr.mxu0 0.0
    %4118 = vmatpush1.msra.mxu0 0.0
    %4119 = vmatprep.subr.mxu0 0.0
    %4120 = vmatpush1.msra.mxu0 0.0
    %4121 = vmatprep.subr.mxu0 0.0
    %4122 = vmatpush1.msra.mxu0 0.0
    %4123 = vmatprep.subr.mxu0 0.0
    %4124 = vmatpush1.msra.mxu0 0.0
    %4125 = vmatprep.subr.mxu0 0.0
    %4126 = vmatpush1.msra.mxu0 0.0
    %4127 = vmatprep.subr.mxu0 0.0
    %4128 = vmatpush1.msra.mxu0 0.0
    %4129 = vmatprep.subr.mxu0 0.0
    %4130 = vmatpush1.msra.mxu0 0.0
    %4131 = vmatprep.subr.mxu0 0.0
    %4132 = vmatpush1.msra.mxu0 0.0
    %4133 = vmatprep.subr.mxu0 0.0
    %4134 = vmatpush1.msra.mxu0 0.0
    %4135 = vmatprep.subr.mxu0 0.0
    %4136 = vmatpush1.msra.mxu0 0.0
    %4137 = vmatprep.subr.mxu0 0.0
    %4138 = vmatpush1.msra.mxu0 0.0
    %4139 = vmatprep.subr.mxu0 0.0
    %4140 = vmatpush1.msra.mxu0 0.0
    %4141 = vmatprep.subr.mxu0 0.0
    %4142 = vmatpush1.msra.mxu0 0.0
    %4143 = vmatprep.subr.mxu0 0.0
    %4144 = vmatpush1.msra.mxu0 0.0
    %4145 = vmatprep.subr.mxu0 0.0
    %4146 = vmatpush1.msra.mxu0 0.0
    %4147 = vmatprep.subr.mxu0 0.0
    %4148 = vmatpush1.msra.mxu0 0.0
    %4149 = vmatprep.subr.mxu0 0.0
    %4150 = vmatpush1.msra.mxu0 0.0
    %4151 = vmatprep.subr.mxu0 0.0
    %4152 = vmatpush1.msra.mxu0 0.0
    %4153 = vmatprep.subr.mxu0 0.0
    %4154 = vmatpush1.msra.mxu0 0.0
    %4155 = vmatprep.subr.mxu0 0.0
    %4156 = vmatpush1.msra.mxu0 0.0
    %4157 = vmatprep.subr.mxu0 0.0
    %4158 = vmatpush1.msra.mxu0 0.0
    %4159 = vmatprep.subr.mxu0 0.0
    %4160 = vmatpush1.msra.mxu0 0.0
    %4161 = vmatprep.subr.mxu0 0.0
    %4162 = vmatpush1.msra.mxu0 0.0
    %4163 = vmatprep.mubr.f32.mxu0 0.0
    %4164 = vmatmul.mubr.f32.gmra.mrb[0].mxu0 %v4097
    %v4165 = vpop.f32.mrb[0].mxu0
    %v4166 = vadd.f32 0.0, %v4165
    %v4167 = vpop.f32.mrb[0].mxu0
    %4168 = vdwg.mxu0
    %v4170 = vrot.slane %v4166, 4
    %v4172 = vadd.f32 %v2438, %v4170
    %v4173 = vsub.f32 0.0, %v4172
    %v4174 = vmul.f32 %v4173, 1.442695
    %v4175 = vpow.pop %v4174
    %v4176 = vadd.f32 %v4175, 1.0
    %v4177 = vrcp.pop %v4176
    %v4178 = vmul.f32 1.0, %v4177
    %4179 = vmatprep.subr.mxu0 0.0
    %4180 = vmatpush1.msra.mxu0 %v2619
    %4181 = vmatprep.subr.mxu0 0.0
    %4182 = vmatpush1.msra.mxu0 %v2620
    %4183 = vmatprep.subr.mxu0 0.0
    %4184 = vmatpush1.msra.mxu0 %v2708
    %4185 = vmatprep.subr.mxu0 0.0
    %4186 = vmatpush1.msra.mxu0 0.0
    %4187 = vmatprep.subr.mxu0 0.0
    %4188 = vmatpush1.msra.mxu0 0.0
    %4189 = vmatprep.subr.mxu0 0.0
    %4190 = vmatpush1.msra.mxu0 0.0
    %4191 = vmatprep.subr.mxu0 0.0
    %4192 = vmatpush1.msra.mxu0 0.0
    %4193 = vmatprep.subr.mxu0 0.0
    %4194 = vmatpush1.msra.mxu0 0.0
    %4195 = vmatprep.subr.mxu0 0.0
    %4196 = vmatpush1.msra.mxu0 0.0
    %4197 = vmatprep.subr.mxu0 0.0
    %4198 = vmatpush1.msra.mxu0 0.0
    %4199 = vmatprep.subr.mxu0 0.0
    %4200 = vmatpush1.msra.mxu0 0.0
    %4201 = vmatprep.subr.mxu0 0.0
    %4202 = vmatpush1.msra.mxu0 0.0
    %4203 = vmatprep.subr.mxu0 0.0
    %4204 = vmatpush1.msra.mxu0 0.0
    %4205 = vmatprep.subr.mxu0 0.0
    %4206 = vmatpush1.msra.mxu0 0.0
    %4207 = vmatprep.subr.mxu0 0.0
    %4208 = vmatpush1.msra.mxu0 0.0
    %4209 = vmatprep.subr.mxu0 0.0
    %4210 = vmatpush1.msra.mxu0 0.0
    %4211 = vmatprep.subr.mxu0 0.0
    %4212 = vmatpush1.msra.mxu0 0.0
    %4213 = vmatprep.subr.mxu0 0.0
    %4214 = vmatpush1.msra.mxu0 0.0
    %4215 = vmatprep.subr.mxu0 0.0
    %4216 = vmatpush1.msra.mxu0 0.0
    %4217 = vmatprep.subr.mxu0 0.0
    %4218 = vmatpush1.msra.mxu0 0.0
    %4219 = vmatprep.subr.mxu0 0.0
    %4220 = vmatpush1.msra.mxu0 0.0
    %4221 = vmatprep.subr.mxu0 0.0
    %4222 = vmatpush1.msra.mxu0 0.0
    %4223 = vmatprep.subr.mxu0 0.0
    %4224 = vmatpush1.msra.mxu0 0.0
    %4225 = vmatprep.subr.mxu0 0.0
    %4226 = vmatpush1.msra.mxu0 0.0
    %4227 = vmatprep.subr.mxu0 0.0
    %4228 = vmatpush1.msra.mxu0 0.0
    %4229 = vmatprep.subr.mxu0 0.0
    %4230 = vmatpush1.msra.mxu0 0.0
    %4231 = vmatprep.subr.mxu0 0.0
    %4232 = vmatpush1.msra.mxu0 0.0
    %4233 = vmatprep.subr.mxu0 0.0
    %4234 = vmatpush1.msra.mxu0 0.0
    %4235 = vmatprep.subr.mxu0 0.0
    %4236 = vmatpush1.msra.mxu0 0.0
    %4237 = vmatprep.subr.mxu0 0.0
    %4238 = vmatpush1.msra.mxu0 0.0
    %4239 = vmatprep.subr.mxu0 0.0
    %4240 = vmatpush1.msra.mxu0 0.0
    %4241 = vmatprep.subr.mxu0 0.0
    %4242 = vmatpush1.msra.mxu0 0.0
    %4243 = vmatprep.mubr.f32.mxu0 0.0
    %4244 = vmatmul.mubr.f32.gmra.mrb[0].mxu0 %v4097
    %v4245 = vpop.f32.mrb[0].mxu0
    %v4246 = vadd.f32 0.0, %v4245
    %v4247 = vpop.f32.mrb[0].mxu0
    %4248 = vdwg.mxu0
    %v4250 = vrot.slane %v4246, 4
    %v4252 = vadd.f32 %v2525, %v4250
    %v4253 = vsub.f32 0.0, %v4252
    %v4254 = vmul.f32 %v4253, 1.442695
    %v4255 = vpow.pop %v4254
    %v4256 = vadd.f32 %v4255, 1.0
    %v4257 = vrcp.pop %v4256
    %v4258 = vmul.f32 1.0, %v4257
    %4259 = vmatprep.subr.mxu0 0.0
    %4260 = vmatpush1.msra.mxu0 %v2623
    %4261 = vmatprep.subr.mxu0 0.0
    %4262 = vmatpush1.msra.mxu0 %v2624
    %4263 = vmatprep.subr.mxu0 0.0
    %4264 = vmatpush1.msra.mxu0 %v2792
    %4265 = vmatprep.subr.mxu0 0.0
    %4266 = vmatpush1.msra.mxu0 0.0
    %4267 = vmatprep.subr.mxu0 0.0
    %4268 = vmatpush1.msra.mxu0 0.0
    %4269 = vmatprep.subr.mxu0 0.0
    %4270 = vmatpush1.msra.mxu0 0.0
    %4271 = vmatprep.subr.mxu0 0.0
    %4272 = vmatpush1.msra.mxu0 0.0
    %4273 = vmatprep.subr.mxu0 0.0
    %4274 = vmatpush1.msra.mxu0 0.0
    %4275 = vmatprep.subr.mxu0 0.0
    %4276 = vmatpush1.msra.mxu0 0.0
    %4277 = vmatprep.subr.mxu0 0.0
    %4278 = vmatpush1.msra.mxu0 0.0
    %4279 = vmatprep.subr.mxu0 0.0
    %4280 = vmatpush1.msra.mxu0 0.0
    %4281 = vmatprep.subr.mxu0 0.0
    %4282 = vmatpush1.msra.mxu0 0.0
    %4283 = vmatprep.subr.mxu0 0.0
    %4284 = vmatpush1.msra.mxu0 0.0
    %4285 = vmatprep.subr.mxu0 0.0
    %4286 = vmatpush1.msra.mxu0 0.0
    %4287 = vmatprep.subr.mxu0 0.0
    %4288 = vmatpush1.msra.mxu0 0.0
    %4289 = vmatprep.subr.mxu0 0.0
    %4290 = vmatpush1.msra.mxu0 0.0
    %4291 = vmatprep.subr.mxu0 0.0
    %4292 = vmatpush1.msra.mxu0 0.0
    %4293 = vmatprep.subr.mxu0 0.0
    %4294 = vmatpush1.msra.mxu0 0.0
    %4295 = vmatprep.subr.mxu0 0.0
    %4296 = vmatpush1.msra.mxu0 0.0
    %4297 = vmatprep.subr.mxu0 0.0
    %4298 = vmatpush1.msra.mxu0 0.0
    %4299 = vmatprep.subr.mxu0 0.0
    %4300 = vmatpush1.msra.mxu0 0.0
    %4301 = vmatprep.subr.mxu0 0.0
    %4302 = vmatpush1.msra.mxu0 0.0
    %4303 = vmatprep.subr.mxu0 0.0
    %4304 = vmatpush1.msra.mxu0 0.0
    %4305 = vmatprep.subr.mxu0 0.0
    %4306 = vmatpush1.msra.mxu0 0.0
    %4307 = vmatprep.subr.mxu0 0.0
    %4308 = vmatpush1.msra.mxu0 0.0
    %4309 = vmatprep.subr.mxu0 0.0
    %4310 = vmatpush1.msra.mxu0 0.0
    %4311 = vmatprep.subr.mxu0 0.0
    %4312 = vmatpush1.msra.mxu0 0.0
    %4313 = vmatprep.subr.mxu0 0.0
    %4314 = vmatpush1.msra.mxu0 0.0
    %4315 = vmatprep.subr.mxu0 0.0
    %4316 = vmatpush1.msra.mxu0 0.0
    %4317 = vmatprep.subr.mxu0 0.0
    %4318 = vmatpush1.msra.mxu0 0.0
    %4319 = vmatprep.subr.mxu0 0.0
    %4320 = vmatpush1.msra.mxu0 0.0
    %4321 = vmatprep.subr.mxu0 0.0
    %4322 = vmatpush1.msra.mxu0 0.0
    %4323 = vmatprep.mubr.f32.mxu0 0.0
    %4324 = vmatmul.mubr.f32.gmra.mrb[0].mxu0 %v4097
    %v4325 = vpop.f32.mrb[0].mxu0
    %v4326 = vadd.f32 %v2790, %v4325
    %v4327 = vpop.f32.mrb[0].mxu0
    %4328 = vdwg.mxu0
    %v4330 = vrot.slane %v4326, 4
    %v4332 = vmul.f32 %v4178, %v4330
    %v4333 = vadd.f32 %v2612, %v4332
    %v4334 = vtanh.pop %v4333
    %v4335 = vsub.f32 1.0, %v4258
    %v4336 = vmul.f32 %v4335, %v4334
    %v4337 = vrot.slane %v4093, 6
    %v4339 = vmul.f32 %v4258, %v4337
    %v4340 = vadd.f32 %v4336, %v4339
    %4341 = vst.msk [vmem:[#allocation3 + $0x8] sm:$0x30] %vm1120, %v4340
    %v4343 = vrot.slane %v4340, 4
    %v4344 = vsel %vm376, %v4343, 0
    %4346 = vmatprep.subr.mxu0 0.0
    %4347 = vmatpush1.msra.mxu0 %v2615
    %4348 = vmatprep.subr.mxu0 0.0
    %4349 = vmatpush1.msra.mxu0 %v2616
    %4350 = vmatprep.subr.mxu0 0.0
    %4351 = vmatpush1.msra.mxu0 %v2628
    %4352 = vmatprep.subr.mxu0 0.0
    %4353 = vmatpush1.msra.mxu0 0.0
    %4354 = vmatprep.subr.mxu0 0.0
    %4355 = vmatpush1.msra.mxu0 0.0
    %4356 = vmatprep.subr.mxu0 0.0
    %4357 = vmatpush1.msra.mxu0 0.0
    %4358 = vmatprep.subr.mxu0 0.0
    %4359 = vmatpush1.msra.mxu0 0.0
    %4360 = vmatprep.subr.mxu0 0.0
    %4361 = vmatpush1.msra.mxu0 0.0
    %4362 = vmatprep.subr.mxu0 0.0
    %4363 = vmatpush1.msra.mxu0 0.0
    %4364 = vmatprep.subr.mxu0 0.0
    %4365 = vmatpush1.msra.mxu0 0.0
    %4366 = vmatprep.subr.mxu0 0.0
    %4367 = vmatpush1.msra.mxu0 0.0
    %4368 = vmatprep.subr.mxu0 0.0
    %4369 = vmatpush1.msra.mxu0 0.0
    %4370 = vmatprep.subr.mxu0 0.0
    %4371 = vmatpush1.msra.mxu0 0.0
    %4372 = vmatprep.subr.mxu0 0.0
    %4373 = vmatpush1.msra.mxu0 0.0
    %4374 = vmatprep.subr.mxu0 0.0
    %4375 = vmatpush1.msra.mxu0 0.0
    %4376 = vmatprep.subr.mxu0 0.0
    %4377 = vmatpush1.msra.mxu0 0.0
    %4378 = vmatprep.subr.mxu0 0.0
    %4379 = vmatpush1.msra.mxu0 0.0
    %4380 = vmatprep.subr.mxu0 0.0
    %4381 = vmatpush1.msra.mxu0 0.0
    %4382 = vmatprep.subr.mxu0 0.0
    %4383 = vmatpush1.msra.mxu0 0.0
    %4384 = vmatprep.subr.mxu0 0.0
    %4385 = vmatpush1.msra.mxu0 0.0
    %4386 = vmatprep.subr.mxu0 0.0
    %4387 = vmatpush1.msra.mxu0 0.0
    %4388 = vmatprep.subr.mxu0 0.0
    %4389 = vmatpush1.msra.mxu0 0.0
    %4390 = vmatprep.subr.mxu0 0.0
    %4391 = vmatpush1.msra.mxu0 0.0
    %4392 = vmatprep.subr.mxu0 0.0
    %4393 = vmatpush1.msra.mxu0 0.0
    %4394 = vmatprep.subr.mxu0 0.0
    %4395 = vmatpush1.msra.mxu0 0.0
    %4396 = vmatprep.subr.mxu0 0.0
    %4397 = vmatpush1.msra.mxu0 0.0
    %4398 = vmatprep.subr.mxu0 0.0
    %4399 = vmatpush1.msra.mxu0 0.0
    %4400 = vmatprep.subr.mxu0 0.0
    %4401 = vmatpush1.msra.mxu0 0.0
    %4402 = vmatprep.subr.mxu0 0.0
    %4403 = vmatpush1.msra.mxu0 0.0
    %4404 = vmatprep.subr.mxu0 0.0
    %4405 = vmatpush1.msra.mxu0 0.0
    %4406 = vmatprep.subr.mxu0 0.0
    %4407 = vmatpush1.msra.mxu0 0.0
    %4408 = vmatprep.subr.mxu0 0.0
    %4409 = vmatpush1.msra.mxu0 0.0
    %4410 = vmatprep.mubr.f32.mxu0 0.0
    %4411 = vmatmul.mubr.f32.gmra.mrb[0].mxu0 %v4344
    %v4412 = vpop.f32.mrb[0].mxu0
    %v4413 = vadd.f32 0.0, %v4412
    %v4414 = vpop.f32.mrb[0].mxu0
    %4415 = vdwg.mxu0
    %v4417 = vrot.slane %v4413, 2
    %v4419 = vadd.f32 %v2438, %v4417
    %v4420 = vsub.f32 0.0, %v4419
    %v4421 = vmul.f32 %v4420, 1.442695
    %v4422 = vpow.pop %v4421
    %v4423 = vadd.f32 %v4422, 1.0
    %v4424 = vrcp.pop %v4423
    %v4425 = vmul.f32 1.0, %v4424
    %4426 = vmatprep.subr.mxu0 0.0
    %4427 = vmatpush1.msra.mxu0 %v2619
    %4428 = vmatprep.subr.mxu0 0.0
    %4429 = vmatpush1.msra.mxu0 %v2620
    %4430 = vmatprep.subr.mxu0 0.0
    %4431 = vmatpush1.msra.mxu0 %v2708
    %4432 = vmatprep.subr.mxu0 0.0
    %4433 = vmatpush1.msra.mxu0 0.0
    %4434 = vmatprep.subr.mxu0 0.0
    %4435 = vmatpush1.msra.mxu0 0.0
    %4436 = vmatprep.subr.mxu0 0.0
    %4437 = vmatpush1.msra.mxu0 0.0
    %4438 = vmatprep.subr.mxu0 0.0
    %4439 = vmatpush1.msra.mxu0 0.0
    %4440 = vmatprep.subr.mxu0 0.0
    %4441 = vmatpush1.msra.mxu0 0.0
    %4442 = vmatprep.subr.mxu0 0.0
    %4443 = vmatpush1.msra.mxu0 0.0
    %4444 = vmatprep.subr.mxu0 0.0
    %4445 = vmatpush1.msra.mxu0 0.0
    %4446 = vmatprep.subr.mxu0 0.0
    %4447 = vmatpush1.msra.mxu0 0.0
    %4448 = vmatprep.subr.mxu0 0.0
    %4449 = vmatpush1.msra.mxu0 0.0
    %4450 = vmatprep.subr.mxu0 0.0
    %4451 = vmatpush1.msra.mxu0 0.0
    %4452 = vmatprep.subr.mxu0 0.0
    %4453 = vmatpush1.msra.mxu0 0.0
    %4454 = vmatprep.subr.mxu0 0.0
    %4455 = vmatpush1.msra.mxu0 0.0
    %4456 = vmatprep.subr.mxu0 0.0
    %4457 = vmatpush1.msra.mxu0 0.0
    %4458 = vmatprep.subr.mxu0 0.0
    %4459 = vmatpush1.msra.mxu0 0.0
    %4460 = vmatprep.subr.mxu0 0.0
    %4461 = vmatpush1.msra.mxu0 0.0
    %4462 = vmatprep.subr.mxu0 0.0
    %4463 = vmatpush1.msra.mxu0 0.0
    %4464 = vmatprep.subr.mxu0 0.0
    %4465 = vmatpush1.msra.mxu0 0.0
    %4466 = vmatprep.subr.mxu0 0.0
    %4467 = vmatpush1.msra.mxu0 0.0
    %4468 = vmatprep.subr.mxu0 0.0
    %4469 = vmatpush1.msra.mxu0 0.0
    %4470 = vmatprep.subr.mxu0 0.0
    %4471 = vmatpush1.msra.mxu0 0.0
    %4472 = vmatprep.subr.mxu0 0.0
    %4473 = vmatpush1.msra.mxu0 0.0
    %4474 = vmatprep.subr.mxu0 0.0
    %4475 = vmatpush1.msra.mxu0 0.0
    %4476 = vmatprep.subr.mxu0 0.0
    %4477 = vmatpush1.msra.mxu0 0.0
    %4478 = vmatprep.subr.mxu0 0.0
    %4479 = vmatpush1.msra.mxu0 0.0
    %4480 = vmatprep.subr.mxu0 0.0
    %4481 = vmatpush1.msra.mxu0 0.0
    %4482 = vmatprep.subr.mxu0 0.0
    %4483 = vmatpush1.msra.mxu0 0.0
    %4484 = vmatprep.subr.mxu0 0.0
    %4485 = vmatpush1.msra.mxu0 0.0
    %4486 = vmatprep.subr.mxu0 0.0
    %4487 = vmatpush1.msra.mxu0 0.0
    %4488 = vmatprep.subr.mxu0 0.0
    %4489 = vmatpush1.msra.mxu0 0.0
    %4490 = vmatprep.mubr.f32.mxu0 0.0
    %4491 = vmatmul.mubr.f32.gmra.mrb[0].mxu0 %v4344
    %v4492 = vpop.f32.mrb[0].mxu0
    %v4493 = vadd.f32 0.0, %v4492
    %v4494 = vpop.f32.mrb[0].mxu0
    %4495 = vdwg.mxu0
    %v4497 = vrot.slane %v4493, 2
    %v4499 = vadd.f32 %v2525, %v4497
    %v4500 = vsub.f32 0.0, %v4499
    %v4501 = vmul.f32 %v4500, 1.442695
    %v4502 = vpow.pop %v4501
    %v4503 = vadd.f32 %v4502, 1.0
    %v4504 = vrcp.pop %v4503
    %v4505 = vmul.f32 1.0, %v4504
    %4506 = vmatprep.subr.mxu0 0.0
    %4507 = vmatpush1.msra.mxu0 %v2623
    %4508 = vmatprep.subr.mxu0 0.0
    %4509 = vmatpush1.msra.mxu0 %v2624
    %4510 = vmatprep.subr.mxu0 0.0
    %4511 = vmatpush1.msra.mxu0 %v2792
    %4512 = vmatprep.subr.mxu0 0.0
    %4513 = vmatpush1.msra.mxu0 0.0
    %4514 = vmatprep.subr.mxu0 0.0
    %4515 = vmatpush1.msra.mxu0 0.0
    %4516 = vmatprep.subr.mxu0 0.0
    %4517 = vmatpush1.msra.mxu0 0.0
    %4518 = vmatprep.subr.mxu0 0.0
    %4519 = vmatpush1.msra.mxu0 0.0
    %4520 = vmatprep.subr.mxu0 0.0
    %4521 = vmatpush1.msra.mxu0 0.0
    %4522 = vmatprep.subr.mxu0 0.0
    %4523 = vmatpush1.msra.mxu0 0.0
    %4524 = vmatprep.subr.mxu0 0.0
    %4525 = vmatpush1.msra.mxu0 0.0
    %4526 = vmatprep.subr.mxu0 0.0
    %4527 = vmatpush1.msra.mxu0 0.0
    %4528 = vmatprep.subr.mxu0 0.0
    %4529 = vmatpush1.msra.mxu0 0.0
    %4530 = vmatprep.subr.mxu0 0.0
    %4531 = vmatpush1.msra.mxu0 0.0
    %4532 = vmatprep.subr.mxu0 0.0
    %4533 = vmatpush1.msra.mxu0 0.0
    %4534 = vmatprep.subr.mxu0 0.0
    %4535 = vmatpush1.msra.mxu0 0.0
    %4536 = vmatprep.subr.mxu0 0.0
    %4537 = vmatpush1.msra.mxu0 0.0
    %4538 = vmatprep.subr.mxu0 0.0
    %4539 = vmatpush1.msra.mxu0 0.0
    %4540 = vmatprep.subr.mxu0 0.0
    %4541 = vmatpush1.msra.mxu0 0.0
    %4542 = vmatprep.subr.mxu0 0.0
    %4543 = vmatpush1.msra.mxu0 0.0
    %4544 = vmatprep.subr.mxu0 0.0
    %4545 = vmatpush1.msra.mxu0 0.0
    %4546 = vmatprep.subr.mxu0 0.0
    %4547 = vmatpush1.msra.mxu0 0.0
    %4548 = vmatprep.subr.mxu0 0.0
    %4549 = vmatpush1.msra.mxu0 0.0
    %4550 = vmatprep.subr.mxu0 0.0
    %4551 = vmatpush1.msra.mxu0 0.0
    %4552 = vmatprep.subr.mxu0 0.0
    %4553 = vmatpush1.msra.mxu0 0.0
    %4554 = vmatprep.subr.mxu0 0.0
    %4555 = vmatpush1.msra.mxu0 0.0
    %4556 = vmatprep.subr.mxu0 0.0
    %4557 = vmatpush1.msra.mxu0 0.0
    %4558 = vmatprep.subr.mxu0 0.0
    %4559 = vmatpush1.msra.mxu0 0.0
    %4560 = vmatprep.subr.mxu0 0.0
    %4561 = vmatpush1.msra.mxu0 0.0
    %4562 = vmatprep.subr.mxu0 0.0
    %4563 = vmatpush1.msra.mxu0 0.0
    %4564 = vmatprep.subr.mxu0 0.0
    %4565 = vmatpush1.msra.mxu0 0.0
    %4566 = vmatprep.subr.mxu0 0.0
    %4567 = vmatpush1.msra.mxu0 0.0
    %4568 = vmatprep.subr.mxu0 0.0
    %4569 = vmatpush1.msra.mxu0 0.0
    %4570 = vmatprep.mubr.f32.mxu0 0.0
    %4571 = vmatmul.mubr.f32.gmra.mrb[0].mxu0 %v4344
    %v4572 = vpop.f32.mrb[0].mxu0
    %v4573 = vadd.f32 %v2790, %v4572
    %v4574 = vpop.f32.mrb[0].mxu0
    %4575 = vdwg.mxu0
    %v4577 = vrot.slane %v4573, 2
    %v4579 = vmul.f32 %v4425, %v4577
    %v4580 = vadd.f32 %v2612, %v4579
    %v4581 = vtanh.pop %v4580
    %v4582 = vsub.f32 1.0, %v4505
    %v4583 = vmul.f32 %v4582, %v4581
    %v4584 = vrot.slane %v4340, 6
    %v4586 = vmul.f32 %v4505, %v4584
    %v4587 = vadd.f32 %v4583, %v4586
    %4588 = vst.msk [vmem:[#allocation3 + $0x8] sm:$0xc0] %vm1368, %v4587
    %v4589 = vld [vmem:[#allocation3] sm:$0xff]
    %v4590 = vld [vmem:[#allocation3 + $0x8] sm:$0xff]
    %v4591 = vld [vmem:[#allocation5] sm:$0xff]
    %v4592 = vld [vmem:[#allocation5 + $0x8] sm:$0xff]
    %v4593 = vld [vmem:[#allocation5 + $0x10] sm:$0xf]
    %v4594 = vld [vmem:[%s9] sm:$0x1]
    %v4595 = vlaneseq
    %v4596 = vshrl.u32 %v4595, 7
    %v4597 = vsub.s32 0, %v4596
    %v4598 = vrot.slane %v4594, %v4597
    %v4600 = vsel %vm376, %v4589, 0
    %v4603 = vsel %vm376, %v4590, 0
    %v4606 = vsel %vm380, %v4593, 0
    %4608 = vmatprep.subr.mxu0 0.0
    %4609 = vmatpush1.msra.mxu0 %v4591
    %4610 = vmatprep.subr.mxu0 0.0
    %4611 = vmatpush1.msra.mxu0 %v4592
    %4612 = vmatprep.subr.mxu0 0.0
    %4613 = vmatpush1.msra.mxu0 %v4606
    %4614 = vmatprep.subr.mxu0 0.0
    %4615 = vmatpush1.msra.mxu0 0.0
    %4616 = vmatprep.subr.mxu0 0.0
    %4617 = vmatpush1.msra.mxu0 0.0
    %4618 = vmatprep.subr.mxu0 0.0
    %4619 = vmatpush1.msra.mxu0 0.0
    %4620 = vmatprep.subr.mxu0 0.0
    %4621 = vmatpush1.msra.mxu0 0.0
    %4622 = vmatprep.subr.mxu0 0.0
    %4623 = vmatpush1.msra.mxu0 0.0
    %4624 = vmatprep.subr.mxu0 0.0
    %4625 = vmatpush1.msra.mxu0 0.0
    %4626 = vmatprep.subr.mxu0 0.0
    %4627 = vmatpush1.msra.mxu0 0.0
    %4628 = vmatprep.subr.mxu0 0.0
    %4629 = vmatpush1.msra.mxu0 0.0
    %4630 = vmatprep.subr.mxu0 0.0
    %4631 = vmatpush1.msra.mxu0 0.0
    %4632 = vmatprep.subr.mxu0 0.0
    %4633 = vmatpush1.msra.mxu0 0.0
    %4634 = vmatprep.subr.mxu0 0.0
    %4635 = vmatpush1.msra.mxu0 0.0
    %4636 = vmatprep.subr.mxu0 0.0
    %4637 = vmatpush1.msra.mxu0 0.0
    %4638 = vmatprep.subr.mxu0 0.0
    %4639 = vmatpush1.msra.mxu0 0.0
    %4640 = vmatprep.subr.mxu0 0.0
    %4641 = vmatpush1.msra.mxu0 0.0
    %4642 = vmatprep.subr.mxu0 0.0
    %4643 = vmatpush1.msra.mxu0 0.0
    %4644 = vmatprep.subr.mxu0 0.0
    %4645 = vmatpush1.msra.mxu0 0.0
    %4646 = vmatprep.subr.mxu0 0.0
    %4647 = vmatpush1.msra.mxu0 0.0
    %4648 = vmatprep.subr.mxu0 0.0
    %4649 = vmatpush1.msra.mxu0 0.0
    %4650 = vmatprep.subr.mxu0 0.0
    %4651 = vmatpush1.msra.mxu0 0.0
    %4652 = vmatprep.subr.mxu0 0.0
    %4653 = vmatpush1.msra.mxu0 0.0
    %4654 = vmatprep.subr.mxu0 0.0
    %4655 = vmatpush1.msra.mxu0 0.0
    %4656 = vmatprep.subr.mxu0 0.0
    %4657 = vmatpush1.msra.mxu0 0.0
    %4658 = vmatprep.subr.mxu0 0.0
    %4659 = vmatpush1.msra.mxu0 0.0
    %4660 = vmatprep.subr.mxu0 0.0
    %4661 = vmatpush1.msra.mxu0 0.0
    %4662 = vmatprep.subr.mxu0 0.0
    %4663 = vmatpush1.msra.mxu0 0.0
    %4664 = vmatprep.subr.mxu0 0.0
    %4665 = vmatpush1.msra.mxu0 0.0
    %4666 = vmatprep.subr.mxu0 0.0
    %4667 = vmatpush1.msra.mxu0 0.0
    %4668 = vmatprep.subr.mxu0 0.0
    %4669 = vmatpush1.msra.mxu0 0.0
    %4670 = vmatprep.subr.mxu0 0.0
    %4671 = vmatpush1.msra.mxu0 0.0
    %4672 = vmatprep.mubr.f32.mxu0 0.0
    %4673 = vmatmul.mubr.f32.gmra.mrb[0].mxu0 %v4600
    %v4674 = vpop.f32.mrb[0].mxu0
    %v4675 = vadd.f32 %v4598, %v4674
    %v4676 = vpop.f32.mrb[0].mxu0
    %4677 = vmatprep.mubr.f32.mxu0 0.0
    %4678 = vmatmul.mubr.f32.gmra.mrb[0].mxu0 %v4603
    %v4679 = vpop.f32.mrb[0].mxu0
    %v4680 = vadd.f32 %v4598, %v4679
    %v4681 = vpop.f32.mrb[0].mxu0
    %4682 = vdwg.mxu0
    %s4683 = scalar_lea.vmem [#allocation5], 24
    %v4684 = vld [vmem:[%s4683] sm:$0xff]
    %v4685 = vld [vmem:[%s4683 + $0x8] sm:$0xff]
    %v4686 = vld [vmem:[%s4683 + $0x10] sm:$0xf]
    %v4687 = vld [vmem:[%s9 + $0x1] sm:$0x1]
    %v4688 = vlaneseq
    %v4689 = vshrl.u32 %v4688, 7
    %v4690 = vsub.s32 0, %v4689
    %v4691 = vrot.slane %v4687, %v4690
    %v4693 = vsel %vm380, %v4686, 0
    %4695 = vmatprep.subr.mxu0 0.0
    %4696 = vmatpush1.msra.mxu0 %v4684
    %4697 = vmatprep.subr.mxu0 0.0
    %4698 = vmatpush1.msra.mxu0 %v4685
    %4699 = vmatprep.subr.mxu0 0.0
    %4700 = vmatpush1.msra.mxu0 %v4693
    %4701 = vmatprep.subr.mxu0 0.0
    %4702 = vmatpush1.msra.mxu0 0.0
    %4703 = vmatprep.subr.mxu0 0.0
    %4704 = vmatpush1.msra.mxu0 0.0
    %4705 = vmatprep.subr.mxu0 0.0
    %4706 = vmatpush1.msra.mxu0 0.0
    %4707 = vmatprep.subr.mxu0 0.0
    %4708 = vmatpush1.msra.mxu0 0.0
    %4709 = vmatprep.subr.mxu0 0.0
    %4710 = vmatpush1.msra.mxu0 0.0
    %4711 = vmatprep.subr.mxu0 0.0
    %4712 = vmatpush1.msra.mxu0 0.0
    %4713 = vmatprep.subr.mxu0 0.0
    %4714 = vmatpush1.msra.mxu0 0.0
    %4715 = vmatprep.subr.mxu0 0.0
    %4716 = vmatpush1.msra.mxu0 0.0
    %4717 = vmatprep.subr.mxu0 0.0
    %4718 = vmatpush1.msra.mxu0 0.0
    %4719 = vmatprep.subr.mxu0 0.0
    %4720 = vmatpush1.msra.mxu0 0.0
    %4721 = vmatprep.subr.mxu0 0.0
    %4722 = vmatpush1.msra.mxu0 0.0
    %4723 = vmatprep.subr.mxu0 0.0
    %4724 = vmatpush1.msra.mxu0 0.0
    %4725 = vmatprep.subr.mxu0 0.0
    %4726 = vmatpush1.msra.mxu0 0.0
    %4727 = vmatprep.subr.mxu0 0.0
    %4728 = vmatpush1.msra.mxu0 0.0
    %4729 = vmatprep.subr.mxu0 0.0
    %4730 = vmatpush1.msra.mxu0 0.0
    %4731 = vmatprep.subr.mxu0 0.0
    %4732 = vmatpush1.msra.mxu0 0.0
    %4733 = vmatprep.subr.mxu0 0.0
    %4734 = vmatpush1.msra.mxu0 0.0
    %4735 = vmatprep.subr.mxu0 0.0
    %4736 = vmatpush1.msra.mxu0 0.0
    %4737 = vmatprep.subr.mxu0 0.0
    %4738 = vmatpush1.msra.mxu0 0.0
    %4739 = vmatprep.subr.mxu0 0.0
    %4740 = vmatpush1.msra.mxu0 0.0
    %4741 = vmatprep.subr.mxu0 0.0
    %4742 = vmatpush1.msra.mxu0 0.0
    %4743 = vmatprep.subr.mxu0 0.0
    %4744 = vmatpush1.msra.mxu0 0.0
    %4745 = vmatprep.subr.mxu0 0.0
    %4746 = vmatpush1.msra.mxu0 0.0
    %4747 = vmatprep.subr.mxu0 0.0
    %4748 = vmatpush1.msra.mxu0 0.0
    %4749 = vmatprep.subr.mxu0 0.0
    %4750 = vmatpush1.msra.mxu0 0.0
    %4751 = vmatprep.subr.mxu0 0.0
    %4752 = vmatpush1.msra.mxu0 0.0
    %4753 = vmatprep.subr.mxu0 0.0
    %4754 = vmatpush1.msra.mxu0 0.0
    %4755 = vmatprep.subr.mxu0 0.0
    %4756 = vmatpush1.msra.mxu0 0.0
    %4757 = vmatprep.subr.mxu0 0.0
    %4758 = vmatpush1.msra.mxu0 0.0
    %4759 = vmatprep.mubr.f32.mxu0 0.0
    %4760 = vmatmul.mubr.f32.gmra.mrb[0].mxu0 %v4600
    %v4761 = vpop.f32.mrb[0].mxu0
    %v4762 = vadd.f32 %v4691, %v4761
    %v4763 = vpop.f32.mrb[0].mxu0
    %4764 = vmatprep.mubr.f32.mxu0 0.0
    %4765 = vmatmul.mubr.f32.gmra.mrb[0].mxu0 %v4603
    %v4766 = vpop.f32.mrb[0].mxu0
    %v4767 = vadd.f32 %v4691, %v4766
    %v4768 = vpop.f32.mrb[0].mxu0
    %4769 = vdwg.mxu0
    %s4770 = scalar_lea.vmem [#allocation5], 48
    %v4771 = vld [vmem:[%s4770] sm:$0xff]
    %v4772 = vld [vmem:[%s4770 + $0x8] sm:$0xff]
    %v4773 = vld [vmem:[%s4770 + $0x10] sm:$0xf]
    %v4774 = vld [vmem:[%s9 + $0x2] sm:$0x1]
    %v4775 = vlaneseq
    %v4776 = vshrl.u32 %v4775, 7
    %v4777 = vsub.s32 0, %v4776
    %v4778 = vrot.slane %v4774, %v4777
    %v4780 = vsel %vm380, %v4773, 0
    %4782 = vmatprep.subr.mxu0 0.0
    %4783 = vmatpush1.msra.mxu0 %v4771
    %4784 = vmatprep.subr.mxu0 0.0
    %4785 = vmatpush1.msra.mxu0 %v4772
    %4786 = vmatprep.subr.mxu0 0.0
    %4787 = vmatpush1.msra.mxu0 %v4780
    %4788 = vmatprep.subr.mxu0 0.0
    %4789 = vmatpush1.msra.mxu0 0.0
    %4790 = vmatprep.subr.mxu0 0.0
    %4791 = vmatpush1.msra.mxu0 0.0
    %4792 = vmatprep.subr.mxu0 0.0
    %4793 = vmatpush1.msra.mxu0 0.0
    %4794 = vmatprep.subr.mxu0 0.0
    %4795 = vmatpush1.msra.mxu0 0.0
    %4796 = vmatprep.subr.mxu0 0.0
    %4797 = vmatpush1.msra.mxu0 0.0
    %4798 = vmatprep.subr.mxu0 0.0
    %4799 = vmatpush1.msra.mxu0 0.0
    %4800 = vmatprep.subr.mxu0 0.0
    %4801 = vmatpush1.msra.mxu0 0.0
    %4802 = vmatprep.subr.mxu0 0.0
    %4803 = vmatpush1.msra.mxu0 0.0
    %4804 = vmatprep.subr.mxu0 0.0
    %4805 = vmatpush1.msra.mxu0 0.0
    %4806 = vmatprep.subr.mxu0 0.0
    %4807 = vmatpush1.msra.mxu0 0.0
    %4808 = vmatprep.subr.mxu0 0.0
    %4809 = vmatpush1.msra.mxu0 0.0
    %4810 = vmatprep.subr.mxu0 0.0
    %4811 = vmatpush1.msra.mxu0 0.0
    %4812 = vmatprep.subr.mxu0 0.0
    %4813 = vmatpush1.msra.mxu0 0.0
    %4814 = vmatprep.subr.mxu0 0.0
    %4815 = vmatpush1.msra.mxu0 0.0
    %4816 = vmatprep.subr.mxu0 0.0
    %4817 = vmatpush1.msra.mxu0 0.0
    %4818 = vmatprep.subr.mxu0 0.0
    %4819 = vmatpush1.msra.mxu0 0.0
    %4820 = vmatprep.subr.mxu0 0.0
    %4821 = vmatpush1.msra.mxu0 0.0
    %4822 = vmatprep.subr.mxu0 0.0
    %4823 = vmatpush1.msra.mxu0 0.0
    %4824 = vmatprep.subr.mxu0 0.0
    %4825 = vmatpush1.msra.mxu0 0.0
    %4826 = vmatprep.subr.mxu0 0.0
    %4827 = vmatpush1.msra.mxu0 0.0
    %4828 = vmatprep.subr.mxu0 0.0
    %4829 = vmatpush1.msra.mxu0 0.0
    %4830 = vmatprep.subr.mxu0 0.0
    %4831 = vmatpush1.msra.mxu0 0.0
    %4832 = vmatprep.subr.mxu0 0.0
    %4833 = vmatpush1.msra.mxu0 0.0
    %4834 = vmatprep.subr.mxu0 0.0
    %4835 = vmatpush1.msra.mxu0 0.0
    %4836 = vmatprep.subr.mxu0 0.0
    %4837 = vmatpush1.msra.mxu0 0.0
    %4838 = vmatprep.subr.mxu0 0.0
    %4839 = vmatpush1.msra.mxu0 0.0
    %4840 = vmatprep.subr.mxu0 0.0
    %4841 = vmatpush1.msra.mxu0 0.0
    %4842 = vmatprep.subr.mxu0 0.0
    %4843 = vmatpush1.msra.mxu0 0.0
    %4844 = vmatprep.subr.mxu0 0.0
    %4845 = vmatpush1.msra.mxu0 0.0
    %4846 = vmatprep.mubr.f32.mxu0 0.0
    %4847 = vmatmul.mubr.f32.gmra.mrb[0].mxu0 %v4600
    %v4848 = vpop.f32.mrb[0].mxu0
    %v4849 = vadd.f32 %v4778, %v4848
    %v4850 = vpop.f32.mrb[0].mxu0
    %4851 = vmatprep.mubr.f32.mxu0 0.0
    %4852 = vmatmul.mubr.f32.gmra.mrb[0].mxu0 %v4603
    %v4853 = vpop.f32.mrb[0].mxu0
    %v4854 = vadd.f32 %v4778, %v4853
    %v4855 = vpop.f32.mrb[0].mxu0
    %4856 = vdwg.mxu0
    %v4857 = vld [vmem:[#allocation8] sm:$0xff]
    %v4858 = vld [vmem:[#allocation8 + $0x8] sm:$0xff]
    %v4859 = vld [vmem:[#allocation8 + $0x10] sm:$0xf]
    %s4860 = scalar_lea.vmem [#allocation8], 24
    %v4861 = vld [vmem:[%s4860] sm:$0xff]
    %v4862 = vld [vmem:[%s4860 + $0x8] sm:$0xff]
    %v4863 = vld [vmem:[%s4860 + $0x10] sm:$0xf]
    %s4864 = scalar_lea.vmem [#allocation8], 48
    %v4865 = vld [vmem:[%s4864] sm:$0xff]
    %v4866 = vld [vmem:[%s4864 + $0x8] sm:$0xff]
    %v4867 = vld [vmem:[%s4864 + $0x10] sm:$0xf]
    %v4868 = vld [vmem:[%s9 + $0x3] sm:$0x1]
    %v4870 = vsel %vm380, %v4859, 0
    %4872 = vmatprep.subr.mxu0 0.0
    %4873 = vmatpush1.msra.mxu0 %v4857
    %4874 = vmatprep.subr.mxu0 0.0
    %4875 = vmatpush1.msra.mxu0 %v4858
    %4876 = vmatprep.subr.mxu0 0.0
    %4877 = vmatpush1.msra.mxu0 %v4870
    %4878 = vmatprep.subr.mxu0 0.0
    %4879 = vmatpush1.msra.mxu0 0.0
    %4880 = vmatprep.subr.mxu0 0.0
    %4881 = vmatpush1.msra.mxu0 0.0
    %4882 = vmatprep.subr.mxu0 0.0
    %4883 = vmatpush1.msra.mxu0 0.0
    %4884 = vmatprep.subr.mxu0 0.0
    %4885 = vmatpush1.msra.mxu0 0.0
    %4886 = vmatprep.subr.mxu0 0.0
    %4887 = vmatpush1.msra.mxu0 0.0
    %4888 = vmatprep.subr.mxu0 0.0
    %4889 = vmatpush1.msra.mxu0 0.0
    %4890 = vmatprep.subr.mxu0 0.0
    %4891 = vmatpush1.msra.mxu0 0.0
    %4892 = vmatprep.subr.mxu0 0.0
    %4893 = vmatpush1.msra.mxu0 0.0
    %4894 = vmatprep.subr.mxu0 0.0
    %4895 = vmatpush1.msra.mxu0 0.0
    %4896 = vmatprep.subr.mxu0 0.0
    %4897 = vmatpush1.msra.mxu0 0.0
    %4898 = vmatprep.subr.mxu0 0.0
    %4899 = vmatpush1.msra.mxu0 0.0
    %4900 = vmatprep.subr.mxu0 0.0
    %4901 = vmatpush1.msra.mxu0 0.0
    %4902 = vmatprep.subr.mxu0 0.0
    %4903 = vmatpush1.msra.mxu0 0.0
    %4904 = vmatprep.subr.mxu0 0.0
    %4905 = vmatpush1.msra.mxu0 0.0
    %4906 = vmatprep.subr.mxu0 0.0
    %4907 = vmatpush1.msra.mxu0 0.0
    %4908 = vmatprep.subr.mxu0 0.0
    %4909 = vmatpush1.msra.mxu0 0.0
    %4910 = vmatprep.subr.mxu0 0.0
    %4911 = vmatpush1.msra.mxu0 0.0
    %4912 = vmatprep.subr.mxu0 0.0
    %4913 = vmatpush1.msra.mxu0 0.0
    %4914 = vmatprep.subr.mxu0 0.0
    %4915 = vmatpush1.msra.mxu0 0.0
    %4916 = vmatprep.subr.mxu0 0.0
    %4917 = vmatpush1.msra.mxu0 0.0
    %4918 = vmatprep.subr.mxu0 0.0
    %4919 = vmatpush1.msra.mxu0 0.0
    %4920 = vmatprep.subr.mxu0 0.0
    %4921 = vmatpush1.msra.mxu0 0.0
    %4922 = vmatprep.subr.mxu0 0.0
    %4923 = vmatpush1.msra.mxu0 0.0
    %4924 = vmatprep.subr.mxu0 0.0
    %4925 = vmatpush1.msra.mxu0 0.0
    %4926 = vmatprep.subr.mxu0 0.0
    %4927 = vmatpush1.msra.mxu0 0.0
    %4928 = vmatprep.subr.mxu0 0.0
    %4929 = vmatpush1.msra.mxu0 0.0
    %4930 = vmatprep.subr.mxu0 0.0
    %4931 = vmatpush1.msra.mxu0 0.0
    %4932 = vmatprep.subr.mxu0 0.0
    %4933 = vmatpush1.msra.mxu0 0.0
    %4934 = vmatprep.subr.mxu0 0.0
    %4935 = vmatpush1.msra.mxu0 0.0
    %4936 = vmatprep.mubr.f32.mxu0 0.0
    %4937 = vmatmul.mubr.f32.gmra.mrb[0].mxu0 %v378
    %v4938 = vpop.f32.mrb[0].mxu0
    %v4939 = vadd.f32 0.0, %v4938
    %v4940 = vpop.f32.mrb[0].mxu0
    %4941 = vdwg.mxu0
    %v4942 = vadd.f32 %v4675, %v4939
    %v4943 = vsub.f32 0.0, %v4942
    %v4944 = vmul.f32 %v4943, 1.442695
    %v4945 = vpow.pop %v4944
    %v4946 = vadd.f32 %v4945, 1.0
    %v4947 = vrcp.pop %v4946
    %v4948 = vmul.f32 1.0, %v4947
    %v4950 = vsel %vm380, %v4863, 0
    %4952 = vmatprep.subr.mxu0 0.0
    %4953 = vmatpush1.msra.mxu0 %v4861
    %4954 = vmatprep.subr.mxu0 0.0
    %4955 = vmatpush1.msra.mxu0 %v4862
    %4956 = vmatprep.subr.mxu0 0.0
    %4957 = vmatpush1.msra.mxu0 %v4950
    %4958 = vmatprep.subr.mxu0 0.0
    %4959 = vmatpush1.msra.mxu0 0.0
    %4960 = vmatprep.subr.mxu0 0.0
    %4961 = vmatpush1.msra.mxu0 0.0
    %4962 = vmatprep.subr.mxu0 0.0
    %4963 = vmatpush1.msra.mxu0 0.0
    %4964 = vmatprep.subr.mxu0 0.0
    %4965 = vmatpush1.msra.mxu0 0.0
    %4966 = vmatprep.subr.mxu0 0.0
    %4967 = vmatpush1.msra.mxu0 0.0
    %4968 = vmatprep.subr.mxu0 0.0
    %4969 = vmatpush1.msra.mxu0 0.0
    %4970 = vmatprep.subr.mxu0 0.0
    %4971 = vmatpush1.msra.mxu0 0.0
    %4972 = vmatprep.subr.mxu0 0.0
    %4973 = vmatpush1.msra.mxu0 0.0
    %4974 = vmatprep.subr.mxu0 0.0
    %4975 = vmatpush1.msra.mxu0 0.0
    %4976 = vmatprep.subr.mxu0 0.0
    %4977 = vmatpush1.msra.mxu0 0.0
    %4978 = vmatprep.subr.mxu0 0.0
    %4979 = vmatpush1.msra.mxu0 0.0
    %4980 = vmatprep.subr.mxu0 0.0
    %4981 = vmatpush1.msra.mxu0 0.0
    %4982 = vmatprep.subr.mxu0 0.0
    %4983 = vmatpush1.msra.mxu0 0.0
    %4984 = vmatprep.subr.mxu0 0.0
    %4985 = vmatpush1.msra.mxu0 0.0
    %4986 = vmatprep.subr.mxu0 0.0
    %4987 = vmatpush1.msra.mxu0 0.0
    %4988 = vmatprep.subr.mxu0 0.0
    %4989 = vmatpush1.msra.mxu0 0.0
    %4990 = vmatprep.subr.mxu0 0.0
    %4991 = vmatpush1.msra.mxu0 0.0
    %4992 = vmatprep.subr.mxu0 0.0
    %4993 = vmatpush1.msra.mxu0 0.0
    %4994 = vmatprep.subr.mxu0 0.0
    %4995 = vmatpush1.msra.mxu0 0.0
    %4996 = vmatprep.subr.mxu0 0.0
    %4997 = vmatpush1.msra.mxu0 0.0
    %4998 = vmatprep.subr.mxu0 0.0
    %4999 = vmatpush1.msra.mxu0 0.0
    %5000 = vmatprep.subr.mxu0 0.0
    %5001 = vmatpush1.msra.mxu0 0.0
    %5002 = vmatprep.subr.mxu0 0.0
    %5003 = vmatpush1.msra.mxu0 0.0
    %5004 = vmatprep.subr.mxu0 0.0
    %5005 = vmatpush1.msra.mxu0 0.0
    %5006 = vmatprep.subr.mxu0 0.0
    %5007 = vmatpush1.msra.mxu0 0.0
    %5008 = vmatprep.subr.mxu0 0.0
    %5009 = vmatpush1.msra.mxu0 0.0
    %5010 = vmatprep.subr.mxu0 0.0
    %5011 = vmatpush1.msra.mxu0 0.0
    %5012 = vmatprep.subr.mxu0 0.0
    %5013 = vmatpush1.msra.mxu0 0.0
    %5014 = vmatprep.subr.mxu0 0.0
    %5015 = vmatpush1.msra.mxu0 0.0
    %5016 = vmatprep.mubr.f32.mxu0 0.0
    %5017 = vmatmul.mubr.f32.gmra.mrb[0].mxu0 %v378
    %v5018 = vpop.f32.mrb[0].mxu0
    %v5019 = vadd.f32 0.0, %v5018
    %v5020 = vpop.f32.mrb[0].mxu0
    %5021 = vdwg.mxu0
    %v5022 = vadd.f32 %v4762, %v5019
    %v5023 = vsub.f32 0.0, %v5022
    %v5024 = vmul.f32 %v5023, 1.442695
    %v5025 = vpow.pop %v5024
    %v5026 = vadd.f32 %v5025, 1.0
    %v5027 = vrcp.pop %v5026
    %v5028 = vmul.f32 1.0, %v5027
    %v5029 = vlaneseq
    %v5030 = vshrl.u32 %v5029, 7
    %v5031 = vsub.s32 0, %v5030
    %v5032 = vrot.slane %v4868, %v5031
    %v5034 = vsel %vm380, %v4867, 0
    %5036 = vmatprep.subr.mxu0 0.0
    %5037 = vmatpush1.msra.mxu0 %v4865
    %5038 = vmatprep.subr.mxu0 0.0
    %5039 = vmatpush1.msra.mxu0 %v4866
    %5040 = vmatprep.subr.mxu0 0.0
    %5041 = vmatpush1.msra.mxu0 %v5034
    %5042 = vmatprep.subr.mxu0 0.0
    %5043 = vmatpush1.msra.mxu0 0.0
    %5044 = vmatprep.subr.mxu0 0.0
    %5045 = vmatpush1.msra.mxu0 0.0
    %5046 = vmatprep.subr.mxu0 0.0
    %5047 = vmatpush1.msra.mxu0 0.0
    %5048 = vmatprep.subr.mxu0 0.0
    %5049 = vmatpush1.msra.mxu0 0.0
    %5050 = vmatprep.subr.mxu0 0.0
    %5051 = vmatpush1.msra.mxu0 0.0
    %5052 = vmatprep.subr.mxu0 0.0
    %5053 = vmatpush1.msra.mxu0 0.0
    %5054 = vmatprep.subr.mxu0 0.0
    %5055 = vmatpush1.msra.mxu0 0.0
    %5056 = vmatprep.subr.mxu0 0.0
    %5057 = vmatpush1.msra.mxu0 0.0
    %5058 = vmatprep.subr.mxu0 0.0
    %5059 = vmatpush1.msra.mxu0 0.0
    %5060 = vmatprep.subr.mxu0 0.0
    %5061 = vmatpush1.msra.mxu0 0.0
    %5062 = vmatprep.subr.mxu0 0.0
    %5063 = vmatpush1.msra.mxu0 0.0
    %5064 = vmatprep.subr.mxu0 0.0
    %5065 = vmatpush1.msra.mxu0 0.0
    %5066 = vmatprep.subr.mxu0 0.0
    %5067 = vmatpush1.msra.mxu0 0.0
    %5068 = vmatprep.subr.mxu0 0.0
    %5069 = vmatpush1.msra.mxu0 0.0
    %5070 = vmatprep.subr.mxu0 0.0
    %5071 = vmatpush1.msra.mxu0 0.0
    %5072 = vmatprep.subr.mxu0 0.0
    %5073 = vmatpush1.msra.mxu0 0.0
    %5074 = vmatprep.subr.mxu0 0.0
    %5075 = vmatpush1.msra.mxu0 0.0
    %5076 = vmatprep.subr.mxu0 0.0
    %5077 = vmatpush1.msra.mxu0 0.0
    %5078 = vmatprep.subr.mxu0 0.0
    %5079 = vmatpush1.msra.mxu0 0.0
    %5080 = vmatprep.subr.mxu0 0.0
    %5081 = vmatpush1.msra.mxu0 0.0
    %5082 = vmatprep.subr.mxu0 0.0
    %5083 = vmatpush1.msra.mxu0 0.0
    %5084 = vmatprep.subr.mxu0 0.0
    %5085 = vmatpush1.msra.mxu0 0.0
    %5086 = vmatprep.subr.mxu0 0.0
    %5087 = vmatpush1.msra.mxu0 0.0
    %5088 = vmatprep.subr.mxu0 0.0
    %5089 = vmatpush1.msra.mxu0 0.0
    %5090 = vmatprep.subr.mxu0 0.0
    %5091 = vmatpush1.msra.mxu0 0.0
    %5092 = vmatprep.subr.mxu0 0.0
    %5093 = vmatpush1.msra.mxu0 0.0
    %5094 = vmatprep.subr.mxu0 0.0
    %5095 = vmatpush1.msra.mxu0 0.0
    %5096 = vmatprep.subr.mxu0 0.0
    %5097 = vmatpush1.msra.mxu0 0.0
    %5098 = vmatprep.subr.mxu0 0.0
    %5099 = vmatpush1.msra.mxu0 0.0
    %5100 = vmatprep.mubr.f32.mxu0 0.0
    %5101 = vmatmul.mubr.f32.gmra.mrb[0].mxu0 %v378
    %v5102 = vpop.f32.mrb[0].mxu0
    %v5103 = vadd.f32 %v5032, %v5102
    %v5104 = vpop.f32.mrb[0].mxu0
    %5105 = vdwg.mxu0
    %v5106 = vmul.f32 %v4948, %v5103
    %v5107 = vadd.f32 %v4849, %v5106
    %v5108 = vtanh.pop %v5107
    %v5109 = vsub.f32 1.0, %v5028
    %v5110 = vmul.f32 %v5109, %v5108
    %v5111 = vmul.f32 %v5028, 0.0
    %v5112 = vadd.f32 %v5110, %v5111
    %vm5113 = vcmask 156673
    %5114 = vst.msk [vmem:[#allocation4 - $0x1] sm:$0x2] %vm5113, %v5112
    %v5116 = vsel %vm376, %v5112, 0
    %5118 = vmatprep.subr.mxu0 0.0
    %5119 = vmatpush1.msra.mxu0 %v4857
    %5120 = vmatprep.subr.mxu0 0.0
    %5121 = vmatpush1.msra.mxu0 %v4858
    %5122 = vmatprep.subr.mxu0 0.0
    %5123 = vmatpush1.msra.mxu0 %v4870
    %5124 = vmatprep.subr.mxu0 0.0
    %5125 = vmatpush1.msra.mxu0 0.0
    %5126 = vmatprep.subr.mxu0 0.0
    %5127 = vmatpush1.msra.mxu0 0.0
    %5128 = vmatprep.subr.mxu0 0.0
    %5129 = vmatpush1.msra.mxu0 0.0
    %5130 = vmatprep.subr.mxu0 0.0
    %5131 = vmatpush1.msra.mxu0 0.0
    %5132 = vmatprep.subr.mxu0 0.0
    %5133 = vmatpush1.msra.mxu0 0.0
    %5134 = vmatprep.subr.mxu0 0.0
    %5135 = vmatpush1.msra.mxu0 0.0
    %5136 = vmatprep.subr.mxu0 0.0
    %5137 = vmatpush1.msra.mxu0 0.0
    %5138 = vmatprep.subr.mxu0 0.0
    %5139 = vmatpush1.msra.mxu0 0.0
    %5140 = vmatprep.subr.mxu0 0.0
    %5141 = vmatpush1.msra.mxu0 0.0
    %5142 = vmatprep.subr.mxu0 0.0
    %5143 = vmatpush1.msra.mxu0 0.0
    %5144 = vmatprep.subr.mxu0 0.0
    %5145 = vmatpush1.msra.mxu0 0.0
    %5146 = vmatprep.subr.mxu0 0.0
    %5147 = vmatpush1.msra.mxu0 0.0
    %5148 = vmatprep.subr.mxu0 0.0
    %5149 = vmatpush1.msra.mxu0 0.0
    %5150 = vmatprep.subr.mxu0 0.0
    %5151 = vmatpush1.msra.mxu0 0.0
    %5152 = vmatprep.subr.mxu0 0.0
    %5153 = vmatpush1.msra.mxu0 0.0
    %5154 = vmatprep.subr.mxu0 0.0
    %5155 = vmatpush1.msra.mxu0 0.0
    %5156 = vmatprep.subr.mxu0 0.0
    %5157 = vmatpush1.msra.mxu0 0.0
    %5158 = vmatprep.subr.mxu0 0.0
    %5159 = vmatpush1.msra.mxu0 0.0
    %5160 = vmatprep.subr.mxu0 0.0
    %5161 = vmatpush1.msra.mxu0 0.0
    %5162 = vmatprep.subr.mxu0 0.0
    %5163 = vmatpush1.msra.mxu0 0.0
    %5164 = vmatprep.subr.mxu0 0.0
    %5165 = vmatpush1.msra.mxu0 0.0
    %5166 = vmatprep.subr.mxu0 0.0
    %5167 = vmatpush1.msra.mxu0 0.0
    %5168 = vmatprep.subr.mxu0 0.0
    %5169 = vmatpush1.msra.mxu0 0.0
    %5170 = vmatprep.subr.mxu0 0.0
    %5171 = vmatpush1.msra.mxu0 0.0
    %5172 = vmatprep.subr.mxu0 0.0
    %5173 = vmatpush1.msra.mxu0 0.0
    %5174 = vmatprep.subr.mxu0 0.0
    %5175 = vmatpush1.msra.mxu0 0.0
    %5176 = vmatprep.subr.mxu0 0.0
    %5177 = vmatpush1.msra.mxu0 0.0
    %5178 = vmatprep.subr.mxu0 0.0
    %5179 = vmatpush1.msra.mxu0 0.0
    %5180 = vmatprep.subr.mxu0 0.0
    %5181 = vmatpush1.msra.mxu0 0.0
    %5182 = vmatprep.mubr.f32.mxu0 0.0
    %5183 = vmatmul.mubr.f32.gmra.mrb[0].mxu0 %v5116
    %v5184 = vpop.f32.mrb[0].mxu0
    %v5185 = vadd.f32 0.0, %v5184
    %v5186 = vpop.f32.mrb[0].mxu0
    %5187 = vdwg.mxu0
    %v5189 = vrot.slane %v5185, 6
    %v5191 = vadd.f32 %v4675, %v5189
    %v5192 = vsub.f32 0.0, %v5191
    %v5193 = vmul.f32 %v5192, 1.442695
    %v5194 = vpow.pop %v5193
    %v5195 = vadd.f32 %v5194, 1.0
    %v5196 = vrcp.pop %v5195
    %v5197 = vmul.f32 1.0, %v5196
    %5198 = vmatprep.subr.mxu0 0.0
    %5199 = vmatpush1.msra.mxu0 %v4861
    %5200 = vmatprep.subr.mxu0 0.0
    %5201 = vmatpush1.msra.mxu0 %v4862
    %5202 = vmatprep.subr.mxu0 0.0
    %5203 = vmatpush1.msra.mxu0 %v4950
    %5204 = vmatprep.subr.mxu0 0.0
    %5205 = vmatpush1.msra.mxu0 0.0
    %5206 = vmatprep.subr.mxu0 0.0
    %5207 = vmatpush1.msra.mxu0 0.0
    %5208 = vmatprep.subr.mxu0 0.0
    %5209 = vmatpush1.msra.mxu0 0.0
    %5210 = vmatprep.subr.mxu0 0.0
    %5211 = vmatpush1.msra.mxu0 0.0
    %5212 = vmatprep.subr.mxu0 0.0
    %5213 = vmatpush1.msra.mxu0 0.0
    %5214 = vmatprep.subr.mxu0 0.0
    %5215 = vmatpush1.msra.mxu0 0.0
    %5216 = vmatprep.subr.mxu0 0.0
    %5217 = vmatpush1.msra.mxu0 0.0
    %5218 = vmatprep.subr.mxu0 0.0
    %5219 = vmatpush1.msra.mxu0 0.0
    %5220 = vmatprep.subr.mxu0 0.0
    %5221 = vmatpush1.msra.mxu0 0.0
    %5222 = vmatprep.subr.mxu0 0.0
    %5223 = vmatpush1.msra.mxu0 0.0
    %5224 = vmatprep.subr.mxu0 0.0
    %5225 = vmatpush1.msra.mxu0 0.0
    %5226 = vmatprep.subr.mxu0 0.0
    %5227 = vmatpush1.msra.mxu0 0.0
    %5228 = vmatprep.subr.mxu0 0.0
    %5229 = vmatpush1.msra.mxu0 0.0
    %5230 = vmatprep.subr.mxu0 0.0
    %5231 = vmatpush1.msra.mxu0 0.0
    %5232 = vmatprep.subr.mxu0 0.0
    %5233 = vmatpush1.msra.mxu0 0.0
    %5234 = vmatprep.subr.mxu0 0.0
    %5235 = vmatpush1.msra.mxu0 0.0
    %5236 = vmatprep.subr.mxu0 0.0
    %5237 = vmatpush1.msra.mxu0 0.0
    %5238 = vmatprep.subr.mxu0 0.0
    %5239 = vmatpush1.msra.mxu0 0.0
    %5240 = vmatprep.subr.mxu0 0.0
    %5241 = vmatpush1.msra.mxu0 0.0
    %5242 = vmatprep.subr.mxu0 0.0
    %5243 = vmatpush1.msra.mxu0 0.0
    %5244 = vmatprep.subr.mxu0 0.0
    %5245 = vmatpush1.msra.mxu0 0.0
    %5246 = vmatprep.subr.mxu0 0.0
    %5247 = vmatpush1.msra.mxu0 0.0
    %5248 = vmatprep.subr.mxu0 0.0
    %5249 = vmatpush1.msra.mxu0 0.0
    %5250 = vmatprep.subr.mxu0 0.0
    %5251 = vmatpush1.msra.mxu0 0.0
    %5252 = vmatprep.subr.mxu0 0.0
    %5253 = vmatpush1.msra.mxu0 0.0
    %5254 = vmatprep.subr.mxu0 0.0
    %5255 = vmatpush1.msra.mxu0 0.0
    %5256 = vmatprep.subr.mxu0 0.0
    %5257 = vmatpush1.msra.mxu0 0.0
    %5258 = vmatprep.subr.mxu0 0.0
    %5259 = vmatpush1.msra.mxu0 0.0
    %5260 = vmatprep.subr.mxu0 0.0
    %5261 = vmatpush1.msra.mxu0 0.0
    %5262 = vmatprep.mubr.f32.mxu0 0.0
    %5263 = vmatmul.mubr.f32.gmra.mrb[0].mxu0 %v5116
    %v5264 = vpop.f32.mrb[0].mxu0
    %v5265 = vadd.f32 0.0, %v5264
    %v5266 = vpop.f32.mrb[0].mxu0
    %5267 = vdwg.mxu0
    %v5269 = vrot.slane %v5265, 6
    %v5271 = vadd.f32 %v4762, %v5269
    %v5272 = vsub.f32 0.0, %v5271
    %v5273 = vmul.f32 %v5272, 1.442695
    %v5274 = vpow.pop %v5273
    %v5275 = vadd.f32 %v5274, 1.0
    %v5276 = vrcp.pop %v5275
    %v5277 = vmul.f32 1.0, %v5276
    %5278 = vmatprep.subr.mxu0 0.0
    %5279 = vmatpush1.msra.mxu0 %v4865
    %5280 = vmatprep.subr.mxu0 0.0
    %5281 = vmatpush1.msra.mxu0 %v4866
    %5282 = vmatprep.subr.mxu0 0.0
    %5283 = vmatpush1.msra.mxu0 %v5034
    %5284 = vmatprep.subr.mxu0 0.0
    %5285 = vmatpush1.msra.mxu0 0.0
    %5286 = vmatprep.subr.mxu0 0.0
    %5287 = vmatpush1.msra.mxu0 0.0
    %5288 = vmatprep.subr.mxu0 0.0
    %5289 = vmatpush1.msra.mxu0 0.0
    %5290 = vmatprep.subr.mxu0 0.0
    %5291 = vmatpush1.msra.mxu0 0.0
    %5292 = vmatprep.subr.mxu0 0.0
    %5293 = vmatpush1.msra.mxu0 0.0
    %5294 = vmatprep.subr.mxu0 0.0
    %5295 = vmatpush1.msra.mxu0 0.0
    %5296 = vmatprep.subr.mxu0 0.0
    %5297 = vmatpush1.msra.mxu0 0.0
    %5298 = vmatprep.subr.mxu0 0.0
    %5299 = vmatpush1.msra.mxu0 0.0
    %5300 = vmatprep.subr.mxu0 0.0
    %5301 = vmatpush1.msra.mxu0 0.0
    %5302 = vmatprep.subr.mxu0 0.0
    %5303 = vmatpush1.msra.mxu0 0.0
    %5304 = vmatprep.subr.mxu0 0.0
    %5305 = vmatpush1.msra.mxu0 0.0
    %5306 = vmatprep.subr.mxu0 0.0
    %5307 = vmatpush1.msra.mxu0 0.0
    %5308 = vmatprep.subr.mxu0 0.0
    %5309 = vmatpush1.msra.mxu0 0.0
    %5310 = vmatprep.subr.mxu0 0.0
    %5311 = vmatpush1.msra.mxu0 0.0
    %5312 = vmatprep.subr.mxu0 0.0
    %5313 = vmatpush1.msra.mxu0 0.0
    %5314 = vmatprep.subr.mxu0 0.0
    %5315 = vmatpush1.msra.mxu0 0.0
    %5316 = vmatprep.subr.mxu0 0.0
    %5317 = vmatpush1.msra.mxu0 0.0
    %5318 = vmatprep.subr.mxu0 0.0
    %5319 = vmatpush1.msra.mxu0 0.0
    %5320 = vmatprep.subr.mxu0 0.0
    %5321 = vmatpush1.msra.mxu0 0.0
    %5322 = vmatprep.subr.mxu0 0.0
    %5323 = vmatpush1.msra.mxu0 0.0
    %5324 = vmatprep.subr.mxu0 0.0
    %5325 = vmatpush1.msra.mxu0 0.0
    %5326 = vmatprep.subr.mxu0 0.0
    %5327 = vmatpush1.msra.mxu0 0.0
    %5328 = vmatprep.subr.mxu0 0.0
    %5329 = vmatpush1.msra.mxu0 0.0
    %5330 = vmatprep.subr.mxu0 0.0
    %5331 = vmatpush1.msra.mxu0 0.0
    %5332 = vmatprep.subr.mxu0 0.0
    %5333 = vmatpush1.msra.mxu0 0.0
    %5334 = vmatprep.subr.mxu0 0.0
    %5335 = vmatpush1.msra.mxu0 0.0
    %5336 = vmatprep.subr.mxu0 0.0
    %5337 = vmatpush1.msra.mxu0 0.0
    %5338 = vmatprep.subr.mxu0 0.0
    %5339 = vmatpush1.msra.mxu0 0.0
    %5340 = vmatprep.subr.mxu0 0.0
    %5341 = vmatpush1.msra.mxu0 0.0
    %5342 = vmatprep.mubr.f32.mxu0 0.0
    %5343 = vmatmul.mubr.f32.gmra.mrb[0].mxu0 %v5116
    %v5344 = vpop.f32.mrb[0].mxu0
    %v5345 = vadd.f32 %v5032, %v5344
    %v5346 = vpop.f32.mrb[0].mxu0
    %5347 = vdwg.mxu0
    %v5349 = vrot.slane %v5345, 6
    %v5351 = vmul.f32 %v5197, %v5349
    %v5352 = vadd.f32 %v4849, %v5351
    %v5353 = vtanh.pop %v5352
    %v5354 = vsub.f32 1.0, %v5277
    %v5355 = vmul.f32 %v5354, %v5353
    %v5356 = vrot.slane %v5112, 6
    %v5358 = vmul.f32 %v5277, %v5356
    %v5359 = vadd.f32 %v5355, %v5358
    %vm5360 = vcmask 158723
    %5361 = vst.msk [vmem:[#allocation4 - $0x2] sm:$0x8] %vm5360, %v5359
    %v5363 = vrot.slane %v5359, 2
    %v5364 = vsel %vm376, %v5363, 0
    %5366 = vmatprep.subr.mxu0 0.0
    %5367 = vmatpush1.msra.mxu0 %v4857
    %5368 = vmatprep.subr.mxu0 0.0
    %5369 = vmatpush1.msra.mxu0 %v4858
    %5370 = vmatprep.subr.mxu0 0.0
    %5371 = vmatpush1.msra.mxu0 %v4870
    %5372 = vmatprep.subr.mxu0 0.0
    %5373 = vmatpush1.msra.mxu0 0.0
    %5374 = vmatprep.subr.mxu0 0.0
    %5375 = vmatpush1.msra.mxu0 0.0
    %5376 = vmatprep.subr.mxu0 0.0
    %5377 = vmatpush1.msra.mxu0 0.0
    %5378 = vmatprep.subr.mxu0 0.0
    %5379 = vmatpush1.msra.mxu0 0.0
    %5380 = vmatprep.subr.mxu0 0.0
    %5381 = vmatpush1.msra.mxu0 0.0
    %5382 = vmatprep.subr.mxu0 0.0
    %5383 = vmatpush1.msra.mxu0 0.0
    %5384 = vmatprep.subr.mxu0 0.0
    %5385 = vmatpush1.msra.mxu0 0.0
    %5386 = vmatprep.subr.mxu0 0.0
    %5387 = vmatpush1.msra.mxu0 0.0
    %5388 = vmatprep.subr.mxu0 0.0
    %5389 = vmatpush1.msra.mxu0 0.0
    %5390 = vmatprep.subr.mxu0 0.0
    %5391 = vmatpush1.msra.mxu0 0.0
    %5392 = vmatprep.subr.mxu0 0.0
    %5393 = vmatpush1.msra.mxu0 0.0
    %5394 = vmatprep.subr.mxu0 0.0
    %5395 = vmatpush1.msra.mxu0 0.0
    %5396 = vmatprep.subr.mxu0 0.0
    %5397 = vmatpush1.msra.mxu0 0.0
    %5398 = vmatprep.subr.mxu0 0.0
    %5399 = vmatpush1.msra.mxu0 0.0
    %5400 = vmatprep.subr.mxu0 0.0
    %5401 = vmatpush1.msra.mxu0 0.0
    %5402 = vmatprep.subr.mxu0 0.0
    %5403 = vmatpush1.msra.mxu0 0.0
    %5404 = vmatprep.subr.mxu0 0.0
    %5405 = vmatpush1.msra.mxu0 0.0
    %5406 = vmatprep.subr.mxu0 0.0
    %5407 = vmatpush1.msra.mxu0 0.0
    %5408 = vmatprep.subr.mxu0 0.0
    %5409 = vmatpush1.msra.mxu0 0.0
    %5410 = vmatprep.subr.mxu0 0.0
    %5411 = vmatpush1.msra.mxu0 0.0
    %5412 = vmatprep.subr.mxu0 0.0
    %5413 = vmatpush1.msra.mxu0 0.0
    %5414 = vmatprep.subr.mxu0 0.0
    %5415 = vmatpush1.msra.mxu0 0.0
    %5416 = vmatprep.subr.mxu0 0.0
    %5417 = vmatpush1.msra.mxu0 0.0
    %5418 = vmatprep.subr.mxu0 0.0
    %5419 = vmatpush1.msra.mxu0 0.0
    %5420 = vmatprep.subr.mxu0 0.0
    %5421 = vmatpush1.msra.mxu0 0.0
    %5422 = vmatprep.subr.mxu0 0.0
    %5423 = vmatpush1.msra.mxu0 0.0
    %5424 = vmatprep.subr.mxu0 0.0
    %5425 = vmatpush1.msra.mxu0 0.0
    %5426 = vmatprep.subr.mxu0 0.0
    %5427 = vmatpush1.msra.mxu0 0.0
    %5428 = vmatprep.subr.mxu0 0.0
    %5429 = vmatpush1.msra.mxu0 0.0
    %5430 = vmatprep.mubr.f32.mxu0 0.0
    %5431 = vmatmul.mubr.f32.gmra.mrb[0].mxu0 %v5364
    %v5432 = vpop.f32.mrb[0].mxu0
    %v5433 = vadd.f32 0.0, %v5432
    %v5434 = vpop.f32.mrb[0].mxu0
    %5435 = vdwg.mxu0
    %v5437 = vrot.slane %v5433, 4
    %v5439 = vadd.f32 %v4675, %v5437
    %v5440 = vsub.f32 0.0, %v5439
    %v5441 = vmul.f32 %v5440, 1.442695
    %v5442 = vpow.pop %v5441
    %v5443 = vadd.f32 %v5442, 1.0
    %v5444 = vrcp.pop %v5443
    %v5445 = vmul.f32 1.0, %v5444
    %5446 = vmatprep.subr.mxu0 0.0
    %5447 = vmatpush1.msra.mxu0 %v4861
    %5448 = vmatprep.subr.mxu0 0.0
    %5449 = vmatpush1.msra.mxu0 %v4862
    %5450 = vmatprep.subr.mxu0 0.0
    %5451 = vmatpush1.msra.mxu0 %v4950
    %5452 = vmatprep.subr.mxu0 0.0
    %5453 = vmatpush1.msra.mxu0 0.0
    %5454 = vmatprep.subr.mxu0 0.0
    %5455 = vmatpush1.msra.mxu0 0.0
    %5456 = vmatprep.subr.mxu0 0.0
    %5457 = vmatpush1.msra.mxu0 0.0
    %5458 = vmatprep.subr.mxu0 0.0
    %5459 = vmatpush1.msra.mxu0 0.0
    %5460 = vmatprep.subr.mxu0 0.0
    %5461 = vmatpush1.msra.mxu0 0.0
    %5462 = vmatprep.subr.mxu0 0.0
    %5463 = vmatpush1.msra.mxu0 0.0
    %5464 = vmatprep.subr.mxu0 0.0
    %5465 = vmatpush1.msra.mxu0 0.0
    %5466 = vmatprep.subr.mxu0 0.0
    %5467 = vmatpush1.msra.mxu0 0.0
    %5468 = vmatprep.subr.mxu0 0.0
    %5469 = vmatpush1.msra.mxu0 0.0
    %5470 = vmatprep.subr.mxu0 0.0
    %5471 = vmatpush1.msra.mxu0 0.0
    %5472 = vmatprep.subr.mxu0 0.0
    %5473 = vmatpush1.msra.mxu0 0.0
    %5474 = vmatprep.subr.mxu0 0.0
    %5475 = vmatpush1.msra.mxu0 0.0
    %5476 = vmatprep.subr.mxu0 0.0
    %5477 = vmatpush1.msra.mxu0 0.0
    %5478 = vmatprep.subr.mxu0 0.0
    %5479 = vmatpush1.msra.mxu0 0.0
    %5480 = vmatprep.subr.mxu0 0.0
    %5481 = vmatpush1.msra.mxu0 0.0
    %5482 = vmatprep.subr.mxu0 0.0
    %5483 = vmatpush1.msra.mxu0 0.0
    %5484 = vmatprep.subr.mxu0 0.0
    %5485 = vmatpush1.msra.mxu0 0.0
    %5486 = vmatprep.subr.mxu0 0.0
    %5487 = vmatpush1.msra.mxu0 0.0
    %5488 = vmatprep.subr.mxu0 0.0
    %5489 = vmatpush1.msra.mxu0 0.0
    %5490 = vmatprep.subr.mxu0 0.0
    %5491 = vmatpush1.msra.mxu0 0.0
    %5492 = vmatprep.subr.mxu0 0.0
    %5493 = vmatpush1.msra.mxu0 0.0
    %5494 = vmatprep.subr.mxu0 0.0
    %5495 = vmatpush1.msra.mxu0 0.0
    %5496 = vmatprep.subr.mxu0 0.0
    %5497 = vmatpush1.msra.mxu0 0.0
    %5498 = vmatprep.subr.mxu0 0.0
    %5499 = vmatpush1.msra.mxu0 0.0
    %5500 = vmatprep.subr.mxu0 0.0
    %5501 = vmatpush1.msra.mxu0 0.0
    %5502 = vmatprep.subr.mxu0 0.0
    %5503 = vmatpush1.msra.mxu0 0.0
    %5504 = vmatprep.subr.mxu0 0.0
    %5505 = vmatpush1.msra.mxu0 0.0
    %5506 = vmatprep.subr.mxu0 0.0
    %5507 = vmatpush1.msra.mxu0 0.0
    %5508 = vmatprep.subr.mxu0 0.0
    %5509 = vmatpush1.msra.mxu0 0.0
    %5510 = vmatprep.mubr.f32.mxu0 0.0
    %5511 = vmatmul.mubr.f32.gmra.mrb[0].mxu0 %v5364
    %v5512 = vpop.f32.mrb[0].mxu0
    %v5513 = vadd.f32 0.0, %v5512
    %v5514 = vpop.f32.mrb[0].mxu0
    %5515 = vdwg.mxu0
    %v5517 = vrot.slane %v5513, 4
    %v5519 = vadd.f32 %v4762, %v5517
    %v5520 = vsub.f32 0.0, %v5519
    %v5521 = vmul.f32 %v5520, 1.442695
    %v5522 = vpow.pop %v5521
    %v5523 = vadd.f32 %v5522, 1.0
    %v5524 = vrcp.pop %v5523
    %v5525 = vmul.f32 1.0, %v5524
    %5526 = vmatprep.subr.mxu0 0.0
    %5527 = vmatpush1.msra.mxu0 %v4865
    %5528 = vmatprep.subr.mxu0 0.0
    %5529 = vmatpush1.msra.mxu0 %v4866
    %5530 = vmatprep.subr.mxu0 0.0
    %5531 = vmatpush1.msra.mxu0 %v5034
    %5532 = vmatprep.subr.mxu0 0.0
    %5533 = vmatpush1.msra.mxu0 0.0
    %5534 = vmatprep.subr.mxu0 0.0
    %5535 = vmatpush1.msra.mxu0 0.0
    %5536 = vmatprep.subr.mxu0 0.0
    %5537 = vmatpush1.msra.mxu0 0.0
    %5538 = vmatprep.subr.mxu0 0.0
    %5539 = vmatpush1.msra.mxu0 0.0
    %5540 = vmatprep.subr.mxu0 0.0
    %5541 = vmatpush1.msra.mxu0 0.0
    %5542 = vmatprep.subr.mxu0 0.0
    %5543 = vmatpush1.msra.mxu0 0.0
    %5544 = vmatprep.subr.mxu0 0.0
    %5545 = vmatpush1.msra.mxu0 0.0
    %5546 = vmatprep.subr.mxu0 0.0
    %5547 = vmatpush1.msra.mxu0 0.0
    %5548 = vmatprep.subr.mxu0 0.0
    %5549 = vmatpush1.msra.mxu0 0.0
    %5550 = vmatprep.subr.mxu0 0.0
    %5551 = vmatpush1.msra.mxu0 0.0
    %5552 = vmatprep.subr.mxu0 0.0
    %5553 = vmatpush1.msra.mxu0 0.0
    %5554 = vmatprep.subr.mxu0 0.0
    %5555 = vmatpush1.msra.mxu0 0.0
    %5556 = vmatprep.subr.mxu0 0.0
    %5557 = vmatpush1.msra.mxu0 0.0
    %5558 = vmatprep.subr.mxu0 0.0
    %5559 = vmatpush1.msra.mxu0 0.0
    %5560 = vmatprep.subr.mxu0 0.0
    %5561 = vmatpush1.msra.mxu0 0.0
    %5562 = vmatprep.subr.mxu0 0.0
    %5563 = vmatpush1.msra.mxu0 0.0
    %5564 = vmatprep.subr.mxu0 0.0
    %5565 = vmatpush1.msra.mxu0 0.0
    %5566 = vmatprep.subr.mxu0 0.0
    %5567 = vmatpush1.msra.mxu0 0.0
    %5568 = vmatprep.subr.mxu0 0.0
    %5569 = vmatpush1.msra.mxu0 0.0
    %5570 = vmatprep.subr.mxu0 0.0
    %5571 = vmatpush1.msra.mxu0 0.0
    %5572 = vmatprep.subr.mxu0 0.0
    %5573 = vmatpush1.msra.mxu0 0.0
    %5574 = vmatprep.subr.mxu0 0.0
    %5575 = vmatpush1.msra.mxu0 0.0
    %5576 = vmatprep.subr.mxu0 0.0
    %5577 = vmatpush1.msra.mxu0 0.0
    %5578 = vmatprep.subr.mxu0 0.0
    %5579 = vmatpush1.msra.mxu0 0.0
    %5580 = vmatprep.subr.mxu0 0.0
    %5581 = vmatpush1.msra.mxu0 0.0
    %5582 = vmatprep.subr.mxu0 0.0
    %5583 = vmatpush1.msra.mxu0 0.0
    %5584 = vmatprep.subr.mxu0 0.0
    %5585 = vmatpush1.msra.mxu0 0.0
    %5586 = vmatprep.subr.mxu0 0.0
    %5587 = vmatpush1.msra.mxu0 0.0
    %5588 = vmatprep.subr.mxu0 0.0
    %5589 = vmatpush1.msra.mxu0 0.0
    %5590 = vmatprep.mubr.f32.mxu0 0.0
    %5591 = vmatmul.mubr.f32.gmra.mrb[0].mxu0 %v5364
    %v5592 = vpop.f32.mrb[0].mxu0
    %v5593 = vadd.f32 %v5032, %v5592
    %v5594 = vpop.f32.mrb[0].mxu0
    %5595 = vdwg.mxu0
    %v5597 = vrot.slane %v5593, 4
    %v5599 = vmul.f32 %v5445, %v5597
    %v5600 = vadd.f32 %v4849, %v5599
    %v5601 = vtanh.pop %v5600
    %v5602 = vsub.f32 1.0, %v5525
    %v5603 = vmul.f32 %v5602, %v5601
    %v5604 = vrot.slane %v5359, 6
    %v5606 = vmul.f32 %v5525, %v5604
    %v5607 = vadd.f32 %v5603, %v5606
    %vm5608 = vcmask 160773
    %5609 = vst.msk [vmem:[#allocation4 - $0x3] sm:$0x20] %vm5608, %v5607
    %v5611 = vrot.slane %v5607, 4
    %v5612 = vsel %vm376, %v5611, 0
    %5614 = vmatprep.subr.mxu0 0.0
    %5615 = vmatpush1.msra.mxu0 %v4857
    %5616 = vmatprep.subr.mxu0 0.0
    %5617 = vmatpush1.msra.mxu0 %v4858
    %5618 = vmatprep.subr.mxu0 0.0
    %5619 = vmatpush1.msra.mxu0 %v4870
    %5620 = vmatprep.subr.mxu0 0.0
    %5621 = vmatpush1.msra.mxu0 0.0
    %5622 = vmatprep.subr.mxu0 0.0
    %5623 = vmatpush1.msra.mxu0 0.0
    %5624 = vmatprep.subr.mxu0 0.0
    %5625 = vmatpush1.msra.mxu0 0.0
    %5626 = vmatprep.subr.mxu0 0.0
    %5627 = vmatpush1.msra.mxu0 0.0
    %5628 = vmatprep.subr.mxu0 0.0
    %5629 = vmatpush1.msra.mxu0 0.0
    %5630 = vmatprep.subr.mxu0 0.0
    %5631 = vmatpush1.msra.mxu0 0.0
    %5632 = vmatprep.subr.mxu0 0.0
    %5633 = vmatpush1.msra.mxu0 0.0
    %5634 = vmatprep.subr.mxu0 0.0
    %5635 = vmatpush1.msra.mxu0 0.0
    %5636 = vmatprep.subr.mxu0 0.0
    %5637 = vmatpush1.msra.mxu0 0.0
    %5638 = vmatprep.subr.mxu0 0.0
    %5639 = vmatpush1.msra.mxu0 0.0
    %5640 = vmatprep.subr.mxu0 0.0
    %5641 = vmatpush1.msra.mxu0 0.0
    %5642 = vmatprep.subr.mxu0 0.0
    %5643 = vmatpush1.msra.mxu0 0.0
    %5644 = vmatprep.subr.mxu0 0.0
    %5645 = vmatpush1.msra.mxu0 0.0
    %5646 = vmatprep.subr.mxu0 0.0
    %5647 = vmatpush1.msra.mxu0 0.0
    %5648 = vmatprep.subr.mxu0 0.0
    %5649 = vmatpush1.msra.mxu0 0.0
    %5650 = vmatprep.subr.mxu0 0.0
    %5651 = vmatpush1.msra.mxu0 0.0
    %5652 = vmatprep.subr.mxu0 0.0
    %5653 = vmatpush1.msra.mxu0 0.0
    %5654 = vmatprep.subr.mxu0 0.0
    %5655 = vmatpush1.msra.mxu0 0.0
    %5656 = vmatprep.subr.mxu0 0.0
    %5657 = vmatpush1.msra.mxu0 0.0
    %5658 = vmatprep.subr.mxu0 0.0
    %5659 = vmatpush1.msra.mxu0 0.0
    %5660 = vmatprep.subr.mxu0 0.0
    %5661 = vmatpush1.msra.mxu0 0.0
    %5662 = vmatprep.subr.mxu0 0.0
    %5663 = vmatpush1.msra.mxu0 0.0
    %5664 = vmatprep.subr.mxu0 0.0
    %5665 = vmatpush1.msra.mxu0 0.0
    %5666 = vmatprep.subr.mxu0 0.0
    %5667 = vmatpush1.msra.mxu0 0.0
    %5668 = vmatprep.subr.mxu0 0.0
    %5669 = vmatpush1.msra.mxu0 0.0
    %5670 = vmatprep.subr.mxu0 0.0
    %5671 = vmatpush1.msra.mxu0 0.0
    %5672 = vmatprep.subr.mxu0 0.0
    %5673 = vmatpush1.msra.mxu0 0.0
    %5674 = vmatprep.subr.mxu0 0.0
    %5675 = vmatpush1.msra.mxu0 0.0
    %5676 = vmatprep.subr.mxu0 0.0
    %5677 = vmatpush1.msra.mxu0 0.0
    %5678 = vmatprep.mubr.f32.mxu0 0.0
    %5679 = vmatmul.mubr.f32.gmra.mrb[0].mxu0 %v5612
    %v5680 = vpop.f32.mrb[0].mxu0
    %v5681 = vadd.f32 0.0, %v5680
    %v5682 = vpop.f32.mrb[0].mxu0
    %5683 = vdwg.mxu0
    %v5685 = vrot.slane %v5681, 2
    %v5687 = vadd.f32 %v4675, %v5685
    %v5688 = vsub.f32 0.0, %v5687
    %v5689 = vmul.f32 %v5688, 1.442695
    %v5690 = vpow.pop %v5689
    %v5691 = vadd.f32 %v5690, 1.0
    %v5692 = vrcp.pop %v5691
    %v5693 = vmul.f32 1.0, %v5692
    %5694 = vmatprep.subr.mxu0 0.0
    %5695 = vmatpush1.msra.mxu0 %v4861
    %5696 = vmatprep.subr.mxu0 0.0
    %5697 = vmatpush1.msra.mxu0 %v4862
    %5698 = vmatprep.subr.mxu0 0.0
    %5699 = vmatpush1.msra.mxu0 %v4950
    %5700 = vmatprep.subr.mxu0 0.0
    %5701 = vmatpush1.msra.mxu0 0.0
    %5702 = vmatprep.subr.mxu0 0.0
    %5703 = vmatpush1.msra.mxu0 0.0
    %5704 = vmatprep.subr.mxu0 0.0
    %5705 = vmatpush1.msra.mxu0 0.0
    %5706 = vmatprep.subr.mxu0 0.0
    %5707 = vmatpush1.msra.mxu0 0.0
    %5708 = vmatprep.subr.mxu0 0.0
    %5709 = vmatpush1.msra.mxu0 0.0
    %5710 = vmatprep.subr.mxu0 0.0
    %5711 = vmatpush1.msra.mxu0 0.0
    %5712 = vmatprep.subr.mxu0 0.0
    %5713 = vmatpush1.msra.mxu0 0.0
    %5714 = vmatprep.subr.mxu0 0.0
    %5715 = vmatpush1.msra.mxu0 0.0
    %5716 = vmatprep.subr.mxu0 0.0
    %5717 = vmatpush1.msra.mxu0 0.0
    %5718 = vmatprep.subr.mxu0 0.0
    %5719 = vmatpush1.msra.mxu0 0.0
    %5720 = vmatprep.subr.mxu0 0.0
    %5721 = vmatpush1.msra.mxu0 0.0
    %5722 = vmatprep.subr.mxu0 0.0
    %5723 = vmatpush1.msra.mxu0 0.0
    %5724 = vmatprep.subr.mxu0 0.0
    %5725 = vmatpush1.msra.mxu0 0.0
    %5726 = vmatprep.subr.mxu0 0.0
    %5727 = vmatpush1.msra.mxu0 0.0
    %5728 = vmatprep.subr.mxu0 0.0
    %5729 = vmatpush1.msra.mxu0 0.0
    %5730 = vmatprep.subr.mxu0 0.0
    %5731 = vmatpush1.msra.mxu0 0.0
    %5732 = vmatprep.subr.mxu0 0.0
    %5733 = vmatpush1.msra.mxu0 0.0
    %5734 = vmatprep.subr.mxu0 0.0
    %5735 = vmatpush1.msra.mxu0 0.0
    %5736 = vmatprep.subr.mxu0 0.0
    %5737 = vmatpush1.msra.mxu0 0.0
    %5738 = vmatprep.subr.mxu0 0.0
    %5739 = vmatpush1.msra.mxu0 0.0
    %5740 = vmatprep.subr.mxu0 0.0
    %5741 = vmatpush1.msra.mxu0 0.0
    %5742 = vmatprep.subr.mxu0 0.0
    %5743 = vmatpush1.msra.mxu0 0.0
    %5744 = vmatprep.subr.mxu0 0.0
    %5745 = vmatpush1.msra.mxu0 0.0
    %5746 = vmatprep.subr.mxu0 0.0
    %5747 = vmatpush1.msra.mxu0 0.0
    %5748 = vmatprep.subr.mxu0 0.0
    %5749 = vmatpush1.msra.mxu0 0.0
    %5750 = vmatprep.subr.mxu0 0.0
    %5751 = vmatpush1.msra.mxu0 0.0
    %5752 = vmatprep.subr.mxu0 0.0
    %5753 = vmatpush1.msra.mxu0 0.0
    %5754 = vmatprep.subr.mxu0 0.0
    %5755 = vmatpush1.msra.mxu0 0.0
    %5756 = vmatprep.subr.mxu0 0.0
    %5757 = vmatpush1.msra.mxu0 0.0
    %5758 = vmatprep.mubr.f32.mxu0 0.0
    %5759 = vmatmul.mubr.f32.gmra.mrb[0].mxu0 %v5612
    %v5760 = vpop.f32.mrb[0].mxu0
    %v5761 = vadd.f32 0.0, %v5760
    %v5762 = vpop.f32.mrb[0].mxu0
    %5763 = vdwg.mxu0
    %v5765 = vrot.slane %v5761, 2
    %v5767 = vadd.f32 %v4762, %v5765
    %v5768 = vsub.f32 0.0, %v5767
    %v5769 = vmul.f32 %v5768, 1.442695
    %v5770 = vpow.pop %v5769
    %v5771 = vadd.f32 %v5770, 1.0
    %v5772 = vrcp.pop %v5771
    %v5773 = vmul.f32 1.0, %v5772
    %5774 = vmatprep.subr.mxu0 0.0
    %5775 = vmatpush1.msra.mxu0 %v4865
    %5776 = vmatprep.subr.mxu0 0.0
    %5777 = vmatpush1.msra.mxu0 %v4866
    %5778 = vmatprep.subr.mxu0 0.0
    %5779 = vmatpush1.msra.mxu0 %v5034
    %5780 = vmatprep.subr.mxu0 0.0
    %5781 = vmatpush1.msra.mxu0 0.0
    %5782 = vmatprep.subr.mxu0 0.0
    %5783 = vmatpush1.msra.mxu0 0.0
    %5784 = vmatprep.subr.mxu0 0.0
    %5785 = vmatpush1.msra.mxu0 0.0
    %5786 = vmatprep.subr.mxu0 0.0
    %5787 = vmatpush1.msra.mxu0 0.0
    %5788 = vmatprep.subr.mxu0 0.0
    %5789 = vmatpush1.msra.mxu0 0.0
    %5790 = vmatprep.subr.mxu0 0.0
    %5791 = vmatpush1.msra.mxu0 0.0
    %5792 = vmatprep.subr.mxu0 0.0
    %5793 = vmatpush1.msra.mxu0 0.0
    %5794 = vmatprep.subr.mxu0 0.0
    %5795 = vmatpush1.msra.mxu0 0.0
    %5796 = vmatprep.subr.mxu0 0.0
    %5797 = vmatpush1.msra.mxu0 0.0
    %5798 = vmatprep.subr.mxu0 0.0
    %5799 = vmatpush1.msra.mxu0 0.0
    %5800 = vmatprep.subr.mxu0 0.0
    %5801 = vmatpush1.msra.mxu0 0.0
    %5802 = vmatprep.subr.mxu0 0.0
    %5803 = vmatpush1.msra.mxu0 0.0
    %5804 = vmatprep.subr.mxu0 0.0
    %5805 = vmatpush1.msra.mxu0 0.0
    %5806 = vmatprep.subr.mxu0 0.0
    %5807 = vmatpush1.msra.mxu0 0.0
    %5808 = vmatprep.subr.mxu0 0.0
    %5809 = vmatpush1.msra.mxu0 0.0
    %5810 = vmatprep.subr.mxu0 0.0
    %5811 = vmatpush1.msra.mxu0 0.0
    %5812 = vmatprep.subr.mxu0 0.0
    %5813 = vmatpush1.msra.mxu0 0.0
    %5814 = vmatprep.subr.mxu0 0.0
    %5815 = vmatpush1.msra.mxu0 0.0
    %5816 = vmatprep.subr.mxu0 0.0
    %5817 = vmatpush1.msra.mxu0 0.0
    %5818 = vmatprep.subr.mxu0 0.0
    %5819 = vmatpush1.msra.mxu0 0.0
    %5820 = vmatprep.subr.mxu0 0.0
    %5821 = vmatpush1.msra.mxu0 0.0
    %5822 = vmatprep.subr.mxu0 0.0
    %5823 = vmatpush1.msra.mxu0 0.0
    %5824 = vmatprep.subr.mxu0 0.0
    %5825 = vmatpush1.msra.mxu0 0.0
    %5826 = vmatprep.subr.mxu0 0.0
    %5827 = vmatpush1.msra.mxu0 0.0
    %5828 = vmatprep.subr.mxu0 0.0
    %5829 = vmatpush1.msra.mxu0 0.0
    %5830 = vmatprep.subr.mxu0 0.0
    %5831 = vmatpush1.msra.mxu0 0.0
    %5832 = vmatprep.subr.mxu0 0.0
    %5833 = vmatpush1.msra.mxu0 0.0
    %5834 = vmatprep.subr.mxu0 0.0
    %5835 = vmatpush1.msra.mxu0 0.0
    %5836 = vmatprep.subr.mxu0 0.0
    %5837 = vmatpush1.msra.mxu0 0.0
    %5838 = vmatprep.mubr.f32.mxu0 0.0
    %5839 = vmatmul.mubr.f32.gmra.mrb[0].mxu0 %v5612
    %v5840 = vpop.f32.mrb[0].mxu0
    %v5841 = vadd.f32 %v5032, %v5840
    %v5842 = vpop.f32.mrb[0].mxu0
    %5843 = vdwg.mxu0
    %v5845 = vrot.slane %v5841, 2
    %v5847 = vmul.f32 %v5693, %v5845
    %v5848 = vadd.f32 %v4849, %v5847
    %v5849 = vtanh.pop %v5848
    %v5850 = vsub.f32 1.0, %v5773
    %v5851 = vmul.f32 %v5850, %v5849
    %v5852 = vrot.slane %v5607, 6
    %v5854 = vmul.f32 %v5773, %v5852
    %v5855 = vadd.f32 %v5851, %v5854
    %vm5856 = vcmask 162823
    %5857 = vst.msk [vmem:[#allocation4 - $0x4] sm:$0x80] %vm5856, %v5855
    %v5859 = vrot.slane %v5855, 6
    %v5860 = vsel %vm376, %v5859, 0
    %5862 = vmatprep.subr.mxu0 0.0
    %5863 = vmatpush1.msra.mxu0 %v4857
    %5864 = vmatprep.subr.mxu0 0.0
    %5865 = vmatpush1.msra.mxu0 %v4858
    %5866 = vmatprep.subr.mxu0 0.0
    %5867 = vmatpush1.msra.mxu0 %v4870
    %5868 = vmatprep.subr.mxu0 0.0
    %5869 = vmatpush1.msra.mxu0 0.0
    %5870 = vmatprep.subr.mxu0 0.0
    %5871 = vmatpush1.msra.mxu0 0.0
    %5872 = vmatprep.subr.mxu0 0.0
    %5873 = vmatpush1.msra.mxu0 0.0
    %5874 = vmatprep.subr.mxu0 0.0
    %5875 = vmatpush1.msra.mxu0 0.0
    %5876 = vmatprep.subr.mxu0 0.0
    %5877 = vmatpush1.msra.mxu0 0.0
    %5878 = vmatprep.subr.mxu0 0.0
    %5879 = vmatpush1.msra.mxu0 0.0
    %5880 = vmatprep.subr.mxu0 0.0
    %5881 = vmatpush1.msra.mxu0 0.0
    %5882 = vmatprep.subr.mxu0 0.0
    %5883 = vmatpush1.msra.mxu0 0.0
    %5884 = vmatprep.subr.mxu0 0.0
    %5885 = vmatpush1.msra.mxu0 0.0
    %5886 = vmatprep.subr.mxu0 0.0
    %5887 = vmatpush1.msra.mxu0 0.0
    %5888 = vmatprep.subr.mxu0 0.0
    %5889 = vmatpush1.msra.mxu0 0.0
    %5890 = vmatprep.subr.mxu0 0.0
    %5891 = vmatpush1.msra.mxu0 0.0
    %5892 = vmatprep.subr.mxu0 0.0
    %5893 = vmatpush1.msra.mxu0 0.0
    %5894 = vmatprep.subr.mxu0 0.0
    %5895 = vmatpush1.msra.mxu0 0.0
    %5896 = vmatprep.subr.mxu0 0.0
    %5897 = vmatpush1.msra.mxu0 0.0
    %5898 = vmatprep.subr.mxu0 0.0
    %5899 = vmatpush1.msra.mxu0 0.0
    %5900 = vmatprep.subr.mxu0 0.0
    %5901 = vmatpush1.msra.mxu0 0.0
    %5902 = vmatprep.subr.mxu0 0.0
    %5903 = vmatpush1.msra.mxu0 0.0
    %5904 = vmatprep.subr.mxu0 0.0
    %5905 = vmatpush1.msra.mxu0 0.0
    %5906 = vmatprep.subr.mxu0 0.0
    %5907 = vmatpush1.msra.mxu0 0.0
    %5908 = vmatprep.subr.mxu0 0.0
    %5909 = vmatpush1.msra.mxu0 0.0
    %5910 = vmatprep.subr.mxu0 0.0
    %5911 = vmatpush1.msra.mxu0 0.0
    %5912 = vmatprep.subr.mxu0 0.0
    %5913 = vmatpush1.msra.mxu0 0.0
    %5914 = vmatprep.subr.mxu0 0.0
    %5915 = vmatpush1.msra.mxu0 0.0
    %5916 = vmatprep.subr.mxu0 0.0
    %5917 = vmatpush1.msra.mxu0 0.0
    %5918 = vmatprep.subr.mxu0 0.0
    %5919 = vmatpush1.msra.mxu0 0.0
    %5920 = vmatprep.subr.mxu0 0.0
    %5921 = vmatpush1.msra.mxu0 0.0
    %5922 = vmatprep.subr.mxu0 0.0
    %5923 = vmatpush1.msra.mxu0 0.0
    %5924 = vmatprep.subr.mxu0 0.0
    %5925 = vmatpush1.msra.mxu0 0.0
    %5926 = vmatprep.mubr.f32.mxu0 0.0
    %5927 = vmatmul.mubr.f32.gmra.mrb[0].mxu0 %v5860
    %v5928 = vpop.f32.mrb[0].mxu0
    %v5929 = vadd.f32 0.0, %v5928
    %v5930 = vpop.f32.mrb[0].mxu0
    %5931 = vdwg.mxu0
    %v5932 = vadd.f32 %v4680, %v5929
    %v5933 = vsub.f32 0.0, %v5932
    %v5934 = vmul.f32 %v5933, 1.442695
    %v5935 = vpow.pop %v5934
    %v5936 = vadd.f32 %v5935, 1.0
    %v5937 = vrcp.pop %v5936
    %v5938 = vmul.f32 1.0, %v5937
    %5939 = vmatprep.subr.mxu0 0.0
    %5940 = vmatpush1.msra.mxu0 %v4861
    %5941 = vmatprep.subr.mxu0 0.0
    %5942 = vmatpush1.msra.mxu0 %v4862
    %5943 = vmatprep.subr.mxu0 0.0
    %5944 = vmatpush1.msra.mxu0 %v4950
    %5945 = vmatprep.subr.mxu0 0.0
    %5946 = vmatpush1.msra.mxu0 0.0
    %5947 = vmatprep.subr.mxu0 0.0
    %5948 = vmatpush1.msra.mxu0 0.0
    %5949 = vmatprep.subr.mxu0 0.0
    %5950 = vmatpush1.msra.mxu0 0.0
    %5951 = vmatprep.subr.mxu0 0.0
    %5952 = vmatpush1.msra.mxu0 0.0
    %5953 = vmatprep.subr.mxu0 0.0
    %5954 = vmatpush1.msra.mxu0 0.0
    %5955 = vmatprep.subr.mxu0 0.0
    %5956 = vmatpush1.msra.mxu0 0.0
    %5957 = vmatprep.subr.mxu0 0.0
    %5958 = vmatpush1.msra.mxu0 0.0
    %5959 = vmatprep.subr.mxu0 0.0
    %5960 = vmatpush1.msra.mxu0 0.0
    %5961 = vmatprep.subr.mxu0 0.0
    %5962 = vmatpush1.msra.mxu0 0.0
    %5963 = vmatprep.subr.mxu0 0.0
    %5964 = vmatpush1.msra.mxu0 0.0
    %5965 = vmatprep.subr.mxu0 0.0
    %5966 = vmatpush1.msra.mxu0 0.0
    %5967 = vmatprep.subr.mxu0 0.0
    %5968 = vmatpush1.msra.mxu0 0.0
    %5969 = vmatprep.subr.mxu0 0.0
    %5970 = vmatpush1.msra.mxu0 0.0
    %5971 = vmatprep.subr.mxu0 0.0
    %5972 = vmatpush1.msra.mxu0 0.0
    %5973 = vmatprep.subr.mxu0 0.0
    %5974 = vmatpush1.msra.mxu0 0.0
    %5975 = vmatprep.subr.mxu0 0.0
    %5976 = vmatpush1.msra.mxu0 0.0
    %5977 = vmatprep.subr.mxu0 0.0
    %5978 = vmatpush1.msra.mxu0 0.0
    %5979 = vmatprep.subr.mxu0 0.0
    %5980 = vmatpush1.msra.mxu0 0.0
    %5981 = vmatprep.subr.mxu0 0.0
    %5982 = vmatpush1.msra.mxu0 0.0
    %5983 = vmatprep.subr.mxu0 0.0
    %5984 = vmatpush1.msra.mxu0 0.0
    %5985 = vmatprep.subr.mxu0 0.0
    %5986 = vmatpush1.msra.mxu0 0.0
    %5987 = vmatprep.subr.mxu0 0.0
    %5988 = vmatpush1.msra.mxu0 0.0
    %5989 = vmatprep.subr.mxu0 0.0
    %5990 = vmatpush1.msra.mxu0 0.0
    %5991 = vmatprep.subr.mxu0 0.0
    %5992 = vmatpush1.msra.mxu0 0.0
    %5993 = vmatprep.subr.mxu0 0.0
    %5994 = vmatpush1.msra.mxu0 0.0
    %5995 = vmatprep.subr.mxu0 0.0
    %5996 = vmatpush1.msra.mxu0 0.0
    %5997 = vmatprep.subr.mxu0 0.0
    %5998 = vmatpush1.msra.mxu0 0.0
    %5999 = vmatprep.subr.mxu0 0.0
    %6000 = vmatpush1.msra.mxu0 0.0
    %6001 = vmatprep.subr.mxu0 0.0
    %6002 = vmatpush1.msra.mxu0 0.0
    %6003 = vmatprep.mubr.f32.mxu0 0.0
    %6004 = vmatmul.mubr.f32.gmra.mrb[0].mxu0 %v5860
    %v6005 = vpop.f32.mrb[0].mxu0
    %v6006 = vadd.f32 0.0, %v6005
    %v6007 = vpop.f32.mrb[0].mxu0
    %6008 = vdwg.mxu0
    %v6009 = vadd.f32 %v4767, %v6006
    %v6010 = vsub.f32 0.0, %v6009
    %v6011 = vmul.f32 %v6010, 1.442695
    %v6012 = vpow.pop %v6011
    %v6013 = vadd.f32 %v6012, 1.0
    %v6014 = vrcp.pop %v6013
    %v6015 = vmul.f32 1.0, %v6014
    %6016 = vmatprep.subr.mxu0 0.0
    %6017 = vmatpush1.msra.mxu0 %v4865
    %6018 = vmatprep.subr.mxu0 0.0
    %6019 = vmatpush1.msra.mxu0 %v4866
    %6020 = vmatprep.subr.mxu0 0.0
    %6021 = vmatpush1.msra.mxu0 %v5034
    %6022 = vmatprep.subr.mxu0 0.0
    %6023 = vmatpush1.msra.mxu0 0.0
    %6024 = vmatprep.subr.mxu0 0.0
    %6025 = vmatpush1.msra.mxu0 0.0
    %6026 = vmatprep.subr.mxu0 0.0
    %6027 = vmatpush1.msra.mxu0 0.0
    %6028 = vmatprep.subr.mxu0 0.0
    %6029 = vmatpush1.msra.mxu0 0.0
    %6030 = vmatprep.subr.mxu0 0.0
    %6031 = vmatpush1.msra.mxu0 0.0
    %6032 = vmatprep.subr.mxu0 0.0
    %6033 = vmatpush1.msra.mxu0 0.0
    %6034 = vmatprep.subr.mxu0 0.0
    %6035 = vmatpush1.msra.mxu0 0.0
    %6036 = vmatprep.subr.mxu0 0.0
    %6037 = vmatpush1.msra.mxu0 0.0
    %6038 = vmatprep.subr.mxu0 0.0
    %6039 = vmatpush1.msra.mxu0 0.0
    %6040 = vmatprep.subr.mxu0 0.0
    %6041 = vmatpush1.msra.mxu0 0.0
    %6042 = vmatprep.subr.mxu0 0.0
    %6043 = vmatpush1.msra.mxu0 0.0
    %6044 = vmatprep.subr.mxu0 0.0
    %6045 = vmatpush1.msra.mxu0 0.0
    %6046 = vmatprep.subr.mxu0 0.0
    %6047 = vmatpush1.msra.mxu0 0.0
    %6048 = vmatprep.subr.mxu0 0.0
    %6049 = vmatpush1.msra.mxu0 0.0
    %6050 = vmatprep.subr.mxu0 0.0
    %6051 = vmatpush1.msra.mxu0 0.0
    %6052 = vmatprep.subr.mxu0 0.0
    %6053 = vmatpush1.msra.mxu0 0.0
    %6054 = vmatprep.subr.mxu0 0.0
    %6055 = vmatpush1.msra.mxu0 0.0
    %6056 = vmatprep.subr.mxu0 0.0
    %6057 = vmatpush1.msra.mxu0 0.0
    %6058 = vmatprep.subr.mxu0 0.0
    %6059 = vmatpush1.msra.mxu0 0.0
    %6060 = vmatprep.subr.mxu0 0.0
    %6061 = vmatpush1.msra.mxu0 0.0
    %6062 = vmatprep.subr.mxu0 0.0
    %6063 = vmatpush1.msra.mxu0 0.0
    %6064 = vmatprep.subr.mxu0 0.0
    %6065 = vmatpush1.msra.mxu0 0.0
    %6066 = vmatprep.subr.mxu0 0.0
    %6067 = vmatpush1.msra.mxu0 0.0
    %6068 = vmatprep.subr.mxu0 0.0
    %6069 = vmatpush1.msra.mxu0 0.0
    %6070 = vmatprep.subr.mxu0 0.0
    %6071 = vmatpush1.msra.mxu0 0.0
    %6072 = vmatprep.subr.mxu0 0.0
    %6073 = vmatpush1.msra.mxu0 0.0
    %6074 = vmatprep.subr.mxu0 0.0
    %6075 = vmatpush1.msra.mxu0 0.0
    %6076 = vmatprep.subr.mxu0 0.0
    %6077 = vmatpush1.msra.mxu0 0.0
    %6078 = vmatprep.subr.mxu0 0.0
    %6079 = vmatpush1.msra.mxu0 0.0
    %6080 = vmatprep.mubr.f32.mxu0 0.0
    %6081 = vmatmul.mubr.f32.gmra.mrb[0].mxu0 %v5860
    %v6082 = vpop.f32.mrb[0].mxu0
    %v6083 = vadd.f32 %v5032, %v6082
    %v6084 = vpop.f32.mrb[0].mxu0
    %6085 = vdwg.mxu0
    %v6086 = vmul.f32 %v5938, %v6083
    %v6087 = vadd.f32 %v4854, %v6086
    %v6088 = vtanh.pop %v6087
    %v6089 = vsub.f32 1.0, %v6015
    %v6090 = vmul.f32 %v6089, %v6088
    %v6092 = vmul.f32 %v6015, %v5859
    %v6093 = vadd.f32 %v6090, %v6092
    %6094 = vst.msk [vmem:[#allocation4 + $0x3] sm:$0x2] %vm5113, %v6093
    %v6096 = vsel %vm376, %v6093, 0
    %6098 = vmatprep.subr.mxu0 0.0
    %6099 = vmatpush1.msra.mxu0 %v4857
    %6100 = vmatprep.subr.mxu0 0.0
    %6101 = vmatpush1.msra.mxu0 %v4858
    %6102 = vmatprep.subr.mxu0 0.0
    %6103 = vmatpush1.msra.mxu0 %v4870
    %6104 = vmatprep.subr.mxu0 0.0
    %6105 = vmatpush1.msra.mxu0 0.0
    %6106 = vmatprep.subr.mxu0 0.0
    %6107 = vmatpush1.msra.mxu0 0.0
    %6108 = vmatprep.subr.mxu0 0.0
    %6109 = vmatpush1.msra.mxu0 0.0
    %6110 = vmatprep.subr.mxu0 0.0
    %6111 = vmatpush1.msra.mxu0 0.0
    %6112 = vmatprep.subr.mxu0 0.0
    %6113 = vmatpush1.msra.mxu0 0.0
    %6114 = vmatprep.subr.mxu0 0.0
    %6115 = vmatpush1.msra.mxu0 0.0
    %6116 = vmatprep.subr.mxu0 0.0
    %6117 = vmatpush1.msra.mxu0 0.0
    %6118 = vmatprep.subr.mxu0 0.0
    %6119 = vmatpush1.msra.mxu0 0.0
    %6120 = vmatprep.subr.mxu0 0.0
    %6121 = vmatpush1.msra.mxu0 0.0
    %6122 = vmatprep.subr.mxu0 0.0
    %6123 = vmatpush1.msra.mxu0 0.0
    %6124 = vmatprep.subr.mxu0 0.0
    %6125 = vmatpush1.msra.mxu0 0.0
    %6126 = vmatprep.subr.mxu0 0.0
    %6127 = vmatpush1.msra.mxu0 0.0
    %6128 = vmatprep.subr.mxu0 0.0
    %6129 = vmatpush1.msra.mxu0 0.0
    %6130 = vmatprep.subr.mxu0 0.0
    %6131 = vmatpush1.msra.mxu0 0.0
    %6132 = vmatprep.subr.mxu0 0.0
    %6133 = vmatpush1.msra.mxu0 0.0
    %6134 = vmatprep.subr.mxu0 0.0
    %6135 = vmatpush1.msra.mxu0 0.0
    %6136 = vmatprep.subr.mxu0 0.0
    %6137 = vmatpush1.msra.mxu0 0.0
    %6138 = vmatprep.subr.mxu0 0.0
    %6139 = vmatpush1.msra.mxu0 0.0
    %6140 = vmatprep.subr.mxu0 0.0
    %6141 = vmatpush1.msra.mxu0 0.0
    %6142 = vmatprep.subr.mxu0 0.0
    %6143 = vmatpush1.msra.mxu0 0.0
    %6144 = vmatprep.subr.mxu0 0.0
    %6145 = vmatpush1.msra.mxu0 0.0
    %6146 = vmatprep.subr.mxu0 0.0
    %6147 = vmatpush1.msra.mxu0 0.0
    %6148 = vmatprep.subr.mxu0 0.0
    %6149 = vmatpush1.msra.mxu0 0.0
    %6150 = vmatprep.subr.mxu0 0.0
    %6151 = vmatpush1.msra.mxu0 0.0
    %6152 = vmatprep.subr.mxu0 0.0
    %6153 = vmatpush1.msra.mxu0 0.0
    %6154 = vmatprep.subr.mxu0 0.0
    %6155 = vmatpush1.msra.mxu0 0.0
    %6156 = vmatprep.subr.mxu0 0.0
    %6157 = vmatpush1.msra.mxu0 0.0
    %6158 = vmatprep.subr.mxu0 0.0
    %6159 = vmatpush1.msra.mxu0 0.0
    %6160 = vmatprep.subr.mxu0 0.0
    %6161 = vmatpush1.msra.mxu0 0.0
    %6162 = vmatprep.mubr.f32.mxu0 0.0
    %6163 = vmatmul.mubr.f32.gmra.mrb[0].mxu0 %v6096
    %v6164 = vpop.f32.mrb[0].mxu0
    %v6165 = vadd.f32 0.0, %v6164
    %v6166 = vpop.f32.mrb[0].mxu0
    %6167 = vdwg.mxu0
    %v6169 = vrot.slane %v6165, 6
    %v6171 = vadd.f32 %v4680, %v6169
    %v6172 = vsub.f32 0.0, %v6171
    %v6173 = vmul.f32 %v6172, 1.442695
    %v6174 = vpow.pop %v6173
    %v6175 = vadd.f32 %v6174, 1.0
    %v6176 = vrcp.pop %v6175
    %v6177 = vmul.f32 1.0, %v6176
    %6178 = vmatprep.subr.mxu0 0.0
    %6179 = vmatpush1.msra.mxu0 %v4861
    %6180 = vmatprep.subr.mxu0 0.0
    %6181 = vmatpush1.msra.mxu0 %v4862
    %6182 = vmatprep.subr.mxu0 0.0
    %6183 = vmatpush1.msra.mxu0 %v4950
    %6184 = vmatprep.subr.mxu0 0.0
    %6185 = vmatpush1.msra.mxu0 0.0
    %6186 = vmatprep.subr.mxu0 0.0
    %6187 = vmatpush1.msra.mxu0 0.0
    %6188 = vmatprep.subr.mxu0 0.0
    %6189 = vmatpush1.msra.mxu0 0.0
    %6190 = vmatprep.subr.mxu0 0.0
    %6191 = vmatpush1.msra.mxu0 0.0
    %6192 = vmatprep.subr.mxu0 0.0
    %6193 = vmatpush1.msra.mxu0 0.0
    %6194 = vmatprep.subr.mxu0 0.0
    %6195 = vmatpush1.msra.mxu0 0.0
    %6196 = vmatprep.subr.mxu0 0.0
    %6197 = vmatpush1.msra.mxu0 0.0
    %6198 = vmatprep.subr.mxu0 0.0
    %6199 = vmatpush1.msra.mxu0 0.0
    %6200 = vmatprep.subr.mxu0 0.0
    %6201 = vmatpush1.msra.mxu0 0.0
    %6202 = vmatprep.subr.mxu0 0.0
    %6203 = vmatpush1.msra.mxu0 0.0
    %6204 = vmatprep.subr.mxu0 0.0
    %6205 = vmatpush1.msra.mxu0 0.0
    %6206 = vmatprep.subr.mxu0 0.0
    %6207 = vmatpush1.msra.mxu0 0.0
    %6208 = vmatprep.subr.mxu0 0.0
    %6209 = vmatpush1.msra.mxu0 0.0
    %6210 = vmatprep.subr.mxu0 0.0
    %6211 = vmatpush1.msra.mxu0 0.0
    %6212 = vmatprep.subr.mxu0 0.0
    %6213 = vmatpush1.msra.mxu0 0.0
    %6214 = vmatprep.subr.mxu0 0.0
    %6215 = vmatpush1.msra.mxu0 0.0
    %6216 = vmatprep.subr.mxu0 0.0
    %6217 = vmatpush1.msra.mxu0 0.0
    %6218 = vmatprep.subr.mxu0 0.0
    %6219 = vmatpush1.msra.mxu0 0.0
    %6220 = vmatprep.subr.mxu0 0.0
    %6221 = vmatpush1.msra.mxu0 0.0
    %6222 = vmatprep.subr.mxu0 0.0
    %6223 = vmatpush1.msra.mxu0 0.0
    %6224 = vmatprep.subr.mxu0 0.0
    %6225 = vmatpush1.msra.mxu0 0.0
    %6226 = vmatprep.subr.mxu0 0.0
    %6227 = vmatpush1.msra.mxu0 0.0
    %6228 = vmatprep.subr.mxu0 0.0
    %6229 = vmatpush1.msra.mxu0 0.0
    %6230 = vmatprep.subr.mxu0 0.0
    %6231 = vmatpush1.msra.mxu0 0.0
    %6232 = vmatprep.subr.mxu0 0.0
    %6233 = vmatpush1.msra.mxu0 0.0
    %6234 = vmatprep.subr.mxu0 0.0
    %6235 = vmatpush1.msra.mxu0 0.0
    %6236 = vmatprep.subr.mxu0 0.0
    %6237 = vmatpush1.msra.mxu0 0.0
    %6238 = vmatprep.subr.mxu0 0.0
    %6239 = vmatpush1.msra.mxu0 0.0
    %6240 = vmatprep.subr.mxu0 0.0
    %6241 = vmatpush1.msra.mxu0 0.0
    %6242 = vmatprep.mubr.f32.mxu0 0.0
    %6243 = vmatmul.mubr.f32.gmra.mrb[0].mxu0 %v6096
    %v6244 = vpop.f32.mrb[0].mxu0
    %v6245 = vadd.f32 0.0, %v6244
    %v6246 = vpop.f32.mrb[0].mxu0
    %6247 = vdwg.mxu0
    %v6249 = vrot.slane %v6245, 6
    %v6251 = vadd.f32 %v4767, %v6249
    %v6252 = vsub.f32 0.0, %v6251
    %v6253 = vmul.f32 %v6252, 1.442695
    %v6254 = vpow.pop %v6253
    %v6255 = vadd.f32 %v6254, 1.0
    %v6256 = vrcp.pop %v6255
    %v6257 = vmul.f32 1.0, %v6256
    %6258 = vmatprep.subr.mxu0 0.0
    %6259 = vmatpush1.msra.mxu0 %v4865
    %6260 = vmatprep.subr.mxu0 0.0
    %6261 = vmatpush1.msra.mxu0 %v4866
    %6262 = vmatprep.subr.mxu0 0.0
    %6263 = vmatpush1.msra.mxu0 %v5034
    %6264 = vmatprep.subr.mxu0 0.0
    %6265 = vmatpush1.msra.mxu0 0.0
    %6266 = vmatprep.subr.mxu0 0.0
    %6267 = vmatpush1.msra.mxu0 0.0
    %6268 = vmatprep.subr.mxu0 0.0
    %6269 = vmatpush1.msra.mxu0 0.0
    %6270 = vmatprep.subr.mxu0 0.0
    %6271 = vmatpush1.msra.mxu0 0.0
    %6272 = vmatprep.subr.mxu0 0.0
    %6273 = vmatpush1.msra.mxu0 0.0
    %6274 = vmatprep.subr.mxu0 0.0
    %6275 = vmatpush1.msra.mxu0 0.0
    %6276 = vmatprep.subr.mxu0 0.0
    %6277 = vmatpush1.msra.mxu0 0.0
    %6278 = vmatprep.subr.mxu0 0.0
    %6279 = vmatpush1.msra.mxu0 0.0
    %6280 = vmatprep.subr.mxu0 0.0
    %6281 = vmatpush1.msra.mxu0 0.0
    %6282 = vmatprep.subr.mxu0 0.0
    %6283 = vmatpush1.msra.mxu0 0.0
    %6284 = vmatprep.subr.mxu0 0.0
    %6285 = vmatpush1.msra.mxu0 0.0
    %6286 = vmatprep.subr.mxu0 0.0
    %6287 = vmatpush1.msra.mxu0 0.0
    %6288 = vmatprep.subr.mxu0 0.0
    %6289 = vmatpush1.msra.mxu0 0.0
    %6290 = vmatprep.subr.mxu0 0.0
    %6291 = vmatpush1.msra.mxu0 0.0
    %6292 = vmatprep.subr.mxu0 0.0
    %6293 = vmatpush1.msra.mxu0 0.0
    %6294 = vmatprep.subr.mxu0 0.0
    %6295 = vmatpush1.msra.mxu0 0.0
    %6296 = vmatprep.subr.mxu0 0.0
    %6297 = vmatpush1.msra.mxu0 0.0
    %6298 = vmatprep.subr.mxu0 0.0
    %6299 = vmatpush1.msra.mxu0 0.0
    %6300 = vmatprep.subr.mxu0 0.0
    %6301 = vmatpush1.msra.mxu0 0.0
    %6302 = vmatprep.subr.mxu0 0.0
    %6303 = vmatpush1.msra.mxu0 0.0
    %6304 = vmatprep.subr.mxu0 0.0
    %6305 = vmatpush1.msra.mxu0 0.0
    %6306 = vmatprep.subr.mxu0 0.0
    %6307 = vmatpush1.msra.mxu0 0.0
    %6308 = vmatprep.subr.mxu0 0.0
    %6309 = vmatpush1.msra.mxu0 0.0
    %6310 = vmatprep.subr.mxu0 0.0
    %6311 = vmatpush1.msra.mxu0 0.0
    %6312 = vmatprep.subr.mxu0 0.0
    %6313 = vmatpush1.msra.mxu0 0.0
    %6314 = vmatprep.subr.mxu0 0.0
    %6315 = vmatpush1.msra.mxu0 0.0
    %6316 = vmatprep.subr.mxu0 0.0
    %6317 = vmatpush1.msra.mxu0 0.0
    %6318 = vmatprep.subr.mxu0 0.0
    %6319 = vmatpush1.msra.mxu0 0.0
    %6320 = vmatprep.subr.mxu0 0.0
    %6321 = vmatpush1.msra.mxu0 0.0
    %6322 = vmatprep.mubr.f32.mxu0 0.0
    %6323 = vmatmul.mubr.f32.gmra.mrb[0].mxu0 %v6096
    %v6324 = vpop.f32.mrb[0].mxu0
    %v6325 = vadd.f32 %v5032, %v6324
    %v6326 = vpop.f32.mrb[0].mxu0
    %6327 = vdwg.mxu0
    %v6329 = vrot.slane %v6325, 6
    %v6331 = vmul.f32 %v6177, %v6329
    %v6332 = vadd.f32 %v4854, %v6331
    %v6333 = vtanh.pop %v6332
    %v6334 = vsub.f32 1.0, %v6257
    %v6335 = vmul.f32 %v6334, %v6333
    %v6336 = vrot.slane %v6093, 6
    %v6338 = vmul.f32 %v6257, %v6336
    %v6339 = vadd.f32 %v6335, %v6338
    %6340 = vst.msk [vmem:[#allocation4 + $0x2] sm:$0x8] %vm5360, %v6339
    %v6342 = vrot.slane %v6339, 2
    %v6343 = vsel %vm376, %v6342, 0
    %6345 = vmatprep.subr.mxu0 0.0
    %6346 = vmatpush1.msra.mxu0 %v4857
    %6347 = vmatprep.subr.mxu0 0.0
    %6348 = vmatpush1.msra.mxu0 %v4858
    %6349 = vmatprep.subr.mxu0 0.0
    %6350 = vmatpush1.msra.mxu0 %v4870
    %6351 = vmatprep.subr.mxu0 0.0
    %6352 = vmatpush1.msra.mxu0 0.0
    %6353 = vmatprep.subr.mxu0 0.0
    %6354 = vmatpush1.msra.mxu0 0.0
    %6355 = vmatprep.subr.mxu0 0.0
    %6356 = vmatpush1.msra.mxu0 0.0
    %6357 = vmatprep.subr.mxu0 0.0
    %6358 = vmatpush1.msra.mxu0 0.0
    %6359 = vmatprep.subr.mxu0 0.0
    %6360 = vmatpush1.msra.mxu0 0.0
    %6361 = vmatprep.subr.mxu0 0.0
    %6362 = vmatpush1.msra.mxu0 0.0
    %6363 = vmatprep.subr.mxu0 0.0
    %6364 = vmatpush1.msra.mxu0 0.0
    %6365 = vmatprep.subr.mxu0 0.0
    %6366 = vmatpush1.msra.mxu0 0.0
    %6367 = vmatprep.subr.mxu0 0.0
    %6368 = vmatpush1.msra.mxu0 0.0
    %6369 = vmatprep.subr.mxu0 0.0
    %6370 = vmatpush1.msra.mxu0 0.0
    %6371 = vmatprep.subr.mxu0 0.0
    %6372 = vmatpush1.msra.mxu0 0.0
    %6373 = vmatprep.subr.mxu0 0.0
    %6374 = vmatpush1.msra.mxu0 0.0
    %6375 = vmatprep.subr.mxu0 0.0
    %6376 = vmatpush1.msra.mxu0 0.0
    %6377 = vmatprep.subr.mxu0 0.0
    %6378 = vmatpush1.msra.mxu0 0.0
    %6379 = vmatprep.subr.mxu0 0.0
    %6380 = vmatpush1.msra.mxu0 0.0
    %6381 = vmatprep.subr.mxu0 0.0
    %6382 = vmatpush1.msra.mxu0 0.0
    %6383 = vmatprep.subr.mxu0 0.0
    %6384 = vmatpush1.msra.mxu0 0.0
    %6385 = vmatprep.subr.mxu0 0.0
    %6386 = vmatpush1.msra.mxu0 0.0
    %6387 = vmatprep.subr.mxu0 0.0
    %6388 = vmatpush1.msra.mxu0 0.0
    %6389 = vmatprep.subr.mxu0 0.0
    %6390 = vmatpush1.msra.mxu0 0.0
    %6391 = vmatprep.subr.mxu0 0.0
    %6392 = vmatpush1.msra.mxu0 0.0
    %6393 = vmatprep.subr.mxu0 0.0
    %6394 = vmatpush1.msra.mxu0 0.0
    %6395 = vmatprep.subr.mxu0 0.0
    %6396 = vmatpush1.msra.mxu0 0.0
    %6397 = vmatprep.subr.mxu0 0.0
    %6398 = vmatpush1.msra.mxu0 0.0
    %6399 = vmatprep.subr.mxu0 0.0
    %6400 = vmatpush1.msra.mxu0 0.0
    %6401 = vmatprep.subr.mxu0 0.0
    %6402 = vmatpush1.msra.mxu0 0.0
    %6403 = vmatprep.subr.mxu0 0.0
    %6404 = vmatpush1.msra.mxu0 0.0
    %6405 = vmatprep.subr.mxu0 0.0
    %6406 = vmatpush1.msra.mxu0 0.0
    %6407 = vmatprep.subr.mxu0 0.0
    %6408 = vmatpush1.msra.mxu0 0.0
    %6409 = vmatprep.mubr.f32.mxu0 0.0
    %6410 = vmatmul.mubr.f32.gmra.mrb[0].mxu0 %v6343
    %v6411 = vpop.f32.mrb[0].mxu0
    %v6412 = vadd.f32 0.0, %v6411
    %v6413 = vpop.f32.mrb[0].mxu0
    %6414 = vdwg.mxu0
    %v6416 = vrot.slane %v6412, 4
    %v6418 = vadd.f32 %v4680, %v6416
    %v6419 = vsub.f32 0.0, %v6418
    %v6420 = vmul.f32 %v6419, 1.442695
    %v6421 = vpow.pop %v6420
    %v6422 = vadd.f32 %v6421, 1.0
    %v6423 = vrcp.pop %v6422
    %v6424 = vmul.f32 1.0, %v6423
    %6425 = vmatprep.subr.mxu0 0.0
    %6426 = vmatpush1.msra.mxu0 %v4861
    %6427 = vmatprep.subr.mxu0 0.0
    %6428 = vmatpush1.msra.mxu0 %v4862
    %6429 = vmatprep.subr.mxu0 0.0
    %6430 = vmatpush1.msra.mxu0 %v4950
    %6431 = vmatprep.subr.mxu0 0.0
    %6432 = vmatpush1.msra.mxu0 0.0
    %6433 = vmatprep.subr.mxu0 0.0
    %6434 = vmatpush1.msra.mxu0 0.0
    %6435 = vmatprep.subr.mxu0 0.0
    %6436 = vmatpush1.msra.mxu0 0.0
    %6437 = vmatprep.subr.mxu0 0.0
    %6438 = vmatpush1.msra.mxu0 0.0
    %6439 = vmatprep.subr.mxu0 0.0
    %6440 = vmatpush1.msra.mxu0 0.0
    %6441 = vmatprep.subr.mxu0 0.0
    %6442 = vmatpush1.msra.mxu0 0.0
    %6443 = vmatprep.subr.mxu0 0.0
    %6444 = vmatpush1.msra.mxu0 0.0
    %6445 = vmatprep.subr.mxu0 0.0
    %6446 = vmatpush1.msra.mxu0 0.0
    %6447 = vmatprep.subr.mxu0 0.0
    %6448 = vmatpush1.msra.mxu0 0.0
    %6449 = vmatprep.subr.mxu0 0.0
    %6450 = vmatpush1.msra.mxu0 0.0
    %6451 = vmatprep.subr.mxu0 0.0
    %6452 = vmatpush1.msra.mxu0 0.0
    %6453 = vmatprep.subr.mxu0 0.0
    %6454 = vmatpush1.msra.mxu0 0.0
    %6455 = vmatprep.subr.mxu0 0.0
    %6456 = vmatpush1.msra.mxu0 0.0
    %6457 = vmatprep.subr.mxu0 0.0
    %6458 = vmatpush1.msra.mxu0 0.0
    %6459 = vmatprep.subr.mxu0 0.0
    %6460 = vmatpush1.msra.mxu0 0.0
    %6461 = vmatprep.subr.mxu0 0.0
    %6462 = vmatpush1.msra.mxu0 0.0
    %6463 = vmatprep.subr.mxu0 0.0
    %6464 = vmatpush1.msra.mxu0 0.0
    %6465 = vmatprep.subr.mxu0 0.0
    %6466 = vmatpush1.msra.mxu0 0.0
    %6467 = vmatprep.subr.mxu0 0.0
    %6468 = vmatpush1.msra.mxu0 0.0
    %6469 = vmatprep.subr.mxu0 0.0
    %6470 = vmatpush1.msra.mxu0 0.0
    %6471 = vmatprep.subr.mxu0 0.0
    %6472 = vmatpush1.msra.mxu0 0.0
    %6473 = vmatprep.subr.mxu0 0.0
    %6474 = vmatpush1.msra.mxu0 0.0
    %6475 = vmatprep.subr.mxu0 0.0
    %6476 = vmatpush1.msra.mxu0 0.0
    %6477 = vmatprep.subr.mxu0 0.0
    %6478 = vmatpush1.msra.mxu0 0.0
    %6479 = vmatprep.subr.mxu0 0.0
    %6480 = vmatpush1.msra.mxu0 0.0
    %6481 = vmatprep.subr.mxu0 0.0
    %6482 = vmatpush1.msra.mxu0 0.0
    %6483 = vmatprep.subr.mxu0 0.0
    %6484 = vmatpush1.msra.mxu0 0.0
    %6485 = vmatprep.subr.mxu0 0.0
    %6486 = vmatpush1.msra.mxu0 0.0
    %6487 = vmatprep.subr.mxu0 0.0
    %6488 = vmatpush1.msra.mxu0 0.0
    %6489 = vmatprep.mubr.f32.mxu0 0.0
    %6490 = vmatmul.mubr.f32.gmra.mrb[0].mxu0 %v6343
    %v6491 = vpop.f32.mrb[0].mxu0
    %v6492 = vadd.f32 0.0, %v6491
    %v6493 = vpop.f32.mrb[0].mxu0
    %6494 = vdwg.mxu0
    %v6496 = vrot.slane %v6492, 4
    %v6498 = vadd.f32 %v4767, %v6496
    %v6499 = vsub.f32 0.0, %v6498
    %v6500 = vmul.f32 %v6499, 1.442695
    %v6501 = vpow.pop %v6500
    %v6502 = vadd.f32 %v6501, 1.0
    %v6503 = vrcp.pop %v6502
    %v6504 = vmul.f32 1.0, %v6503
    %6505 = vmatprep.subr.mxu0 0.0
    %6506 = vmatpush1.msra.mxu0 %v4865
    %6507 = vmatprep.subr.mxu0 0.0
    %6508 = vmatpush1.msra.mxu0 %v4866
    %6509 = vmatprep.subr.mxu0 0.0
    %6510 = vmatpush1.msra.mxu0 %v5034
    %6511 = vmatprep.subr.mxu0 0.0
    %6512 = vmatpush1.msra.mxu0 0.0
    %6513 = vmatprep.subr.mxu0 0.0
    %6514 = vmatpush1.msra.mxu0 0.0
    %6515 = vmatprep.subr.mxu0 0.0
    %6516 = vmatpush1.msra.mxu0 0.0
    %6517 = vmatprep.subr.mxu0 0.0
    %6518 = vmatpush1.msra.mxu0 0.0
    %6519 = vmatprep.subr.mxu0 0.0
    %6520 = vmatpush1.msra.mxu0 0.0
    %6521 = vmatprep.subr.mxu0 0.0
    %6522 = vmatpush1.msra.mxu0 0.0
    %6523 = vmatprep.subr.mxu0 0.0
    %6524 = vmatpush1.msra.mxu0 0.0
    %6525 = vmatprep.subr.mxu0 0.0
    %6526 = vmatpush1.msra.mxu0 0.0
    %6527 = vmatprep.subr.mxu0 0.0
    %6528 = vmatpush1.msra.mxu0 0.0
    %6529 = vmatprep.subr.mxu0 0.0
    %6530 = vmatpush1.msra.mxu0 0.0
    %6531 = vmatprep.subr.mxu0 0.0
    %6532 = vmatpush1.msra.mxu0 0.0
    %6533 = vmatprep.subr.mxu0 0.0
    %6534 = vmatpush1.msra.mxu0 0.0
    %6535 = vmatprep.subr.mxu0 0.0
    %6536 = vmatpush1.msra.mxu0 0.0
    %6537 = vmatprep.subr.mxu0 0.0
    %6538 = vmatpush1.msra.mxu0 0.0
    %6539 = vmatprep.subr.mxu0 0.0
    %6540 = vmatpush1.msra.mxu0 0.0
    %6541 = vmatprep.subr.mxu0 0.0
    %6542 = vmatpush1.msra.mxu0 0.0
    %6543 = vmatprep.subr.mxu0 0.0
    %6544 = vmatpush1.msra.mxu0 0.0
    %6545 = vmatprep.subr.mxu0 0.0
    %6546 = vmatpush1.msra.mxu0 0.0
    %6547 = vmatprep.subr.mxu0 0.0
    %6548 = vmatpush1.msra.mxu0 0.0
    %6549 = vmatprep.subr.mxu0 0.0
    %6550 = vmatpush1.msra.mxu0 0.0
    %6551 = vmatprep.subr.mxu0 0.0
    %6552 = vmatpush1.msra.mxu0 0.0
    %6553 = vmatprep.subr.mxu0 0.0
    %6554 = vmatpush1.msra.mxu0 0.0
    %6555 = vmatprep.subr.mxu0 0.0
    %6556 = vmatpush1.msra.mxu0 0.0
    %6557 = vmatprep.subr.mxu0 0.0
    %6558 = vmatpush1.msra.mxu0 0.0
    %6559 = vmatprep.subr.mxu0 0.0
    %6560 = vmatpush1.msra.mxu0 0.0
    %6561 = vmatprep.subr.mxu0 0.0
    %6562 = vmatpush1.msra.mxu0 0.0
    %6563 = vmatprep.subr.mxu0 0.0
    %6564 = vmatpush1.msra.mxu0 0.0
    %6565 = vmatprep.subr.mxu0 0.0
    %6566 = vmatpush1.msra.mxu0 0.0
    %6567 = vmatprep.subr.mxu0 0.0
    %6568 = vmatpush1.msra.mxu0 0.0
    %6569 = vmatprep.mubr.f32.mxu0 0.0
    %6570 = vmatmul.mubr.f32.gmra.mrb[0].mxu0 %v6343
    %v6571 = vpop.f32.mrb[0].mxu0
    %v6572 = vadd.f32 %v5032, %v6571
    %v6573 = vpop.f32.mrb[0].mxu0
    %6574 = vdwg.mxu0
    %v6576 = vrot.slane %v6572, 4
    %v6578 = vmul.f32 %v6424, %v6576
    %v6579 = vadd.f32 %v4854, %v6578
    %v6580 = vtanh.pop %v6579
    %v6581 = vsub.f32 1.0, %v6504
    %v6582 = vmul.f32 %v6581, %v6580
    %v6583 = vrot.slane %v6339, 6
    %v6585 = vmul.f32 %v6504, %v6583
    %v6586 = vadd.f32 %v6582, %v6585
    %6587 = vst.msk [vmem:[#allocation4 + $0x1] sm:$0x20] %vm5608, %v6586
    %v6589 = vrot.slane %v6586, 4
    %v6590 = vsel %vm376, %v6589, 0
    %6592 = vmatprep.subr.mxu0 0.0
    %6593 = vmatpush1.msra.mxu0 %v4857
    %6594 = vmatprep.subr.mxu0 0.0
    %6595 = vmatpush1.msra.mxu0 %v4858
    %6596 = vmatprep.subr.mxu0 0.0
    %6597 = vmatpush1.msra.mxu0 %v4870
    %6598 = vmatprep.subr.mxu0 0.0
    %6599 = vmatpush1.msra.mxu0 0.0
    %6600 = vmatprep.subr.mxu0 0.0
    %6601 = vmatpush1.msra.mxu0 0.0
    %6602 = vmatprep.subr.mxu0 0.0
    %6603 = vmatpush1.msra.mxu0 0.0
    %6604 = vmatprep.subr.mxu0 0.0
    %6605 = vmatpush1.msra.mxu0 0.0
    %6606 = vmatprep.subr.mxu0 0.0
    %6607 = vmatpush1.msra.mxu0 0.0
    %6608 = vmatprep.subr.mxu0 0.0
    %6609 = vmatpush1.msra.mxu0 0.0
    %6610 = vmatprep.subr.mxu0 0.0
    %6611 = vmatpush1.msra.mxu0 0.0
    %6612 = vmatprep.subr.mxu0 0.0
    %6613 = vmatpush1.msra.mxu0 0.0
    %6614 = vmatprep.subr.mxu0 0.0
    %6615 = vmatpush1.msra.mxu0 0.0
    %6616 = vmatprep.subr.mxu0 0.0
    %6617 = vmatpush1.msra.mxu0 0.0
    %6618 = vmatprep.subr.mxu0 0.0
    %6619 = vmatpush1.msra.mxu0 0.0
    %6620 = vmatprep.subr.mxu0 0.0
    %6621 = vmatpush1.msra.mxu0 0.0
    %6622 = vmatprep.subr.mxu0 0.0
    %6623 = vmatpush1.msra.mxu0 0.0
    %6624 = vmatprep.subr.mxu0 0.0
    %6625 = vmatpush1.msra.mxu0 0.0
    %6626 = vmatprep.subr.mxu0 0.0
    %6627 = vmatpush1.msra.mxu0 0.0
    %6628 = vmatprep.subr.mxu0 0.0
    %6629 = vmatpush1.msra.mxu0 0.0
    %6630 = vmatprep.subr.mxu0 0.0
    %6631 = vmatpush1.msra.mxu0 0.0
    %6632 = vmatprep.subr.mxu0 0.0
    %6633 = vmatpush1.msra.mxu0 0.0
    %6634 = vmatprep.subr.mxu0 0.0
    %6635 = vmatpush1.msra.mxu0 0.0
    %6636 = vmatprep.subr.mxu0 0.0
    %6637 = vmatpush1.msra.mxu0 0.0
    %6638 = vmatprep.subr.mxu0 0.0
    %6639 = vmatpush1.msra.mxu0 0.0
    %6640 = vmatprep.subr.mxu0 0.0
    %6641 = vmatpush1.msra.mxu0 0.0
    %6642 = vmatprep.subr.mxu0 0.0
    %6643 = vmatpush1.msra.mxu0 0.0
    %6644 = vmatprep.subr.mxu0 0.0
    %6645 = vmatpush1.msra.mxu0 0.0
    %6646 = vmatprep.subr.mxu0 0.0
    %6647 = vmatpush1.msra.mxu0 0.0
    %6648 = vmatprep.subr.mxu0 0.0
    %6649 = vmatpush1.msra.mxu0 0.0
    %6650 = vmatprep.subr.mxu0 0.0
    %6651 = vmatpush1.msra.mxu0 0.0
    %6652 = vmatprep.subr.mxu0 0.0
    %6653 = vmatpush1.msra.mxu0 0.0
    %6654 = vmatprep.subr.mxu0 0.0
    %6655 = vmatpush1.msra.mxu0 0.0
    %6656 = vmatprep.mubr.f32.mxu0 0.0
    %6657 = vmatmul.mubr.f32.gmra.mrb[0].mxu0 %v6590
    %v6658 = vpop.f32.mrb[0].mxu0
    %v6659 = vadd.f32 0.0, %v6658
    %v6660 = vpop.f32.mrb[0].mxu0
    %6661 = vdwg.mxu0
    %v6663 = vrot.slane %v6659, 2
    %v6665 = vadd.f32 %v4680, %v6663
    %v6666 = vsub.f32 0.0, %v6665
    %v6667 = vmul.f32 %v6666, 1.442695
    %v6668 = vpow.pop %v6667
    %v6669 = vadd.f32 %v6668, 1.0
    %v6670 = vrcp.pop %v6669
    %v6671 = vmul.f32 1.0, %v6670
    %6672 = vmatprep.subr.mxu0 0.0
    %6673 = vmatpush1.msra.mxu0 %v4861
    %6674 = vmatprep.subr.mxu0 0.0
    %6675 = vmatpush1.msra.mxu0 %v4862
    %6676 = vmatprep.subr.mxu0 0.0
    %6677 = vmatpush1.msra.mxu0 %v4950
    %6678 = vmatprep.subr.mxu0 0.0
    %6679 = vmatpush1.msra.mxu0 0.0
    %6680 = vmatprep.subr.mxu0 0.0
    %6681 = vmatpush1.msra.mxu0 0.0
    %6682 = vmatprep.subr.mxu0 0.0
    %6683 = vmatpush1.msra.mxu0 0.0
    %6684 = vmatprep.subr.mxu0 0.0
    %6685 = vmatpush1.msra.mxu0 0.0
    %6686 = vmatprep.subr.mxu0 0.0
    %6687 = vmatpush1.msra.mxu0 0.0
    %6688 = vmatprep.subr.mxu0 0.0
    %6689 = vmatpush1.msra.mxu0 0.0
    %6690 = vmatprep.subr.mxu0 0.0
    %6691 = vmatpush1.msra.mxu0 0.0
    %6692 = vmatprep.subr.mxu0 0.0
    %6693 = vmatpush1.msra.mxu0 0.0
    %6694 = vmatprep.subr.mxu0 0.0
    %6695 = vmatpush1.msra.mxu0 0.0
    %6696 = vmatprep.subr.mxu0 0.0
    %6697 = vmatpush1.msra.mxu0 0.0
    %6698 = vmatprep.subr.mxu0 0.0
    %6699 = vmatpush1.msra.mxu0 0.0
    %6700 = vmatprep.subr.mxu0 0.0
    %6701 = vmatpush1.msra.mxu0 0.0
    %6702 = vmatprep.subr.mxu0 0.0
    %6703 = vmatpush1.msra.mxu0 0.0
    %6704 = vmatprep.subr.mxu0 0.0
    %6705 = vmatpush1.msra.mxu0 0.0
    %6706 = vmatprep.subr.mxu0 0.0
    %6707 = vmatpush1.msra.mxu0 0.0
    %6708 = vmatprep.subr.mxu0 0.0
    %6709 = vmatpush1.msra.mxu0 0.0
    %6710 = vmatprep.subr.mxu0 0.0
    %6711 = vmatpush1.msra.mxu0 0.0
    %6712 = vmatprep.subr.mxu0 0.0
    %6713 = vmatpush1.msra.mxu0 0.0
    %6714 = vmatprep.subr.mxu0 0.0
    %6715 = vmatpush1.msra.mxu0 0.0
    %6716 = vmatprep.subr.mxu0 0.0
    %6717 = vmatpush1.msra.mxu0 0.0
    %6718 = vmatprep.subr.mxu0 0.0
    %6719 = vmatpush1.msra.mxu0 0.0
    %6720 = vmatprep.subr.mxu0 0.0
    %6721 = vmatpush1.msra.mxu0 0.0
    %6722 = vmatprep.subr.mxu0 0.0
    %6723 = vmatpush1.msra.mxu0 0.0
    %6724 = vmatprep.subr.mxu0 0.0
    %6725 = vmatpush1.msra.mxu0 0.0
    %6726 = vmatprep.subr.mxu0 0.0
    %6727 = vmatpush1.msra.mxu0 0.0
    %6728 = vmatprep.subr.mxu0 0.0
    %6729 = vmatpush1.msra.mxu0 0.0
    %6730 = vmatprep.subr.mxu0 0.0
    %6731 = vmatpush1.msra.mxu0 0.0
    %6732 = vmatprep.subr.mxu0 0.0
    %6733 = vmatpush1.msra.mxu0 0.0
    %6734 = vmatprep.subr.mxu0 0.0
    %6735 = vmatpush1.msra.mxu0 0.0
    %6736 = vmatprep.mubr.f32.mxu0 0.0
    %6737 = vmatmul.mubr.f32.gmra.mrb[0].mxu0 %v6590
    %v6738 = vpop.f32.mrb[0].mxu0
    %v6739 = vadd.f32 0.0, %v6738
    %v6740 = vpop.f32.mrb[0].mxu0
    %6741 = vdwg.mxu0
    %v6743 = vrot.slane %v6739, 2
    %v6745 = vadd.f32 %v4767, %v6743
    %v6746 = vsub.f32 0.0, %v6745
    %v6747 = vmul.f32 %v6746, 1.442695
    %v6748 = vpow.pop %v6747
    %v6749 = vadd.f32 %v6748, 1.0
    %v6750 = vrcp.pop %v6749
    %v6751 = vmul.f32 1.0, %v6750
    %6752 = vmatprep.subr.mxu0 0.0
    %6753 = vmatpush1.msra.mxu0 %v4865
    %6754 = vmatprep.subr.mxu0 0.0
    %6755 = vmatpush1.msra.mxu0 %v4866
    %6756 = vmatprep.subr.mxu0 0.0
    %6757 = vmatpush1.msra.mxu0 %v5034
    %6758 = vmatprep.subr.mxu0 0.0
    %6759 = vmatpush1.msra.mxu0 0.0
    %6760 = vmatprep.subr.mxu0 0.0
    %6761 = vmatpush1.msra.mxu0 0.0
    %6762 = vmatprep.subr.mxu0 0.0
    %6763 = vmatpush1.msra.mxu0 0.0
    %6764 = vmatprep.subr.mxu0 0.0
    %6765 = vmatpush1.msra.mxu0 0.0
    %6766 = vmatprep.subr.mxu0 0.0
    %6767 = vmatpush1.msra.mxu0 0.0
    %6768 = vmatprep.subr.mxu0 0.0
    %6769 = vmatpush1.msra.mxu0 0.0
    %6770 = vmatprep.subr.mxu0 0.0
    %6771 = vmatpush1.msra.mxu0 0.0
    %6772 = vmatprep.subr.mxu0 0.0
    %6773 = vmatpush1.msra.mxu0 0.0
    %6774 = vmatprep.subr.mxu0 0.0
    %6775 = vmatpush1.msra.mxu0 0.0
    %6776 = vmatprep.subr.mxu0 0.0
    %6777 = vmatpush1.msra.mxu0 0.0
    %6778 = vmatprep.subr.mxu0 0.0
    %6779 = vmatpush1.msra.mxu0 0.0
    %6780 = vmatprep.subr.mxu0 0.0
    %6781 = vmatpush1.msra.mxu0 0.0
    %6782 = vmatprep.subr.mxu0 0.0
    %6783 = vmatpush1.msra.mxu0 0.0
    %6784 = vmatprep.subr.mxu0 0.0
    %6785 = vmatpush1.msra.mxu0 0.0
    %6786 = vmatprep.subr.mxu0 0.0
    %6787 = vmatpush1.msra.mxu0 0.0
    %6788 = vmatprep.subr.mxu0 0.0
    %6789 = vmatpush1.msra.mxu0 0.0
    %6790 = vmatprep.subr.mxu0 0.0
    %6791 = vmatpush1.msra.mxu0 0.0
    %6792 = vmatprep.subr.mxu0 0.0
    %6793 = vmatpush1.msra.mxu0 0.0
    %6794 = vmatprep.subr.mxu0 0.0
    %6795 = vmatpush1.msra.mxu0 0.0
    %6796 = vmatprep.subr.mxu0 0.0
    %6797 = vmatpush1.msra.mxu0 0.0
    %6798 = vmatprep.subr.mxu0 0.0
    %6799 = vmatpush1.msra.mxu0 0.0
    %6800 = vmatprep.subr.mxu0 0.0
    %6801 = vmatpush1.msra.mxu0 0.0
    %6802 = vmatprep.subr.mxu0 0.0
    %6803 = vmatpush1.msra.mxu0 0.0
    %6804 = vmatprep.subr.mxu0 0.0
    %6805 = vmatpush1.msra.mxu0 0.0
    %6806 = vmatprep.subr.mxu0 0.0
    %6807 = vmatpush1.msra.mxu0 0.0
    %6808 = vmatprep.subr.mxu0 0.0
    %6809 = vmatpush1.msra.mxu0 0.0
    %6810 = vmatprep.subr.mxu0 0.0
    %6811 = vmatpush1.msra.mxu0 0.0
    %6812 = vmatprep.subr.mxu0 0.0
    %6813 = vmatpush1.msra.mxu0 0.0
    %6814 = vmatprep.subr.mxu0 0.0
    %6815 = vmatpush1.msra.mxu0 0.0
    %6816 = vmatprep.mubr.f32.mxu0 0.0
    %6817 = vmatmul.mubr.f32.gmra.mrb[0].mxu0 %v6590
    %v6818 = vpop.f32.mrb[0].mxu0
    %v6819 = vadd.f32 %v5032, %v6818
    %v6820 = vpop.f32.mrb[0].mxu0
    %6821 = vdwg.mxu0
    %v6823 = vrot.slane %v6819, 2
    %v6825 = vmul.f32 %v6671, %v6823
    %v6826 = vadd.f32 %v4854, %v6825
    %v6827 = vtanh.pop %v6826
    %v6828 = vsub.f32 1.0, %v6751
    %v6829 = vmul.f32 %v6828, %v6827
    %v6830 = vrot.slane %v6586, 6
    %v6832 = vmul.f32 %v6751, %v6830
    %v6833 = vadd.f32 %v6829, %v6832
    %6834 = vst.msk [vmem:[#allocation4] sm:$0x80] %vm5856, %v6833
    %v6835 = vld [vmem:[#allocation4] sm:$0xff]
    %v6836 = vld [vmem:[%s10] sm:$0xff]
    %v6837 = vld [vmem:[%s10 + $0x8] sm:$0xff]
    %v6838 = vld [vmem:[%s10 + $0x10] sm:$0xf]
    %v6839 = vld [vmem:[%s11] sm:$0x1]
    %v6841 = vlaneseq
    %v6842 = vshrl.u32 %v6841, 7
    %v6843 = vsub.s32 0, %v6842
    %v6844 = vrot.slane %v6839, %v6843
    %v6847 = vsel %vm376, %v6835, 0
    %v6850 = vsel %vm380, %v6838, 0
    %6852 = vmatprep.subr.mxu0 0.0
    %6853 = vmatpush1.msra.mxu0 %v6836
    %6854 = vmatprep.subr.mxu0 0.0
    %6855 = vmatpush1.msra.mxu0 %v6837
    %6856 = vmatprep.subr.mxu0 0.0
    %6857 = vmatpush1.msra.mxu0 %v6850
    %6858 = vmatprep.subr.mxu0 0.0
    %6859 = vmatpush1.msra.mxu0 0.0
    %6860 = vmatprep.subr.mxu0 0.0
    %6861 = vmatpush1.msra.mxu0 0.0
    %6862 = vmatprep.subr.mxu0 0.0
    %6863 = vmatpush1.msra.mxu0 0.0
    %6864 = vmatprep.subr.mxu0 0.0
    %6865 = vmatpush1.msra.mxu0 0.0
    %6866 = vmatprep.subr.mxu0 0.0
    %6867 = vmatpush1.msra.mxu0 0.0
    %6868 = vmatprep.subr.mxu0 0.0
    %6869 = vmatpush1.msra.mxu0 0.0
    %6870 = vmatprep.subr.mxu0 0.0
    %6871 = vmatpush1.msra.mxu0 0.0
    %6872 = vmatprep.subr.mxu0 0.0
    %6873 = vmatpush1.msra.mxu0 0.0
    %6874 = vmatprep.subr.mxu0 0.0
    %6875 = vmatpush1.msra.mxu0 0.0
    %6876 = vmatprep.subr.mxu0 0.0
    %6877 = vmatpush1.msra.mxu0 0.0
    %6878 = vmatprep.subr.mxu0 0.0
    %6879 = vmatpush1.msra.mxu0 0.0
    %6880 = vmatprep.subr.mxu0 0.0
    %6881 = vmatpush1.msra.mxu0 0.0
    %6882 = vmatprep.subr.mxu0 0.0
    %6883 = vmatpush1.msra.mxu0 0.0
    %6884 = vmatprep.subr.mxu0 0.0
    %6885 = vmatpush1.msra.mxu0 0.0
    %6886 = vmatprep.subr.mxu0 0.0
    %6887 = vmatpush1.msra.mxu0 0.0
    %6888 = vmatprep.subr.mxu0 0.0
    %6889 = vmatpush1.msra.mxu0 0.0
    %6890 = vmatprep.subr.mxu0 0.0
    %6891 = vmatpush1.msra.mxu0 0.0
    %6892 = vmatprep.subr.mxu0 0.0
    %6893 = vmatpush1.msra.mxu0 0.0
    %6894 = vmatprep.subr.mxu0 0.0
    %6895 = vmatpush1.msra.mxu0 0.0
    %6896 = vmatprep.subr.mxu0 0.0
    %6897 = vmatpush1.msra.mxu0 0.0
    %6898 = vmatprep.subr.mxu0 0.0
    %6899 = vmatpush1.msra.mxu0 0.0
    %6900 = vmatprep.subr.mxu0 0.0
    %6901 = vmatpush1.msra.mxu0 0.0
    %6902 = vmatprep.subr.mxu0 0.0
    %6903 = vmatpush1.msra.mxu0 0.0
    %6904 = vmatprep.subr.mxu0 0.0
    %6905 = vmatpush1.msra.mxu0 0.0
    %6906 = vmatprep.subr.mxu0 0.0
    %6907 = vmatpush1.msra.mxu0 0.0
    %6908 = vmatprep.subr.mxu0 0.0
    %6909 = vmatpush1.msra.mxu0 0.0
    %6910 = vmatprep.subr.mxu0 0.0
    %6911 = vmatpush1.msra.mxu0 0.0
    %6912 = vmatprep.subr.mxu0 0.0
    %6913 = vmatpush1.msra.mxu0 0.0
    %6914 = vmatprep.subr.mxu0 0.0
    %6915 = vmatpush1.msra.mxu0 0.0
    %6916 = vmatprep.mubr.f32.mxu0 0.0
    %6917 = vmatmul.mubr.f32.gmra.mrb[0].mxu0 %v6847
    %v6918 = vpop.f32.mrb[0].mxu0
    %v6919 = vadd.f32 %v6844, %v6918
    %v6920 = vpop.f32.mrb[0].mxu0
    %6921 = vdwg.mxu0
    %vm6922 = vcmask 56320
    %v6923 = vsel %vm6922, %v6919, -inf
    %6924 = vmax.xlane.f32.xlu0 %v6923
    %v6925 = vpop.xlane.xlu0 %6924
    %v6926 = vsub.f32 %v6919, %v6925
    %v6927 = vmul.f32 %v6926, 1.442695
    %v6928 = vpow.pop %v6927
    %v6929 = vsel %vm6922, %v6928, 0.0
    %6930 = vadd.xlane.f32.xlu0 %v6929
    %v6931 = vpop.xlane.xlu0 %6930
    %v6932 = vlog2.pop %v6931
    %v6933 = vmul.f32 %v6932, 0.6931472
    %v6934 = vsub.f32 %v6926, %v6933
    %v6935 = vld [vmem:[%s12] sm:$0xff]
    %v6936 = vld [vmem:[%s12 + $0x8] sm:$0xff]
    %v6937 = vld [vmem:[%s12 + $0x10] sm:$0xf]
    %v6938 = vld [vmem:[%s13] sm:$0x1]
    %v6940 = vlaneseq
    %v6941 = vshrl.u32 %v6940, 7
    %v6942 = vsub.s32 0, %v6941
    %v6943 = vrot.slane %v6938, %v6942
    %v6946 = vsel %vm380, %v6937, 0
    %6948 = vmatprep.subr.mxu0 0.0
    %6949 = vmatpush1.msra.mxu0 %v6935
    %6950 = vmatprep.subr.mxu0 0.0
    %6951 = vmatpush1.msra.mxu0 %v6936
    %6952 = vmatprep.subr.mxu0 0.0
    %6953 = vmatpush1.msra.mxu0 %v6946
    %6954 = vmatprep.subr.mxu0 0.0
    %6955 = vmatpush1.msra.mxu0 0.0
    %6956 = vmatprep.subr.mxu0 0.0
    %6957 = vmatpush1.msra.mxu0 0.0
    %6958 = vmatprep.subr.mxu0 0.0
    %6959 = vmatpush1.msra.mxu0 0.0
    %6960 = vmatprep.subr.mxu0 0.0
    %6961 = vmatpush1.msra.mxu0 0.0
    %6962 = vmatprep.subr.mxu0 0.0
    %6963 = vmatpush1.msra.mxu0 0.0
    %6964 = vmatprep.subr.mxu0 0.0
    %6965 = vmatpush1.msra.mxu0 0.0
    %6966 = vmatprep.subr.mxu0 0.0
    %6967 = vmatpush1.msra.mxu0 0.0
    %6968 = vmatprep.subr.mxu0 0.0
    %6969 = vmatpush1.msra.mxu0 0.0
    %6970 = vmatprep.subr.mxu0 0.0
    %6971 = vmatpush1.msra.mxu0 0.0
    %6972 = vmatprep.subr.mxu0 0.0
    %6973 = vmatpush1.msra.mxu0 0.0
    %6974 = vmatprep.subr.mxu0 0.0
    %6975 = vmatpush1.msra.mxu0 0.0
    %6976 = vmatprep.subr.mxu0 0.0
    %6977 = vmatpush1.msra.mxu0 0.0
    %6978 = vmatprep.subr.mxu0 0.0
    %6979 = vmatpush1.msra.mxu0 0.0
    %6980 = vmatprep.subr.mxu0 0.0
    %6981 = vmatpush1.msra.mxu0 0.0
    %6982 = vmatprep.subr.mxu0 0.0
    %6983 = vmatpush1.msra.mxu0 0.0
    %6984 = vmatprep.subr.mxu0 0.0
    %6985 = vmatpush1.msra.mxu0 0.0
    %6986 = vmatprep.subr.mxu0 0.0
    %6987 = vmatpush1.msra.mxu0 0.0
    %6988 = vmatprep.subr.mxu0 0.0
    %6989 = vmatpush1.msra.mxu0 0.0
    %6990 = vmatprep.subr.mxu0 0.0
    %6991 = vmatpush1.msra.mxu0 0.0
    %6992 = vmatprep.subr.mxu0 0.0
    %6993 = vmatpush1.msra.mxu0 0.0
    %6994 = vmatprep.subr.mxu0 0.0
    %6995 = vmatpush1.msra.mxu0 0.0
    %6996 = vmatprep.subr.mxu0 0.0
    %6997 = vmatpush1.msra.mxu0 0.0
    %6998 = vmatprep.subr.mxu0 0.0
    %6999 = vmatpush1.msra.mxu0 0.0
    %7000 = vmatprep.subr.mxu0 0.0
    %7001 = vmatpush1.msra.mxu0 0.0
    %7002 = vmatprep.subr.mxu0 0.0
    %7003 = vmatpush1.msra.mxu0 0.0
    %7004 = vmatprep.subr.mxu0 0.0
    %7005 = vmatpush1.msra.mxu0 0.0
    %7006 = vmatprep.subr.mxu0 0.0
    %7007 = vmatpush1.msra.mxu0 0.0
    %7008 = vmatprep.subr.mxu0 0.0
    %7009 = vmatpush1.msra.mxu0 0.0
    %7010 = vmatprep.subr.mxu0 0.0
    %7011 = vmatpush1.msra.mxu0 0.0
    %7012 = vmatprep.mubr.f32.mxu0 0.0
    %7013 = vmatmul.mubr.f32.gmra.mrb[0].mxu0 %v6847
    %v7014 = vpop.f32.mrb[0].mxu0
    %v7015 = vadd.f32 %v6943, %v7014
    %v7016 = vpop.f32.mrb[0].mxu0
    %7017 = vdwg.mxu0
    %v7018 = vsub.f32 0.0, %v7015
    %v7019 = vmul.f32 %v7018, 1.442695
    %v7020 = vpow.pop %v7019
    %v7021 = vadd.f32 %v7020, 1.0
    %v7022 = vrcp.pop %v7021
    %v7023 = vmul.f32 1.0, %v7022
    %v7024 = vld [vmem:[%s14] sm:$0xff]
    %v7025 = vld [vmem:[%s14 + $0x8] sm:$0xff]
    %v7026 = vld [vmem:[%s14 + $0x10] sm:$0xff]
    %v7027 = vld [vmem:[%s14 + $0x18] sm:$0xff]
    %v7028 = vld [vmem:[%s14 + $0x20] sm:$0xff]
    %v7029 = vld [vmem:[%s14 + $0x28] sm:$0xff]
    %v7030 = vld [vmem:[%s14 + $0x30] sm:$0xff]
    %v7031 = vld [vmem:[%s14 + $0x38] sm:$0xff]
    %v7032 = vld [vmem:[%s15] sm:$0x1]
    %v7034 = vlaneseq
    %v7035 = vshrl.u32 %v7034, 7
    %v7036 = vsub.s32 0, %v7035
    %v7037 = vrot.slane %v7032, %v7036
    %vm7039 = vcmask 523264
    %v7041 = vsel %vm7039, %v7023, 0
    %7043 = vmatprep.subr.mxu0 0.0
    %7044 = vmatpush1.msra.mxu0 %v7024
    %7045 = vmatprep.subr.mxu0 0.0
    %7046 = vmatpush1.msra.mxu0 %v7025
    %7047 = vmatprep.subr.mxu0 0.0
    %7048 = vmatpush1.msra.mxu0 %v7026
    %7049 = vmatprep.subr.mxu0 0.0
    %7050 = vmatpush1.msra.mxu0 %v7027
    %7051 = vmatprep.subr.mxu0 0.0
    %7052 = vmatpush1.msra.mxu0 %v7028
    %7053 = vmatprep.subr.mxu0 0.0
    %7054 = vmatpush1.msra.mxu0 %v7029
    %7055 = vmatprep.subr.mxu0 0.0
    %7056 = vmatpush1.msra.mxu0 %v7030
    %7057 = vmatprep.subr.mxu0 0.0
    %7058 = vmatpush1.msra.mxu0 %v7031
    %7059 = vmatprep.subr.mxu0 0.0
    %7060 = vmatpush1.msra.mxu0 0.0
    %7061 = vmatprep.subr.mxu0 0.0
    %7062 = vmatpush1.msra.mxu0 0.0
    %7063 = vmatprep.subr.mxu0 0.0
    %7064 = vmatpush1.msra.mxu0 0.0
    %7065 = vmatprep.subr.mxu0 0.0
    %7066 = vmatpush1.msra.mxu0 0.0
    %7067 = vmatprep.subr.mxu0 0.0
    %7068 = vmatpush1.msra.mxu0 0.0
    %7069 = vmatprep.subr.mxu0 0.0
    %7070 = vmatpush1.msra.mxu0 0.0
    %7071 = vmatprep.subr.mxu0 0.0
    %7072 = vmatpush1.msra.mxu0 0.0
    %7073 = vmatprep.subr.mxu0 0.0
    %7074 = vmatpush1.msra.mxu0 0.0
    %7075 = vmatprep.subr.mxu0 0.0
    %7076 = vmatpush1.msra.mxu0 0.0
    %7077 = vmatprep.subr.mxu0 0.0
    %7078 = vmatpush1.msra.mxu0 0.0
    %7079 = vmatprep.subr.mxu0 0.0
    %7080 = vmatpush1.msra.mxu0 0.0
    %7081 = vmatprep.subr.mxu0 0.0
    %7082 = vmatpush1.msra.mxu0 0.0
    %7083 = vmatprep.subr.mxu0 0.0
    %7084 = vmatpush1.msra.mxu0 0.0
    %7085 = vmatprep.subr.mxu0 0.0
    %7086 = vmatpush1.msra.mxu0 0.0
    %7087 = vmatprep.subr.mxu0 0.0
    %7088 = vmatpush1.msra.mxu0 0.0
    %7089 = vmatprep.subr.mxu0 0.0
    %7090 = vmatpush1.msra.mxu0 0.0
    %7091 = vmatprep.subr.mxu0 0.0
    %7092 = vmatpush1.msra.mxu0 0.0
    %7093 = vmatprep.subr.mxu0 0.0
    %7094 = vmatpush1.msra.mxu0 0.0
    %7095 = vmatprep.subr.mxu0 0.0
    %7096 = vmatpush1.msra.mxu0 0.0
    %7097 = vmatprep.subr.mxu0 0.0
    %7098 = vmatpush1.msra.mxu0 0.0
    %7099 = vmatprep.subr.mxu0 0.0
    %7100 = vmatpush1.msra.mxu0 0.0
    %7101 = vmatprep.subr.mxu0 0.0
    %7102 = vmatpush1.msra.mxu0 0.0
    %7103 = vmatprep.subr.mxu0 0.0
    %7104 = vmatpush1.msra.mxu0 0.0
    %7105 = vmatprep.subr.mxu0 0.0
    %7106 = vmatpush1.msra.mxu0 0.0
    %7107 = vmatprep.mubr.f32.mxu0 0.0
    %7108 = vmatmul.mubr.f32.gmra.mrb[0].mxu0 %v7041
    %v7109 = vpop.f32.mrb[0].mxu0
    %v7110 = vadd.f32 %v7037, %v7109
    %v7111 = vpop.f32.mrb[0].mxu0
    %7112 = vdwg.mxu0
    %v7113 = vsub.f32 0.0, %v7110
    %v7114 = vmul.f32 %v7113, 1.442695
    %v7115 = vpow.pop %v7114
    %v7116 = vadd.f32 %v7115, 1.0
    %v7117 = vrcp.pop %v7116
    %v7118 = vmul.f32 1.0, %v7117
    %v7119 = vmul.f32 %v7118, 0.9
    %v7120 = vadd.f32 %v7119, 0.1
    %7122 = vrot.lane.b32.xlu0 %v6919, 7
    %v7123 = vpop.permute.xlu0 %7122
    %7126 = vrot.lane.b32.xlu0 %v6934, 14
    %v7127 = vpop.permute.xlu0 %7126
    %v7129 = vsel %vm6922, %v7120, %v7123
    %vm7130 = vcmask 113664
    %v7131 = vsel %vm7130, %v7129, %v7127
    %vm7132 = vcmask 171008
    %7133 = vst.msk [vmem:[#allocation10] sm:$0xff] %vm7132, %v7131
    // Predicated region
    $region74: #{tpu_custom_call.1} parent=1 // pred_check
      _
    $region75: #{tpu_custom_call.1} parent=1 // pred_check_branch
      %7135 = sbr.rel (0) target = $region77
    $region76: #{tpu_custom_call.1} parent=1 // pred_region
      %s7137 = ssub.s32 128, 128
      %7138 = vsyncadd [#allocation7], %s7137
      %s7140 = sshll.u32 [#allocation10], 4
      %s7141 = int_to_ptr.vmem [resolvable:$true] %s7140
      %7143 = dma.vmem_to_hbm [thread:$0]  %s7141, 128, %s16, [#allocation7]
    $region77: #{tpu_custom_call.1} parent=1 // pred_fallthru
      _
    // Predicated region
    $region78: #{tpu_custom_call.1} parent=1 // pred_check
      _
    $region79: #{tpu_custom_call.1} parent=1 // pred_check_branch
      %7145 = sbr.rel (0) target = $region81
    $region80: #{tpu_custom_call.1} parent=1 // pred_region
      %7146 = dma.done [#allocation7], 128
    $region81: #{tpu_custom_call.1} parent=1 // pred_fallthru
      _
    %7147 = vsyncpa [#allocation6], 1
    %7148 = vsyncpa [#allocation9], 1
    %7149 = vsyncpa [#allocation7], 1

</llo_original>
